<compile_context>
chip_gen: v7x
topology: tpu7x:2x2x1
jax: 0.10.0
libtpu: 0.0.40
codegen_flags: <defaults>
</compile_context>

<pallas_src>
import numpy as np
import jax
import jax.numpy as jnp
from jax.experimental import pallas as pl
from jax.experimental.pallas import tpu as pltpu

NUM_CLASSES = 10
LATENT_DIM = 256


# --------------------------------------------------------------------------
# Fused forward-pass kernel (one batch tile of TB images per grid step)
# --------------------------------------------------------------------------
def _beta_cvae_kernel(
    # batch-tiled data
    xband_ref, onehot_ref, eps_ref,
    # prepacked weights (constant across the grid)
    band1_ref, bias1_ref, pm1_ref, qall_ref, band2_ref, bias2_ref,
    pm2_ref, hp2_ref, wenc_ref, wlab_ref, benc_ref,
    wdecz_ref, wdecy_ref, bdec_ref, d1_ref, bd1_ref, d2_ref, bd2_ref,
    # outputs
    out_ref, mu_ref, logvar_ref,
    # scratch
    d_ref,
):
    f32 = jnp.float32
    TB = eps_ref.shape[0]

    def mm(a, b):
        return jnp.dot(a, b, preferred_element_type=f32)

    # ---- conv1 (3x3, pad 1) + ReLU; batch folded into M (TB*28 rows) -------
    h1 = jnp.maximum(mm(xband_ref[...], band1_ref[...]) + bias1_ref[...], 0.0)  # (TB*28,256)

    # ---- avgpool1: W-pool/repack (matmul) + H-pool/H-pad/conv2 row shifts --
    pw1 = mm(h1, pm1_ref[...])                                  # (TB*28, 128)
    s_all = mm(qall_ref[...], pw1)                              # (3*TB*14, 128)

    # ---- conv2 (3x3, pad 1) + ReLU ------------------------------------------
    n2 = TB * 14
    h2 = mm(s_all[0:n2], band2_ref[0])
    h2 = h2 + mm(s_all[n2:2 * n2], band2_ref[1])
    h2 = h2 + mm(s_all[2 * n2:3 * n2], band2_ref[2])
    h2 = jnp.maximum(h2 + bias2_ref[...], 0.0)                  # (TB*14, 256)

    # ---- avgpool2 ------------------------------------------------------------
    pw2 = mm(h2, pm2_ref[...])                                  # (TB*14, 128)
    enc = mm(hp2_ref[...], pw2)                                 # (7*TB, 128), rows h*TB+b

    # ---- fc_mu || fc_logvar (fused, 512-wide) --------------------------------
    acc = benc_ref[...] + mm(onehot_ref[...], wlab_ref[...])    # (TB, 512)
    for h in range(7):                                          # aligned (TB,128) slices
        acc = acc + mm(enc[h * TB:(h + 1) * TB, :], wenc_ref[h])
    mu = acc[:, 0:256]
    logvar = acc[:, 256:512]
    mu_ref[...] = mu
    logvar_ref[...] = logvar

    # ---- reparameterize -------------------------------------------------------
    z = mu + eps_ref[...] * jnp.exp(0.5 * logvar)               # (TB, 256)

    # ---- fc_decode (decoder-ready column order baked into the weights) -------
    dec = bdec_ref[...] + mm(z, wdecz_ref[...]) + mm(onehot_ref[...], wdecy_ref[...])  # (TB,896)

    # lane -> sublane repack: 7 aligned (TB,128) full-tile stores
    for h in range(7):
        d_ref[h * TB:(h + 1) * TB, :] = dec[:, h * 128:(h + 1) * 128]

    # ---- deconv1 (2x2 stride 2; even|odd rows merged on lanes) + ReLU --------
    h3 = jnp.maximum(mm(d_ref[...], d1_ref[...]) + bd1_ref[...], 0.0)   # (7*TB, 256)

    # ---- deconv2 (2x2 stride 2; 4 image rows per input row on lanes) + sigmoid
    r = mm(h3, d2_ref[...]) + bd2_ref[...]                               # (7*TB, 128)
    out_ref[...] = 0.5 * (jnp.tanh(0.5 * r) + 1.0)                       # EUP tanh form


# --------------------------------------------------------------------------
# Parameter init (torch-layout weights, PyTorch-like uniform fan-in scaling)
# --------------------------------------------------------------------------
def _uniform(key, shape, fan_in):
    bound = 1.0 / np.sqrt(float(fan_in))
    return jax.random.uniform(key, shape, jnp.float32, -bound, bound)


def init_params(key):
    ks = jax.random.split(key, 14)
    p = {}
    p["conv1_w"] = _uniform(ks[0], (8, 1, 3, 3), 1 * 9)
    p["conv1_b"] = _uniform(ks[1], (8,), 1 * 9)
    p["conv2_w"] = _uniform(ks[2], (16, 8, 3, 3), 8 * 9)
    p["conv2_b"] = _uniform(ks[3], (16,), 8 * 9)
    fin = 16 * 7 * 7 + NUM_CLASSES
    p["fc_mu_w"] = _uniform(ks[4], (fin, LATENT_DIM), fin)
    p["fc_mu_b"] = _uniform(ks[5], (LATENT_DIM,), fin)
    p["fc_logvar_w"] = _uniform(ks[6], (fin, LATENT_DIM), fin)
    p["fc_logvar_b"] = _uniform(ks[7], (LATENT_DIM,), fin)
    din = LATENT_DIM + NUM_CLASSES
    p["fc_decode_w"] = _uniform(ks[8], (din, 16 * 7 * 7), din)
    p["fc_decode_b"] = _uniform(ks[9], (16 * 7 * 7,), din)
    p["deconv1_w"] = _uniform(ks[10], (16, 8, 2, 2), 16 * 4)
    p["deconv1_b"] = _uniform(ks[11], (8,), 16 * 4)
    p["deconv2_w"] = _uniform(ks[12], (8, 1, 2, 2), 8 * 4)
    p["deconv2_b"] = _uniform(ks[13], (1,), 8 * 4)
    return p


# --------------------------------------------------------------------------
# One-time host-side repacking into the banded / lane-packed / selection
# matrices the fused kernel consumes.  tile_b = batch tile size (sublane fold).
# --------------------------------------------------------------------------
def prepare_kernel_params(params, tile_b=8):
    TB = tile_b
    w1 = np.asarray(params["conv1_w"], np.float32)      # (8,1,3,3)
    b1 = np.asarray(params["conv1_b"], np.float32)
    w2 = np.asarray(params["conv2_w"], np.float32)      # (16,8,3,3)
    b2 = np.asarray(params["conv2_b"], np.float32)
    wmu = np.asarray(params["fc_mu_w"], np.float32)     # (794,256)
    bmu = np.asarray(params["fc_mu_b"], np.float32)
    wlv = np.asarray(params["fc_logvar_w"], np.float32)
    blv = np.asarray(params["fc_logvar_b"], np.float32)
    wd = np.asarray(params["fc_decode_w"], np.float32)  # (266,784)
    bd = np.asarray(params["fc_decode_b"], np.float32)
    wt1 = np.asarray(params["deconv1_w"], np.float32)   # (16,8,2,2)
    bt1 = np.asarray(params["deconv1_b"], np.float32)
    wt2 = np.asarray(params["deconv2_w"], np.float32)   # (8,1,2,2)
    bt2 = np.asarray(params["deconv2_b"], np.float32)

    # conv1 as ONE banded matmul over the 3 vertically-shifted input copies:
    #   h1[r, co*28+jo] = sum_{ki,j} xband[r, ki*32+j] * band1[ki*32+j, co*28+jo]
    band1 = np.zeros((96, 256), np.float32)
    for ki in range(3):
        for co in range(8):
            for kj in range(3):
                for jo in range(28):
                    band1[ki * 32 + jo + kj, co * 28 + jo] = w1[co, 0, ki, kj]
    bias1 = np.zeros((1, 256), np.float32)
    bias1[0, :224] = np.repeat(b1, 28)

    # pool1: W-pool + lane repack co*28+w -> co*16 + w//2 + 1 (conv2 W-pad baked in)
    pm1 = np.zeros((256, 128), np.float32)
    for c in range(8):
        for j in range(14):
            for dj in range(2):
                pm1[c * 28 + 2 * j + dj, c * 16 + j + 1] = 0.25

    # pool1 H-pool + conv2 vertical taps (ki=0..2) as one row-selection matmul.
    # s_all[ki*TB*14 + b*14 + h, :] = p1pad[b, h+ki, :]  (H-zero-pad baked in)
    qall = np.zeros((3 * TB * 14, TB * 28), np.float32)
    for ki in range(3):
        for b in range(TB):
            for h in range(14):
                i = h + ki - 1
                if 0 <= i <= 13:
                    for dj in range(2):
                        qall[ki * TB * 14 + b * 14 + h, b * 28 + 2 * i + dj] = 1.0

    # conv2 banded matmuls over the 128-lane packed input (ci*16 + padded_w)
    band2 = np.zeros((3, 128, 256), np.float32)
    for ki in range(3):
        for co in range(16):
            for ci in range(8):
                for kj in range(3):
                    for jo in range(14):
                        band2[ki, ci * 16 + jo + kj, co * 14 + jo] = w2[co, ci, ki, kj]
    bias2 = np.zeros((1, 256), np.float32)
    bias2[0, :224] = np.repeat(b2, 14)

    # pool2: W-pool + lane repack co*14+w -> co*7 + w//2
    pm2 = np.zeros((256, 128), np.float32)
    for c in range(16):
        for j in range(7):
            for dj in range(2):
                pm2[c * 14 + 2 * j + dj, c * 7 + j] = 0.25

    # pool2 H-pool selection; output rows h*TB + b (h-major -> aligned fc slices)
    hp2 = np.zeros((7 * TB, TB * 14), np.float32)
    for h in range(7):
        for b in range(TB):
            for dj in range(2):
                hp2[h * TB + b, b * 14 + 2 * h + dj] = 1.0

    # fc_mu || fc_logvar fused; rows reordered to (h, ci*7+w), K padded to 128
    wcat = np.concatenate([wmu, wlv], axis=1)                        # (794,512)
    we = wcat[:784].reshape(16, 7, 7, 512).transpose(1, 0, 2, 3).reshape(7, 112, 512)
    wenc = np.zeros((7, 128, 512), np.float32)
    wenc[:, :112, :] = we
    wlab = wcat[784:]                                                # (10,512)
    benc = np.concatenate([bmu, blv])[None, :]                       # (1,512)

    # fc_decode: columns reordered to (h, ci*7+w), each h-block padded to 128 lanes
    wdec_r = wd.reshape(266, 16, 7, 7).transpose(0, 2, 1, 3).reshape(266, 7, 112)
    wdec_p = np.zeros((266, 7, 128), np.float32)
    wdec_p[:, :, :112] = wdec_r
    wdec_p = wdec_p.reshape(266, 896)
    wdec_z, wdec_y = wdec_p[:256], wdec_p[256:]
    bdec_r = bd.reshape(16, 7, 7).transpose(1, 0, 2).reshape(7, 112)
    bdec_p = np.zeros((7, 128), np.float32)
    bdec_p[:, :112] = bdec_r
    bdec = bdec_p.reshape(1, 896)

    # deconv1: even|odd output rows merged on lanes (two 128-lane blocks)
    d1 = np.zeros((128, 256), np.float32)
    bd1 = np.zeros((1, 256), np.float32)
    for ki in range(2):
        for ci in range(16):
            for co in range(8):
                for kj in range(2):
                    for w in range(7):
                        d1[ci * 7 + w, ki * 128 + co * 14 + 2 * w + kj] = wt1[ci, co, ki, kj]
    for ki in range(2):
        for co in range(8):
            bd1[0, ki * 128 + co * 14: ki * 128 + co * 14 + 14] = bt1[co]

    # deconv2: block-diagonal; each h3 row emits final image rows 4h..4h+3 on
    # lanes q*28 + col (112 lanes used, padded to 128 -> lane-dense output).
    d2 = np.zeros((256, 128), np.float32)
    bd2 = np.zeros((1, 128), np.float32)
    for ki1 in range(2):                # deconv1 row parity (even/odd lane block)
        for ci in range(8):
            for c in range(14):
                for ki2 in range(2):
                    for kj2 in range(2):
                        d2[ki1 * 128 + ci * 14 + c,
                           (2 * ki1 + ki2) * 28 + 2 * c + kj2] = wt2[ci, 0, ki2, kj2]
    bd2[0, :112] = bt2[0]

    names = dict(band1=band1, bias1=bias1, pm1=pm1, qall=qall, band2=band2,
                 bias2=bias2, pm2=pm2, hp2=hp2, wenc=wenc, wlab=wlab, benc=benc,
                 wdec_z=wdec_z, wdec_y=wdec_y, bdec=bdec, d1=d1, bd1=bd1,
                 d2=d2, bd2=bd2)
    return {k: jnp.asarray(v, jnp.float32) for k, v in names.items()}


# --------------------------------------------------------------------------
# Forward pass wrapper: batch grid over tiles of TB images + XLA glue
# --------------------------------------------------------------------------
def beta_cvae_forward(kparams, x, y, eps):
    """x: (B,1,28,28) f32, y: (B,) int32, eps: (B,256) f32 -> (x_rec, mu, logvar)."""
    TB = kparams["hp2"].shape[0] // 7          # batch tile baked into the packing
    B = x.shape[0]
    nt = -(-B // TB)
    B_pad = nt * TB
    pad = B_pad - B

    # layout plumbing (XLA): pad batch, spatial pad, lane-stack the 3 vertical taps
    xf = x.astype(jnp.float32)[:, 0, :, :]                           # (B,28,28)
    xpad = jnp.pad(xf, ((0, pad), (1, 1), (1, 3)))                   # (B_pad,30,32)
    xband = jnp.concatenate([xpad[:, k:k + 28, :] for k in range(3)], axis=-1)
    xband = xband.reshape(B_pad * 28, 96)                            # (B_pad*28,96)
    onehot = jnp.pad(jax.nn.one_hot(y, NUM_CLASSES, dtype=jnp.float32),
                     ((0, pad), (0, 0)))
    epsp = jnp.pad(eps.astype(jnp.float32), ((0, pad), (0, 0)))

    dmap = lambda i: (i, 0)         # batch-tiled data / outputs
    wmap2 = lambda i: (0, 0)        # weights stay resident (constant block index)
    wmap3 = lambda i: (0, 0, 0)

    in_specs = [
        pl.BlockSpec((TB * 28, 96), dmap),            # xband
        pl.BlockSpec((TB, NUM_CLASSES), dmap),        # onehot
        pl.BlockSpec((TB, LATENT_DIM), dmap),         # eps
        pl.BlockSpec((96, 256), wmap2),               # band1
        pl.BlockSpec((1, 256), wmap2),                # bias1
        pl.BlockSpec((256, 128), wmap2),              # pm1
        pl.BlockSpec((3 * TB * 14, TB * 28), wmap2),  # qall
        pl.BlockSpec((3, 128, 256), wmap3),           # band2
        pl.BlockSpec((1, 256), wmap2),                # bias2
        pl.BlockSpec((256, 128), wmap2),              # pm2
        pl.BlockSpec((7 * TB, TB * 14), wmap2),       # hp2
        pl.BlockSpec((7, 128, 512), wmap3),           # wenc
        pl.BlockSpec((NUM_CLASSES, 512), wmap2),      # wlab
        pl.BlockSpec((1, 512), wmap2),                # benc
        pl.BlockSpec((LATENT_DIM, 896), wmap2),       # wdec_z
        pl.BlockSpec((NUM_CLASSES, 896), wmap2),      # wdec_y
        pl.BlockSpec((1, 896), wmap2),                # bdec
        pl.BlockSpec((128, 256), wmap2),              # d1
        pl.BlockSpec((1, 256), wmap2),                # bd1
        pl.BlockSpec((256, 128), wmap2),              # d2
        pl.BlockSpec((1, 128), wmap2),                # bd2
    ]
    out_specs = (
        pl.BlockSpec((7 * TB, 128), dmap),
        pl.BlockSpec((TB, LATENT_DIM), dmap),
        pl.BlockSpec((TB, LATENT_DIM), dmap),
    )
    out_shape = (
        jax.ShapeDtypeStruct((B_pad * 7, 128), jnp.float32),   # lane-dense recon slab
        jax.ShapeDtypeStruct((B_pad, LATENT_DIM), jnp.float32),
        jax.ShapeDtypeStruct((B_pad, LATENT_DIM), jnp.float32),
    )

    macs_tile = (TB * 28 * 96 * 256 + TB * 28 * 256 * 128
                 + 3 * TB * 14 * TB * 28 * 128 + 3 * TB * 14 * 128 * 256
                 + TB * 14 * 256 * 128 + 7 * TB * TB * 14 * 128
                 + TB * NUM_CLASSES * 512 + 7 * TB * 128 * 512
                 + TB * 256 * 896 + TB * NUM_CLASSES * 896
                 + 7 * TB * 128 * 256 + 7 * TB * 256 * 128)
    w_bytes = int(sum(int(np.prod(v.shape)) for v in kparams.values()) * 4)
    data_bytes = int((xband.size + onehot.size + epsp.size
                      + B_pad * 7 * 128 + 2 * B_pad * LATENT_DIM) * 4)
    cost = pl.CostEstimate(flops=int(2 * macs_tile * nt),
                           transcendentals=int(nt * TB * (LATENT_DIM + 7 * 128)),
                           bytes_accessed=w_bytes + data_bytes)

    out, mu, logvar = pl.pallas_call(
        _beta_cvae_kernel,
        out_shape=out_shape,
        grid_spec=pltpu.PrefetchScalarGridSpec(
            num_scalar_prefetch=0,
            grid=(nt,),
            in_specs=in_specs,
            out_specs=out_specs,
            scratch_shapes=[pltpu.VMEM((7 * TB, 128), jnp.float32)],  # decoder input
        ),
        compiler_params=pltpu.CompilerParams(
            dimension_semantics=("parallel",),
            vmem_limit_bytes=32 * 1024 * 1024,
        ),
        cost_estimate=cost,
    )(xband, onehot, epsp,
      kparams["band1"], kparams["bias1"], kparams["pm1"], kparams["qall"],
      kparams["band2"], kparams["bias2"], kparams["pm2"], kparams["hp2"],
      kparams["wenc"], kparams["wlab"], kparams["benc"],
      kparams["wdec_z"], kparams["wdec_y"], kparams["bdec"],
      kparams["d1"], kparams["bd1"], kparams["d2"], kparams["bd2"])

    # kernel row (tile t, h, b), lane q*28+col  <->  image row 4*h + q
    rec = out.reshape(nt, 7, TB, 128)[..., :112].reshape(nt, 7, TB, 4, 28)
    rec = jnp.transpose(rec, (0, 2, 1, 3, 4)).reshape(B_pad, 28, 28)[:B]
    return rec[:, None, :, :], mu[:B], logvar[:B]


# --------------------------------------------------------------------------
# Pure-JAX reference (matches the PyTorch module) for a correctness check
# --------------------------------------------------------------------------
def reference_forward(params, x, y, eps):
    B = x.shape[0]
    hp = jax.lax.Precision.HIGHEST
    h = jax.lax.conv_general_dilated(
        x, params["conv1_w"], (1, 1), ((1, 1), (1, 1)),
        dimension_numbers=("NCHW", "OIHW", "NCHW"), precision=hp)
    h = jax.nn.relu(h + params["conv1_b"][None, :, None, None])
    h = h.reshape(B, 8, 14, 2, 14, 2).mean(axis=(3, 5))
    h = jax.lax.conv_general_dilated(
        h, params["conv2_w"], (1, 1), ((1, 1), (1, 1)),
        dimension_numbers=("NCHW", "OIHW", "NCHW"), precision=hp)
    h = jax.nn.relu(h + params["conv2_b"][None, :, None, None])
    h = h.reshape(B, 16, 7, 2, 7, 2).mean(axis=(3, 5))
    flat = h.reshape(B, 16 * 7 * 7)
    y1 = jax.nn.one_hot(y, NUM_CLASSES, dtype=jnp.float32)
    enc_in = jnp.concatenate([flat, y1], axis=1)
    mu = jnp.dot(enc_in, params["fc_mu_w"], precision=hp) + params["fc_mu_b"]
    logvar = jnp.dot(enc_in, params["fc_logvar_w"], precision=hp) + params["fc_logvar_b"]
    z = mu + eps * jnp.exp(0.5 * logvar)
    dec_in = jnp.concatenate([z, y1], axis=1)
    d = jnp.dot(dec_in, params["fc_decode_w"], precision=hp) + params["fc_decode_b"]
    d = d.reshape(B, 16, 7, 7)

    def deconv2x2(xin, w, b):
        Bi, Ci, H, W = xin.shape
        Co = w.shape[1]
        out = jnp.zeros((Bi, Co, 2 * H, 2 * W), jnp.float32)
        for ki in range(2):
            for kj in range(2):
                c = jnp.einsum("bihw,io->bohw", xin, w[:, :, ki, kj], precision=hp)
                out = out.at[:, :, ki::2, kj::2].add(c)
        return out + b[None, :, None, None]

    d = jax.nn.relu(deconv2x2(d, params["deconv1_w"], params["deconv1_b"]))
    d = jax.nn.sigmoid(deconv2x2(d, params["deconv2_w"], params["deconv2_b"]))
    return d, mu, logvar


if __name__ == "__main__":
    key = jax.random.PRNGKey(0)
    k_param, k_x, k_eps = jax.random.split(key, 3)

    params = init_params(k_param)
    kparams = prepare_kernel_params(params, tile_b=8)

    # MNIST-like input implied by the 16*7*7 flatten: (B,1,28,28)
    x = jax.random.uniform(k_x, (2, 1, 28, 28), jnp.float32)
    y = jnp.array([3, 7], dtype=jnp.int32)
    eps = jax.random.normal(k_eps, (2, LATENT_DIM), jnp.float32)

    fwd = jax.jit(beta_cvae_forward)
    x_rec, mu, logvar = fwd(kparams, x, y, eps)
    jax.block_until_ready((x_rec, mu, logvar))

    assert x_rec.shape == (2, 1, 28, 28)
    assert mu.shape == (2, LATENT_DIM) and logvar.shape == (2, LATENT_DIM)
    assert bool(jnp.all(jnp.isfinite(x_rec)))

    # correctness vs. a pure-JAX/XLA reference of the PyTorch module
    xr_r, mu_r, lv_r = jax.jit(reference_forward)(params, x, y, eps)
    err = max(float(jnp.max(jnp.abs(x_rec - xr_r))),
              float(jnp.max(jnp.abs(mu - mu_r))),
              float(jnp.max(jnp.abs(logvar - lv_r))))
    assert err < 3e-3, f"kernel/reference mismatch: {err}"

    print("KERNEL_OK")
</pallas_src>

<mosaic_0001>
module attributes {stable_mosaic.version = 11 : i64} {
  func.func @_beta_cvae_kernel(%arg0: i32, %arg1: memref<224x96xf32, #tpu.memory_space<vmem>>, %arg2: memref<8x10xf32, #tpu.memory_space<vmem>>, %arg3: memref<8x256xf32, #tpu.memory_space<vmem>>, %arg4: memref<96x256xf32, #tpu.memory_space<vmem>>, %arg5: memref<1x256xf32, #tpu.memory_space<vmem>>, %arg6: memref<256x128xf32, #tpu.memory_space<vmem>>, %arg7: memref<336x224xf32, #tpu.memory_space<vmem>>, %arg8: memref<3x128x256xf32, #tpu.memory_space<vmem>>, %arg9: memref<1x256xf32, #tpu.memory_space<vmem>>, %arg10: memref<256x128xf32, #tpu.memory_space<vmem>>, %arg11: memref<56x112xf32, #tpu.memory_space<vmem>>, %arg12: memref<7x128x512xf32, #tpu.memory_space<vmem>>, %arg13: memref<10x512xf32, #tpu.memory_space<vmem>>, %arg14: memref<1x512xf32, #tpu.memory_space<vmem>>, %arg15: memref<256x896xf32, #tpu.memory_space<vmem>>, %arg16: memref<10x896xf32, #tpu.memory_space<vmem>>, %arg17: memref<1x896xf32, #tpu.memory_space<vmem>>, %arg18: memref<128x256xf32, #tpu.memory_space<vmem>>, %arg19: memref<1x256xf32, #tpu.memory_space<vmem>>, %arg20: memref<256x128xf32, #tpu.memory_space<vmem>>, %arg21: memref<1x128xf32, #tpu.memory_space<vmem>>, %arg22: memref<56x128xf32, #tpu.memory_space<vmem>>, %arg23: memref<8x256xf32, #tpu.memory_space<vmem>>, %arg24: memref<8x256xf32, #tpu.memory_space<vmem>>, %arg25: memref<56x128xf32, #tpu.memory_space<vmem>>) attributes {dimension_semantics = [#tpu.dimension_semantics<parallel>], iteration_bounds = array<i64: 1>, scalar_prefetch = 0 : i64, scratch_operands = 1 : i64, tpu.core_type = #tpu.core_type<tc>, window_params = [{transform_indices = @transform_0, window_bounds = array<i64: 224, 96>}, {transform_indices = @transform_1, window_bounds = array<i64: 8, 10>}, {transform_indices = @transform_2, window_bounds = array<i64: 8, 256>}, {pipeline_mode = #tpu.pipeline_mode<synchronous>, transform_indices = @transform_3, window_bounds = array<i64: 96, 256>}, {pipeline_mode = #tpu.pipeline_mode<synchronous>, transform_indices = @transform_4, window_bounds = array<i64: 1, 256>}, {pipeline_mode = #tpu.pipeline_mode<synchronous>, transform_indices = @transform_5, window_bounds = array<i64: 256, 128>}, {pipeline_mode = #tpu.pipeline_mode<synchronous>, transform_indices = @transform_6, window_bounds = array<i64: 336, 224>}, {pipeline_mode = #tpu.pipeline_mode<synchronous>, transform_indices = @transform_7, window_bounds = array<i64: 3, 128, 256>}, {pipeline_mode = #tpu.pipeline_mode<synchronous>, transform_indices = @transform_8, window_bounds = array<i64: 1, 256>}, {pipeline_mode = #tpu.pipeline_mode<synchronous>, transform_indices = @transform_9, window_bounds = array<i64: 256, 128>}, {pipeline_mode = #tpu.pipeline_mode<synchronous>, transform_indices = @transform_10, window_bounds = array<i64: 56, 112>}, {pipeline_mode = #tpu.pipeline_mode<synchronous>, transform_indices = @transform_11, window_bounds = array<i64: 7, 128, 512>}, {pipeline_mode = #tpu.pipeline_mode<synchronous>, transform_indices = @transform_12, window_bounds = array<i64: 10, 512>}, {pipeline_mode = #tpu.pipeline_mode<synchronous>, transform_indices = @transform_13, window_bounds = array<i64: 1, 512>}, {pipeline_mode = #tpu.pipeline_mode<synchronous>, transform_indices = @transform_14, window_bounds = array<i64: 256, 896>}, {pipeline_mode = #tpu.pipeline_mode<synchronous>, transform_indices = @transform_15, window_bounds = array<i64: 10, 896>}, {pipeline_mode = #tpu.pipeline_mode<synchronous>, transform_indices = @transform_16, window_bounds = array<i64: 1, 896>}, {pipeline_mode = #tpu.pipeline_mode<synchronous>, transform_indices = @transform_17, window_bounds = array<i64: 128, 256>}, {pipeline_mode = #tpu.pipeline_mode<synchronous>, transform_indices = @transform_18, window_bounds = array<i64: 1, 256>}, {pipeline_mode = #tpu.pipeline_mode<synchronous>, transform_indices = @transform_19, window_bounds = array<i64: 256, 128>}, {pipeline_mode = #tpu.pipeline_mode<synchronous>, transform_indices = @transform_20, window_bounds = array<i64: 1, 128>}, {transform_indices = @transform_21, window_bounds = array<i64: 56, 128>}, {transform_indices = @transform_22, window_bounds = array<i64: 8, 256>}, {transform_indices = @transform_23, window_bounds = array<i64: 8, 256>}]} {
    %c0 = arith.constant 0 : index
    %c0_0 = arith.constant 0 : index
    %0 = vector.load %arg1[%c0, %c0_0] : memref<224x96xf32, #tpu.memory_space<vmem>>, vector<224x96xf32>
    %c0_1 = arith.constant 0 : index
    %c0_2 = arith.constant 0 : index
    %1 = vector.load %arg4[%c0_1, %c0_2] : memref<96x256xf32, #tpu.memory_space<vmem>>, vector<96x256xf32>
    %cst = arith.constant dense<0.000000e+00> : vector<224x256xf32>
    %2 = tpu.matmul %0, %1, %cst {dimension_numbers = #tpu.dot_dimension_numbers<[1], [0], [0], [1], [0, 0, 1, 1], [], []>} : vector<224x96xf32>, vector<96x256xf32>, vector<224x256xf32> -> vector<224x256xf32>
    %c0_3 = arith.constant 0 : index
    %c0_4 = arith.constant 0 : index
    %3 = vector.load %arg5[%c0_3, %c0_4] : memref<1x256xf32, #tpu.memory_space<vmem>>, vector<1x256xf32>
    %4 = vector.broadcast %3 : vector<1x256xf32> to vector<224x256xf32>
    %5 = arith.addf %2, %4 : vector<224x256xf32>
    %cst_5 = arith.constant 0.000000e+00 : f32
    %6 = vector.broadcast %cst_5 : f32 to vector<224x256xf32>
    %7 = arith.maximumf %5, %6 : vector<224x256xf32>
    %c0_6 = arith.constant 0 : index
    %c0_7 = arith.constant 0 : index
    %8 = vector.load %arg6[%c0_6, %c0_7] : memref<256x128xf32, #tpu.memory_space<vmem>>, vector<256x128xf32>
    %cst_8 = arith.constant dense<0.000000e+00> : vector<224x128xf32>
    %9 = tpu.matmul %7, %8, %cst_8 {dimension_numbers = #tpu.dot_dimension_numbers<[1], [0], [0], [1], [0, 0, 1, 1], [], []>} : vector<224x256xf32>, vector<256x128xf32>, vector<224x128xf32> -> vector<224x128xf32>
    %c0_9 = arith.constant 0 : index
    %c0_10 = arith.constant 0 : index
    %10 = vector.load %arg7[%c0_9, %c0_10] : memref<336x224xf32, #tpu.memory_space<vmem>>, vector<336x224xf32>
    %cst_11 = arith.constant dense<0.000000e+00> : vector<336x128xf32>
    %11 = tpu.matmul %10, %9, %cst_11 {dimension_numbers = #tpu.dot_dimension_numbers<[1], [0], [0], [1], [0, 0, 1, 1], [], []>} : vector<336x224xf32>, vector<224x128xf32>, vector<336x128xf32> -> vector<336x128xf32>
    %12 = vector.extract_strided_slice %11 {offsets = [0, 0], sizes = [112, 128], strides = [1, 1]} : vector<336x128xf32> to vector<112x128xf32>
    %c0_12 = arith.constant 0 : index
    %c0_13 = arith.constant 0 : index
    %c0_14 = arith.constant 0 : index
    %13 = vector.load %arg8[%c0_12, %c0_13, %c0_14] : memref<3x128x256xf32, #tpu.memory_space<vmem>>, vector<1x128x256xf32>
    %14 = vector.shape_cast %13 : vector<1x128x256xf32> to vector<128x256xf32>
    %cst_15 = arith.constant dense<0.000000e+00> : vector<112x256xf32>
    %15 = tpu.matmul %12, %14, %cst_15 {dimension_numbers = #tpu.dot_dimension_numbers<[1], [0], [0], [1], [0, 0, 1, 1], [], []>} : vector<112x128xf32>, vector<128x256xf32>, vector<112x256xf32> -> vector<112x256xf32>
    %16 = vector.extract_strided_slice %11 {offsets = [112, 0], sizes = [112, 128], strides = [1, 1]} : vector<336x128xf32> to vector<112x128xf32>
    %c1 = arith.constant 1 : index
    %c0_16 = arith.constant 0 : index
    %c0_17 = arith.constant 0 : index
    %17 = vector.load %arg8[%c1, %c0_16, %c0_17] : memref<3x128x256xf32, #tpu.memory_space<vmem>>, vector<1x128x256xf32>
    %18 = vector.shape_cast %17 : vector<1x128x256xf32> to vector<128x256xf32>
    %cst_18 = arith.constant dense<0.000000e+00> : vector<112x256xf32>
    %19 = tpu.matmul %16, %18, %cst_18 {dimension_numbers = #tpu.dot_dimension_numbers<[1], [0], [0], [1], [0, 0, 1, 1], [], []>} : vector<112x128xf32>, vector<128x256xf32>, vector<112x256xf32> -> vector<112x256xf32>
    %20 = arith.addf %15, %19 : vector<112x256xf32>
    %21 = vector.extract_strided_slice %11 {offsets = [224, 0], sizes = [112, 128], strides = [1, 1]} : vector<336x128xf32> to vector<112x128xf32>
    %c2 = arith.constant 2 : index
    %c0_19 = arith.constant 0 : index
    %c0_20 = arith.constant 0 : index
    %22 = vector.load %arg8[%c2, %c0_19, %c0_20] : memref<3x128x256xf32, #tpu.memory_space<vmem>>, vector<1x128x256xf32>
    %23 = vector.shape_cast %22 : vector<1x128x256xf32> to vector<128x256xf32>
    %cst_21 = arith.constant dense<0.000000e+00> : vector<112x256xf32>
    %24 = tpu.matmul %21, %23, %cst_21 {dimension_numbers = #tpu.dot_dimension_numbers<[1], [0], [0], [1], [0, 0, 1, 1], [], []>} : vector<112x128xf32>, vector<128x256xf32>, vector<112x256xf32> -> vector<112x256xf32>
    %25 = arith.addf %20, %24 : vector<112x256xf32>
    %c0_22 = arith.constant 0 : index
    %c0_23 = arith.constant 0 : index
    %26 = vector.load %arg9[%c0_22, %c0_23] : memref<1x256xf32, #tpu.memory_space<vmem>>, vector<1x256xf32>
    %27 = vector.broadcast %26 : vector<1x256xf32> to vector<112x256xf32>
    %28 = arith.addf %25, %27 : vector<112x256xf32>
    %cst_24 = arith.constant 0.000000e+00 : f32
    %29 = vector.broadcast %cst_24 : f32 to vector<112x256xf32>
    %30 = arith.maximumf %28, %29 : vector<112x256xf32>
    %c0_25 = arith.constant 0 : index
    %c0_26 = arith.constant 0 : index
    %31 = vector.load %arg10[%c0_25, %c0_26] : memref<256x128xf32, #tpu.memory_space<vmem>>, vector<256x128xf32>
    %cst_27 = arith.constant dense<0.000000e+00> : vector<112x128xf32>
    %32 = tpu.matmul %30, %31, %cst_27 {dimension_numbers = #tpu.dot_dimension_numbers<[1], [0], [0], [1], [0, 0, 1, 1], [], []>} : vector<112x256xf32>, vector<256x128xf32>, vector<112x128xf32> -> vector<112x128xf32>
    %c0_28 = arith.constant 0 : index
    %c0_29 = arith.constant 0 : index
    %33 = vector.load %arg11[%c0_28, %c0_29] : memref<56x112xf32, #tpu.memory_space<vmem>>, vector<56x112xf32>
    %cst_30 = arith.constant dense<0.000000e+00> : vector<56x128xf32>
    %34 = tpu.matmul %33, %32, %cst_30 {dimension_numbers = #tpu.dot_dimension_numbers<[1], [0], [0], [1], [0, 0, 1, 1], [], []>} : vector<56x112xf32>, vector<112x128xf32>, vector<56x128xf32> -> vector<56x128xf32>
    %c0_31 = arith.constant 0 : index
    %c0_32 = arith.constant 0 : index
    %35 = vector.load %arg14[%c0_31, %c0_32] : memref<1x512xf32, #tpu.memory_space<vmem>>, vector<1x512xf32>
    %c0_33 = arith.constant 0 : index
    %c0_34 = arith.constant 0 : index
    %36 = vector.load %arg2[%c0_33, %c0_34] : memref<8x10xf32, #tpu.memory_space<vmem>>, vector<8x10xf32>
    %c0_35 = arith.constant 0 : index
    %c0_36 = arith.constant 0 : index
    %37 = vector.load %arg13[%c0_35, %c0_36] : memref<10x512xf32, #tpu.memory_space<vmem>>, vector<10x512xf32>
    %cst_37 = arith.constant dense<0.000000e+00> : vector<8x512xf32>
    %38 = tpu.matmul %36, %37, %cst_37 {dimension_numbers = #tpu.dot_dimension_numbers<[1], [0], [0], [1], [0, 0, 1, 1], [], []>} : vector<8x10xf32>, vector<10x512xf32>, vector<8x512xf32> -> vector<8x512xf32>
    %39 = vector.broadcast %35 : vector<1x512xf32> to vector<8x512xf32>
    %40 = arith.addf %39, %38 : vector<8x512xf32>
    %41 = vector.extract_strided_slice %34 {offsets = [0, 0], sizes = [8, 128], strides = [1, 1]} : vector<56x128xf32> to vector<8x128xf32>
    %c0_38 = arith.constant 0 : index
    %c0_39 = arith.constant 0 : index
    %c0_40 = arith.constant 0 : index
    %42 = vector.load %arg12[%c0_38, %c0_39, %c0_40] : memref<7x128x512xf32, #tpu.memory_space<vmem>>, vector<1x128x512xf32>
    %43 = vector.shape_cast %42 : vector<1x128x512xf32> to vector<128x512xf32>
    %cst_41 = arith.constant dense<0.000000e+00> : vector<8x512xf32>
    %44 = tpu.matmul %41, %43, %cst_41 {dimension_numbers = #tpu.dot_dimension_numbers<[1], [0], [0], [1], [0, 0, 1, 1], [], []>} : vector<8x128xf32>, vector<128x512xf32>, vector<8x512xf32> -> vector<8x512xf32>
    %45 = arith.addf %40, %44 : vector<8x512xf32>
    %46 = vector.extract_strided_slice %34 {offsets = [8, 0], sizes = [8, 128], strides = [1, 1]} : vector<56x128xf32> to vector<8x128xf32>
    %c1_42 = arith.constant 1 : index
    %c0_43 = arith.constant 0 : index
    %c0_44 = arith.constant 0 : index
    %47 = vector.load %arg12[%c1_42, %c0_43, %c0_44] : memref<7x128x512xf32, #tpu.memory_space<vmem>>, vector<1x128x512xf32>
    %48 = vector.shape_cast %47 : vector<1x128x512xf32> to vector<128x512xf32>
    %cst_45 = arith.constant dense<0.000000e+00> : vector<8x512xf32>
    %49 = tpu.matmul %46, %48, %cst_45 {dimension_numbers = #tpu.dot_dimension_numbers<[1], [0], [0], [1], [0, 0, 1, 1], [], []>} : vector<8x128xf32>, vector<128x512xf32>, vector<8x512xf32> -> vector<8x512xf32>
    %50 = arith.addf %45, %49 : vector<8x512xf32>
    %51 = vector.extract_strided_slice %34 {offsets = [16, 0], sizes = [8, 128], strides = [1, 1]} : vector<56x128xf32> to vector<8x128xf32>
    %c2_46 = arith.constant 2 : index
    %c0_47 = arith.constant 0 : index
    %c0_48 = arith.constant 0 : index
    %52 = vector.load %arg12[%c2_46, %c0_47, %c0_48] : memref<7x128x512xf32, #tpu.memory_space<vmem>>, vector<1x128x512xf32>
    %53 = vector.shape_cast %52 : vector<1x128x512xf32> to vector<128x512xf32>
    %cst_49 = arith.constant dense<0.000000e+00> : vector<8x512xf32>
    %54 = tpu.matmul %51, %53, %cst_49 {dimension_numbers = #tpu.dot_dimension_numbers<[1], [0], [0], [1], [0, 0, 1, 1], [], []>} : vector<8x128xf32>, vector<128x512xf32>, vector<8x512xf32> -> vector<8x512xf32>
    %55 = arith.addf %50, %54 : vector<8x512xf32>
    %56 = vector.extract_strided_slice %34 {offsets = [24, 0], sizes = [8, 128], strides = [1, 1]} : vector<56x128xf32> to vector<8x128xf32>
    %c3 = arith.constant 3 : index
    %c0_50 = arith.constant 0 : index
    %c0_51 = arith.constant 0 : index
    %57 = vector.load %arg12[%c3, %c0_50, %c0_51] : memref<7x128x512xf32, #tpu.memory_space<vmem>>, vector<1x128x512xf32>
    %58 = vector.shape_cast %57 : vector<1x128x512xf32> to vector<128x512xf32>
    %cst_52 = arith.constant dense<0.000000e+00> : vector<8x512xf32>
    %59 = tpu.matmul %56, %58, %cst_52 {dimension_numbers = #tpu.dot_dimension_numbers<[1], [0], [0], [1], [0, 0, 1, 1], [], []>} : vector<8x128xf32>, vector<128x512xf32>, vector<8x512xf32> -> vector<8x512xf32>
    %60 = arith.addf %55, %59 : vector<8x512xf32>
    %61 = vector.extract_strided_slice %34 {offsets = [32, 0], sizes = [8, 128], strides = [1, 1]} : vector<56x128xf32> to vector<8x128xf32>
    %c4 = arith.constant 4 : index
    %c0_53 = arith.constant 0 : index
    %c0_54 = arith.constant 0 : index
    %62 = vector.load %arg12[%c4, %c0_53, %c0_54] : memref<7x128x512xf32, #tpu.memory_space<vmem>>, vector<1x128x512xf32>
    %63 = vector.shape_cast %62 : vector<1x128x512xf32> to vector<128x512xf32>
    %cst_55 = arith.constant dense<0.000000e+00> : vector<8x512xf32>
    %64 = tpu.matmul %61, %63, %cst_55 {dimension_numbers = #tpu.dot_dimension_numbers<[1], [0], [0], [1], [0, 0, 1, 1], [], []>} : vector<8x128xf32>, vector<128x512xf32>, vector<8x512xf32> -> vector<8x512xf32>
    %65 = arith.addf %60, %64 : vector<8x512xf32>
    %66 = vector.extract_strided_slice %34 {offsets = [40, 0], sizes = [8, 128], strides = [1, 1]} : vector<56x128xf32> to vector<8x128xf32>
    %c5 = arith.constant 5 : index
    %c0_56 = arith.constant 0 : index
    %c0_57 = arith.constant 0 : index
    %67 = vector.load %arg12[%c5, %c0_56, %c0_57] : memref<7x128x512xf32, #tpu.memory_space<vmem>>, vector<1x128x512xf32>
    %68 = vector.shape_cast %67 : vector<1x128x512xf32> to vector<128x512xf32>
    %cst_58 = arith.constant dense<0.000000e+00> : vector<8x512xf32>
    %69 = tpu.matmul %66, %68, %cst_58 {dimension_numbers = #tpu.dot_dimension_numbers<[1], [0], [0], [1], [0, 0, 1, 1], [], []>} : vector<8x128xf32>, vector<128x512xf32>, vector<8x512xf32> -> vector<8x512xf32>
    %70 = arith.addf %65, %69 : vector<8x512xf32>
    %71 = vector.extract_strided_slice %34 {offsets = [48, 0], sizes = [8, 128], strides = [1, 1]} : vector<56x128xf32> to vector<8x128xf32>
    %c6 = arith.constant 6 : index
    %c0_59 = arith.constant 0 : index
    %c0_60 = arith.constant 0 : index
    %72 = vector.load %arg12[%c6, %c0_59, %c0_60] : memref<7x128x512xf32, #tpu.memory_space<vmem>>, vector<1x128x512xf32>
    %73 = vector.shape_cast %72 : vector<1x128x512xf32> to vector<128x512xf32>
    %cst_61 = arith.constant dense<0.000000e+00> : vector<8x512xf32>
    %74 = tpu.matmul %71, %73, %cst_61 {dimension_numbers = #tpu.dot_dimension_numbers<[1], [0], [0], [1], [0, 0, 1, 1], [], []>} : vector<8x128xf32>, vector<128x512xf32>, vector<8x512xf32> -> vector<8x512xf32>
    %75 = arith.addf %70, %74 : vector<8x512xf32>
    %76 = vector.extract_strided_slice %75 {offsets = [0, 0], sizes = [8, 256], strides = [1, 1]} : vector<8x512xf32> to vector<8x256xf32>
    %77 = vector.extract_strided_slice %75 {offsets = [0, 256], sizes = [8, 256], strides = [1, 1]} : vector<8x512xf32> to vector<8x256xf32>
    %c0_62 = arith.constant 0 : index
    %c0_63 = arith.constant 0 : index
    %78 = vector.load %arg23[%c0_62, %c0_63] : memref<8x256xf32, #tpu.memory_space<vmem>>, vector<8x256xf32>
    tpu.vector_store %arg23[%c0_62, %c0_63], %76 {strides = array<i32>} : memref<8x256xf32, #tpu.memory_space<vmem>>, vector<8x256xf32>,
    %c0_64 = arith.constant 0 : index
    %c0_65 = arith.constant 0 : index
    %79 = vector.load %arg24[%c0_64, %c0_65] : memref<8x256xf32, #tpu.memory_space<vmem>>, vector<8x256xf32>
    tpu.vector_store %arg24[%c0_64, %c0_65], %77 {strides = array<i32>} : memref<8x256xf32, #tpu.memory_space<vmem>>, vector<8x256xf32>,
    %c0_66 = arith.constant 0 : index
    %c0_67 = arith.constant 0 : index
    %80 = vector.load %arg3[%c0_66, %c0_67] : memref<8x256xf32, #tpu.memory_space<vmem>>, vector<8x256xf32>
    %cst_68 = arith.constant 5.000000e-01 : f32
    %81 = vector.broadcast %cst_68 : f32 to vector<8x256xf32>
    %82 = arith.mulf %81, %77 : vector<8x256xf32>
    %83 = math.exp %82 : vector<8x256xf32>
    %84 = arith.mulf %80, %83 : vector<8x256xf32>
    %85 = arith.addf %76, %84 : vector<8x256xf32>
    %c0_69 = arith.constant 0 : index
    %c0_70 = arith.constant 0 : index
    %86 = vector.load %arg17[%c0_69, %c0_70] : memref<1x896xf32, #tpu.memory_space<vmem>>, vector<1x896xf32>
    %c0_71 = arith.constant 0 : index
    %c0_72 = arith.constant 0 : index
    %87 = vector.load %arg15[%c0_71, %c0_72] : memref<256x896xf32, #tpu.memory_space<vmem>>, vector<256x896xf32>
    %cst_73 = arith.constant dense<0.000000e+00> : vector<8x896xf32>
    %88 = tpu.matmul %85, %87, %cst_73 {dimension_numbers = #tpu.dot_dimension_numbers<[1], [0], [0], [1], [0, 0, 1, 1], [], []>} : vector<8x256xf32>, vector<256x896xf32>, vector<8x896xf32> -> vector<8x896xf32>
    %89 = vector.broadcast %86 : vector<1x896xf32> to vector<8x896xf32>
    %90 = arith.addf %89, %88 : vector<8x896xf32>
    %c0_74 = arith.constant 0 : index
    %c0_75 = arith.constant 0 : index
    %91 = vector.load %arg2[%c0_74, %c0_75] : memref<8x10xf32, #tpu.memory_space<vmem>>, vector<8x10xf32>
    %c0_76 = arith.constant 0 : index
    %c0_77 = arith.constant 0 : index
    %92 = vector.load %arg16[%c0_76, %c0_77] : memref<10x896xf32, #tpu.memory_space<vmem>>, vector<10x896xf32>
    %cst_78 = arith.constant dense<0.000000e+00> : vector<8x896xf32>
    %93 = tpu.matmul %91, %92, %cst_78 {dimension_numbers = #tpu.dot_dimension_numbers<[1], [0], [0], [1], [0, 0, 1, 1], [], []>} : vector<8x10xf32>, vector<10x896xf32>, vector<8x896xf32> -> vector<8x896xf32>
    %94 = arith.addf %90, %93 : vector<8x896xf32>
    %95 = vector.extract_strided_slice %94 {offsets = [0, 0], sizes = [8, 128], strides = [1, 1]} : vector<8x896xf32> to vector<8x128xf32>
    %c0_79 = arith.constant 0 : index
    %c0_80 = arith.constant 0 : index
    %96 = vector.load %arg25[%c0_79, %c0_80] : memref<56x128xf32, #tpu.memory_space<vmem>>, vector<8x128xf32>
    tpu.vector_store %arg25[%c0_79, %c0_80], %95 {strides = array<i32>} : memref<56x128xf32, #tpu.memory_space<vmem>>, vector<8x128xf32>,
    %97 = vector.extract_strided_slice %94 {offsets = [0, 128], sizes = [8, 128], strides = [1, 1]} : vector<8x896xf32> to vector<8x128xf32>
    %c8 = arith.constant 8 : index
    %c0_81 = arith.constant 0 : index
    %98 = vector.load %arg25[%c8, %c0_81] : memref<56x128xf32, #tpu.memory_space<vmem>>, vector<8x128xf32>
    tpu.vector_store %arg25[%c8, %c0_81], %97 {strides = array<i32>} : memref<56x128xf32, #tpu.memory_space<vmem>>, vector<8x128xf32>,
    %99 = vector.extract_strided_slice %94 {offsets = [0, 256], sizes = [8, 128], strides = [1, 1]} : vector<8x896xf32> to vector<8x128xf32>
    %c16 = arith.constant 16 : index
    %c0_82 = arith.constant 0 : index
    %100 = vector.load %arg25[%c16, %c0_82] : memref<56x128xf32, #tpu.memory_space<vmem>>, vector<8x128xf32>
    tpu.vector_store %arg25[%c16, %c0_82], %99 {strides = array<i32>} : memref<56x128xf32, #tpu.memory_space<vmem>>, vector<8x128xf32>,
    %101 = vector.extract_strided_slice %94 {offsets = [0, 384], sizes = [8, 128], strides = [1, 1]} : vector<8x896xf32> to vector<8x128xf32>
    %c24 = arith.constant 24 : index
    %c0_83 = arith.constant 0 : index
    %102 = vector.load %arg25[%c24, %c0_83] : memref<56x128xf32, #tpu.memory_space<vmem>>, vector<8x128xf32>
    tpu.vector_store %arg25[%c24, %c0_83], %101 {strides = array<i32>} : memref<56x128xf32, #tpu.memory_space<vmem>>, vector<8x128xf32>,
    %103 = vector.extract_strided_slice %94 {offsets = [0, 512], sizes = [8, 128], strides = [1, 1]} : vector<8x896xf32> to vector<8x128xf32>
    %c32 = arith.constant 32 : index
    %c0_84 = arith.constant 0 : index
    %104 = vector.load %arg25[%c32, %c0_84] : memref<56x128xf32, #tpu.memory_space<vmem>>, vector<8x128xf32>
    tpu.vector_store %arg25[%c32, %c0_84], %103 {strides = array<i32>} : memref<56x128xf32, #tpu.memory_space<vmem>>, vector<8x128xf32>,
    %105 = vector.extract_strided_slice %94 {offsets = [0, 640], sizes = [8, 128], strides = [1, 1]} : vector<8x896xf32> to vector<8x128xf32>
    %c40 = arith.constant 40 : index
    %c0_85 = arith.constant 0 : index
    %106 = vector.load %arg25[%c40, %c0_85] : memref<56x128xf32, #tpu.memory_space<vmem>>, vector<8x128xf32>
    tpu.vector_store %arg25[%c40, %c0_85], %105 {strides = array<i32>} : memref<56x128xf32, #tpu.memory_space<vmem>>, vector<8x128xf32>,
    %107 = vector.extract_strided_slice %94 {offsets = [0, 768], sizes = [8, 128], strides = [1, 1]} : vector<8x896xf32> to vector<8x128xf32>
    %c48 = arith.constant 48 : index
    %c0_86 = arith.constant 0 : index
    %108 = vector.load %arg25[%c48, %c0_86] : memref<56x128xf32, #tpu.memory_space<vmem>>, vector<8x128xf32>
    tpu.vector_store %arg25[%c48, %c0_86], %107 {strides = array<i32>} : memref<56x128xf32, #tpu.memory_space<vmem>>, vector<8x128xf32>,
    %c0_87 = arith.constant 0 : index
    %c0_88 = arith.constant 0 : index
    %109 = vector.load %arg25[%c0_87, %c0_88] : memref<56x128xf32, #tpu.memory_space<vmem>>, vector<56x128xf32>
    %c0_89 = arith.constant 0 : index
    %c0_90 = arith.constant 0 : index
    %110 = vector.load %arg18[%c0_89, %c0_90] : memref<128x256xf32, #tpu.memory_space<vmem>>, vector<128x256xf32>
    %cst_91 = arith.constant dense<0.000000e+00> : vector<56x256xf32>
    %111 = tpu.matmul %109, %110, %cst_91 {dimension_numbers = #tpu.dot_dimension_numbers<[1], [0], [0], [1], [0, 0, 1, 1], [], []>} : vector<56x128xf32>, vector<128x256xf32>, vector<56x256xf32> -> vector<56x256xf32>
    %c0_92 = arith.constant 0 : index
    %c0_93 = arith.constant 0 : index
    %112 = vector.load %arg19[%c0_92, %c0_93] : memref<1x256xf32, #tpu.memory_space<vmem>>, vector<1x256xf32>
    %113 = vector.broadcast %112 : vector<1x256xf32> to vector<56x256xf32>
    %114 = arith.addf %111, %113 : vector<56x256xf32>
    %cst_94 = arith.constant 0.000000e+00 : f32
    %115 = vector.broadcast %cst_94 : f32 to vector<56x256xf32>
    %116 = arith.maximumf %114, %115 : vector<56x256xf32>
    %c0_95 = arith.constant 0 : index
    %c0_96 = arith.constant 0 : index
    %117 = vector.load %arg20[%c0_95, %c0_96] : memref<256x128xf32, #tpu.memory_space<vmem>>, vector<256x128xf32>
    %cst_97 = arith.constant dense<0.000000e+00> : vector<56x128xf32>
    %118 = tpu.matmul %116, %117, %cst_97 {dimension_numbers = #tpu.dot_dimension_numbers<[1], [0], [0], [1], [0, 0, 1, 1], [], []>} : vector<56x256xf32>, vector<256x128xf32>, vector<56x128xf32> -> vector<56x128xf32>
    %c0_98 = arith.constant 0 : index
    %c0_99 = arith.constant 0 : index
    %119 = vector.load %arg21[%c0_98, %c0_99] : memref<1x128xf32, #tpu.memory_space<vmem>>, vector<1x128xf32>
    %120 = vector.broadcast %119 : vector<1x128xf32> to vector<56x128xf32>
    %121 = arith.addf %118, %120 : vector<56x128xf32>
    %cst_100 = arith.constant 5.000000e-01 : f32
    %122 = vector.broadcast %cst_100 : f32 to vector<56x128xf32>
    %123 = arith.mulf %122, %121 : vector<56x128xf32>
    %124 = math.tanh %123 : vector<56x128xf32>
    %cst_101 = arith.constant 1.000000e+00 : f32
    %125 = vector.broadcast %cst_101 : f32 to vector<56x128xf32>
    %126 = arith.addf %124, %125 : vector<56x128xf32>
    %cst_102 = arith.constant 5.000000e-01 : f32
    %127 = vector.broadcast %cst_102 : f32 to vector<56x128xf32>
    %128 = arith.mulf %127, %126 : vector<56x128xf32>
    %c0_103 = arith.constant 0 : index
    %c0_104 = arith.constant 0 : index
    %129 = vector.load %arg22[%c0_103, %c0_104] : memref<56x128xf32, #tpu.memory_space<vmem>>, vector<56x128xf32>
    tpu.vector_store %arg22[%c0_103, %c0_104], %128 {strides = array<i32>} : memref<56x128xf32, #tpu.memory_space<vmem>>, vector<56x128xf32>,
    return
  }
  func.func @transform_0(%arg0: i32) -> (i32, i32) {
    %c0_i32 = arith.constant 0 : i32
    %c0_i32_0 = arith.constant 0 : i32
    return %arg0, %c0_i32 : i32, i32
  }
  func.func @transform_1(%arg0: i32) -> (i32, i32) {
    %c0_i32 = arith.constant 0 : i32
    %c0_i32_0 = arith.constant 0 : i32
    return %arg0, %c0_i32 : i32, i32
  }
  func.func @transform_2(%arg0: i32) -> (i32, i32) {
    %c0_i32 = arith.constant 0 : i32
    %c0_i32_0 = arith.constant 0 : i32
    return %arg0, %c0_i32 : i32, i32
  }
  func.func @transform_3(%arg0: i32) -> (i32, i32) {
    %c0_i32 = arith.constant 0 : i32
    %c0_i32_0 = arith.constant 0 : i32
    %c0_i32_1 = arith.constant 0 : i32
    return %c0_i32, %c0_i32_0 : i32, i32
  }
  func.func @transform_4(%arg0: i32) -> (i32, i32) {
    %c0_i32 = arith.constant 0 : i32
    %c0_i32_0 = arith.constant 0 : i32
    %c0_i32_1 = arith.constant 0 : i32
    return %c0_i32, %c0_i32_0 : i32, i32
  }
  func.func @transform_5(%arg0: i32) -> (i32, i32) {
    %c0_i32 = arith.constant 0 : i32
    %c0_i32_0 = arith.constant 0 : i32
    %c0_i32_1 = arith.constant 0 : i32
    return %c0_i32, %c0_i32_0 : i32, i32
  }
  func.func @transform_6(%arg0: i32) -> (i32, i32) {
    %c0_i32 = arith.constant 0 : i32
    %c0_i32_0 = arith.constant 0 : i32
    %c0_i32_1 = arith.constant 0 : i32
    return %c0_i32, %c0_i32_0 : i32, i32
  }
  func.func @transform_7(%arg0: i32) -> (i32, i32, i32) {
    %c0_i32 = arith.constant 0 : i32
    %c0_i32_0 = arith.constant 0 : i32
    %c0_i32_1 = arith.constant 0 : i32
    %c0_i32_2 = arith.constant 0 : i32
    return %c0_i32, %c0_i32_0, %c0_i32_1 : i32, i32, i32
  }
  func.func @transform_8(%arg0: i32) -> (i32, i32) {
    %c0_i32 = arith.constant 0 : i32
    %c0_i32_0 = arith.constant 0 : i32
    %c0_i32_1 = arith.constant 0 : i32
    return %c0_i32, %c0_i32_0 : i32, i32
  }
  func.func @transform_9(%arg0: i32) -> (i32, i32) {
    %c0_i32 = arith.constant 0 : i32
    %c0_i32_0 = arith.constant 0 : i32
    %c0_i32_1 = arith.constant 0 : i32
    return %c0_i32, %c0_i32_0 : i32, i32
  }
  func.func @transform_10(%arg0: i32) -> (i32, i32) {
    %c0_i32 = arith.constant 0 : i32
    %c0_i32_0 = arith.constant 0 : i32
    %c0_i32_1 = arith.constant 0 : i32
    return %c0_i32, %c0_i32_0 : i32, i32
  }
  func.func @transform_11(%arg0: i32) -> (i32, i32, i32) {
    %c0_i32 = arith.constant 0 : i32
    %c0_i32_0 = arith.constant 0 : i32
    %c0_i32_1 = arith.constant 0 : i32
    %c0_i32_2 = arith.constant 0 : i32
    return %c0_i32, %c0_i32_0, %c0_i32_1 : i32, i32, i32
  }
  func.func @transform_12(%arg0: i32) -> (i32, i32) {
    %c0_i32 = arith.constant 0 : i32
    %c0_i32_0 = arith.constant 0 : i32
    %c0_i32_1 = arith.constant 0 : i32
    return %c0_i32, %c0_i32_0 : i32, i32
  }
  func.func @transform_13(%arg0: i32) -> (i32, i32) {
    %c0_i32 = arith.constant 0 : i32
    %c0_i32_0 = arith.constant 0 : i32
    %c0_i32_1 = arith.constant 0 : i32
    return %c0_i32, %c0_i32_0 : i32, i32
  }
  func.func @transform_14(%arg0: i32) -> (i32, i32) {
    %c0_i32 = arith.constant 0 : i32
    %c0_i32_0 = arith.constant 0 : i32
    %c0_i32_1 = arith.constant 0 : i32
    return %c0_i32, %c0_i32_0 : i32, i32
  }
  func.func @transform_15(%arg0: i32) -> (i32, i32) {
    %c0_i32 = arith.constant 0 : i32
    %c0_i32_0 = arith.constant 0 : i32
    %c0_i32_1 = arith.constant 0 : i32
    return %c0_i32, %c0_i32_0 : i32, i32
  }
  func.func @transform_16(%arg0: i32) -> (i32, i32) {
    %c0_i32 = arith.constant 0 : i32
    %c0_i32_0 = arith.constant 0 : i32
    %c0_i32_1 = arith.constant 0 : i32
    return %c0_i32, %c0_i32_0 : i32, i32
  }
  func.func @transform_17(%arg0: i32) -> (i32, i32) {
    %c0_i32 = arith.constant 0 : i32
    %c0_i32_0 = arith.constant 0 : i32
    %c0_i32_1 = arith.constant 0 : i32
    return %c0_i32, %c0_i32_0 : i32, i32
  }
  func.func @transform_18(%arg0: i32) -> (i32, i32) {
    %c0_i32 = arith.constant 0 : i32
    %c0_i32_0 = arith.constant 0 : i32
    %c0_i32_1 = arith.constant 0 : i32
    return %c0_i32, %c0_i32_0 : i32, i32
  }
  func.func @transform_19(%arg0: i32) -> (i32, i32) {
    %c0_i32 = arith.constant 0 : i32
    %c0_i32_0 = arith.constant 0 : i32
    %c0_i32_1 = arith.constant 0 : i32
    return %c0_i32, %c0_i32_0 : i32, i32
  }
  func.func @transform_20(%arg0: i32) -> (i32, i32) {
    %c0_i32 = arith.constant 0 : i32
    %c0_i32_0 = arith.constant 0 : i32
    %c0_i32_1 = arith.constant 0 : i32
    return %c0_i32, %c0_i32_0 : i32, i32
  }
  func.func @transform_21(%arg0: i32) -> (i32, i32) {
    %c0_i32 = arith.constant 0 : i32
    %c0_i32_0 = arith.constant 0 : i32
    return %arg0, %c0_i32 : i32, i32
  }
  func.func @transform_22(%arg0: i32) -> (i32, i32) {
    %c0_i32 = arith.constant 0 : i32
    %c0_i32_0 = arith.constant 0 : i32
    return %arg0, %c0_i32 : i32, i32
  }
  func.func @transform_23(%arg0: i32) -> (i32, i32) {
    %c0_i32 = arith.constant 0 : i32
    %c0_i32_0 = arith.constant 0 : i32
    return %arg0, %c0_i32 : i32, i32
  }
}

</mosaic_0001>

<llo_original>
// kernel: beta_cvae_forward.1
$region0: #{beta_cvae_forward.1}
  #allocation0 [shape = 'u32[]', space=smem, size = 0x4, offset = 0x4, fixed_abs, tag = 'smem constant byte address 0x4 - core index']
  #allocation1 [shape = 'u32[144,128]{1,0:T(1,128)}', space=vmem, size = 0x12000, scoped, tag = 'internal scratch']
  #allocation2 [shape = 'f32[56,128]{1,0:T(8,128)}', space=vmem, size = 0x7000, scoped, tag = 'scratch operand']
  %s0 = inlined_call_operand.vmem [shape: f32[224,96], index: 0, kind: input, shape index: {}]
  %s1 = inlined_call_operand.vmem [shape: f32[8,10], index: 1, kind: input, shape index: {}]
  %s2 = inlined_call_operand.vmem [shape: f32[8,256], index: 2, kind: input, shape index: {}]
  %s3 = inlined_call_operand.hbm [shape: f32[96,256], index: 3, kind: input, shape index: {}]
  %s4 = inlined_call_operand.hbm [shape: f32[1,256], index: 4, kind: input, shape index: {}]
  %s5 = inlined_call_operand.hbm [shape: f32[256,128], index: 5, kind: input, shape index: {}]
  %s6 = inlined_call_operand.hbm [shape: f32[336,224], index: 6, kind: input, shape index: {}]
  %s7 = inlined_call_operand.hbm [shape: f32[3,128,256], index: 7, kind: input, shape index: {}]
  %s8 = inlined_call_operand.hbm [shape: f32[1,256], index: 8, kind: input, shape index: {}]
  %s9 = inlined_call_operand.hbm [shape: f32[256,128], index: 9, kind: input, shape index: {}]
  %s10 = inlined_call_operand.hbm [shape: f32[56,112], index: 10, kind: input, shape index: {}]
  %s11 = inlined_call_operand.hbm [shape: f32[7,128,512], index: 11, kind: input, shape index: {}]
  %s12 = inlined_call_operand.hbm [shape: f32[10,512], index: 12, kind: input, shape index: {}]
  %s13 = inlined_call_operand.hbm [shape: f32[1,512], index: 13, kind: input, shape index: {}]
  %s14 = inlined_call_operand.vmem [shape: f32[256,896], index: 14, kind: input, shape index: {}]
  %s15 = inlined_call_operand.hbm [shape: f32[10,896], index: 15, kind: input, shape index: {}]
  %s16 = inlined_call_operand.hbm [shape: f32[1,896], index: 16, kind: input, shape index: {}]
  %s17 = inlined_call_operand.hbm [shape: f32[128,256], index: 17, kind: input, shape index: {}]
  %s18 = inlined_call_operand.hbm [shape: f32[1,256], index: 18, kind: input, shape index: {}]
  %s19 = inlined_call_operand.hbm [shape: f32[256,128], index: 19, kind: input, shape index: {}]
  %s20 = inlined_call_operand.hbm [shape: f32[1,128], index: 20, kind: input, shape index: {}]
  %s21 = inlined_call_operand.vmem [shape: f32[56,128], index: 21, kind: output, shape index: {0}]
  %s22 = inlined_call_operand.vmem [shape: f32[8,256], index: 22, kind: output, shape index: {1}]
  %s23 = inlined_call_operand.vmem [shape: f32[8,256], index: 23, kind: output, shape index: {2}]
  %24 = xla_tuple %s21, %s22, %s23
  %s25 = sld [smem:[#allocation0]]
  $region178: #{beta_cvae_forward.1} parent=0
    _
  %s27 = ssub.s32 1, %s25
  %s28 = scalar_select 0, %s27, %s25
  $region1: #{beta_cvae_forward.1} parent=0
    #allocation3 [shape = 'u8[98304]{0}', space=vmem, size = 0x18000, scoped, tag = 'input window, operand 3, single buffered']
    #allocation4 [shape = 's32[1]{0}', space=sflag, size = 0x4, scoped, tag = 'scoped memory for beta_cvae_forward.1']
    #allocation5 [shape = 'u8[1024]{0}', space=vmem, size = 0x400, scoped, tag = 'input window, operand 4, single buffered']
    #allocation6 [shape = 's32[1]{0}', space=sflag, size = 0x4, scoped, tag = 'scoped memory for beta_cvae_forward.1']
    #allocation7 [shape = 'u8[131072]{0}', space=vmem, size = 0x20000, scoped, tag = 'input window, operand 5, single buffered']
    #allocation8 [shape = 'u8[344064]{0}', space=vmem, size = 0x54000, scoped, tag = 'input window, operand 6, single buffered']
    #allocation9 [shape = 's32[1]{0}', space=sflag, size = 0x4, scoped, tag = 'scoped memory for beta_cvae_forward.1']
    #allocation10 [shape = 'u8[393216]{0}', space=vmem, size = 0x60000, scoped, tag = 'input window, operand 7, single buffered']
    #allocation11 [shape = 'u8[1024]{0}', space=vmem, size = 0x400, scoped, tag = 'input window, operand 8, single buffered']
    #allocation12 [shape = 's32[1]{0}', space=sflag, size = 0x4, scoped, tag = 'scoped memory for beta_cvae_forward.1']
    #allocation13 [shape = 'u8[131072]{0}', space=vmem, size = 0x20000, scoped, tag = 'input window, operand 9, single buffered']
    #allocation14 [shape = 'u8[28672]{0}', space=vmem, size = 0x7000, scoped, tag = 'input window, operand 10, single buffered']
    #allocation15 [shape = 's32[1]{0}', space=sflag, size = 0x4, scoped, tag = 'scoped memory for beta_cvae_forward.1']
    #allocation16 [shape = 'u8[1835008]{0}', space=vmem, size = 0x1c0000, scoped, tag = 'input window, operand 11, single buffered']
    #allocation17 [shape = 'u8[32768]{0}', space=vmem, size = 0x8000, scoped, tag = 'input window, operand 12, single buffered']
    #allocation18 [shape = 's32[1]{0}', space=sflag, size = 0x4, scoped, tag = 'scoped memory for beta_cvae_forward.1']
    #allocation19 [shape = 'u8[2048]{0}', space=vmem, size = 0x800, scoped, tag = 'input window, operand 13, single buffered']
    #allocation20 [shape = 'u8[57344]{0}', space=vmem, size = 0xe000, scoped, tag = 'input window, operand 15, single buffered']
    #allocation21 [shape = 's32[1]{0}', space=sflag, size = 0x4, scoped, tag = 'scoped memory for beta_cvae_forward.1']
    #allocation22 [shape = 'u8[3584]{0}', space=vmem, size = 0x1000, scoped, tag = 'input window, operand 16, single buffered']
    #allocation23 [shape = 'u8[131072]{0}', space=vmem, size = 0x20000, scoped, tag = 'input window, operand 17, single buffered']
    #allocation24 [shape = 's32[1]{0}', space=sflag, size = 0x4, scoped, tag = 'scoped memory for beta_cvae_forward.1']
    #allocation25 [shape = 'u8[1024]{0}', space=vmem, size = 0x400, scoped, tag = 'input window, operand 18, single buffered']
    #allocation26 [shape = 'u8[131072]{0}', space=vmem, size = 0x20000, scoped, tag = 'input window, operand 19, single buffered']
    #allocation27 [shape = 's32[1]{0}', space=sflag, size = 0x4, scoped, tag = 'scoped memory for beta_cvae_forward.1']
    #allocation28 [shape = 'u8[512]{0}', space=vmem, size = 0x400, scoped, tag = 'input window, operand 20, single buffered']
    %29 = vsyncpa [#allocation4], 0
    %30 = vsyncpa [#allocation6], 0
    %31 = vsyncpa [#allocation9], 0
    %32 = vsyncpa [#allocation12], 0
    %33 = vsyncpa [#allocation15], 0
    %34 = vsyncpa [#allocation18], 0
    %35 = vsyncpa [#allocation21], 0
    %36 = vsyncpa [#allocation24], 0
    %37 = vsyncpa [#allocation27], 0
    // Predicated region
    $region2: #{beta_cvae_forward.1} parent=1 // pred_check
      _
    $region3: #{beta_cvae_forward.1} parent=1 // pred_check_branch
      %39 = sbr.rel (0) target = $region5
    $region4: #{beta_cvae_forward.1} parent=1 // pred_region
      _
    $region5: #{beta_cvae_forward.1} parent=1 // pred_fallthru
      _
    // Predicated region
    $region6: #{beta_cvae_forward.1} parent=1 // pred_check
      _
    $region7: #{beta_cvae_forward.1} parent=1 // pred_check_branch
      %41 = sbr.rel (0) target = $region9
    $region8: #{beta_cvae_forward.1} parent=1 // pred_region
      _
    $region9: #{beta_cvae_forward.1} parent=1 // pred_fallthru
      _
    // Predicated region
    $region10: #{beta_cvae_forward.1} parent=1 // pred_check
      _
    $region11: #{beta_cvae_forward.1} parent=1 // pred_check_branch
      %43 = sbr.rel (0) target = $region13
    $region12: #{beta_cvae_forward.1} parent=1 // pred_region
      _
    $region13: #{beta_cvae_forward.1} parent=1 // pred_fallthru
      _
    // Predicated region
    $region14: #{beta_cvae_forward.1} parent=1 // pred_check
      _
    $region15: #{beta_cvae_forward.1} parent=1 // pred_check_branch
      %45 = sbr.rel (0) target = $region17
    $region16: #{beta_cvae_forward.1} parent=1 // pred_region
      %s47 = ssub.s32 3072, 3072
      %48 = vsyncadd [#allocation4], %s47
      %s49 = sshll.u32 [#allocation3], 4
      %s50 = int_to_ptr.vmem [resolvable:$true] %s49
      %55 = dma.hbm_to_vmem [thread:$0]  %s3, 3072, %s50, [#allocation4], 256, 256, 16
    $region17: #{beta_cvae_forward.1} parent=1 // pred_fallthru
      _
    // Predicated region
    $region18: #{beta_cvae_forward.1} parent=1 // pred_check
      _
    $region19: #{beta_cvae_forward.1} parent=1 // pred_check_branch
      %57 = sbr.rel (0) target = $region21
    $region20: #{beta_cvae_forward.1} parent=1 // pred_region
      %s59 = ssub.s32 32, 32
      %60 = vsyncadd [#allocation6], %s59
      %s62 = sshll.u32 [#allocation5], 4
      %s63 = int_to_ptr.vmem [resolvable:$true] %s62
      %65 = dma.hbm_to_vmem [thread:$0]  %s4, 32, %s63, [#allocation6]
    $region21: #{beta_cvae_forward.1} parent=1 // pred_fallthru
      _
    // Predicated region
    $region22: #{beta_cvae_forward.1} parent=1 // pred_check
      _
    $region23: #{beta_cvae_forward.1} parent=1 // pred_check_branch
      %67 = sbr.rel (0) target = $region25
    $region24: #{beta_cvae_forward.1} parent=1 // pred_region
      %s69 = ssub.s32 4096, 4096
      %70 = vsyncadd [#allocation6], %s69
      %s71 = sshll.u32 [#allocation7], 4
      %s72 = int_to_ptr.vmem [resolvable:$true] %s71
      %77 = dma.hbm_to_vmem [thread:$0]  %s5, 4096, %s72, [#allocation6], 128, 128, 8
    $region25: #{beta_cvae_forward.1} parent=1 // pred_fallthru
      _
    // Predicated region
    $region26: #{beta_cvae_forward.1} parent=1 // pred_check
      _
    $region27: #{beta_cvae_forward.1} parent=1 // pred_check_branch
      %79 = sbr.rel (0) target = $region29
    $region28: #{beta_cvae_forward.1} parent=1 // pred_region
      %s81 = ssub.s32 10752, 10752
      %82 = vsyncadd [#allocation9], %s81
      %s83 = sshll.u32 [#allocation8], 4
      %s84 = int_to_ptr.vmem [resolvable:$true] %s83
      %89 = dma.hbm_to_vmem [thread:$0]  %s6, 10752, %s84, [#allocation9], 256, 256, 16
    $region29: #{beta_cvae_forward.1} parent=1 // pred_fallthru
      _
    // Predicated region
    $region30: #{beta_cvae_forward.1} parent=1 // pred_check
      _
    $region31: #{beta_cvae_forward.1} parent=1 // pred_check_branch
      %91 = sbr.rel (0) target = $region33
    $region32: #{beta_cvae_forward.1} parent=1 // pred_region
      %s93 = ssub.s32 12288, 12288
      %94 = vsyncadd [#allocation9], %s93
      %s95 = sshll.u32 [#allocation10], 4
      %s96 = int_to_ptr.vmem [resolvable:$true] %s95
      %101 = dma.hbm_to_vmem [thread:$0]  %s7, 12288, %s96, [#allocation9], 256, 256, 16
    $region33: #{beta_cvae_forward.1} parent=1 // pred_fallthru
      _
    // Predicated region
    $region34: #{beta_cvae_forward.1} parent=1 // pred_check
      _
    $region35: #{beta_cvae_forward.1} parent=1 // pred_check_branch
      %103 = sbr.rel (0) target = $region37
    $region36: #{beta_cvae_forward.1} parent=1 // pred_region
      %s105 = ssub.s32 32, 32
      %106 = vsyncadd [#allocation12], %s105
      %s108 = sshll.u32 [#allocation11], 4
      %s109 = int_to_ptr.vmem [resolvable:$true] %s108
      %111 = dma.hbm_to_vmem [thread:$0]  %s8, 32, %s109, [#allocation12]
    $region37: #{beta_cvae_forward.1} parent=1 // pred_fallthru
      _
    // Predicated region
    $region38: #{beta_cvae_forward.1} parent=1 // pred_check
      _
    $region39: #{beta_cvae_forward.1} parent=1 // pred_check_branch
      %113 = sbr.rel (0) target = $region41
    $region40: #{beta_cvae_forward.1} parent=1 // pred_region
      %s115 = ssub.s32 4096, 4096
      %116 = vsyncadd [#allocation12], %s115
      %s117 = sshll.u32 [#allocation13], 4
      %s118 = int_to_ptr.vmem [resolvable:$true] %s117
      %123 = dma.hbm_to_vmem [thread:$0]  %s9, 4096, %s118, [#allocation12], 128, 128, 8
    $region41: #{beta_cvae_forward.1} parent=1 // pred_fallthru
      _
    // Predicated region
    $region42: #{beta_cvae_forward.1} parent=1 // pred_check
      _
    $region43: #{beta_cvae_forward.1} parent=1 // pred_check_branch
      %125 = sbr.rel (0) target = $region45
    $region44: #{beta_cvae_forward.1} parent=1 // pred_region
      %s127 = ssub.s32 896, 896
      %128 = vsyncadd [#allocation15], %s127
      %s129 = sshll.u32 [#allocation14], 4
      %s130 = int_to_ptr.vmem [resolvable:$true] %s129
      %135 = dma.hbm_to_vmem [thread:$0]  %s10, 896, %s130, [#allocation15], 128, 128, 8
    $region45: #{beta_cvae_forward.1} parent=1 // pred_fallthru
      _
    // Predicated region
    $region46: #{beta_cvae_forward.1} parent=1 // pred_check
      _
    $region47: #{beta_cvae_forward.1} parent=1 // pred_check_branch
      %137 = sbr.rel (0) target = $region49
    $region48: #{beta_cvae_forward.1} parent=1 // pred_region
      %s139 = ssub.s32 57344, 57344
      %140 = vsyncadd [#allocation15], %s139
      %s141 = sshll.u32 [#allocation16], 4
      %s142 = int_to_ptr.vmem [resolvable:$true] %s141
      %147 = dma.hbm_to_vmem [thread:$0]  %s11, 57344, %s142, [#allocation15], 512, 512, 32
    $region49: #{beta_cvae_forward.1} parent=1 // pred_fallthru
      _
    // Predicated region
    $region50: #{beta_cvae_forward.1} parent=1 // pred_check
      _
    $region51: #{beta_cvae_forward.1} parent=1 // pred_check_branch
      %149 = sbr.rel (0) target = $region53
    $region52: #{beta_cvae_forward.1} parent=1 // pred_region
      %s151 = ssub.s32 1024, 1024
      %152 = vsyncadd [#allocation18], %s151
      %s153 = sshll.u32 [#allocation17], 4
      %s154 = int_to_ptr.vmem [resolvable:$true] %s153
      %159 = dma.hbm_to_vmem [thread:$0]  %s12, 1024, %s154, [#allocation18], 512, 512, 32
    $region53: #{beta_cvae_forward.1} parent=1 // pred_fallthru
      _
    // Predicated region
    $region54: #{beta_cvae_forward.1} parent=1 // pred_check
      _
    $region55: #{beta_cvae_forward.1} parent=1 // pred_check_branch
      %161 = sbr.rel (0) target = $region57
    $region56: #{beta_cvae_forward.1} parent=1 // pred_region
      %s163 = ssub.s32 64, 64
      %164 = vsyncadd [#allocation18], %s163
      %s166 = sshll.u32 [#allocation19], 4
      %s167 = int_to_ptr.vmem [resolvable:$true] %s166
      %169 = dma.hbm_to_vmem [thread:$0]  %s13, 64, %s167, [#allocation18]
    $region57: #{beta_cvae_forward.1} parent=1 // pred_fallthru
      _
    // Predicated region
    $region58: #{beta_cvae_forward.1} parent=1 // pred_check
      _
    $region59: #{beta_cvae_forward.1} parent=1 // pred_check_branch
      %171 = sbr.rel (0) target = $region61
    $region60: #{beta_cvae_forward.1} parent=1 // pred_region
      _
    $region61: #{beta_cvae_forward.1} parent=1 // pred_fallthru
      _
    // Predicated region
    $region62: #{beta_cvae_forward.1} parent=1 // pred_check
      _
    $region63: #{beta_cvae_forward.1} parent=1 // pred_check_branch
      %173 = sbr.rel (0) target = $region65
    $region64: #{beta_cvae_forward.1} parent=1 // pred_region
      %s175 = ssub.s32 1792, 1792
      %176 = vsyncadd [#allocation21], %s175
      %s177 = sshll.u32 [#allocation20], 4
      %s178 = int_to_ptr.vmem [resolvable:$true] %s177
      %183 = dma.hbm_to_vmem [thread:$0]  %s15, 1792, %s178, [#allocation21], 896, 896, 56
    $region65: #{beta_cvae_forward.1} parent=1 // pred_fallthru
      _
    // Predicated region
    $region66: #{beta_cvae_forward.1} parent=1 // pred_check
      _
    $region67: #{beta_cvae_forward.1} parent=1 // pred_check_branch
      %185 = sbr.rel (0) target = $region69
    $region68: #{beta_cvae_forward.1} parent=1 // pred_region
      %s187 = ssub.s32 112, 112
      %188 = vsyncadd [#allocation21], %s187
      %s190 = sshll.u32 [#allocation22], 4
      %s191 = int_to_ptr.vmem [resolvable:$true] %s190
      %193 = dma.hbm_to_vmem [thread:$0]  %s16, 112, %s191, [#allocation21]
    $region69: #{beta_cvae_forward.1} parent=1 // pred_fallthru
      _
    // Predicated region
    $region70: #{beta_cvae_forward.1} parent=1 // pred_check
      _
    $region71: #{beta_cvae_forward.1} parent=1 // pred_check_branch
      %195 = sbr.rel (0) target = $region73
    $region72: #{beta_cvae_forward.1} parent=1 // pred_region
      %s197 = ssub.s32 4096, 4096
      %198 = vsyncadd [#allocation24], %s197
      %s199 = sshll.u32 [#allocation23], 4
      %s200 = int_to_ptr.vmem [resolvable:$true] %s199
      %205 = dma.hbm_to_vmem [thread:$0]  %s17, 4096, %s200, [#allocation24], 256, 256, 16
    $region73: #{beta_cvae_forward.1} parent=1 // pred_fallthru
      _
    // Predicated region
    $region74: #{beta_cvae_forward.1} parent=1 // pred_check
      _
    $region75: #{beta_cvae_forward.1} parent=1 // pred_check_branch
      %207 = sbr.rel (0) target = $region77
    $region76: #{beta_cvae_forward.1} parent=1 // pred_region
      %s209 = ssub.s32 32, 32
      %210 = vsyncadd [#allocation24], %s209
      %s212 = sshll.u32 [#allocation25], 4
      %s213 = int_to_ptr.vmem [resolvable:$true] %s212
      %215 = dma.hbm_to_vmem [thread:$0]  %s18, 32, %s213, [#allocation24]
    $region77: #{beta_cvae_forward.1} parent=1 // pred_fallthru
      _
    // Predicated region
    $region78: #{beta_cvae_forward.1} parent=1 // pred_check
      _
    $region79: #{beta_cvae_forward.1} parent=1 // pred_check_branch
      %217 = sbr.rel (0) target = $region81
    $region80: #{beta_cvae_forward.1} parent=1 // pred_region
      %s219 = ssub.s32 4096, 4096
      %220 = vsyncadd [#allocation27], %s219
      %s221 = sshll.u32 [#allocation26], 4
      %s222 = int_to_ptr.vmem [resolvable:$true] %s221
      %227 = dma.hbm_to_vmem [thread:$0]  %s19, 4096, %s222, [#allocation27], 128, 128, 8
    $region81: #{beta_cvae_forward.1} parent=1 // pred_fallthru
      _
    // Predicated region
    $region82: #{beta_cvae_forward.1} parent=1 // pred_check
      _
    $region83: #{beta_cvae_forward.1} parent=1 // pred_check_branch
      %229 = sbr.rel (0) target = $region85
    $region84: #{beta_cvae_forward.1} parent=1 // pred_region
      %s231 = ssub.s32 16, 16
      %232 = vsyncadd [#allocation27], %s231
      %s234 = sshll.u32 [#allocation28], 4
      %s235 = int_to_ptr.vmem [resolvable:$true] %s234
      %237 = dma.hbm_to_vmem [thread:$0]  %s20, 16, %s235, [#allocation27]
    $region85: #{beta_cvae_forward.1} parent=1 // pred_fallthru
      _
    // Predicated region
    $region86: #{beta_cvae_forward.1} parent=1 // pred_check
      _
    $region87: #{beta_cvae_forward.1} parent=1 // pred_check_branch
      %239 = sbr.rel (0) target = $region89
    $region88: #{beta_cvae_forward.1} parent=1 // pred_region
      %240 = dma.done [#allocation4], 3072
    $region89: #{beta_cvae_forward.1} parent=1 // pred_fallthru
      _
    // Predicated region
    $region90: #{beta_cvae_forward.1} parent=1 // pred_check
      _
    $region91: #{beta_cvae_forward.1} parent=1 // pred_check_branch
      %242 = sbr.rel (0) target = $region93
    $region92: #{beta_cvae_forward.1} parent=1 // pred_region
      %243 = dma.done [#allocation6], 32
    $region93: #{beta_cvae_forward.1} parent=1 // pred_fallthru
      _
    // Predicated region
    $region94: #{beta_cvae_forward.1} parent=1 // pred_check
      _
    $region95: #{beta_cvae_forward.1} parent=1 // pred_check_branch
      %245 = sbr.rel (0) target = $region97
    $region96: #{beta_cvae_forward.1} parent=1 // pred_region
      %246 = dma.done [#allocation6], 4096
    $region97: #{beta_cvae_forward.1} parent=1 // pred_fallthru
      _
    // Predicated region
    $region98: #{beta_cvae_forward.1} parent=1 // pred_check
      _
    $region99: #{beta_cvae_forward.1} parent=1 // pred_check_branch
      %248 = sbr.rel (0) target = $region101
    $region100: #{beta_cvae_forward.1} parent=1 // pred_region
      %249 = dma.done [#allocation9], 10752
    $region101: #{beta_cvae_forward.1} parent=1 // pred_fallthru
      _
    // Predicated region
    $region102: #{beta_cvae_forward.1} parent=1 // pred_check
      _
    $region103: #{beta_cvae_forward.1} parent=1 // pred_check_branch
      %251 = sbr.rel (0) target = $region105
    $region104: #{beta_cvae_forward.1} parent=1 // pred_region
      %252 = dma.done [#allocation9], 12288
    $region105: #{beta_cvae_forward.1} parent=1 // pred_fallthru
      _
    // Predicated region
    $region106: #{beta_cvae_forward.1} parent=1 // pred_check
      _
    $region107: #{beta_cvae_forward.1} parent=1 // pred_check_branch
      %254 = sbr.rel (0) target = $region109
    $region108: #{beta_cvae_forward.1} parent=1 // pred_region
      %255 = dma.done [#allocation12], 32
    $region109: #{beta_cvae_forward.1} parent=1 // pred_fallthru
      _
    // Predicated region
    $region110: #{beta_cvae_forward.1} parent=1 // pred_check
      _
    $region111: #{beta_cvae_forward.1} parent=1 // pred_check_branch
      %257 = sbr.rel (0) target = $region113
    $region112: #{beta_cvae_forward.1} parent=1 // pred_region
      %258 = dma.done [#allocation12], 4096
    $region113: #{beta_cvae_forward.1} parent=1 // pred_fallthru
      _
    // Predicated region
    $region114: #{beta_cvae_forward.1} parent=1 // pred_check
      _
    $region115: #{beta_cvae_forward.1} parent=1 // pred_check_branch
      %260 = sbr.rel (0) target = $region117
    $region116: #{beta_cvae_forward.1} parent=1 // pred_region
      %261 = dma.done [#allocation15], 896
    $region117: #{beta_cvae_forward.1} parent=1 // pred_fallthru
      _
    // Predicated region
    $region118: #{beta_cvae_forward.1} parent=1 // pred_check
      _
    $region119: #{beta_cvae_forward.1} parent=1 // pred_check_branch
      %263 = sbr.rel (0) target = $region121
    $region120: #{beta_cvae_forward.1} parent=1 // pred_region
      %264 = dma.done [#allocation15], 57344
    $region121: #{beta_cvae_forward.1} parent=1 // pred_fallthru
      _
    // Predicated region
    $region122: #{beta_cvae_forward.1} parent=1 // pred_check
      _
    $region123: #{beta_cvae_forward.1} parent=1 // pred_check_branch
      %266 = sbr.rel (0) target = $region125
    $region124: #{beta_cvae_forward.1} parent=1 // pred_region
      %267 = dma.done [#allocation18], 1024
    $region125: #{beta_cvae_forward.1} parent=1 // pred_fallthru
      _
    // Predicated region
    $region126: #{beta_cvae_forward.1} parent=1 // pred_check
      _
    $region127: #{beta_cvae_forward.1} parent=1 // pred_check_branch
      %269 = sbr.rel (0) target = $region129
    $region128: #{beta_cvae_forward.1} parent=1 // pred_region
      %270 = dma.done [#allocation18], 64
    $region129: #{beta_cvae_forward.1} parent=1 // pred_fallthru
      _
    // Predicated region
    $region130: #{beta_cvae_forward.1} parent=1 // pred_check
      _
    $region131: #{beta_cvae_forward.1} parent=1 // pred_check_branch
      %272 = sbr.rel (0) target = $region133
    $region132: #{beta_cvae_forward.1} parent=1 // pred_region
      %273 = dma.done [#allocation21], 1792
    $region133: #{beta_cvae_forward.1} parent=1 // pred_fallthru
      _
    // Predicated region
    $region134: #{beta_cvae_forward.1} parent=1 // pred_check
      _
    $region135: #{beta_cvae_forward.1} parent=1 // pred_check_branch
      %275 = sbr.rel (0) target = $region137
    $region136: #{beta_cvae_forward.1} parent=1 // pred_region
      %276 = dma.done [#allocation21], 112
    $region137: #{beta_cvae_forward.1} parent=1 // pred_fallthru
      _
    // Predicated region
    $region138: #{beta_cvae_forward.1} parent=1 // pred_check
      _
    $region139: #{beta_cvae_forward.1} parent=1 // pred_check_branch
      %278 = sbr.rel (0) target = $region141
    $region140: #{beta_cvae_forward.1} parent=1 // pred_region
      %279 = dma.done [#allocation24], 4096
    $region141: #{beta_cvae_forward.1} parent=1 // pred_fallthru
      _
    // Predicated region
    $region142: #{beta_cvae_forward.1} parent=1 // pred_check
      _
    $region143: #{beta_cvae_forward.1} parent=1 // pred_check_branch
      %281 = sbr.rel (0) target = $region145
    $region144: #{beta_cvae_forward.1} parent=1 // pred_region
      %282 = dma.done [#allocation24], 32
    $region145: #{beta_cvae_forward.1} parent=1 // pred_fallthru
      _
    // Predicated region
    $region146: #{beta_cvae_forward.1} parent=1 // pred_check
      _
    $region147: #{beta_cvae_forward.1} parent=1 // pred_check_branch
      %284 = sbr.rel (0) target = $region149
    $region148: #{beta_cvae_forward.1} parent=1 // pred_region
      %285 = dma.done [#allocation27], 4096
    $region149: #{beta_cvae_forward.1} parent=1 // pred_fallthru
      _
    // Predicated region
    $region150: #{beta_cvae_forward.1} parent=1 // pred_check
      _
    $region151: #{beta_cvae_forward.1} parent=1 // pred_check_branch
      %287 = sbr.rel (0) target = $region153
    $region152: #{beta_cvae_forward.1} parent=1 // pred_region
      %288 = dma.done [#allocation27], 16
    $region153: #{beta_cvae_forward.1} parent=1 // pred_fallthru
      _
    %v289 = vld [vmem:[%s0] sm:$0xff]
    %v290 = vld [vmem:[%s0 + $0x8] sm:$0xff]
    %v291 = vld [vmem:[%s0 + $0x10] sm:$0xff]
    %v292 = vld [vmem:[%s0 + $0x18] sm:$0xff]
    %v293 = vld [vmem:[%s0 + $0x20] sm:$0xff]
    %v294 = vld [vmem:[%s0 + $0x28] sm:$0xff]
    %v295 = vld [vmem:[%s0 + $0x30] sm:$0xff]
    %v296 = vld [vmem:[%s0 + $0x38] sm:$0xff]
    %v297 = vld [vmem:[%s0 + $0x40] sm:$0xff]
    %v298 = vld [vmem:[%s0 + $0x48] sm:$0xff]
    %v299 = vld [vmem:[%s0 + $0x50] sm:$0xff]
    %v300 = vld [vmem:[%s0 + $0x58] sm:$0xff]
    %v301 = vld [vmem:[%s0 + $0x60] sm:$0xff]
    %v302 = vld [vmem:[%s0 + $0x68] sm:$0xff]
    %v303 = vld [vmem:[%s0 + $0x70] sm:$0xff]
    %v304 = vld [vmem:[%s0 + $0x78] sm:$0xff]
    %v305 = vld [vmem:[%s0 + $0x80] sm:$0xff]
    %v306 = vld [vmem:[%s0 + $0x88] sm:$0xff]
    %v307 = vld [vmem:[%s0 + $0x90] sm:$0xff]
    %v308 = vld [vmem:[%s0 + $0x98] sm:$0xff]
    %v309 = vld [vmem:[%s0 + $0xa0] sm:$0xff]
    %v310 = vld [vmem:[%s0 + $0xa8] sm:$0xff]
    %v311 = vld [vmem:[%s0 + $0xb0] sm:$0xff]
    %v312 = vld [vmem:[%s0 + $0xb8] sm:$0xff]
    %v313 = vld [vmem:[%s0 + $0xc0] sm:$0xff]
    %v314 = vld [vmem:[%s0 + $0xc8] sm:$0xff]
    %v315 = vld [vmem:[%s0 + $0xd0] sm:$0xff]
    %v316 = vld [vmem:[%s0 + $0xd8] sm:$0xff]
    %v317 = vld [vmem:[#allocation3] sm:$0xff]
    %v318 = vld [vmem:[#allocation3 + $0x8] sm:$0xff]
    %v319 = vld [vmem:[#allocation3 + $0x10] sm:$0xff]
    %v320 = vld [vmem:[#allocation3 + $0x18] sm:$0xff]
    %v321 = vld [vmem:[#allocation3 + $0x20] sm:$0xff]
    %v322 = vld [vmem:[#allocation3 + $0x28] sm:$0xff]
    %v323 = vld [vmem:[#allocation3 + $0x30] sm:$0xff]
    %v324 = vld [vmem:[#allocation3 + $0x38] sm:$0xff]
    %v325 = vld [vmem:[#allocation3 + $0x40] sm:$0xff]
    %v326 = vld [vmem:[#allocation3 + $0x48] sm:$0xff]
    %v327 = vld [vmem:[#allocation3 + $0x50] sm:$0xff]
    %v328 = vld [vmem:[#allocation3 + $0x58] sm:$0xff]
    %v329 = vld [vmem:[#allocation3 + $0x60] sm:$0xff]
    %v330 = vld [vmem:[#allocation3 + $0x68] sm:$0xff]
    %v331 = vld [vmem:[#allocation3 + $0x70] sm:$0xff]
    %v332 = vld [vmem:[#allocation3 + $0x78] sm:$0xff]
    %v333 = vld [vmem:[#allocation3 + $0x80] sm:$0xff]
    %v334 = vld [vmem:[#allocation3 + $0x88] sm:$0xff]
    %v335 = vld [vmem:[#allocation3 + $0x90] sm:$0xff]
    %v336 = vld [vmem:[#allocation3 + $0x98] sm:$0xff]
    %v337 = vld [vmem:[#allocation3 + $0xa0] sm:$0xff]
    %v338 = vld [vmem:[#allocation3 + $0xa8] sm:$0xff]
    %v339 = vld [vmem:[#allocation3 + $0xb0] sm:$0xff]
    %v340 = vld [vmem:[#allocation3 + $0xb8] sm:$0xff]
    %v341 = vld [vmem:[#allocation5] sm:$0x3]
    %v343 = vlaneseq
    %v344 = vshrl.u32 %v343, 7
    %v345 = vsub.s32 0, %v344
    %v346 = vrot.slane %v341, %v345
    %v347 = vlaneseq
    %v348 = vshrl.u32 %v347, 7
    %v349 = vsub.s32 1, %v348
    %v350 = vrot.slane %v341, %v349
    %vm353 = vcmask 785408
    %v355 = vsel %vm353, %v289, 0
    %v358 = vsel %vm353, %v290, 0
    %v361 = vsel %vm353, %v291, 0
    %v364 = vsel %vm353, %v292, 0
    %v367 = vsel %vm353, %v293, 0
    %v370 = vsel %vm353, %v294, 0
    %v373 = vsel %vm353, %v295, 0
    %v376 = vsel %vm353, %v296, 0
    %v379 = vsel %vm353, %v297, 0
    %v382 = vsel %vm353, %v298, 0
    %v385 = vsel %vm353, %v299, 0
    %v388 = vsel %vm353, %v300, 0
    %v391 = vsel %vm353, %v301, 0
    %v394 = vsel %vm353, %v302, 0
    %v397 = vsel %vm353, %v303, 0
    %v400 = vsel %vm353, %v304, 0
    %v403 = vsel %vm353, %v305, 0
    %v406 = vsel %vm353, %v306, 0
    %v409 = vsel %vm353, %v307, 0
    %v412 = vsel %vm353, %v308, 0
    %v415 = vsel %vm353, %v309, 0
    %v418 = vsel %vm353, %v310, 0
    %v421 = vsel %vm353, %v311, 0
    %v424 = vsel %vm353, %v312, 0
    %v427 = vsel %vm353, %v313, 0
    %v430 = vsel %vm353, %v314, 0
    %v433 = vsel %vm353, %v315, 0
    %v436 = vsel %vm353, %v316, 0
    %438 = vmatprep.subr.mxu0 %v318
    %439 = vmatpush1.msra.mxu0 %v317
    %440 = vmatprep.subr.mxu0 %v320
    %441 = vmatpush1.msra.mxu0 %v319
    %442 = vmatprep.subr.mxu0 %v322
    %443 = vmatpush1.msra.mxu0 %v321
    %444 = vmatprep.subr.mxu0 %v324
    %445 = vmatpush1.msra.mxu0 %v323
    %446 = vmatprep.subr.mxu0 %v326
    %447 = vmatpush1.msra.mxu0 %v325
    %448 = vmatprep.subr.mxu0 %v328
    %449 = vmatpush1.msra.mxu0 %v327
    %450 = vmatprep.subr.mxu0 %v330
    %451 = vmatpush1.msra.mxu0 %v329
    %452 = vmatprep.subr.mxu0 %v332
    %453 = vmatpush1.msra.mxu0 %v331
    %454 = vmatprep.subr.mxu0 %v334
    %455 = vmatpush1.msra.mxu0 %v333
    %456 = vmatprep.subr.mxu0 %v336
    %457 = vmatpush1.msra.mxu0 %v335
    %458 = vmatprep.subr.mxu0 %v338
    %459 = vmatpush1.msra.mxu0 %v337
    %460 = vmatprep.subr.mxu0 %v340
    %461 = vmatpush1.msra.mxu0 %v339
    %462 = vmatprep.subr.mxu0 0.0
    %463 = vmatpush1.msra.mxu0 0.0
    %464 = vmatprep.subr.mxu0 0.0
    %465 = vmatpush1.msra.mxu0 0.0
    %466 = vmatprep.subr.mxu0 0.0
    %467 = vmatpush1.msra.mxu0 0.0
    %468 = vmatprep.subr.mxu0 0.0
    %469 = vmatpush1.msra.mxu0 0.0
    %470 = vmatprep.subr.mxu0 0.0
    %471 = vmatpush1.msra.mxu0 0.0
    %472 = vmatprep.subr.mxu0 0.0
    %473 = vmatpush1.msra.mxu0 0.0
    %474 = vmatprep.subr.mxu0 0.0
    %475 = vmatpush1.msra.mxu0 0.0
    %476 = vmatprep.subr.mxu0 0.0
    %477 = vmatpush1.msra.mxu0 0.0
    %478 = vmatprep.subr.mxu0 0.0
    %479 = vmatpush1.msra.mxu0 0.0
    %480 = vmatprep.subr.mxu0 0.0
    %481 = vmatpush1.msra.mxu0 0.0
    %482 = vmatprep.subr.mxu0 0.0
    %483 = vmatpush1.msra.mxu0 0.0
    %484 = vmatprep.subr.mxu0 0.0
    %485 = vmatpush1.msra.mxu0 0.0
    %486 = vmatprep.subr.mxu0 0.0
    %487 = vmatpush1.msra.mxu0 0.0
    %488 = vmatprep.subr.mxu0 0.0
    %489 = vmatpush1.msra.mxu0 0.0
    %490 = vmatprep.subr.mxu0 0.0
    %491 = vmatpush1.msra.mxu0 0.0
    %492 = vmatprep.subr.mxu0 0.0
    %493 = vmatpush1.msra.mxu0 0.0
    %494 = vmatprep.subr.mxu0 0.0
    %495 = vmatpush1.msra.mxu0 0.0
    %496 = vmatprep.subr.mxu0 0.0
    %497 = vmatpush1.msra.mxu0 0.0
    %498 = vmatprep.subr.mxu0 0.0
    %499 = vmatpush1.msra.mxu0 0.0
    %500 = vmatprep.subr.mxu0 0.0
    %501 = vmatpush1.msra.mxu0 0.0
    %502 = vmatprep.mubr.f32.mxu0 0.0
    %503 = vmatmul.mubr.f32.gmra.mrb[0].mxu0 %v355
    %v504 = vpop.f32.mrb[0].mxu0
    %v505 = vadd.f32 %v346, %v504
    %v506 = vpop.f32.mrb[0].mxu0
    %v507 = vadd.f32 %v350, %v506
    %508 = vmatprep.mubr.f32.mxu0 0.0
    %509 = vmatmul.mubr.f32.gmra.mrb[0].mxu0 %v358
    %v510 = vpop.f32.mrb[0].mxu0
    %v511 = vadd.f32 %v346, %v510
    %v512 = vpop.f32.mrb[0].mxu0
    %v513 = vadd.f32 %v350, %v512
    %514 = vmatprep.mubr.f32.mxu0 0.0
    %515 = vmatmul.mubr.f32.gmra.mrb[0].mxu0 %v361
    %v516 = vpop.f32.mrb[0].mxu0
    %v517 = vadd.f32 %v346, %v516
    %v518 = vpop.f32.mrb[0].mxu0
    %v519 = vadd.f32 %v350, %v518
    %520 = vmatprep.mubr.f32.mxu0 0.0
    %521 = vmatmul.mubr.f32.gmra.mrb[0].mxu0 %v364
    %v522 = vpop.f32.mrb[0].mxu0
    %v523 = vadd.f32 %v346, %v522
    %v524 = vpop.f32.mrb[0].mxu0
    %v525 = vadd.f32 %v350, %v524
    %526 = vmatprep.mubr.f32.mxu0 0.0
    %527 = vmatmul.mubr.f32.gmra.mrb[0].mxu0 %v367
    %v528 = vpop.f32.mrb[0].mxu0
    %v529 = vadd.f32 %v346, %v528
    %v530 = vpop.f32.mrb[0].mxu0
    %v531 = vadd.f32 %v350, %v530
    %532 = vmatprep.mubr.f32.mxu0 0.0
    %533 = vmatmul.mubr.f32.gmra.mrb[0].mxu0 %v370
    %v534 = vpop.f32.mrb[0].mxu0
    %v535 = vadd.f32 %v346, %v534
    %v536 = vpop.f32.mrb[0].mxu0
    %v537 = vadd.f32 %v350, %v536
    %538 = vmatprep.mubr.f32.mxu0 0.0
    %539 = vmatmul.mubr.f32.gmra.mrb[0].mxu0 %v373
    %v540 = vpop.f32.mrb[0].mxu0
    %v541 = vadd.f32 %v346, %v540
    %v542 = vpop.f32.mrb[0].mxu0
    %v543 = vadd.f32 %v350, %v542
    %544 = vmatprep.mubr.f32.mxu0 0.0
    %545 = vmatmul.mubr.f32.gmra.mrb[0].mxu0 %v376
    %v546 = vpop.f32.mrb[0].mxu0
    %v547 = vadd.f32 %v346, %v546
    %v548 = vpop.f32.mrb[0].mxu0
    %v549 = vadd.f32 %v350, %v548
    %550 = vmatprep.mubr.f32.mxu0 0.0
    %551 = vmatmul.mubr.f32.gmra.mrb[0].mxu0 %v379
    %v552 = vpop.f32.mrb[0].mxu0
    %v553 = vadd.f32 %v346, %v552
    %v554 = vpop.f32.mrb[0].mxu0
    %v555 = vadd.f32 %v350, %v554
    %556 = vmatprep.mubr.f32.mxu0 0.0
    %557 = vmatmul.mubr.f32.gmra.mrb[0].mxu0 %v382
    %v558 = vpop.f32.mrb[0].mxu0
    %v559 = vadd.f32 %v346, %v558
    %v560 = vpop.f32.mrb[0].mxu0
    %v561 = vadd.f32 %v350, %v560
    %562 = vmatprep.mubr.f32.mxu0 0.0
    %563 = vmatmul.mubr.f32.gmra.mrb[0].mxu0 %v385
    %v564 = vpop.f32.mrb[0].mxu0
    %v565 = vadd.f32 %v346, %v564
    %v566 = vpop.f32.mrb[0].mxu0
    %v567 = vadd.f32 %v350, %v566
    %568 = vmatprep.mubr.f32.mxu0 0.0
    %569 = vmatmul.mubr.f32.gmra.mrb[0].mxu0 %v388
    %v570 = vpop.f32.mrb[0].mxu0
    %v571 = vadd.f32 %v346, %v570
    %v572 = vpop.f32.mrb[0].mxu0
    %v573 = vadd.f32 %v350, %v572
    %574 = vmatprep.mubr.f32.mxu0 0.0
    %575 = vmatmul.mubr.f32.gmra.mrb[0].mxu0 %v391
    %v576 = vpop.f32.mrb[0].mxu0
    %v577 = vadd.f32 %v346, %v576
    %v578 = vpop.f32.mrb[0].mxu0
    %v579 = vadd.f32 %v350, %v578
    %580 = vmatprep.mubr.f32.mxu0 0.0
    %581 = vmatmul.mubr.f32.gmra.mrb[0].mxu0 %v394
    %v582 = vpop.f32.mrb[0].mxu0
    %v583 = vadd.f32 %v346, %v582
    %v584 = vpop.f32.mrb[0].mxu0
    %v585 = vadd.f32 %v350, %v584
    %586 = vmatprep.mubr.f32.mxu0 0.0
    %587 = vmatmul.mubr.f32.gmra.mrb[0].mxu0 %v397
    %v588 = vpop.f32.mrb[0].mxu0
    %v589 = vadd.f32 %v346, %v588
    %v590 = vpop.f32.mrb[0].mxu0
    %v591 = vadd.f32 %v350, %v590
    %592 = vmatprep.mubr.f32.mxu0 0.0
    %593 = vmatmul.mubr.f32.gmra.mrb[0].mxu0 %v400
    %v594 = vpop.f32.mrb[0].mxu0
    %v595 = vadd.f32 %v346, %v594
    %v596 = vpop.f32.mrb[0].mxu0
    %v597 = vadd.f32 %v350, %v596
    %598 = vmatprep.mubr.f32.mxu0 0.0
    %599 = vmatmul.mubr.f32.gmra.mrb[0].mxu0 %v403
    %v600 = vpop.f32.mrb[0].mxu0
    %v601 = vadd.f32 %v346, %v600
    %v602 = vpop.f32.mrb[0].mxu0
    %v603 = vadd.f32 %v350, %v602
    %604 = vmatprep.mubr.f32.mxu0 0.0
    %605 = vmatmul.mubr.f32.gmra.mrb[0].mxu0 %v406
    %v606 = vpop.f32.mrb[0].mxu0
    %v607 = vadd.f32 %v346, %v606
    %v608 = vpop.f32.mrb[0].mxu0
    %v609 = vadd.f32 %v350, %v608
    %610 = vmatprep.mubr.f32.mxu0 0.0
    %611 = vmatmul.mubr.f32.gmra.mrb[0].mxu0 %v409
    %v612 = vpop.f32.mrb[0].mxu0
    %v613 = vadd.f32 %v346, %v612
    %v614 = vpop.f32.mrb[0].mxu0
    %v615 = vadd.f32 %v350, %v614
    %616 = vmatprep.mubr.f32.mxu0 0.0
    %617 = vmatmul.mubr.f32.gmra.mrb[0].mxu0 %v412
    %v618 = vpop.f32.mrb[0].mxu0
    %v619 = vadd.f32 %v346, %v618
    %v620 = vpop.f32.mrb[0].mxu0
    %v621 = vadd.f32 %v350, %v620
    %622 = vmatprep.mubr.f32.mxu0 0.0
    %623 = vmatmul.mubr.f32.gmra.mrb[0].mxu0 %v415
    %v624 = vpop.f32.mrb[0].mxu0
    %v625 = vadd.f32 %v346, %v624
    %v626 = vpop.f32.mrb[0].mxu0
    %v627 = vadd.f32 %v350, %v626
    %628 = vmatprep.mubr.f32.mxu0 0.0
    %629 = vmatmul.mubr.f32.gmra.mrb[0].mxu0 %v418
    %v630 = vpop.f32.mrb[0].mxu0
    %v631 = vadd.f32 %v346, %v630
    %v632 = vpop.f32.mrb[0].mxu0
    %v633 = vadd.f32 %v350, %v632
    %634 = vmatprep.mubr.f32.mxu0 0.0
    %635 = vmatmul.mubr.f32.gmra.mrb[0].mxu0 %v421
    %v636 = vpop.f32.mrb[0].mxu0
    %v637 = vadd.f32 %v346, %v636
    %v638 = vpop.f32.mrb[0].mxu0
    %v639 = vadd.f32 %v350, %v638
    %640 = vmatprep.mubr.f32.mxu0 0.0
    %641 = vmatmul.mubr.f32.gmra.mrb[0].mxu0 %v424
    %v642 = vpop.f32.mrb[0].mxu0
    %v643 = vadd.f32 %v346, %v642
    %v644 = vpop.f32.mrb[0].mxu0
    %v645 = vadd.f32 %v350, %v644
    %646 = vmatprep.mubr.f32.mxu0 0.0
    %647 = vmatmul.mubr.f32.gmra.mrb[0].mxu0 %v427
    %v648 = vpop.f32.mrb[0].mxu0
    %v649 = vadd.f32 %v346, %v648
    %v650 = vpop.f32.mrb[0].mxu0
    %v651 = vadd.f32 %v350, %v650
    %652 = vmatprep.mubr.f32.mxu0 0.0
    %653 = vmatmul.mubr.f32.gmra.mrb[0].mxu0 %v430
    %v654 = vpop.f32.mrb[0].mxu0
    %v655 = vadd.f32 %v346, %v654
    %v656 = vpop.f32.mrb[0].mxu0
    %v657 = vadd.f32 %v350, %v656
    %658 = vmatprep.mubr.f32.mxu0 0.0
    %659 = vmatmul.mubr.f32.gmra.mrb[0].mxu0 %v433
    %v660 = vpop.f32.mrb[0].mxu0
    %v661 = vadd.f32 %v346, %v660
    %v662 = vpop.f32.mrb[0].mxu0
    %v663 = vadd.f32 %v350, %v662
    %664 = vmatprep.mubr.f32.mxu0 0.0
    %665 = vmatmul.mubr.f32.gmra.mrb[0].mxu0 %v436
    %v666 = vpop.f32.mrb[0].mxu0
    %v667 = vadd.f32 %v346, %v666
    %v668 = vpop.f32.mrb[0].mxu0
    %v669 = vadd.f32 %v350, %v668
    %670 = vdwg.mxu0
    %v671 = vmax.f32 %v505, 0.0
    %v672 = vmax.f32 %v507, 0.0
    %v673 = vmax.f32 %v511, 0.0
    %v674 = vmax.f32 %v513, 0.0
    %v675 = vmax.f32 %v517, 0.0
    %v676 = vmax.f32 %v519, 0.0
    %v677 = vmax.f32 %v523, 0.0
    %v678 = vmax.f32 %v525, 0.0
    %v679 = vmax.f32 %v529, 0.0
    %v680 = vmax.f32 %v531, 0.0
    %v681 = vmax.f32 %v535, 0.0
    %v682 = vmax.f32 %v537, 0.0
    %v683 = vmax.f32 %v541, 0.0
    %v684 = vmax.f32 %v543, 0.0
    %v685 = vmax.f32 %v547, 0.0
    %v686 = vmax.f32 %v549, 0.0
    %v687 = vmax.f32 %v553, 0.0
    %v688 = vmax.f32 %v555, 0.0
    %v689 = vmax.f32 %v559, 0.0
    %v690 = vmax.f32 %v561, 0.0
    %v691 = vmax.f32 %v565, 0.0
    %v692 = vmax.f32 %v567, 0.0
    %v693 = vmax.f32 %v571, 0.0
    %v694 = vmax.f32 %v573, 0.0
    %v695 = vmax.f32 %v577, 0.0
    %v696 = vmax.f32 %v579, 0.0
    %v697 = vmax.f32 %v583, 0.0
    %v698 = vmax.f32 %v585, 0.0
    %v699 = vmax.f32 %v589, 0.0
    %v700 = vmax.f32 %v591, 0.0
    %v701 = vmax.f32 %v595, 0.0
    %v702 = vmax.f32 %v597, 0.0
    %v703 = vmax.f32 %v601, 0.0
    %v704 = vmax.f32 %v603, 0.0
    %v705 = vmax.f32 %v607, 0.0
    %v706 = vmax.f32 %v609, 0.0
    %v707 = vmax.f32 %v613, 0.0
    %v708 = vmax.f32 %v615, 0.0
    %v709 = vmax.f32 %v619, 0.0
    %v710 = vmax.f32 %v621, 0.0
    %v711 = vmax.f32 %v625, 0.0
    %v712 = vmax.f32 %v627, 0.0
    %v713 = vmax.f32 %v631, 0.0
    %v714 = vmax.f32 %v633, 0.0
    %v715 = vmax.f32 %v637, 0.0
    %v716 = vmax.f32 %v639, 0.0
    %v717 = vmax.f32 %v643, 0.0
    %v718 = vmax.f32 %v645, 0.0
    %v719 = vmax.f32 %v649, 0.0
    %v720 = vmax.f32 %v651, 0.0
    %v721 = vmax.f32 %v655, 0.0
    %v722 = vmax.f32 %v657, 0.0
    %v723 = vmax.f32 %v661, 0.0
    %v724 = vmax.f32 %v663, 0.0
    %v725 = vmax.f32 %v667, 0.0
    %v726 = vmax.f32 %v669, 0.0
    %v727 = vld [vmem:[#allocation7] sm:$0xff]
    %v728 = vld [vmem:[#allocation7 + $0x8] sm:$0xff]
    %v729 = vld [vmem:[#allocation7 + $0x10] sm:$0xff]
    %v730 = vld [vmem:[#allocation7 + $0x18] sm:$0xff]
    %v731 = vld [vmem:[#allocation7 + $0x20] sm:$0xff]
    %v732 = vld [vmem:[#allocation7 + $0x28] sm:$0xff]
    %v733 = vld [vmem:[#allocation7 + $0x30] sm:$0xff]
    %v734 = vld [vmem:[#allocation7 + $0x38] sm:$0xff]
    %v735 = vld [vmem:[#allocation7 + $0x40] sm:$0xff]
    %v736 = vld [vmem:[#allocation7 + $0x48] sm:$0xff]
    %v737 = vld [vmem:[#allocation7 + $0x50] sm:$0xff]
    %v738 = vld [vmem:[#allocation7 + $0x58] sm:$0xff]
    %v739 = vld [vmem:[#allocation7 + $0x60] sm:$0xff]
    %v740 = vld [vmem:[#allocation7 + $0x68] sm:$0xff]
    %v741 = vld [vmem:[#allocation7 + $0x70] sm:$0xff]
    %v742 = vld [vmem:[#allocation7 + $0x78] sm:$0xff]
    %v743 = vld [vmem:[#allocation7 + $0x80] sm:$0xff]
    %v744 = vld [vmem:[#allocation7 + $0x88] sm:$0xff]
    %v745 = vld [vmem:[#allocation7 + $0x90] sm:$0xff]
    %v746 = vld [vmem:[#allocation7 + $0x98] sm:$0xff]
    %v747 = vld [vmem:[#allocation7 + $0xa0] sm:$0xff]
    %v748 = vld [vmem:[#allocation7 + $0xa8] sm:$0xff]
    %v749 = vld [vmem:[#allocation7 + $0xb0] sm:$0xff]
    %v750 = vld [vmem:[#allocation7 + $0xb8] sm:$0xff]
    %v751 = vld [vmem:[#allocation7 + $0xc0] sm:$0xff]
    %v752 = vld [vmem:[#allocation7 + $0xc8] sm:$0xff]
    %v753 = vld [vmem:[#allocation7 + $0xd0] sm:$0xff]
    %v754 = vld [vmem:[#allocation7 + $0xd8] sm:$0xff]
    %v755 = vld [vmem:[#allocation7 + $0xe0] sm:$0xff]
    %v756 = vld [vmem:[#allocation7 + $0xe8] sm:$0xff]
    %v757 = vld [vmem:[#allocation7 + $0xf0] sm:$0xff]
    %v758 = vld [vmem:[#allocation7 + $0xf8] sm:$0xff]
    %759 = vmatprep.subr.mxu0 0.0
    %760 = vmatpush1.msra.mxu0 %v727
    %761 = vmatprep.subr.mxu0 0.0
    %762 = vmatpush1.msra.mxu0 %v728
    %763 = vmatprep.subr.mxu0 0.0
    %764 = vmatpush1.msra.mxu0 %v729
    %765 = vmatprep.subr.mxu0 0.0
    %766 = vmatpush1.msra.mxu0 %v730
    %767 = vmatprep.subr.mxu0 0.0
    %768 = vmatpush1.msra.mxu0 %v731
    %769 = vmatprep.subr.mxu0 0.0
    %770 = vmatpush1.msra.mxu0 %v732
    %771 = vmatprep.subr.mxu0 0.0
    %772 = vmatpush1.msra.mxu0 %v733
    %773 = vmatprep.subr.mxu0 0.0
    %774 = vmatpush1.msra.mxu0 %v734
    %775 = vmatprep.subr.mxu0 0.0
    %776 = vmatpush1.msra.mxu0 %v735
    %777 = vmatprep.subr.mxu0 0.0
    %778 = vmatpush1.msra.mxu0 %v736
    %779 = vmatprep.subr.mxu0 0.0
    %780 = vmatpush1.msra.mxu0 %v737
    %781 = vmatprep.subr.mxu0 0.0
    %782 = vmatpush1.msra.mxu0 %v738
    %783 = vmatprep.subr.mxu0 0.0
    %784 = vmatpush1.msra.mxu0 %v739
    %785 = vmatprep.subr.mxu0 0.0
    %786 = vmatpush1.msra.mxu0 %v740
    %787 = vmatprep.subr.mxu0 0.0
    %788 = vmatpush1.msra.mxu0 %v741
    %789 = vmatprep.subr.mxu0 0.0
    %790 = vmatpush1.msra.mxu0 %v742
    %791 = vmatprep.subr.mxu0 0.0
    %792 = vmatpush1.msra.mxu0 %v743
    %793 = vmatprep.subr.mxu0 0.0
    %794 = vmatpush1.msra.mxu0 %v744
    %795 = vmatprep.subr.mxu0 0.0
    %796 = vmatpush1.msra.mxu0 %v745
    %797 = vmatprep.subr.mxu0 0.0
    %798 = vmatpush1.msra.mxu0 %v746
    %799 = vmatprep.subr.mxu0 0.0
    %800 = vmatpush1.msra.mxu0 %v747
    %801 = vmatprep.subr.mxu0 0.0
    %802 = vmatpush1.msra.mxu0 %v748
    %803 = vmatprep.subr.mxu0 0.0
    %804 = vmatpush1.msra.mxu0 %v749
    %805 = vmatprep.subr.mxu0 0.0
    %806 = vmatpush1.msra.mxu0 %v750
    %807 = vmatprep.subr.mxu0 0.0
    %808 = vmatpush1.msra.mxu0 %v751
    %809 = vmatprep.subr.mxu0 0.0
    %810 = vmatpush1.msra.mxu0 %v752
    %811 = vmatprep.subr.mxu0 0.0
    %812 = vmatpush1.msra.mxu0 %v753
    %813 = vmatprep.subr.mxu0 0.0
    %814 = vmatpush1.msra.mxu0 %v754
    %815 = vmatprep.subr.mxu0 0.0
    %816 = vmatpush1.msra.mxu0 %v755
    %817 = vmatprep.subr.mxu0 0.0
    %818 = vmatpush1.msra.mxu0 %v756
    %819 = vmatprep.subr.mxu0 0.0
    %820 = vmatpush1.msra.mxu0 %v757
    %821 = vmatprep.subr.mxu0 0.0
    %822 = vmatpush1.msra.mxu0 %v758
    %823 = vmatprep.mubr.f32.mxu0 %v672
    %824 = vmatmul.mubr.f32.gmra.mrb[0].mxu0 %v671
    %v825 = vpop.f32.mrb[0].mxu0
    %v826 = vadd.f32 0.0, %v825
    %v827 = vpop.f32.mrb[0].mxu0
    %828 = vmatprep.mubr.f32.mxu0 %v674
    %829 = vmatmul.mubr.f32.gmra.mrb[0].mxu0 %v673
    %v830 = vpop.f32.mrb[0].mxu0
    %v831 = vadd.f32 0.0, %v830
    %v832 = vpop.f32.mrb[0].mxu0
    %833 = vmatprep.mubr.f32.mxu0 %v676
    %834 = vmatmul.mubr.f32.gmra.mrb[0].mxu0 %v675
    %v835 = vpop.f32.mrb[0].mxu0
    %v836 = vadd.f32 0.0, %v835
    %v837 = vpop.f32.mrb[0].mxu0
    %838 = vmatprep.mubr.f32.mxu0 %v678
    %839 = vmatmul.mubr.f32.gmra.mrb[0].mxu0 %v677
    %v840 = vpop.f32.mrb[0].mxu0
    %v841 = vadd.f32 0.0, %v840
    %v842 = vpop.f32.mrb[0].mxu0
    %843 = vmatprep.mubr.f32.mxu0 %v680
    %844 = vmatmul.mubr.f32.gmra.mrb[0].mxu0 %v679
    %v845 = vpop.f32.mrb[0].mxu0
    %v846 = vadd.f32 0.0, %v845
    %v847 = vpop.f32.mrb[0].mxu0
    %848 = vmatprep.mubr.f32.mxu0 %v682
    %849 = vmatmul.mubr.f32.gmra.mrb[0].mxu0 %v681
    %v850 = vpop.f32.mrb[0].mxu0
    %v851 = vadd.f32 0.0, %v850
    %v852 = vpop.f32.mrb[0].mxu0
    %853 = vmatprep.mubr.f32.mxu0 %v684
    %854 = vmatmul.mubr.f32.gmra.mrb[0].mxu0 %v683
    %v855 = vpop.f32.mrb[0].mxu0
    %v856 = vadd.f32 0.0, %v855
    %v857 = vpop.f32.mrb[0].mxu0
    %858 = vmatprep.mubr.f32.mxu0 %v686
    %859 = vmatmul.mubr.f32.gmra.mrb[0].mxu0 %v685
    %v860 = vpop.f32.mrb[0].mxu0
    %v861 = vadd.f32 0.0, %v860
    %v862 = vpop.f32.mrb[0].mxu0
    %863 = vmatprep.mubr.f32.mxu0 %v688
    %864 = vmatmul.mubr.f32.gmra.mrb[0].mxu0 %v687
    %v865 = vpop.f32.mrb[0].mxu0
    %v866 = vadd.f32 0.0, %v865
    %v867 = vpop.f32.mrb[0].mxu0
    %868 = vmatprep.mubr.f32.mxu0 %v690
    %869 = vmatmul.mubr.f32.gmra.mrb[0].mxu0 %v689
    %v870 = vpop.f32.mrb[0].mxu0
    %v871 = vadd.f32 0.0, %v870
    %v872 = vpop.f32.mrb[0].mxu0
    %873 = vmatprep.mubr.f32.mxu0 %v692
    %874 = vmatmul.mubr.f32.gmra.mrb[0].mxu0 %v691
    %v875 = vpop.f32.mrb[0].mxu0
    %v876 = vadd.f32 0.0, %v875
    %v877 = vpop.f32.mrb[0].mxu0
    %878 = vmatprep.mubr.f32.mxu0 %v694
    %879 = vmatmul.mubr.f32.gmra.mrb[0].mxu0 %v693
    %v880 = vpop.f32.mrb[0].mxu0
    %v881 = vadd.f32 0.0, %v880
    %v882 = vpop.f32.mrb[0].mxu0
    %883 = vmatprep.mubr.f32.mxu0 %v696
    %884 = vmatmul.mubr.f32.gmra.mrb[0].mxu0 %v695
    %v885 = vpop.f32.mrb[0].mxu0
    %v886 = vadd.f32 0.0, %v885
    %v887 = vpop.f32.mrb[0].mxu0
    %888 = vmatprep.mubr.f32.mxu0 %v698
    %889 = vmatmul.mubr.f32.gmra.mrb[0].mxu0 %v697
    %v890 = vpop.f32.mrb[0].mxu0
    %v891 = vadd.f32 0.0, %v890
    %v892 = vpop.f32.mrb[0].mxu0
    %893 = vmatprep.mubr.f32.mxu0 %v700
    %894 = vmatmul.mubr.f32.gmra.mrb[0].mxu0 %v699
    %v895 = vpop.f32.mrb[0].mxu0
    %v896 = vadd.f32 0.0, %v895
    %v897 = vpop.f32.mrb[0].mxu0
    %898 = vmatprep.mubr.f32.mxu0 %v702
    %899 = vmatmul.mubr.f32.gmra.mrb[0].mxu0 %v701
    %v900 = vpop.f32.mrb[0].mxu0
    %v901 = vadd.f32 0.0, %v900
    %v902 = vpop.f32.mrb[0].mxu0
    %903 = vmatprep.mubr.f32.mxu0 %v704
    %904 = vmatmul.mubr.f32.gmra.mrb[0].mxu0 %v703
    %v905 = vpop.f32.mrb[0].mxu0
    %v906 = vadd.f32 0.0, %v905
    %v907 = vpop.f32.mrb[0].mxu0
    %908 = vmatprep.mubr.f32.mxu0 %v706
    %909 = vmatmul.mubr.f32.gmra.mrb[0].mxu0 %v705
    %v910 = vpop.f32.mrb[0].mxu0
    %v911 = vadd.f32 0.0, %v910
    %v912 = vpop.f32.mrb[0].mxu0
    %913 = vmatprep.mubr.f32.mxu0 %v708
    %914 = vmatmul.mubr.f32.gmra.mrb[0].mxu0 %v707
    %v915 = vpop.f32.mrb[0].mxu0
    %v916 = vadd.f32 0.0, %v915
    %v917 = vpop.f32.mrb[0].mxu0
    %918 = vmatprep.mubr.f32.mxu0 %v710
    %919 = vmatmul.mubr.f32.gmra.mrb[0].mxu0 %v709
    %v920 = vpop.f32.mrb[0].mxu0
    %v921 = vadd.f32 0.0, %v920
    %v922 = vpop.f32.mrb[0].mxu0
    %923 = vmatprep.mubr.f32.mxu0 %v712
    %924 = vmatmul.mubr.f32.gmra.mrb[0].mxu0 %v711
    %v925 = vpop.f32.mrb[0].mxu0
    %v926 = vadd.f32 0.0, %v925
    %v927 = vpop.f32.mrb[0].mxu0
    %928 = vmatprep.mubr.f32.mxu0 %v714
    %929 = vmatmul.mubr.f32.gmra.mrb[0].mxu0 %v713
    %v930 = vpop.f32.mrb[0].mxu0
    %v931 = vadd.f32 0.0, %v930
    %v932 = vpop.f32.mrb[0].mxu0
    %933 = vmatprep.mubr.f32.mxu0 %v716
    %934 = vmatmul.mubr.f32.gmra.mrb[0].mxu0 %v715
    %v935 = vpop.f32.mrb[0].mxu0
    %v936 = vadd.f32 0.0, %v935
    %v937 = vpop.f32.mrb[0].mxu0
    %938 = vmatprep.mubr.f32.mxu0 %v718
    %939 = vmatmul.mubr.f32.gmra.mrb[0].mxu0 %v717
    %v940 = vpop.f32.mrb[0].mxu0
    %v941 = vadd.f32 0.0, %v940
    %v942 = vpop.f32.mrb[0].mxu0
    %943 = vmatprep.mubr.f32.mxu0 %v720
    %944 = vmatmul.mubr.f32.gmra.mrb[0].mxu0 %v719
    %v945 = vpop.f32.mrb[0].mxu0
    %v946 = vadd.f32 0.0, %v945
    %v947 = vpop.f32.mrb[0].mxu0
    %948 = vmatprep.mubr.f32.mxu0 %v722
    %949 = vmatmul.mubr.f32.gmra.mrb[0].mxu0 %v721
    %v950 = vpop.f32.mrb[0].mxu0
    %v951 = vadd.f32 0.0, %v950
    %v952 = vpop.f32.mrb[0].mxu0
    %953 = vmatprep.mubr.f32.mxu0 %v724
    %954 = vmatmul.mubr.f32.gmra.mrb[0].mxu0 %v723
    %v955 = vpop.f32.mrb[0].mxu0
    %v956 = vadd.f32 0.0, %v955
    %v957 = vpop.f32.mrb[0].mxu0
    %958 = vmatprep.mubr.f32.mxu0 %v726
    %959 = vmatmul.mubr.f32.gmra.mrb[0].mxu0 %v725
    %v960 = vpop.f32.mrb[0].mxu0
    %v961 = vadd.f32 0.0, %v960
    %v962 = vpop.f32.mrb[0].mxu0
    %963 = vdwg.mxu0
    %v964 = vld [vmem:[#allocation8] sm:$0xff]
    %v965 = vld [vmem:[#allocation8 + $0x8] sm:$0xff]
    %v966 = vld [vmem:[#allocation8 + $0x10] sm:$0xff]
    %v967 = vld [vmem:[#allocation8 + $0x18] sm:$0xff]
    %v968 = vld [vmem:[#allocation8 + $0x20] sm:$0xff]
    %v969 = vld [vmem:[#allocation8 + $0x28] sm:$0xff]
    %v970 = vld [vmem:[#allocation8 + $0x30] sm:$0xff]
    %v971 = vld [vmem:[#allocation8 + $0x38] sm:$0xff]
    %v972 = vld [vmem:[#allocation8 + $0x40] sm:$0xff]
    %v973 = vld [vmem:[#allocation8 + $0x48] sm:$0xff]
    %v974 = vld [vmem:[#allocation8 + $0x50] sm:$0xff]
    %v975 = vld [vmem:[#allocation8 + $0x58] sm:$0xff]
    %v976 = vld [vmem:[#allocation8 + $0x60] sm:$0xff]
    %v977 = vld [vmem:[#allocation8 + $0x68] sm:$0xff]
    %v978 = vld [vmem:[#allocation8 + $0x70] sm:$0xff]
    %v979 = vld [vmem:[#allocation8 + $0x78] sm:$0xff]
    %v980 = vld [vmem:[#allocation8 + $0x80] sm:$0xff]
    %v981 = vld [vmem:[#allocation8 + $0x88] sm:$0xff]
    %v982 = vld [vmem:[#allocation8 + $0x90] sm:$0xff]
    %v983 = vld [vmem:[#allocation8 + $0x98] sm:$0xff]
    %v984 = vld [vmem:[#allocation8 + $0xa0] sm:$0xff]
    %v985 = vld [vmem:[#allocation8 + $0xa8] sm:$0xff]
    %v986 = vld [vmem:[#allocation8 + $0xb0] sm:$0xff]
    %v987 = vld [vmem:[#allocation8 + $0xb8] sm:$0xff]
    %v988 = vld [vmem:[#allocation8 + $0xc0] sm:$0xff]
    %v989 = vld [vmem:[#allocation8 + $0xc8] sm:$0xff]
    %v990 = vld [vmem:[#allocation8 + $0xd0] sm:$0xff]
    %v991 = vld [vmem:[#allocation8 + $0xd8] sm:$0xff]
    %v992 = vld [vmem:[#allocation8 + $0xe0] sm:$0xff]
    %v993 = vld [vmem:[#allocation8 + $0xe8] sm:$0xff]
    %v994 = vld [vmem:[#allocation8 + $0xf0] sm:$0xff]
    %v995 = vld [vmem:[#allocation8 + $0xf8] sm:$0xff]
    %v996 = vld [vmem:[#allocation8 + $0x100] sm:$0xff]
    %v997 = vld [vmem:[#allocation8 + $0x108] sm:$0xff]
    %v998 = vld [vmem:[#allocation8 + $0x110] sm:$0xff]
    %v999 = vld [vmem:[#allocation8 + $0x118] sm:$0xff]
    %v1000 = vld [vmem:[#allocation8 + $0x120] sm:$0xff]
    %v1001 = vld [vmem:[#allocation8 + $0x128] sm:$0xff]
    %v1002 = vld [vmem:[#allocation8 + $0x130] sm:$0xff]
    %v1003 = vld [vmem:[#allocation8 + $0x138] sm:$0xff]
    %v1004 = vld [vmem:[#allocation8 + $0x140] sm:$0xff]
    %v1005 = vld [vmem:[#allocation8 + $0x148] sm:$0xff]
    %v1006 = vld [vmem:[#allocation8 + $0x150] sm:$0xff]
    %v1007 = vld [vmem:[#allocation8 + $0x158] sm:$0xff]
    %v1008 = vld [vmem:[#allocation8 + $0x160] sm:$0xff]
    %v1009 = vld [vmem:[#allocation8 + $0x168] sm:$0xff]
    %v1010 = vld [vmem:[#allocation8 + $0x170] sm:$0xff]
    %v1011 = vld [vmem:[#allocation8 + $0x178] sm:$0xff]
    %v1012 = vld [vmem:[#allocation8 + $0x180] sm:$0xff]
    %v1013 = vld [vmem:[#allocation8 + $0x188] sm:$0xff]
    %v1014 = vld [vmem:[#allocation8 + $0x190] sm:$0xff]
    %v1015 = vld [vmem:[#allocation8 + $0x198] sm:$0xff]
    %v1016 = vld [vmem:[#allocation8 + $0x1a0] sm:$0xff]
    %v1017 = vld [vmem:[#allocation8 + $0x1a8] sm:$0xff]
    %v1018 = vld [vmem:[#allocation8 + $0x1b0] sm:$0xff]
    %v1019 = vld [vmem:[#allocation8 + $0x1b8] sm:$0xff]
    %v1020 = vld [vmem:[#allocation8 + $0x1c0] sm:$0xff]
    %v1021 = vld [vmem:[#allocation8 + $0x1c8] sm:$0xff]
    %v1022 = vld [vmem:[#allocation8 + $0x1d0] sm:$0xff]
    %v1023 = vld [vmem:[#allocation8 + $0x1d8] sm:$0xff]
    %v1024 = vld [vmem:[#allocation8 + $0x1e0] sm:$0xff]
    %v1025 = vld [vmem:[#allocation8 + $0x1e8] sm:$0xff]
    %v1026 = vld [vmem:[#allocation8 + $0x1f0] sm:$0xff]
    %v1027 = vld [vmem:[#allocation8 + $0x1f8] sm:$0xff]
    %v1028 = vld [vmem:[#allocation8 + $0x200] sm:$0xff]
    %v1029 = vld [vmem:[#allocation8 + $0x208] sm:$0xff]
    %v1030 = vld [vmem:[#allocation8 + $0x210] sm:$0xff]
    %v1031 = vld [vmem:[#allocation8 + $0x218] sm:$0xff]
    %v1032 = vld [vmem:[#allocation8 + $0x220] sm:$0xff]
    %v1033 = vld [vmem:[#allocation8 + $0x228] sm:$0xff]
    %v1034 = vld [vmem:[#allocation8 + $0x230] sm:$0xff]
    %v1035 = vld [vmem:[#allocation8 + $0x238] sm:$0xff]
    %v1036 = vld [vmem:[#allocation8 + $0x240] sm:$0xff]
    %v1037 = vld [vmem:[#allocation8 + $0x248] sm:$0xff]
    %v1038 = vld [vmem:[#allocation8 + $0x250] sm:$0xff]
    %v1039 = vld [vmem:[#allocation8 + $0x258] sm:$0xff]
    %v1040 = vld [vmem:[#allocation8 + $0x260] sm:$0xff]
    %v1041 = vld [vmem:[#allocation8 + $0x268] sm:$0xff]
    %v1042 = vld [vmem:[#allocation8 + $0x270] sm:$0xff]
    %v1043 = vld [vmem:[#allocation8 + $0x278] sm:$0xff]
    %v1044 = vld [vmem:[#allocation8 + $0x280] sm:$0xff]
    %v1045 = vld [vmem:[#allocation8 + $0x288] sm:$0xff]
    %v1046 = vld [vmem:[#allocation8 + $0x290] sm:$0xff]
    %v1047 = vld [vmem:[#allocation8 + $0x298] sm:$0xff]
    %v1049 = vsel %vm353, %v965, 0
    %v1052 = vsel %vm353, %v967, 0
    %v1055 = vsel %vm353, %v969, 0
    %v1058 = vsel %vm353, %v971, 0
    %v1061 = vsel %vm353, %v973, 0
    %v1064 = vsel %vm353, %v975, 0
    %v1067 = vsel %vm353, %v977, 0
    %v1070 = vsel %vm353, %v979, 0
    %v1073 = vsel %vm353, %v981, 0
    %v1076 = vsel %vm353, %v983, 0
    %v1079 = vsel %vm353, %v985, 0
    %v1082 = vsel %vm353, %v987, 0
    %v1085 = vsel %vm353, %v989, 0
    %v1088 = vsel %vm353, %v991, 0
    %v1091 = vsel %vm353, %v993, 0
    %v1094 = vsel %vm353, %v995, 0
    %v1097 = vsel %vm353, %v997, 0
    %v1100 = vsel %vm353, %v999, 0
    %v1103 = vsel %vm353, %v1001, 0
    %v1106 = vsel %vm353, %v1003, 0
    %v1109 = vsel %vm353, %v1005, 0
    %v1112 = vsel %vm353, %v1007, 0
    %v1115 = vsel %vm353, %v1009, 0
    %v1118 = vsel %vm353, %v1011, 0
    %v1121 = vsel %vm353, %v1013, 0
    %v1124 = vsel %vm353, %v1015, 0
    %v1127 = vsel %vm353, %v1017, 0
    %v1130 = vsel %vm353, %v1019, 0
    %v1133 = vsel %vm353, %v1021, 0
    %v1136 = vsel %vm353, %v1023, 0
    %v1139 = vsel %vm353, %v1025, 0
    %v1142 = vsel %vm353, %v1027, 0
    %v1145 = vsel %vm353, %v1029, 0
    %v1148 = vsel %vm353, %v1031, 0
    %v1151 = vsel %vm353, %v1033, 0
    %v1154 = vsel %vm353, %v1035, 0
    %v1157 = vsel %vm353, %v1037, 0
    %v1160 = vsel %vm353, %v1039, 0
    %v1163 = vsel %vm353, %v1041, 0
    %v1166 = vsel %vm353, %v1043, 0
    %v1169 = vsel %vm353, %v1045, 0
    %v1172 = vsel %vm353, %v1047, 0
    %1174 = vmatprep.subr.mxu0 0.0
    %1175 = vmatpush1.msra.mxu0 %v826
    %1176 = vmatprep.subr.mxu0 0.0
    %1177 = vmatpush1.msra.mxu0 %v831
    %1178 = vmatprep.subr.mxu0 0.0
    %1179 = vmatpush1.msra.mxu0 %v836
    %1180 = vmatprep.subr.mxu0 0.0
    %1181 = vmatpush1.msra.mxu0 %v841
    %1182 = vmatprep.subr.mxu0 0.0
    %1183 = vmatpush1.msra.mxu0 %v846
    %1184 = vmatprep.subr.mxu0 0.0
    %1185 = vmatpush1.msra.mxu0 %v851
    %1186 = vmatprep.subr.mxu0 0.0
    %1187 = vmatpush1.msra.mxu0 %v856
    %1188 = vmatprep.subr.mxu0 0.0
    %1189 = vmatpush1.msra.mxu0 %v861
    %1190 = vmatprep.subr.mxu0 0.0
    %1191 = vmatpush1.msra.mxu0 %v866
    %1192 = vmatprep.subr.mxu0 0.0
    %1193 = vmatpush1.msra.mxu0 %v871
    %1194 = vmatprep.subr.mxu0 0.0
    %1195 = vmatpush1.msra.mxu0 %v876
    %1196 = vmatprep.subr.mxu0 0.0
    %1197 = vmatpush1.msra.mxu0 %v881
    %1198 = vmatprep.subr.mxu0 0.0
    %1199 = vmatpush1.msra.mxu0 %v886
    %1200 = vmatprep.subr.mxu0 0.0
    %1201 = vmatpush1.msra.mxu0 %v891
    %1202 = vmatprep.subr.mxu0 0.0
    %1203 = vmatpush1.msra.mxu0 %v896
    %1204 = vmatprep.subr.mxu0 0.0
    %1205 = vmatpush1.msra.mxu0 %v901
    %1206 = vmatprep.subr.mxu0 0.0
    %1207 = vmatpush1.msra.mxu0 %v906
    %1208 = vmatprep.subr.mxu0 0.0
    %1209 = vmatpush1.msra.mxu0 %v911
    %1210 = vmatprep.subr.mxu0 0.0
    %1211 = vmatpush1.msra.mxu0 %v916
    %1212 = vmatprep.subr.mxu0 0.0
    %1213 = vmatpush1.msra.mxu0 %v921
    %1214 = vmatprep.subr.mxu0 0.0
    %1215 = vmatpush1.msra.mxu0 %v926
    %1216 = vmatprep.subr.mxu0 0.0
    %1217 = vmatpush1.msra.mxu0 %v931
    %1218 = vmatprep.subr.mxu0 0.0
    %1219 = vmatpush1.msra.mxu0 %v936
    %1220 = vmatprep.subr.mxu0 0.0
    %1221 = vmatpush1.msra.mxu0 %v941
    %1222 = vmatprep.subr.mxu0 0.0
    %1223 = vmatpush1.msra.mxu0 %v946
    %1224 = vmatprep.subr.mxu0 0.0
    %1225 = vmatpush1.msra.mxu0 %v951
    %1226 = vmatprep.subr.mxu0 0.0
    %1227 = vmatpush1.msra.mxu0 %v956
    %1228 = vmatprep.subr.mxu0 0.0
    %1229 = vmatpush1.msra.mxu0 %v961
    %1230 = vmatprep.subr.mxu0 0.0
    %1231 = vmatpush1.msra.mxu0 0.0
    %1232 = vmatprep.subr.mxu0 0.0
    %1233 = vmatpush1.msra.mxu0 0.0
    %1234 = vmatprep.subr.mxu0 0.0
    %1235 = vmatpush1.msra.mxu0 0.0
    %1236 = vmatprep.subr.mxu0 0.0
    %1237 = vmatpush1.msra.mxu0 0.0
    %1238 = vmatprep.mubr.f32.mxu0 %v1049
    %1239 = vmatmul.mubr.f32.gmra.mrb[0].mxu0 %v964
    %v1240 = vpop.f32.mrb[0].mxu0
    %v1241 = vadd.f32 0.0, %v1240
    %v1242 = vpop.f32.mrb[0].mxu0
    %1243 = vmatprep.mubr.f32.mxu0 %v1052
    %1244 = vmatmul.mubr.f32.gmra.mrb[0].mxu0 %v966
    %v1245 = vpop.f32.mrb[0].mxu0
    %v1246 = vadd.f32 0.0, %v1245
    %v1247 = vpop.f32.mrb[0].mxu0
    %1248 = vmatprep.mubr.f32.mxu0 %v1055
    %1249 = vmatmul.mubr.f32.gmra.mrb[0].mxu0 %v968
    %v1250 = vpop.f32.mrb[0].mxu0
    %v1251 = vadd.f32 0.0, %v1250
    %v1252 = vpop.f32.mrb[0].mxu0
    %1253 = vmatprep.mubr.f32.mxu0 %v1058
    %1254 = vmatmul.mubr.f32.gmra.mrb[0].mxu0 %v970
    %v1255 = vpop.f32.mrb[0].mxu0
    %v1256 = vadd.f32 0.0, %v1255
    %v1257 = vpop.f32.mrb[0].mxu0
    %1258 = vmatprep.mubr.f32.mxu0 %v1061
    %1259 = vmatmul.mubr.f32.gmra.mrb[0].mxu0 %v972
    %v1260 = vpop.f32.mrb[0].mxu0
    %v1261 = vadd.f32 0.0, %v1260
    %v1262 = vpop.f32.mrb[0].mxu0
    %1263 = vmatprep.mubr.f32.mxu0 %v1064
    %1264 = vmatmul.mubr.f32.gmra.mrb[0].mxu0 %v974
    %v1265 = vpop.f32.mrb[0].mxu0
    %v1266 = vadd.f32 0.0, %v1265
    %v1267 = vpop.f32.mrb[0].mxu0
    %1268 = vmatprep.mubr.f32.mxu0 %v1067
    %1269 = vmatmul.mubr.f32.gmra.mrb[0].mxu0 %v976
    %v1270 = vpop.f32.mrb[0].mxu0
    %v1271 = vadd.f32 0.0, %v1270
    %v1272 = vpop.f32.mrb[0].mxu0
    %1273 = vmatprep.mubr.f32.mxu0 %v1070
    %1274 = vmatmul.mubr.f32.gmra.mrb[0].mxu0 %v978
    %v1275 = vpop.f32.mrb[0].mxu0
    %v1276 = vadd.f32 0.0, %v1275
    %v1277 = vpop.f32.mrb[0].mxu0
    %1278 = vmatprep.mubr.f32.mxu0 %v1073
    %1279 = vmatmul.mubr.f32.gmra.mrb[0].mxu0 %v980
    %v1280 = vpop.f32.mrb[0].mxu0
    %v1281 = vadd.f32 0.0, %v1280
    %v1282 = vpop.f32.mrb[0].mxu0
    %1283 = vmatprep.mubr.f32.mxu0 %v1076
    %1284 = vmatmul.mubr.f32.gmra.mrb[0].mxu0 %v982
    %v1285 = vpop.f32.mrb[0].mxu0
    %v1286 = vadd.f32 0.0, %v1285
    %v1287 = vpop.f32.mrb[0].mxu0
    %1288 = vmatprep.mubr.f32.mxu0 %v1079
    %1289 = vmatmul.mubr.f32.gmra.mrb[0].mxu0 %v984
    %v1290 = vpop.f32.mrb[0].mxu0
    %v1291 = vadd.f32 0.0, %v1290
    %v1292 = vpop.f32.mrb[0].mxu0
    %1293 = vmatprep.mubr.f32.mxu0 %v1082
    %1294 = vmatmul.mubr.f32.gmra.mrb[0].mxu0 %v986
    %v1295 = vpop.f32.mrb[0].mxu0
    %v1296 = vadd.f32 0.0, %v1295
    %v1297 = vpop.f32.mrb[0].mxu0
    %1298 = vmatprep.mubr.f32.mxu0 %v1085
    %1299 = vmatmul.mubr.f32.gmra.mrb[0].mxu0 %v988
    %v1300 = vpop.f32.mrb[0].mxu0
    %v1301 = vadd.f32 0.0, %v1300
    %v1302 = vpop.f32.mrb[0].mxu0
    %1303 = vmatprep.mubr.f32.mxu0 %v1088
    %1304 = vmatmul.mubr.f32.gmra.mrb[0].mxu0 %v990
    %v1305 = vpop.f32.mrb[0].mxu0
    %v1306 = vadd.f32 0.0, %v1305
    %v1307 = vpop.f32.mrb[0].mxu0
    %1308 = vmatprep.mubr.f32.mxu0 %v1091
    %1309 = vmatmul.mubr.f32.gmra.mrb[0].mxu0 %v992
    %v1310 = vpop.f32.mrb[0].mxu0
    %v1311 = vadd.f32 0.0, %v1310
    %v1312 = vpop.f32.mrb[0].mxu0
    %1313 = vmatprep.mubr.f32.mxu0 %v1094
    %1314 = vmatmul.mubr.f32.gmra.mrb[0].mxu0 %v994
    %v1315 = vpop.f32.mrb[0].mxu0
    %v1316 = vadd.f32 0.0, %v1315
    %v1317 = vpop.f32.mrb[0].mxu0
    %1318 = vmatprep.mubr.f32.mxu0 %v1097
    %1319 = vmatmul.mubr.f32.gmra.mrb[0].mxu0 %v996
    %v1320 = vpop.f32.mrb[0].mxu0
    %v1321 = vadd.f32 0.0, %v1320
    %v1322 = vpop.f32.mrb[0].mxu0
    %1323 = vmatprep.mubr.f32.mxu0 %v1100
    %1324 = vmatmul.mubr.f32.gmra.mrb[0].mxu0 %v998
    %v1325 = vpop.f32.mrb[0].mxu0
    %v1326 = vadd.f32 0.0, %v1325
    %v1327 = vpop.f32.mrb[0].mxu0
    %1328 = vmatprep.mubr.f32.mxu0 %v1103
    %1329 = vmatmul.mubr.f32.gmra.mrb[0].mxu0 %v1000
    %v1330 = vpop.f32.mrb[0].mxu0
    %v1331 = vadd.f32 0.0, %v1330
    %v1332 = vpop.f32.mrb[0].mxu0
    %1333 = vmatprep.mubr.f32.mxu0 %v1106
    %1334 = vmatmul.mubr.f32.gmra.mrb[0].mxu0 %v1002
    %v1335 = vpop.f32.mrb[0].mxu0
    %v1336 = vadd.f32 0.0, %v1335
    %v1337 = vpop.f32.mrb[0].mxu0
    %1338 = vmatprep.mubr.f32.mxu0 %v1109
    %1339 = vmatmul.mubr.f32.gmra.mrb[0].mxu0 %v1004
    %v1340 = vpop.f32.mrb[0].mxu0
    %v1341 = vadd.f32 0.0, %v1340
    %v1342 = vpop.f32.mrb[0].mxu0
    %1343 = vmatprep.mubr.f32.mxu0 %v1112
    %1344 = vmatmul.mubr.f32.gmra.mrb[0].mxu0 %v1006
    %v1345 = vpop.f32.mrb[0].mxu0
    %v1346 = vadd.f32 0.0, %v1345
    %v1347 = vpop.f32.mrb[0].mxu0
    %1348 = vmatprep.mubr.f32.mxu0 %v1115
    %1349 = vmatmul.mubr.f32.gmra.mrb[0].mxu0 %v1008
    %v1350 = vpop.f32.mrb[0].mxu0
    %v1351 = vadd.f32 0.0, %v1350
    %v1352 = vpop.f32.mrb[0].mxu0
    %1353 = vmatprep.mubr.f32.mxu0 %v1118
    %1354 = vmatmul.mubr.f32.gmra.mrb[0].mxu0 %v1010
    %v1355 = vpop.f32.mrb[0].mxu0
    %v1356 = vadd.f32 0.0, %v1355
    %v1357 = vpop.f32.mrb[0].mxu0
    %1358 = vmatprep.mubr.f32.mxu0 %v1121
    %1359 = vmatmul.mubr.f32.gmra.mrb[0].mxu0 %v1012
    %v1360 = vpop.f32.mrb[0].mxu0
    %v1361 = vadd.f32 0.0, %v1360
    %v1362 = vpop.f32.mrb[0].mxu0
    %1363 = vmatprep.mubr.f32.mxu0 %v1124
    %1364 = vmatmul.mubr.f32.gmra.mrb[0].mxu0 %v1014
    %v1365 = vpop.f32.mrb[0].mxu0
    %v1366 = vadd.f32 0.0, %v1365
    %v1367 = vpop.f32.mrb[0].mxu0
    %1368 = vmatprep.mubr.f32.mxu0 %v1127
    %1369 = vmatmul.mubr.f32.gmra.mrb[0].mxu0 %v1016
    %v1370 = vpop.f32.mrb[0].mxu0
    %v1371 = vadd.f32 0.0, %v1370
    %v1372 = vpop.f32.mrb[0].mxu0
    %1373 = vmatprep.mubr.f32.mxu0 %v1130
    %1374 = vmatmul.mubr.f32.gmra.mrb[0].mxu0 %v1018
    %v1375 = vpop.f32.mrb[0].mxu0
    %v1376 = vadd.f32 0.0, %v1375
    %v1377 = vpop.f32.mrb[0].mxu0
    %1378 = vmatprep.mubr.f32.mxu0 %v1133
    %1379 = vmatmul.mubr.f32.gmra.mrb[0].mxu0 %v1020
    %v1380 = vpop.f32.mrb[0].mxu0
    %v1381 = vadd.f32 0.0, %v1380
    %v1382 = vpop.f32.mrb[0].mxu0
    %1383 = vmatprep.mubr.f32.mxu0 %v1136
    %1384 = vmatmul.mubr.f32.gmra.mrb[0].mxu0 %v1022
    %v1385 = vpop.f32.mrb[0].mxu0
    %v1386 = vadd.f32 0.0, %v1385
    %v1387 = vpop.f32.mrb[0].mxu0
    %1388 = vmatprep.mubr.f32.mxu0 %v1139
    %1389 = vmatmul.mubr.f32.gmra.mrb[0].mxu0 %v1024
    %v1390 = vpop.f32.mrb[0].mxu0
    %v1391 = vadd.f32 0.0, %v1390
    %v1392 = vpop.f32.mrb[0].mxu0
    %1393 = vmatprep.mubr.f32.mxu0 %v1142
    %1394 = vmatmul.mubr.f32.gmra.mrb[0].mxu0 %v1026
    %v1395 = vpop.f32.mrb[0].mxu0
    %v1396 = vadd.f32 0.0, %v1395
    %v1397 = vpop.f32.mrb[0].mxu0
    %1398 = vmatprep.mubr.f32.mxu0 %v1145
    %1399 = vmatmul.mubr.f32.gmra.mrb[0].mxu0 %v1028
    %v1400 = vpop.f32.mrb[0].mxu0
    %v1401 = vadd.f32 0.0, %v1400
    %v1402 = vpop.f32.mrb[0].mxu0
    %1403 = vmatprep.mubr.f32.mxu0 %v1148
    %1404 = vmatmul.mubr.f32.gmra.mrb[0].mxu0 %v1030
    %v1405 = vpop.f32.mrb[0].mxu0
    %v1406 = vadd.f32 0.0, %v1405
    %v1407 = vpop.f32.mrb[0].mxu0
    %1408 = vmatprep.mubr.f32.mxu0 %v1151
    %1409 = vmatmul.mubr.f32.gmra.mrb[0].mxu0 %v1032
    %v1410 = vpop.f32.mrb[0].mxu0
    %v1411 = vadd.f32 0.0, %v1410
    %v1412 = vpop.f32.mrb[0].mxu0
    %1413 = vmatprep.mubr.f32.mxu0 %v1154
    %1414 = vmatmul.mubr.f32.gmra.mrb[0].mxu0 %v1034
    %v1415 = vpop.f32.mrb[0].mxu0
    %v1416 = vadd.f32 0.0, %v1415
    %v1417 = vpop.f32.mrb[0].mxu0
    %1418 = vmatprep.mubr.f32.mxu0 %v1157
    %1419 = vmatmul.mubr.f32.gmra.mrb[0].mxu0 %v1036
    %v1420 = vpop.f32.mrb[0].mxu0
    %v1421 = vadd.f32 0.0, %v1420
    %v1422 = vpop.f32.mrb[0].mxu0
    %1423 = vmatprep.mubr.f32.mxu0 %v1160
    %1424 = vmatmul.mubr.f32.gmra.mrb[0].mxu0 %v1038
    %v1425 = vpop.f32.mrb[0].mxu0
    %v1426 = vadd.f32 0.0, %v1425
    %v1427 = vpop.f32.mrb[0].mxu0
    %1428 = vmatprep.mubr.f32.mxu0 %v1163
    %1429 = vmatmul.mubr.f32.gmra.mrb[0].mxu0 %v1040
    %v1430 = vpop.f32.mrb[0].mxu0
    %v1431 = vadd.f32 0.0, %v1430
    %v1432 = vpop.f32.mrb[0].mxu0
    %1433 = vmatprep.mubr.f32.mxu0 %v1166
    %1434 = vmatmul.mubr.f32.gmra.mrb[0].mxu0 %v1042
    %v1435 = vpop.f32.mrb[0].mxu0
    %v1436 = vadd.f32 0.0, %v1435
    %v1437 = vpop.f32.mrb[0].mxu0
    %1438 = vmatprep.mubr.f32.mxu0 %v1169
    %1439 = vmatmul.mubr.f32.gmra.mrb[0].mxu0 %v1044
    %v1440 = vpop.f32.mrb[0].mxu0
    %v1441 = vadd.f32 0.0, %v1440
    %v1442 = vpop.f32.mrb[0].mxu0
    %1443 = vmatprep.mubr.f32.mxu0 %v1172
    %1444 = vmatmul.mubr.f32.gmra.mrb[0].mxu0 %v1046
    %v1445 = vpop.f32.mrb[0].mxu0
    %v1446 = vadd.f32 0.0, %v1445
    %v1447 = vpop.f32.mrb[0].mxu0
    %1448 = vdwg.mxu0
    %v1449 = vld [vmem:[#allocation10] sm:$0xff]
    %v1450 = vld [vmem:[#allocation10 + $0x8] sm:$0xff]
    %v1451 = vld [vmem:[#allocation10 + $0x10] sm:$0xff]
    %v1452 = vld [vmem:[#allocation10 + $0x18] sm:$0xff]
    %v1453 = vld [vmem:[#allocation10 + $0x20] sm:$0xff]
    %v1454 = vld [vmem:[#allocation10 + $0x28] sm:$0xff]
    %v1455 = vld [vmem:[#allocation10 + $0x30] sm:$0xff]
    %v1456 = vld [vmem:[#allocation10 + $0x38] sm:$0xff]
    %v1457 = vld [vmem:[#allocation10 + $0x40] sm:$0xff]
    %v1458 = vld [vmem:[#allocation10 + $0x48] sm:$0xff]
    %v1459 = vld [vmem:[#allocation10 + $0x50] sm:$0xff]
    %v1460 = vld [vmem:[#allocation10 + $0x58] sm:$0xff]
    %v1461 = vld [vmem:[#allocation10 + $0x60] sm:$0xff]
    %v1462 = vld [vmem:[#allocation10 + $0x68] sm:$0xff]
    %v1463 = vld [vmem:[#allocation10 + $0x70] sm:$0xff]
    %v1464 = vld [vmem:[#allocation10 + $0x78] sm:$0xff]
    %v1465 = vld [vmem:[#allocation10 + $0x80] sm:$0xff]
    %v1466 = vld [vmem:[#allocation10 + $0x88] sm:$0xff]
    %v1467 = vld [vmem:[#allocation10 + $0x90] sm:$0xff]
    %v1468 = vld [vmem:[#allocation10 + $0x98] sm:$0xff]
    %v1469 = vld [vmem:[#allocation10 + $0xa0] sm:$0xff]
    %v1470 = vld [vmem:[#allocation10 + $0xa8] sm:$0xff]
    %v1471 = vld [vmem:[#allocation10 + $0xb0] sm:$0xff]
    %v1472 = vld [vmem:[#allocation10 + $0xb8] sm:$0xff]
    %v1473 = vld [vmem:[#allocation10 + $0xc0] sm:$0xff]
    %v1474 = vld [vmem:[#allocation10 + $0xc8] sm:$0xff]
    %v1475 = vld [vmem:[#allocation10 + $0xd0] sm:$0xff]
    %v1476 = vld [vmem:[#allocation10 + $0xd8] sm:$0xff]
    %v1477 = vld [vmem:[#allocation10 + $0xe0] sm:$0xff]
    %v1478 = vld [vmem:[#allocation10 + $0xe8] sm:$0xff]
    %v1479 = vld [vmem:[#allocation10 + $0xf0] sm:$0xff]
    %v1480 = vld [vmem:[#allocation10 + $0xf8] sm:$0xff]
    %s1481 = scalar_lea.vmem [#allocation10], 256
    %v1482 = vld [vmem:[%s1481] sm:$0xff]
    %v1483 = vld [vmem:[%s1481 + $0x8] sm:$0xff]
    %v1484 = vld [vmem:[%s1481 + $0x10] sm:$0xff]
    %v1485 = vld [vmem:[%s1481 + $0x18] sm:$0xff]
    %v1486 = vld [vmem:[%s1481 + $0x20] sm:$0xff]
    %v1487 = vld [vmem:[%s1481 + $0x28] sm:$0xff]
    %v1488 = vld [vmem:[%s1481 + $0x30] sm:$0xff]
    %v1489 = vld [vmem:[%s1481 + $0x38] sm:$0xff]
    %v1490 = vld [vmem:[%s1481 + $0x40] sm:$0xff]
    %v1491 = vld [vmem:[%s1481 + $0x48] sm:$0xff]
    %v1492 = vld [vmem:[%s1481 + $0x50] sm:$0xff]
    %v1493 = vld [vmem:[%s1481 + $0x58] sm:$0xff]
    %v1494 = vld [vmem:[%s1481 + $0x60] sm:$0xff]
    %v1495 = vld [vmem:[%s1481 + $0x68] sm:$0xff]
    %v1496 = vld [vmem:[%s1481 + $0x70] sm:$0xff]
    %v1497 = vld [vmem:[%s1481 + $0x78] sm:$0xff]
    %v1498 = vld [vmem:[%s1481 + $0x80] sm:$0xff]
    %v1499 = vld [vmem:[%s1481 + $0x88] sm:$0xff]
    %v1500 = vld [vmem:[%s1481 + $0x90] sm:$0xff]
    %v1501 = vld [vmem:[%s1481 + $0x98] sm:$0xff]
    %v1502 = vld [vmem:[%s1481 + $0xa0] sm:$0xff]
    %v1503 = vld [vmem:[%s1481 + $0xa8] sm:$0xff]
    %v1504 = vld [vmem:[%s1481 + $0xb0] sm:$0xff]
    %v1505 = vld [vmem:[%s1481 + $0xb8] sm:$0xff]
    %v1506 = vld [vmem:[%s1481 + $0xc0] sm:$0xff]
    %v1507 = vld [vmem:[%s1481 + $0xc8] sm:$0xff]
    %v1508 = vld [vmem:[%s1481 + $0xd0] sm:$0xff]
    %v1509 = vld [vmem:[%s1481 + $0xd8] sm:$0xff]
    %v1510 = vld [vmem:[%s1481 + $0xe0] sm:$0xff]
    %v1511 = vld [vmem:[%s1481 + $0xe8] sm:$0xff]
    %v1512 = vld [vmem:[%s1481 + $0xf0] sm:$0xff]
    %v1513 = vld [vmem:[%s1481 + $0xf8] sm:$0xff]
    %1514 = vmatprep.subr.mxu0 %v1483
    %1515 = vmatpush1.msra.mxu0 %v1482
    %1516 = vmatprep.subr.mxu0 %v1485
    %1517 = vmatpush1.msra.mxu0 %v1484
    %1518 = vmatprep.subr.mxu0 %v1487
    %1519 = vmatpush1.msra.mxu0 %v1486
    %1520 = vmatprep.subr.mxu0 %v1489
    %1521 = vmatpush1.msra.mxu0 %v1488
    %1522 = vmatprep.subr.mxu0 %v1491
    %1523 = vmatpush1.msra.mxu0 %v1490
    %1524 = vmatprep.subr.mxu0 %v1493
    %1525 = vmatpush1.msra.mxu0 %v1492
    %1526 = vmatprep.subr.mxu0 %v1495
    %1527 = vmatpush1.msra.mxu0 %v1494
    %1528 = vmatprep.subr.mxu0 %v1497
    %1529 = vmatpush1.msra.mxu0 %v1496
    %1530 = vmatprep.subr.mxu0 %v1499
    %1531 = vmatpush1.msra.mxu0 %v1498
    %1532 = vmatprep.subr.mxu0 %v1501
    %1533 = vmatpush1.msra.mxu0 %v1500
    %1534 = vmatprep.subr.mxu0 %v1503
    %1535 = vmatpush1.msra.mxu0 %v1502
    %1536 = vmatprep.subr.mxu0 %v1505
    %1537 = vmatpush1.msra.mxu0 %v1504
    %1538 = vmatprep.subr.mxu0 %v1507
    %1539 = vmatpush1.msra.mxu0 %v1506
    %1540 = vmatprep.subr.mxu0 %v1509
    %1541 = vmatpush1.msra.mxu0 %v1508
    %1542 = vmatprep.subr.mxu0 %v1511
    %1543 = vmatpush1.msra.mxu0 %v1510
    %1544 = vmatprep.subr.mxu0 %v1513
    %1545 = vmatpush1.msra.mxu0 %v1512
    %1546 = vmatprep.subr.mxu0 0.0
    %1547 = vmatpush1.msra.mxu0 0.0
    %1548 = vmatprep.subr.mxu0 0.0
    %1549 = vmatpush1.msra.mxu0 0.0
    %1550 = vmatprep.subr.mxu0 0.0
    %1551 = vmatpush1.msra.mxu0 0.0
    %1552 = vmatprep.subr.mxu0 0.0
    %1553 = vmatpush1.msra.mxu0 0.0
    %1554 = vmatprep.subr.mxu0 0.0
    %1555 = vmatpush1.msra.mxu0 0.0
    %1556 = vmatprep.subr.mxu0 0.0
    %1557 = vmatpush1.msra.mxu0 0.0
    %1558 = vmatprep.subr.mxu0 0.0
    %1559 = vmatpush1.msra.mxu0 0.0
    %1560 = vmatprep.subr.mxu0 0.0
    %1561 = vmatpush1.msra.mxu0 0.0
    %1562 = vmatprep.subr.mxu0 0.0
    %1563 = vmatpush1.msra.mxu0 0.0
    %1564 = vmatprep.subr.mxu0 0.0
    %1565 = vmatpush1.msra.mxu0 0.0
    %1566 = vmatprep.subr.mxu0 0.0
    %1567 = vmatpush1.msra.mxu0 0.0
    %1568 = vmatprep.subr.mxu0 0.0
    %1569 = vmatpush1.msra.mxu0 0.0
    %1570 = vmatprep.subr.mxu0 0.0
    %1571 = vmatpush1.msra.mxu0 0.0
    %1572 = vmatprep.subr.mxu0 0.0
    %1573 = vmatpush1.msra.mxu0 0.0
    %1574 = vmatprep.subr.mxu0 0.0
    %1575 = vmatpush1.msra.mxu0 0.0
    %1576 = vmatprep.subr.mxu0 0.0
    %1577 = vmatpush1.msra.mxu0 0.0
    %1578 = vmatprep.mubr.f32.mxu0 0.0
    %1579 = vmatmul.mubr.f32.gmra.mrb[0].mxu0 %v1311
    %v1580 = vpop.f32.mrb[0].mxu0
    %v1581 = vadd.f32 0.0, %v1580
    %v1582 = vpop.f32.mrb[0].mxu0
    %v1583 = vadd.f32 0.0, %v1582
    %1584 = vmatprep.mubr.f32.mxu0 0.0
    %1585 = vmatmul.mubr.f32.gmra.mrb[0].mxu0 %v1316
    %v1586 = vpop.f32.mrb[0].mxu0
    %v1587 = vadd.f32 0.0, %v1586
    %v1588 = vpop.f32.mrb[0].mxu0
    %v1589 = vadd.f32 0.0, %v1588
    %1590 = vmatprep.mubr.f32.mxu0 0.0
    %1591 = vmatmul.mubr.f32.gmra.mrb[0].mxu0 %v1321
    %v1592 = vpop.f32.mrb[0].mxu0
    %v1593 = vadd.f32 0.0, %v1592
    %v1594 = vpop.f32.mrb[0].mxu0
    %v1595 = vadd.f32 0.0, %v1594
    %1596 = vmatprep.mubr.f32.mxu0 0.0
    %1597 = vmatmul.mubr.f32.gmra.mrb[0].mxu0 %v1326
    %v1598 = vpop.f32.mrb[0].mxu0
    %v1599 = vadd.f32 0.0, %v1598
    %v1600 = vpop.f32.mrb[0].mxu0
    %v1601 = vadd.f32 0.0, %v1600
    %1602 = vmatprep.mubr.f32.mxu0 0.0
    %1603 = vmatmul.mubr.f32.gmra.mrb[0].mxu0 %v1331
    %v1604 = vpop.f32.mrb[0].mxu0
    %v1605 = vadd.f32 0.0, %v1604
    %v1606 = vpop.f32.mrb[0].mxu0
    %v1607 = vadd.f32 0.0, %v1606
    %1608 = vmatprep.mubr.f32.mxu0 0.0
    %1609 = vmatmul.mubr.f32.gmra.mrb[0].mxu0 %v1336
    %v1610 = vpop.f32.mrb[0].mxu0
    %v1611 = vadd.f32 0.0, %v1610
    %v1612 = vpop.f32.mrb[0].mxu0
    %v1613 = vadd.f32 0.0, %v1612
    %1614 = vmatprep.mubr.f32.mxu0 0.0
    %1615 = vmatmul.mubr.f32.gmra.mrb[0].mxu0 %v1341
    %v1616 = vpop.f32.mrb[0].mxu0
    %v1617 = vadd.f32 0.0, %v1616
    %v1618 = vpop.f32.mrb[0].mxu0
    %v1619 = vadd.f32 0.0, %v1618
    %1620 = vmatprep.mubr.f32.mxu0 0.0
    %1621 = vmatmul.mubr.f32.gmra.mrb[0].mxu0 %v1346
    %v1622 = vpop.f32.mrb[0].mxu0
    %v1623 = vadd.f32 0.0, %v1622
    %v1624 = vpop.f32.mrb[0].mxu0
    %v1625 = vadd.f32 0.0, %v1624
    %1626 = vmatprep.mubr.f32.mxu0 0.0
    %1627 = vmatmul.mubr.f32.gmra.mrb[0].mxu0 %v1351
    %v1628 = vpop.f32.mrb[0].mxu0
    %v1629 = vadd.f32 0.0, %v1628
    %v1630 = vpop.f32.mrb[0].mxu0
    %v1631 = vadd.f32 0.0, %v1630
    %1632 = vmatprep.mubr.f32.mxu0 0.0
    %1633 = vmatmul.mubr.f32.gmra.mrb[0].mxu0 %v1356
    %v1634 = vpop.f32.mrb[0].mxu0
    %v1635 = vadd.f32 0.0, %v1634
    %v1636 = vpop.f32.mrb[0].mxu0
    %v1637 = vadd.f32 0.0, %v1636
    %1638 = vmatprep.mubr.f32.mxu0 0.0
    %1639 = vmatmul.mubr.f32.gmra.mrb[0].mxu0 %v1361
    %v1640 = vpop.f32.mrb[0].mxu0
    %v1641 = vadd.f32 0.0, %v1640
    %v1642 = vpop.f32.mrb[0].mxu0
    %v1643 = vadd.f32 0.0, %v1642
    %1644 = vmatprep.mubr.f32.mxu0 0.0
    %1645 = vmatmul.mubr.f32.gmra.mrb[0].mxu0 %v1366
    %v1646 = vpop.f32.mrb[0].mxu0
    %v1647 = vadd.f32 0.0, %v1646
    %v1648 = vpop.f32.mrb[0].mxu0
    %v1649 = vadd.f32 0.0, %v1648
    %1650 = vmatprep.mubr.f32.mxu0 0.0
    %1651 = vmatmul.mubr.f32.gmra.mrb[0].mxu0 %v1371
    %v1652 = vpop.f32.mrb[0].mxu0
    %v1653 = vadd.f32 0.0, %v1652
    %v1654 = vpop.f32.mrb[0].mxu0
    %v1655 = vadd.f32 0.0, %v1654
    %1656 = vmatprep.mubr.f32.mxu0 0.0
    %1657 = vmatmul.mubr.f32.gmra.mrb[0].mxu0 %v1376
    %v1658 = vpop.f32.mrb[0].mxu0
    %v1659 = vadd.f32 0.0, %v1658
    %v1660 = vpop.f32.mrb[0].mxu0
    %v1661 = vadd.f32 0.0, %v1660
    %1662 = vdwg.mxu0
    %1663 = vmatprep.subr.mxu0 %v1450
    %1664 = vmatpush1.msra.mxu0 %v1449
    %1665 = vmatprep.subr.mxu0 %v1452
    %1666 = vmatpush1.msra.mxu0 %v1451
    %1667 = vmatprep.subr.mxu0 %v1454
    %1668 = vmatpush1.msra.mxu0 %v1453
    %1669 = vmatprep.subr.mxu0 %v1456
    %1670 = vmatpush1.msra.mxu0 %v1455
    %1671 = vmatprep.subr.mxu0 %v1458
    %1672 = vmatpush1.msra.mxu0 %v1457
    %1673 = vmatprep.subr.mxu0 %v1460
    %1674 = vmatpush1.msra.mxu0 %v1459
    %1675 = vmatprep.subr.mxu0 %v1462
    %1676 = vmatpush1.msra.mxu0 %v1461
    %1677 = vmatprep.subr.mxu0 %v1464
    %1678 = vmatpush1.msra.mxu0 %v1463
    %1679 = vmatprep.subr.mxu0 %v1466
    %1680 = vmatpush1.msra.mxu0 %v1465
    %1681 = vmatprep.subr.mxu0 %v1468
    %1682 = vmatpush1.msra.mxu0 %v1467
    %1683 = vmatprep.subr.mxu0 %v1470
    %1684 = vmatpush1.msra.mxu0 %v1469
    %1685 = vmatprep.subr.mxu0 %v1472
    %1686 = vmatpush1.msra.mxu0 %v1471
    %1687 = vmatprep.subr.mxu0 %v1474
    %1688 = vmatpush1.msra.mxu0 %v1473
    %1689 = vmatprep.subr.mxu0 %v1476
    %1690 = vmatpush1.msra.mxu0 %v1475
    %1691 = vmatprep.subr.mxu0 %v1478
    %1692 = vmatpush1.msra.mxu0 %v1477
    %1693 = vmatprep.subr.mxu0 %v1480
    %1694 = vmatpush1.msra.mxu0 %v1479
    %1695 = vmatprep.subr.mxu0 0.0
    %1696 = vmatpush1.msra.mxu0 0.0
    %1697 = vmatprep.subr.mxu0 0.0
    %1698 = vmatpush1.msra.mxu0 0.0
    %1699 = vmatprep.subr.mxu0 0.0
    %1700 = vmatpush1.msra.mxu0 0.0
    %1701 = vmatprep.subr.mxu0 0.0
    %1702 = vmatpush1.msra.mxu0 0.0
    %1703 = vmatprep.subr.mxu0 0.0
    %1704 = vmatpush1.msra.mxu0 0.0
    %1705 = vmatprep.subr.mxu0 0.0
    %1706 = vmatpush1.msra.mxu0 0.0
    %1707 = vmatprep.subr.mxu0 0.0
    %1708 = vmatpush1.msra.mxu0 0.0
    %1709 = vmatprep.subr.mxu0 0.0
    %1710 = vmatpush1.msra.mxu0 0.0
    %1711 = vmatprep.subr.mxu0 0.0
    %1712 = vmatpush1.msra.mxu0 0.0
    %1713 = vmatprep.subr.mxu0 0.0
    %1714 = vmatpush1.msra.mxu0 0.0
    %1715 = vmatprep.subr.mxu0 0.0
    %1716 = vmatpush1.msra.mxu0 0.0
    %1717 = vmatprep.subr.mxu0 0.0
    %1718 = vmatpush1.msra.mxu0 0.0
    %1719 = vmatprep.subr.mxu0 0.0
    %1720 = vmatpush1.msra.mxu0 0.0
    %1721 = vmatprep.subr.mxu0 0.0
    %1722 = vmatpush1.msra.mxu0 0.0
    %1723 = vmatprep.subr.mxu0 0.0
    %1724 = vmatpush1.msra.mxu0 0.0
    %1725 = vmatprep.subr.mxu0 0.0
    %1726 = vmatpush1.msra.mxu0 0.0
    %1727 = vmatprep.mubr.f32.mxu0 0.0
    %1728 = vmatmul.mubr.f32.gmra.mrb[0].mxu0 %v1241
    %v1729 = vpop.f32.mrb[0].mxu0
    %v1730 = vadd.f32 %v1581, %v1729
    %v1731 = vpop.f32.mrb[0].mxu0
    %v1732 = vadd.f32 %v1583, %v1731
    %1733 = vmatprep.mubr.f32.mxu0 0.0
    %1734 = vmatmul.mubr.f32.gmra.mrb[0].mxu0 %v1246
    %v1735 = vpop.f32.mrb[0].mxu0
    %v1736 = vadd.f32 %v1587, %v1735
    %v1737 = vpop.f32.mrb[0].mxu0
    %v1738 = vadd.f32 %v1589, %v1737
    %1739 = vmatprep.mubr.f32.mxu0 0.0
    %1740 = vmatmul.mubr.f32.gmra.mrb[0].mxu0 %v1251
    %v1741 = vpop.f32.mrb[0].mxu0
    %v1742 = vadd.f32 %v1593, %v1741
    %v1743 = vpop.f32.mrb[0].mxu0
    %v1744 = vadd.f32 %v1595, %v1743
    %1745 = vmatprep.mubr.f32.mxu0 0.0
    %1746 = vmatmul.mubr.f32.gmra.mrb[0].mxu0 %v1256
    %v1747 = vpop.f32.mrb[0].mxu0
    %v1748 = vadd.f32 %v1599, %v1747
    %v1749 = vpop.f32.mrb[0].mxu0
    %v1750 = vadd.f32 %v1601, %v1749
    %1751 = vmatprep.mubr.f32.mxu0 0.0
    %1752 = vmatmul.mubr.f32.gmra.mrb[0].mxu0 %v1261
    %v1753 = vpop.f32.mrb[0].mxu0
    %v1754 = vadd.f32 %v1605, %v1753
    %v1755 = vpop.f32.mrb[0].mxu0
    %v1756 = vadd.f32 %v1607, %v1755
    %1757 = vmatprep.mubr.f32.mxu0 0.0
    %1758 = vmatmul.mubr.f32.gmra.mrb[0].mxu0 %v1266
    %v1759 = vpop.f32.mrb[0].mxu0
    %v1760 = vadd.f32 %v1611, %v1759
    %v1761 = vpop.f32.mrb[0].mxu0
    %v1762 = vadd.f32 %v1613, %v1761
    %1763 = vmatprep.mubr.f32.mxu0 0.0
    %1764 = vmatmul.mubr.f32.gmra.mrb[0].mxu0 %v1271
    %v1765 = vpop.f32.mrb[0].mxu0
    %v1766 = vadd.f32 %v1617, %v1765
    %v1767 = vpop.f32.mrb[0].mxu0
    %v1768 = vadd.f32 %v1619, %v1767
    %1769 = vmatprep.mubr.f32.mxu0 0.0
    %1770 = vmatmul.mubr.f32.gmra.mrb[0].mxu0 %v1276
    %v1771 = vpop.f32.mrb[0].mxu0
    %v1772 = vadd.f32 %v1623, %v1771
    %v1773 = vpop.f32.mrb[0].mxu0
    %v1774 = vadd.f32 %v1625, %v1773
    %1775 = vmatprep.mubr.f32.mxu0 0.0
    %1776 = vmatmul.mubr.f32.gmra.mrb[0].mxu0 %v1281
    %v1777 = vpop.f32.mrb[0].mxu0
    %v1778 = vadd.f32 %v1629, %v1777
    %v1779 = vpop.f32.mrb[0].mxu0
    %v1780 = vadd.f32 %v1631, %v1779
    %1781 = vmatprep.mubr.f32.mxu0 0.0
    %1782 = vmatmul.mubr.f32.gmra.mrb[0].mxu0 %v1286
    %v1783 = vpop.f32.mrb[0].mxu0
    %v1784 = vadd.f32 %v1635, %v1783
    %v1785 = vpop.f32.mrb[0].mxu0
    %v1786 = vadd.f32 %v1637, %v1785
    %1787 = vmatprep.mubr.f32.mxu0 0.0
    %1788 = vmatmul.mubr.f32.gmra.mrb[0].mxu0 %v1291
    %v1789 = vpop.f32.mrb[0].mxu0
    %v1790 = vadd.f32 %v1641, %v1789
    %v1791 = vpop.f32.mrb[0].mxu0
    %v1792 = vadd.f32 %v1643, %v1791
    %1793 = vmatprep.mubr.f32.mxu0 0.0
    %1794 = vmatmul.mubr.f32.gmra.mrb[0].mxu0 %v1296
    %v1795 = vpop.f32.mrb[0].mxu0
    %v1796 = vadd.f32 %v1647, %v1795
    %v1797 = vpop.f32.mrb[0].mxu0
    %v1798 = vadd.f32 %v1649, %v1797
    %1799 = vmatprep.mubr.f32.mxu0 0.0
    %1800 = vmatmul.mubr.f32.gmra.mrb[0].mxu0 %v1301
    %v1801 = vpop.f32.mrb[0].mxu0
    %v1802 = vadd.f32 %v1653, %v1801
    %v1803 = vpop.f32.mrb[0].mxu0
    %v1804 = vadd.f32 %v1655, %v1803
    %1805 = vmatprep.mubr.f32.mxu0 0.0
    %1806 = vmatmul.mubr.f32.gmra.mrb[0].mxu0 %v1306
    %v1807 = vpop.f32.mrb[0].mxu0
    %v1808 = vadd.f32 %v1659, %v1807
    %v1809 = vpop.f32.mrb[0].mxu0
    %v1810 = vadd.f32 %v1661, %v1809
    %1811 = vdwg.mxu0
    %s1812 = scalar_lea.vmem [#allocation10], 512
    %v1813 = vld [vmem:[%s1812] sm:$0xff]
    %v1814 = vld [vmem:[%s1812 + $0x8] sm:$0xff]
    %v1815 = vld [vmem:[%s1812 + $0x10] sm:$0xff]
    %v1816 = vld [vmem:[%s1812 + $0x18] sm:$0xff]
    %v1817 = vld [vmem:[%s1812 + $0x20] sm:$0xff]
    %v1818 = vld [vmem:[%s1812 + $0x28] sm:$0xff]
    %v1819 = vld [vmem:[%s1812 + $0x30] sm:$0xff]
    %v1820 = vld [vmem:[%s1812 + $0x38] sm:$0xff]
    %v1821 = vld [vmem:[%s1812 + $0x40] sm:$0xff]
    %v1822 = vld [vmem:[%s1812 + $0x48] sm:$0xff]
    %v1823 = vld [vmem:[%s1812 + $0x50] sm:$0xff]
    %v1824 = vld [vmem:[%s1812 + $0x58] sm:$0xff]
    %v1825 = vld [vmem:[%s1812 + $0x60] sm:$0xff]
    %v1826 = vld [vmem:[%s1812 + $0x68] sm:$0xff]
    %v1827 = vld [vmem:[%s1812 + $0x70] sm:$0xff]
    %v1828 = vld [vmem:[%s1812 + $0x78] sm:$0xff]
    %v1829 = vld [vmem:[%s1812 + $0x80] sm:$0xff]
    %v1830 = vld [vmem:[%s1812 + $0x88] sm:$0xff]
    %v1831 = vld [vmem:[%s1812 + $0x90] sm:$0xff]
    %v1832 = vld [vmem:[%s1812 + $0x98] sm:$0xff]
    %v1833 = vld [vmem:[%s1812 + $0xa0] sm:$0xff]
    %v1834 = vld [vmem:[%s1812 + $0xa8] sm:$0xff]
    %v1835 = vld [vmem:[%s1812 + $0xb0] sm:$0xff]
    %v1836 = vld [vmem:[%s1812 + $0xb8] sm:$0xff]
    %v1837 = vld [vmem:[%s1812 + $0xc0] sm:$0xff]
    %v1838 = vld [vmem:[%s1812 + $0xc8] sm:$0xff]
    %v1839 = vld [vmem:[%s1812 + $0xd0] sm:$0xff]
    %v1840 = vld [vmem:[%s1812 + $0xd8] sm:$0xff]
    %v1841 = vld [vmem:[%s1812 + $0xe0] sm:$0xff]
    %v1842 = vld [vmem:[%s1812 + $0xe8] sm:$0xff]
    %v1843 = vld [vmem:[%s1812 + $0xf0] sm:$0xff]
    %v1844 = vld [vmem:[%s1812 + $0xf8] sm:$0xff]
    %1845 = vmatprep.subr.mxu0 %v1814
    %1846 = vmatpush1.msra.mxu0 %v1813
    %1847 = vmatprep.subr.mxu0 %v1816
    %1848 = vmatpush1.msra.mxu0 %v1815
    %1849 = vmatprep.subr.mxu0 %v1818
    %1850 = vmatpush1.msra.mxu0 %v1817
    %1851 = vmatprep.subr.mxu0 %v1820
    %1852 = vmatpush1.msra.mxu0 %v1819
    %1853 = vmatprep.subr.mxu0 %v1822
    %1854 = vmatpush1.msra.mxu0 %v1821
    %1855 = vmatprep.subr.mxu0 %v1824
    %1856 = vmatpush1.msra.mxu0 %v1823
    %1857 = vmatprep.subr.mxu0 %v1826
    %1858 = vmatpush1.msra.mxu0 %v1825
    %1859 = vmatprep.subr.mxu0 %v1828
    %1860 = vmatpush1.msra.mxu0 %v1827
    %1861 = vmatprep.subr.mxu0 %v1830
    %1862 = vmatpush1.msra.mxu0 %v1829
    %1863 = vmatprep.subr.mxu0 %v1832
    %1864 = vmatpush1.msra.mxu0 %v1831
    %1865 = vmatprep.subr.mxu0 %v1834
    %1866 = vmatpush1.msra.mxu0 %v1833
    %1867 = vmatprep.subr.mxu0 %v1836
    %1868 = vmatpush1.msra.mxu0 %v1835
    %1869 = vmatprep.subr.mxu0 %v1838
    %1870 = vmatpush1.msra.mxu0 %v1837
    %1871 = vmatprep.subr.mxu0 %v1840
    %1872 = vmatpush1.msra.mxu0 %v1839
    %1873 = vmatprep.subr.mxu0 %v1842
    %1874 = vmatpush1.msra.mxu0 %v1841
    %1875 = vmatprep.subr.mxu0 %v1844
    %1876 = vmatpush1.msra.mxu0 %v1843
    %1877 = vmatprep.subr.mxu0 0.0
    %1878 = vmatpush1.msra.mxu0 0.0
    %1879 = vmatprep.subr.mxu0 0.0
    %1880 = vmatpush1.msra.mxu0 0.0
    %1881 = vmatprep.subr.mxu0 0.0
    %1882 = vmatpush1.msra.mxu0 0.0
    %1883 = vmatprep.subr.mxu0 0.0
    %1884 = vmatpush1.msra.mxu0 0.0
    %1885 = vmatprep.subr.mxu0 0.0
    %1886 = vmatpush1.msra.mxu0 0.0
    %1887 = vmatprep.subr.mxu0 0.0
    %1888 = vmatpush1.msra.mxu0 0.0
    %1889 = vmatprep.subr.mxu0 0.0
    %1890 = vmatpush1.msra.mxu0 0.0
    %1891 = vmatprep.subr.mxu0 0.0
    %1892 = vmatpush1.msra.mxu0 0.0
    %1893 = vmatprep.subr.mxu0 0.0
    %1894 = vmatpush1.msra.mxu0 0.0
    %1895 = vmatprep.subr.mxu0 0.0
    %1896 = vmatpush1.msra.mxu0 0.0
    %1897 = vmatprep.subr.mxu0 0.0
    %1898 = vmatpush1.msra.mxu0 0.0
    %1899 = vmatprep.subr.mxu0 0.0
    %1900 = vmatpush1.msra.mxu0 0.0
    %1901 = vmatprep.subr.mxu0 0.0
    %1902 = vmatpush1.msra.mxu0 0.0
    %1903 = vmatprep.subr.mxu0 0.0
    %1904 = vmatpush1.msra.mxu0 0.0
    %1905 = vmatprep.subr.mxu0 0.0
    %1906 = vmatpush1.msra.mxu0 0.0
    %1907 = vmatprep.subr.mxu0 0.0
    %1908 = vmatpush1.msra.mxu0 0.0
    %1909 = vmatprep.mubr.f32.mxu0 0.0
    %1910 = vmatmul.mubr.f32.gmra.mrb[0].mxu0 %v1381
    %v1911 = vpop.f32.mrb[0].mxu0
    %v1912 = vadd.f32 0.0, %v1911
    %v1913 = vpop.f32.mrb[0].mxu0
    %v1914 = vadd.f32 0.0, %v1913
    %1915 = vmatprep.mubr.f32.mxu0 0.0
    %1916 = vmatmul.mubr.f32.gmra.mrb[0].mxu0 %v1386
    %v1917 = vpop.f32.mrb[0].mxu0
    %v1918 = vadd.f32 0.0, %v1917
    %v1919 = vpop.f32.mrb[0].mxu0
    %v1920 = vadd.f32 0.0, %v1919
    %1921 = vmatprep.mubr.f32.mxu0 0.0
    %1922 = vmatmul.mubr.f32.gmra.mrb[0].mxu0 %v1391
    %v1923 = vpop.f32.mrb[0].mxu0
    %v1924 = vadd.f32 0.0, %v1923
    %v1925 = vpop.f32.mrb[0].mxu0
    %v1926 = vadd.f32 0.0, %v1925
    %1927 = vmatprep.mubr.f32.mxu0 0.0
    %1928 = vmatmul.mubr.f32.gmra.mrb[0].mxu0 %v1396
    %v1929 = vpop.f32.mrb[0].mxu0
    %v1930 = vadd.f32 0.0, %v1929
    %v1931 = vpop.f32.mrb[0].mxu0
    %v1932 = vadd.f32 0.0, %v1931
    %1933 = vmatprep.mubr.f32.mxu0 0.0
    %1934 = vmatmul.mubr.f32.gmra.mrb[0].mxu0 %v1401
    %v1935 = vpop.f32.mrb[0].mxu0
    %v1936 = vadd.f32 0.0, %v1935
    %v1937 = vpop.f32.mrb[0].mxu0
    %v1938 = vadd.f32 0.0, %v1937
    %1939 = vmatprep.mubr.f32.mxu0 0.0
    %1940 = vmatmul.mubr.f32.gmra.mrb[0].mxu0 %v1406
    %v1941 = vpop.f32.mrb[0].mxu0
    %v1942 = vadd.f32 0.0, %v1941
    %v1943 = vpop.f32.mrb[0].mxu0
    %v1944 = vadd.f32 0.0, %v1943
    %1945 = vmatprep.mubr.f32.mxu0 0.0
    %1946 = vmatmul.mubr.f32.gmra.mrb[0].mxu0 %v1411
    %v1947 = vpop.f32.mrb[0].mxu0
    %v1948 = vadd.f32 0.0, %v1947
    %v1949 = vpop.f32.mrb[0].mxu0
    %v1950 = vadd.f32 0.0, %v1949
    %1951 = vmatprep.mubr.f32.mxu0 0.0
    %1952 = vmatmul.mubr.f32.gmra.mrb[0].mxu0 %v1416
    %v1953 = vpop.f32.mrb[0].mxu0
    %v1954 = vadd.f32 0.0, %v1953
    %v1955 = vpop.f32.mrb[0].mxu0
    %v1956 = vadd.f32 0.0, %v1955
    %1957 = vmatprep.mubr.f32.mxu0 0.0
    %1958 = vmatmul.mubr.f32.gmra.mrb[0].mxu0 %v1421
    %v1959 = vpop.f32.mrb[0].mxu0
    %v1960 = vadd.f32 0.0, %v1959
    %v1961 = vpop.f32.mrb[0].mxu0
    %v1962 = vadd.f32 0.0, %v1961
    %1963 = vmatprep.mubr.f32.mxu0 0.0
    %1964 = vmatmul.mubr.f32.gmra.mrb[0].mxu0 %v1426
    %v1965 = vpop.f32.mrb[0].mxu0
    %v1966 = vadd.f32 0.0, %v1965
    %v1967 = vpop.f32.mrb[0].mxu0
    %v1968 = vadd.f32 0.0, %v1967
    %1969 = vmatprep.mubr.f32.mxu0 0.0
    %1970 = vmatmul.mubr.f32.gmra.mrb[0].mxu0 %v1431
    %v1971 = vpop.f32.mrb[0].mxu0
    %v1972 = vadd.f32 0.0, %v1971
    %v1973 = vpop.f32.mrb[0].mxu0
    %v1974 = vadd.f32 0.0, %v1973
    %1975 = vmatprep.mubr.f32.mxu0 0.0
    %1976 = vmatmul.mubr.f32.gmra.mrb[0].mxu0 %v1436
    %v1977 = vpop.f32.mrb[0].mxu0
    %v1978 = vadd.f32 0.0, %v1977
    %v1979 = vpop.f32.mrb[0].mxu0
    %v1980 = vadd.f32 0.0, %v1979
    %1981 = vmatprep.mubr.f32.mxu0 0.0
    %1982 = vmatmul.mubr.f32.gmra.mrb[0].mxu0 %v1441
    %v1983 = vpop.f32.mrb[0].mxu0
    %v1984 = vadd.f32 0.0, %v1983
    %v1985 = vpop.f32.mrb[0].mxu0
    %v1986 = vadd.f32 0.0, %v1985
    %1987 = vmatprep.mubr.f32.mxu0 0.0
    %1988 = vmatmul.mubr.f32.gmra.mrb[0].mxu0 %v1446
    %v1989 = vpop.f32.mrb[0].mxu0
    %v1990 = vadd.f32 0.0, %v1989
    %v1991 = vpop.f32.mrb[0].mxu0
    %v1992 = vadd.f32 0.0, %v1991
    %1993 = vdwg.mxu0
    %v1994 = vadd.f32 %v1730, %v1912
    %v1995 = vadd.f32 %v1732, %v1914
    %v1996 = vadd.f32 %v1736, %v1918
    %v1997 = vadd.f32 %v1738, %v1920
    %v1998 = vadd.f32 %v1742, %v1924
    %v1999 = vadd.f32 %v1744, %v1926
    %v2000 = vadd.f32 %v1748, %v1930
    %v2001 = vadd.f32 %v1750, %v1932
    %v2002 = vadd.f32 %v1754, %v1936
    %v2003 = vadd.f32 %v1756, %v1938
    %v2004 = vadd.f32 %v1760, %v1942
    %v2005 = vadd.f32 %v1762, %v1944
    %v2006 = vadd.f32 %v1766, %v1948
    %v2007 = vadd.f32 %v1768, %v1950
    %v2008 = vadd.f32 %v1772, %v1954
    %v2009 = vadd.f32 %v1774, %v1956
    %v2010 = vadd.f32 %v1778, %v1960
    %v2011 = vadd.f32 %v1780, %v1962
    %v2012 = vadd.f32 %v1784, %v1966
    %v2013 = vadd.f32 %v1786, %v1968
    %v2014 = vadd.f32 %v1790, %v1972
    %v2015 = vadd.f32 %v1792, %v1974
    %v2016 = vadd.f32 %v1796, %v1978
    %v2017 = vadd.f32 %v1798, %v1980
    %v2018 = vadd.f32 %v1802, %v1984
    %v2019 = vadd.f32 %v1804, %v1986
    %v2020 = vadd.f32 %v1808, %v1990
    %v2021 = vadd.f32 %v1810, %v1992
    %v2022 = vld [vmem:[#allocation11] sm:$0x3]
    %v2024 = vlaneseq
    %v2025 = vshrl.u32 %v2024, 7
    %v2026 = vsub.s32 0, %v2025
    %v2027 = vrot.slane %v2022, %v2026
    %v2028 = vlaneseq
    %v2029 = vshrl.u32 %v2028, 7
    %v2030 = vsub.s32 1, %v2029
    %v2031 = vrot.slane %v2022, %v2030
    %v2034 = vadd.f32 %v1994, %v2027
    %v2035 = vadd.f32 %v1995, %v2031
    %v2036 = vadd.f32 %v1996, %v2027
    %v2037 = vadd.f32 %v1997, %v2031
    %v2038 = vadd.f32 %v1998, %v2027
    %v2039 = vadd.f32 %v1999, %v2031
    %v2040 = vadd.f32 %v2000, %v2027
    %v2041 = vadd.f32 %v2001, %v2031
    %v2042 = vadd.f32 %v2002, %v2027
    %v2043 = vadd.f32 %v2003, %v2031
    %v2044 = vadd.f32 %v2004, %v2027
    %v2045 = vadd.f32 %v2005, %v2031
    %v2046 = vadd.f32 %v2006, %v2027
    %v2047 = vadd.f32 %v2007, %v2031
    %v2048 = vadd.f32 %v2008, %v2027
    %v2049 = vadd.f32 %v2009, %v2031
    %v2050 = vadd.f32 %v2010, %v2027
    %v2051 = vadd.f32 %v2011, %v2031
    %v2052 = vadd.f32 %v2012, %v2027
    %v2053 = vadd.f32 %v2013, %v2031
    %v2054 = vadd.f32 %v2014, %v2027
    %v2055 = vadd.f32 %v2015, %v2031
    %v2056 = vadd.f32 %v2016, %v2027
    %v2057 = vadd.f32 %v2017, %v2031
    %v2058 = vadd.f32 %v2018, %v2027
    %v2059 = vadd.f32 %v2019, %v2031
    %v2060 = vadd.f32 %v2020, %v2027
    %v2061 = vadd.f32 %v2021, %v2031
    %v2062 = vmax.f32 %v2034, 0.0
    %v2063 = vmax.f32 %v2035, 0.0
    %v2064 = vmax.f32 %v2036, 0.0
    %v2065 = vmax.f32 %v2037, 0.0
    %v2066 = vmax.f32 %v2038, 0.0
    %v2067 = vmax.f32 %v2039, 0.0
    %v2068 = vmax.f32 %v2040, 0.0
    %v2069 = vmax.f32 %v2041, 0.0
    %v2070 = vmax.f32 %v2042, 0.0
    %v2071 = vmax.f32 %v2043, 0.0
    %v2072 = vmax.f32 %v2044, 0.0
    %v2073 = vmax.f32 %v2045, 0.0
    %v2074 = vmax.f32 %v2046, 0.0
    %v2075 = vmax.f32 %v2047, 0.0
    %v2076 = vmax.f32 %v2048, 0.0
    %v2077 = vmax.f32 %v2049, 0.0
    %v2078 = vmax.f32 %v2050, 0.0
    %v2079 = vmax.f32 %v2051, 0.0
    %v2080 = vmax.f32 %v2052, 0.0
    %v2081 = vmax.f32 %v2053, 0.0
    %v2082 = vmax.f32 %v2054, 0.0
    %v2083 = vmax.f32 %v2055, 0.0
    %v2084 = vmax.f32 %v2056, 0.0
    %v2085 = vmax.f32 %v2057, 0.0
    %v2086 = vmax.f32 %v2058, 0.0
    %v2087 = vmax.f32 %v2059, 0.0
    %v2088 = vmax.f32 %v2060, 0.0
    %v2089 = vmax.f32 %v2061, 0.0
    %v2090 = vld [vmem:[#allocation13] sm:$0xff]
    %v2091 = vld [vmem:[#allocation13 + $0x8] sm:$0xff]
    %v2092 = vld [vmem:[#allocation13 + $0x10] sm:$0xff]
    %v2093 = vld [vmem:[#allocation13 + $0x18] sm:$0xff]
    %v2094 = vld [vmem:[#allocation13 + $0x20] sm:$0xff]
    %v2095 = vld [vmem:[#allocation13 + $0x28] sm:$0xff]
    %v2096 = vld [vmem:[#allocation13 + $0x30] sm:$0xff]
    %v2097 = vld [vmem:[#allocation13 + $0x38] sm:$0xff]
    %v2098 = vld [vmem:[#allocation13 + $0x40] sm:$0xff]
    %v2099 = vld [vmem:[#allocation13 + $0x48] sm:$0xff]
    %v2100 = vld [vmem:[#allocation13 + $0x50] sm:$0xff]
    %v2101 = vld [vmem:[#allocation13 + $0x58] sm:$0xff]
    %v2102 = vld [vmem:[#allocation13 + $0x60] sm:$0xff]
    %v2103 = vld [vmem:[#allocation13 + $0x68] sm:$0xff]
    %v2104 = vld [vmem:[#allocation13 + $0x70] sm:$0xff]
    %v2105 = vld [vmem:[#allocation13 + $0x78] sm:$0xff]
    %v2106 = vld [vmem:[#allocation13 + $0x80] sm:$0xff]
    %v2107 = vld [vmem:[#allocation13 + $0x88] sm:$0xff]
    %v2108 = vld [vmem:[#allocation13 + $0x90] sm:$0xff]
    %v2109 = vld [vmem:[#allocation13 + $0x98] sm:$0xff]
    %v2110 = vld [vmem:[#allocation13 + $0xa0] sm:$0xff]
    %v2111 = vld [vmem:[#allocation13 + $0xa8] sm:$0xff]
    %v2112 = vld [vmem:[#allocation13 + $0xb0] sm:$0xff]
    %v2113 = vld [vmem:[#allocation13 + $0xb8] sm:$0xff]
    %v2114 = vld [vmem:[#allocation13 + $0xc0] sm:$0xff]
    %v2115 = vld [vmem:[#allocation13 + $0xc8] sm:$0xff]
    %v2116 = vld [vmem:[#allocation13 + $0xd0] sm:$0xff]
    %v2117 = vld [vmem:[#allocation13 + $0xd8] sm:$0xff]
    %v2118 = vld [vmem:[#allocation13 + $0xe0] sm:$0xff]
    %v2119 = vld [vmem:[#allocation13 + $0xe8] sm:$0xff]
    %v2120 = vld [vmem:[#allocation13 + $0xf0] sm:$0xff]
    %v2121 = vld [vmem:[#allocation13 + $0xf8] sm:$0xff]
    %2122 = vmatprep.subr.mxu0 0.0
    %2123 = vmatpush1.msra.mxu0 %v2090
    %2124 = vmatprep.subr.mxu0 0.0
    %2125 = vmatpush1.msra.mxu0 %v2091
    %2126 = vmatprep.subr.mxu0 0.0
    %2127 = vmatpush1.msra.mxu0 %v2092
    %2128 = vmatprep.subr.mxu0 0.0
    %2129 = vmatpush1.msra.mxu0 %v2093
    %2130 = vmatprep.subr.mxu0 0.0
    %2131 = vmatpush1.msra.mxu0 %v2094
    %2132 = vmatprep.subr.mxu0 0.0
    %2133 = vmatpush1.msra.mxu0 %v2095
    %2134 = vmatprep.subr.mxu0 0.0
    %2135 = vmatpush1.msra.mxu0 %v2096
    %2136 = vmatprep.subr.mxu0 0.0
    %2137 = vmatpush1.msra.mxu0 %v2097
    %2138 = vmatprep.subr.mxu0 0.0
    %2139 = vmatpush1.msra.mxu0 %v2098
    %2140 = vmatprep.subr.mxu0 0.0
    %2141 = vmatpush1.msra.mxu0 %v2099
    %2142 = vmatprep.subr.mxu0 0.0
    %2143 = vmatpush1.msra.mxu0 %v2100
    %2144 = vmatprep.subr.mxu0 0.0
    %2145 = vmatpush1.msra.mxu0 %v2101
    %2146 = vmatprep.subr.mxu0 0.0
    %2147 = vmatpush1.msra.mxu0 %v2102
    %2148 = vmatprep.subr.mxu0 0.0
    %2149 = vmatpush1.msra.mxu0 %v2103
    %2150 = vmatprep.subr.mxu0 0.0
    %2151 = vmatpush1.msra.mxu0 %v2104
    %2152 = vmatprep.subr.mxu0 0.0
    %2153 = vmatpush1.msra.mxu0 %v2105
    %2154 = vmatprep.subr.mxu0 0.0
    %2155 = vmatpush1.msra.mxu0 %v2106
    %2156 = vmatprep.subr.mxu0 0.0
    %2157 = vmatpush1.msra.mxu0 %v2107
    %2158 = vmatprep.subr.mxu0 0.0
    %2159 = vmatpush1.msra.mxu0 %v2108
    %2160 = vmatprep.subr.mxu0 0.0
    %2161 = vmatpush1.msra.mxu0 %v2109
    %2162 = vmatprep.subr.mxu0 0.0
    %2163 = vmatpush1.msra.mxu0 %v2110
    %2164 = vmatprep.subr.mxu0 0.0
    %2165 = vmatpush1.msra.mxu0 %v2111
    %2166 = vmatprep.subr.mxu0 0.0
    %2167 = vmatpush1.msra.mxu0 %v2112
    %2168 = vmatprep.subr.mxu0 0.0
    %2169 = vmatpush1.msra.mxu0 %v2113
    %2170 = vmatprep.subr.mxu0 0.0
    %2171 = vmatpush1.msra.mxu0 %v2114
    %2172 = vmatprep.subr.mxu0 0.0
    %2173 = vmatpush1.msra.mxu0 %v2115
    %2174 = vmatprep.subr.mxu0 0.0
    %2175 = vmatpush1.msra.mxu0 %v2116
    %2176 = vmatprep.subr.mxu0 0.0
    %2177 = vmatpush1.msra.mxu0 %v2117
    %2178 = vmatprep.subr.mxu0 0.0
    %2179 = vmatpush1.msra.mxu0 %v2118
    %2180 = vmatprep.subr.mxu0 0.0
    %2181 = vmatpush1.msra.mxu0 %v2119
    %2182 = vmatprep.subr.mxu0 0.0
    %2183 = vmatpush1.msra.mxu0 %v2120
    %2184 = vmatprep.subr.mxu0 0.0
    %2185 = vmatpush1.msra.mxu0 %v2121
    %2186 = vmatprep.mubr.f32.mxu0 %v2063
    %2187 = vmatmul.mubr.f32.gmra.mrb[0].mxu0 %v2062
    %v2188 = vpop.f32.mrb[0].mxu0
    %v2189 = vadd.f32 0.0, %v2188
    %v2190 = vpop.f32.mrb[0].mxu0
    %2191 = vmatprep.mubr.f32.mxu0 %v2065
    %2192 = vmatmul.mubr.f32.gmra.mrb[0].mxu0 %v2064
    %v2193 = vpop.f32.mrb[0].mxu0
    %v2194 = vadd.f32 0.0, %v2193
    %v2195 = vpop.f32.mrb[0].mxu0
    %2196 = vmatprep.mubr.f32.mxu0 %v2067
    %2197 = vmatmul.mubr.f32.gmra.mrb[0].mxu0 %v2066
    %v2198 = vpop.f32.mrb[0].mxu0
    %v2199 = vadd.f32 0.0, %v2198
    %v2200 = vpop.f32.mrb[0].mxu0
    %2201 = vmatprep.mubr.f32.mxu0 %v2069
    %2202 = vmatmul.mubr.f32.gmra.mrb[0].mxu0 %v2068
    %v2203 = vpop.f32.mrb[0].mxu0
    %v2204 = vadd.f32 0.0, %v2203
    %v2205 = vpop.f32.mrb[0].mxu0
    %2206 = vmatprep.mubr.f32.mxu0 %v2071
    %2207 = vmatmul.mubr.f32.gmra.mrb[0].mxu0 %v2070
    %v2208 = vpop.f32.mrb[0].mxu0
    %v2209 = vadd.f32 0.0, %v2208
    %v2210 = vpop.f32.mrb[0].mxu0
    %2211 = vmatprep.mubr.f32.mxu0 %v2073
    %2212 = vmatmul.mubr.f32.gmra.mrb[0].mxu0 %v2072
    %v2213 = vpop.f32.mrb[0].mxu0
    %v2214 = vadd.f32 0.0, %v2213
    %v2215 = vpop.f32.mrb[0].mxu0
    %2216 = vmatprep.mubr.f32.mxu0 %v2075
    %2217 = vmatmul.mubr.f32.gmra.mrb[0].mxu0 %v2074
    %v2218 = vpop.f32.mrb[0].mxu0
    %v2219 = vadd.f32 0.0, %v2218
    %v2220 = vpop.f32.mrb[0].mxu0
    %2221 = vmatprep.mubr.f32.mxu0 %v2077
    %2222 = vmatmul.mubr.f32.gmra.mrb[0].mxu0 %v2076
    %v2223 = vpop.f32.mrb[0].mxu0
    %v2224 = vadd.f32 0.0, %v2223
    %v2225 = vpop.f32.mrb[0].mxu0
    %2226 = vmatprep.mubr.f32.mxu0 %v2079
    %2227 = vmatmul.mubr.f32.gmra.mrb[0].mxu0 %v2078
    %v2228 = vpop.f32.mrb[0].mxu0
    %v2229 = vadd.f32 0.0, %v2228
    %v2230 = vpop.f32.mrb[0].mxu0
    %2231 = vmatprep.mubr.f32.mxu0 %v2081
    %2232 = vmatmul.mubr.f32.gmra.mrb[0].mxu0 %v2080
    %v2233 = vpop.f32.mrb[0].mxu0
    %v2234 = vadd.f32 0.0, %v2233
    %v2235 = vpop.f32.mrb[0].mxu0
    %2236 = vmatprep.mubr.f32.mxu0 %v2083
    %2237 = vmatmul.mubr.f32.gmra.mrb[0].mxu0 %v2082
    %v2238 = vpop.f32.mrb[0].mxu0
    %v2239 = vadd.f32 0.0, %v2238
    %v2240 = vpop.f32.mrb[0].mxu0
    %2241 = vmatprep.mubr.f32.mxu0 %v2085
    %2242 = vmatmul.mubr.f32.gmra.mrb[0].mxu0 %v2084
    %v2243 = vpop.f32.mrb[0].mxu0
    %v2244 = vadd.f32 0.0, %v2243
    %v2245 = vpop.f32.mrb[0].mxu0
    %2246 = vmatprep.mubr.f32.mxu0 %v2087
    %2247 = vmatmul.mubr.f32.gmra.mrb[0].mxu0 %v2086
    %v2248 = vpop.f32.mrb[0].mxu0
    %v2249 = vadd.f32 0.0, %v2248
    %v2250 = vpop.f32.mrb[0].mxu0
    %2251 = vmatprep.mubr.f32.mxu0 %v2089
    %2252 = vmatmul.mubr.f32.gmra.mrb[0].mxu0 %v2088
    %v2253 = vpop.f32.mrb[0].mxu0
    %v2254 = vadd.f32 0.0, %v2253
    %v2255 = vpop.f32.mrb[0].mxu0
    %2256 = vdwg.mxu0
    %v2257 = vld [vmem:[#allocation14] sm:$0xff]
    %v2258 = vld [vmem:[#allocation14 + $0x8] sm:$0xff]
    %v2259 = vld [vmem:[#allocation14 + $0x10] sm:$0xff]
    %v2260 = vld [vmem:[#allocation14 + $0x18] sm:$0xff]
    %v2261 = vld [vmem:[#allocation14 + $0x20] sm:$0xff]
    %v2262 = vld [vmem:[#allocation14 + $0x28] sm:$0xff]
    %v2263 = vld [vmem:[#allocation14 + $0x30] sm:$0xff]
    %vm2264 = vcmask 916480
    %v2266 = vsel %vm2264, %v2257, 0
    %v2269 = vsel %vm2264, %v2258, 0
    %v2272 = vsel %vm2264, %v2259, 0
    %v2275 = vsel %vm2264, %v2260, 0
    %v2278 = vsel %vm2264, %v2261, 0
    %v2281 = vsel %vm2264, %v2262, 0
    %v2284 = vsel %vm2264, %v2263, 0
    %2286 = vmatprep.subr.mxu0 0.0
    %2287 = vmatpush1.msra.mxu0 %v2189
    %2288 = vmatprep.subr.mxu0 0.0
    %2289 = vmatpush1.msra.mxu0 %v2194
    %2290 = vmatprep.subr.mxu0 0.0
    %2291 = vmatpush1.msra.mxu0 %v2199
    %2292 = vmatprep.subr.mxu0 0.0
    %2293 = vmatpush1.msra.mxu0 %v2204
    %2294 = vmatprep.subr.mxu0 0.0
    %2295 = vmatpush1.msra.mxu0 %v2209
    %2296 = vmatprep.subr.mxu0 0.0
    %2297 = vmatpush1.msra.mxu0 %v2214
    %2298 = vmatprep.subr.mxu0 0.0
    %2299 = vmatpush1.msra.mxu0 %v2219
    %2300 = vmatprep.subr.mxu0 0.0
    %2301 = vmatpush1.msra.mxu0 %v2224
    %2302 = vmatprep.subr.mxu0 0.0
    %2303 = vmatpush1.msra.mxu0 %v2229
    %2304 = vmatprep.subr.mxu0 0.0
    %2305 = vmatpush1.msra.mxu0 %v2234
    %2306 = vmatprep.subr.mxu0 0.0
    %2307 = vmatpush1.msra.mxu0 %v2239
    %2308 = vmatprep.subr.mxu0 0.0
    %2309 = vmatpush1.msra.mxu0 %v2244
    %2310 = vmatprep.subr.mxu0 0.0
    %2311 = vmatpush1.msra.mxu0 %v2249
    %2312 = vmatprep.subr.mxu0 0.0
    %2313 = vmatpush1.msra.mxu0 %v2254
    %2314 = vmatprep.subr.mxu0 0.0
    %2315 = vmatpush1.msra.mxu0 0.0
    %2316 = vmatprep.subr.mxu0 0.0
    %2317 = vmatpush1.msra.mxu0 0.0
    %2318 = vmatprep.subr.mxu0 0.0
    %2319 = vmatpush1.msra.mxu0 0.0
    %2320 = vmatprep.subr.mxu0 0.0
    %2321 = vmatpush1.msra.mxu0 0.0
    %2322 = vmatprep.subr.mxu0 0.0
    %2323 = vmatpush1.msra.mxu0 0.0
    %2324 = vmatprep.subr.mxu0 0.0
    %2325 = vmatpush1.msra.mxu0 0.0
    %2326 = vmatprep.subr.mxu0 0.0
    %2327 = vmatpush1.msra.mxu0 0.0
    %2328 = vmatprep.subr.mxu0 0.0
    %2329 = vmatpush1.msra.mxu0 0.0
    %2330 = vmatprep.subr.mxu0 0.0
    %2331 = vmatpush1.msra.mxu0 0.0
    %2332 = vmatprep.subr.mxu0 0.0
    %2333 = vmatpush1.msra.mxu0 0.0
    %2334 = vmatprep.subr.mxu0 0.0
    %2335 = vmatpush1.msra.mxu0 0.0
    %2336 = vmatprep.subr.mxu0 0.0
    %2337 = vmatpush1.msra.mxu0 0.0
    %2338 = vmatprep.subr.mxu0 0.0
    %2339 = vmatpush1.msra.mxu0 0.0
    %2340 = vmatprep.subr.mxu0 0.0
    %2341 = vmatpush1.msra.mxu0 0.0
    %2342 = vmatprep.subr.mxu0 0.0
    %2343 = vmatpush1.msra.mxu0 0.0
    %2344 = vmatprep.subr.mxu0 0.0
    %2345 = vmatpush1.msra.mxu0 0.0
    %2346 = vmatprep.subr.mxu0 0.0
    %2347 = vmatpush1.msra.mxu0 0.0
    %2348 = vmatprep.subr.mxu0 0.0
    %2349 = vmatpush1.msra.mxu0 0.0
    %2350 = vmatprep.mubr.f32.mxu0 0.0
    %2351 = vmatmul.mubr.f32.gmra.mrb[0].mxu0 %v2266
    %v2352 = vpop.f32.mrb[0].mxu0
    %v2353 = vadd.f32 0.0, %v2352
    %v2354 = vpop.f32.mrb[0].mxu0
    %2355 = vmatprep.mubr.f32.mxu0 0.0
    %2356 = vmatmul.mubr.f32.gmra.mrb[0].mxu0 %v2269
    %v2357 = vpop.f32.mrb[0].mxu0
    %v2358 = vadd.f32 0.0, %v2357
    %v2359 = vpop.f32.mrb[0].mxu0
    %2360 = vmatprep.mubr.f32.mxu0 0.0
    %2361 = vmatmul.mubr.f32.gmra.mrb[0].mxu0 %v2272
    %v2362 = vpop.f32.mrb[0].mxu0
    %v2363 = vadd.f32 0.0, %v2362
    %v2364 = vpop.f32.mrb[0].mxu0
    %2365 = vmatprep.mubr.f32.mxu0 0.0
    %2366 = vmatmul.mubr.f32.gmra.mrb[0].mxu0 %v2275
    %v2367 = vpop.f32.mrb[0].mxu0
    %v2368 = vadd.f32 0.0, %v2367
    %v2369 = vpop.f32.mrb[0].mxu0
    %2370 = vmatprep.mubr.f32.mxu0 0.0
    %2371 = vmatmul.mubr.f32.gmra.mrb[0].mxu0 %v2278
    %v2372 = vpop.f32.mrb[0].mxu0
    %v2373 = vadd.f32 0.0, %v2372
    %v2374 = vpop.f32.mrb[0].mxu0
    %2375 = vmatprep.mubr.f32.mxu0 0.0
    %2376 = vmatmul.mubr.f32.gmra.mrb[0].mxu0 %v2281
    %v2377 = vpop.f32.mrb[0].mxu0
    %v2378 = vadd.f32 0.0, %v2377
    %v2379 = vpop.f32.mrb[0].mxu0
    %2380 = vmatprep.mubr.f32.mxu0 0.0
    %2381 = vmatmul.mubr.f32.gmra.mrb[0].mxu0 %v2284
    %v2382 = vpop.f32.mrb[0].mxu0
    %v2383 = vadd.f32 0.0, %v2382
    %v2384 = vpop.f32.mrb[0].mxu0
    %2385 = vdwg.mxu0
    %v2386 = vld [vmem:[#allocation19] sm:$0xf]
    %v2387 = vld [vmem:[%s1] sm:$0xff]
    %v2388 = vld [vmem:[#allocation17] sm:$0xff]
    %v2389 = vld [vmem:[#allocation17 + $0x8] sm:$0xff]
    %v2390 = vld [vmem:[#allocation17 + $0x10] sm:$0xff]
    %v2391 = vld [vmem:[#allocation17 + $0x18] sm:$0xff]
    %v2392 = vld [vmem:[#allocation17 + $0x20] sm:$0x3]
    %v2393 = vld [vmem:[#allocation17 + $0x28] sm:$0x3]
    %v2394 = vld [vmem:[#allocation17 + $0x30] sm:$0x3]
    %v2395 = vld [vmem:[#allocation17 + $0x38] sm:$0x3]
    %vm2396 = vcmask 80896
    %v2398 = vsel %vm2396, %v2387, 0
    %vm2400 = vcmask 1041408
    %v2402 = vsel %vm2400, %v2392, 0
    %v2405 = vsel %vm2400, %v2393, 0
    %v2408 = vsel %vm2400, %v2394, 0
    %v2411 = vsel %vm2400, %v2395, 0
    %2413 = vmatprep.subr.mxu0 %v2389
    %2414 = vmatpush1.msra.mxu0 %v2388
    %2415 = vmatprep.subr.mxu0 %v2405
    %2416 = vmatpush1.msra.mxu0 %v2402
    %2417 = vmatprep.subr.mxu0 0.0
    %2418 = vmatpush1.msra.mxu0 0.0
    %2419 = vmatprep.subr.mxu0 0.0
    %2420 = vmatpush1.msra.mxu0 0.0
    %2421 = vmatprep.subr.mxu0 0.0
    %2422 = vmatpush1.msra.mxu0 0.0
    %2423 = vmatprep.subr.mxu0 0.0
    %2424 = vmatpush1.msra.mxu0 0.0
    %2425 = vmatprep.subr.mxu0 0.0
    %2426 = vmatpush1.msra.mxu0 0.0
    %2427 = vmatprep.subr.mxu0 0.0
    %2428 = vmatpush1.msra.mxu0 0.0
    %2429 = vmatprep.subr.mxu0 0.0
    %2430 = vmatpush1.msra.mxu0 0.0
    %2431 = vmatprep.subr.mxu0 0.0
    %2432 = vmatpush1.msra.mxu0 0.0
    %2433 = vmatprep.subr.mxu0 0.0
    %2434 = vmatpush1.msra.mxu0 0.0
    %2435 = vmatprep.subr.mxu0 0.0
    %2436 = vmatpush1.msra.mxu0 0.0
    %2437 = vmatprep.subr.mxu0 0.0
    %2438 = vmatpush1.msra.mxu0 0.0
    %2439 = vmatprep.subr.mxu0 0.0
    %2440 = vmatpush1.msra.mxu0 0.0
    %2441 = vmatprep.subr.mxu0 0.0
    %2442 = vmatpush1.msra.mxu0 0.0
    %2443 = vmatprep.subr.mxu0 0.0
    %2444 = vmatpush1.msra.mxu0 0.0
    %2445 = vmatprep.subr.mxu0 0.0
    %2446 = vmatpush1.msra.mxu0 0.0
    %2447 = vmatprep.subr.mxu0 0.0
    %2448 = vmatpush1.msra.mxu0 0.0
    %2449 = vmatprep.subr.mxu0 0.0
    %2450 = vmatpush1.msra.mxu0 0.0
    %2451 = vmatprep.subr.mxu0 0.0
    %2452 = vmatpush1.msra.mxu0 0.0
    %2453 = vmatprep.subr.mxu0 0.0
    %2454 = vmatpush1.msra.mxu0 0.0
    %2455 = vmatprep.subr.mxu0 0.0
    %2456 = vmatpush1.msra.mxu0 0.0
    %2457 = vmatprep.subr.mxu0 0.0
    %2458 = vmatpush1.msra.mxu0 0.0
    %2459 = vmatprep.subr.mxu0 0.0
    %2460 = vmatpush1.msra.mxu0 0.0
    %2461 = vmatprep.subr.mxu0 0.0
    %2462 = vmatpush1.msra.mxu0 0.0
    %2463 = vmatprep.subr.mxu0 0.0
    %2464 = vmatpush1.msra.mxu0 0.0
    %2465 = vmatprep.subr.mxu0 0.0
    %2466 = vmatpush1.msra.mxu0 0.0
    %2467 = vmatprep.subr.mxu0 0.0
    %2468 = vmatpush1.msra.mxu0 0.0
    %2469 = vmatprep.subr.mxu0 0.0
    %2470 = vmatpush1.msra.mxu0 0.0
    %2471 = vmatprep.subr.mxu0 0.0
    %2472 = vmatpush1.msra.mxu0 0.0
    %2473 = vmatprep.subr.mxu0 0.0
    %2474 = vmatpush1.msra.mxu0 0.0
    %2475 = vmatprep.subr.mxu0 0.0
    %2476 = vmatpush1.msra.mxu0 0.0
    %2477 = vmatprep.mubr.f32.mxu0 0.0
    %2478 = vmatmul.mubr.f32.gmra.mrb[0].mxu0 %v2398
    %v2479 = vpop.f32.mrb[0].mxu0
    %v2480 = vadd.f32 0.0, %v2479
    %v2481 = vpop.f32.mrb[0].mxu0
    %v2482 = vadd.f32 0.0, %v2481
    %2483 = vdwg.mxu0
    %2484 = vmatprep.subr.mxu0 %v2391
    %2485 = vmatpush1.msra.mxu0 %v2390
    %2486 = vmatprep.subr.mxu0 %v2411
    %2487 = vmatpush1.msra.mxu0 %v2408
    %2488 = vmatprep.subr.mxu0 0.0
    %2489 = vmatpush1.msra.mxu0 0.0
    %2490 = vmatprep.subr.mxu0 0.0
    %2491 = vmatpush1.msra.mxu0 0.0
    %2492 = vmatprep.subr.mxu0 0.0
    %2493 = vmatpush1.msra.mxu0 0.0
    %2494 = vmatprep.subr.mxu0 0.0
    %2495 = vmatpush1.msra.mxu0 0.0
    %2496 = vmatprep.subr.mxu0 0.0
    %2497 = vmatpush1.msra.mxu0 0.0
    %2498 = vmatprep.subr.mxu0 0.0
    %2499 = vmatpush1.msra.mxu0 0.0
    %2500 = vmatprep.subr.mxu0 0.0
    %2501 = vmatpush1.msra.mxu0 0.0
    %2502 = vmatprep.subr.mxu0 0.0
    %2503 = vmatpush1.msra.mxu0 0.0
    %2504 = vmatprep.subr.mxu0 0.0
    %2505 = vmatpush1.msra.mxu0 0.0
    %2506 = vmatprep.subr.mxu0 0.0
    %2507 = vmatpush1.msra.mxu0 0.0
    %2508 = vmatprep.subr.mxu0 0.0
    %2509 = vmatpush1.msra.mxu0 0.0
    %2510 = vmatprep.subr.mxu0 0.0
    %2511 = vmatpush1.msra.mxu0 0.0
    %2512 = vmatprep.subr.mxu0 0.0
    %2513 = vmatpush1.msra.mxu0 0.0
    %2514 = vmatprep.subr.mxu0 0.0
    %2515 = vmatpush1.msra.mxu0 0.0
    %2516 = vmatprep.subr.mxu0 0.0
    %2517 = vmatpush1.msra.mxu0 0.0
    %2518 = vmatprep.subr.mxu0 0.0
    %2519 = vmatpush1.msra.mxu0 0.0
    %2520 = vmatprep.subr.mxu0 0.0
    %2521 = vmatpush1.msra.mxu0 0.0
    %2522 = vmatprep.subr.mxu0 0.0
    %2523 = vmatpush1.msra.mxu0 0.0
    %2524 = vmatprep.subr.mxu0 0.0
    %2525 = vmatpush1.msra.mxu0 0.0
    %2526 = vmatprep.subr.mxu0 0.0
    %2527 = vmatpush1.msra.mxu0 0.0
    %2528 = vmatprep.subr.mxu0 0.0
    %2529 = vmatpush1.msra.mxu0 0.0
    %2530 = vmatprep.subr.mxu0 0.0
    %2531 = vmatpush1.msra.mxu0 0.0
    %2532 = vmatprep.subr.mxu0 0.0
    %2533 = vmatpush1.msra.mxu0 0.0
    %2534 = vmatprep.subr.mxu0 0.0
    %2535 = vmatpush1.msra.mxu0 0.0
    %2536 = vmatprep.subr.mxu0 0.0
    %2537 = vmatpush1.msra.mxu0 0.0
    %2538 = vmatprep.subr.mxu0 0.0
    %2539 = vmatpush1.msra.mxu0 0.0
    %2540 = vmatprep.subr.mxu0 0.0
    %2541 = vmatpush1.msra.mxu0 0.0
    %2542 = vmatprep.subr.mxu0 0.0
    %2543 = vmatpush1.msra.mxu0 0.0
    %2544 = vmatprep.subr.mxu0 0.0
    %2545 = vmatpush1.msra.mxu0 0.0
    %2546 = vmatprep.subr.mxu0 0.0
    %2547 = vmatpush1.msra.mxu0 0.0
    %2548 = vmatprep.mubr.f32.mxu0 0.0
    %2549 = vmatmul.mubr.f32.gmra.mrb[0].mxu0 %v2398
    %v2550 = vpop.f32.mrb[0].mxu0
    %v2551 = vadd.f32 0.0, %v2550
    %v2552 = vpop.f32.mrb[0].mxu0
    %v2553 = vadd.f32 0.0, %v2552
    %2554 = vdwg.mxu0
    %v2556 = vlaneseq
    %v2557 = vshrl.u32 %v2556, 7
    %v2558 = vsub.s32 0, %v2557
    %v2559 = vrot.slane %v2386, %v2558
    %v2560 = vlaneseq
    %v2561 = vshrl.u32 %v2560, 7
    %v2562 = vsub.s32 1, %v2561
    %v2563 = vrot.slane %v2386, %v2562
    %v2564 = vlaneseq
    %v2565 = vshrl.u32 %v2564, 7
    %v2566 = vsub.s32 2, %v2565
    %v2567 = vrot.slane %v2386, %v2566
    %v2568 = vlaneseq
    %v2569 = vshrl.u32 %v2568, 7
    %v2570 = vsub.s32 3, %v2569
    %v2571 = vrot.slane %v2386, %v2570
    %v2576 = vadd.f32 %v2559, %v2480
    %v2577 = vadd.f32 %v2563, %v2482
    %v2578 = vadd.f32 %v2567, %v2551
    %v2579 = vadd.f32 %v2571, %v2553
    %v2580 = vld [vmem:[#allocation16] sm:$0xff]
    %v2581 = vld [vmem:[#allocation16 + $0x8] sm:$0xff]
    %v2582 = vld [vmem:[#allocation16 + $0x10] sm:$0xff]
    %v2583 = vld [vmem:[#allocation16 + $0x18] sm:$0xff]
    %v2584 = vld [vmem:[#allocation16 + $0x20] sm:$0xff]
    %v2585 = vld [vmem:[#allocation16 + $0x28] sm:$0xff]
    %v2586 = vld [vmem:[#allocation16 + $0x30] sm:$0xff]
    %v2587 = vld [vmem:[#allocation16 + $0x38] sm:$0xff]
    %v2588 = vld [vmem:[#allocation16 + $0x40] sm:$0xff]
    %v2589 = vld [vmem:[#allocation16 + $0x48] sm:$0xff]
    %v2590 = vld [vmem:[#allocation16 + $0x50] sm:$0xff]
    %v2591 = vld [vmem:[#allocation16 + $0x58] sm:$0xff]
    %v2592 = vld [vmem:[#allocation16 + $0x60] sm:$0xff]
    %v2593 = vld [vmem:[#allocation16 + $0x68] sm:$0xff]
    %v2594 = vld [vmem:[#allocation16 + $0x70] sm:$0xff]
    %v2595 = vld [vmem:[#allocation16 + $0x78] sm:$0xff]
    %v2596 = vld [vmem:[#allocation16 + $0x80] sm:$0xff]
    %v2597 = vld [vmem:[#allocation16 + $0x88] sm:$0xff]
    %v2598 = vld [vmem:[#allocation16 + $0x90] sm:$0xff]
    %v2599 = vld [vmem:[#allocation16 + $0x98] sm:$0xff]
    %v2600 = vld [vmem:[#allocation16 + $0xa0] sm:$0xff]
    %v2601 = vld [vmem:[#allocation16 + $0xa8] sm:$0xff]
    %v2602 = vld [vmem:[#allocation16 + $0xb0] sm:$0xff]
    %v2603 = vld [vmem:[#allocation16 + $0xb8] sm:$0xff]
    %v2604 = vld [vmem:[#allocation16 + $0xc0] sm:$0xff]
    %v2605 = vld [vmem:[#allocation16 + $0xc8] sm:$0xff]
    %v2606 = vld [vmem:[#allocation16 + $0xd0] sm:$0xff]
    %v2607 = vld [vmem:[#allocation16 + $0xd8] sm:$0xff]
    %v2608 = vld [vmem:[#allocation16 + $0xe0] sm:$0xff]
    %v2609 = vld [vmem:[#allocation16 + $0xe8] sm:$0xff]
    %v2610 = vld [vmem:[#allocation16 + $0xf0] sm:$0xff]
    %v2611 = vld [vmem:[#allocation16 + $0xf8] sm:$0xff]
    %v2612 = vld [vmem:[#allocation16 + $0x100] sm:$0xff]
    %v2613 = vld [vmem:[#allocation16 + $0x108] sm:$0xff]
    %v2614 = vld [vmem:[#allocation16 + $0x110] sm:$0xff]
    %v2615 = vld [vmem:[#allocation16 + $0x118] sm:$0xff]
    %v2616 = vld [vmem:[#allocation16 + $0x120] sm:$0xff]
    %v2617 = vld [vmem:[#allocation16 + $0x128] sm:$0xff]
    %v2618 = vld [vmem:[#allocation16 + $0x130] sm:$0xff]
    %v2619 = vld [vmem:[#allocation16 + $0x138] sm:$0xff]
    %v2620 = vld [vmem:[#allocation16 + $0x140] sm:$0xff]
    %v2621 = vld [vmem:[#allocation16 + $0x148] sm:$0xff]
    %v2622 = vld [vmem:[#allocation16 + $0x150] sm:$0xff]
    %v2623 = vld [vmem:[#allocation16 + $0x158] sm:$0xff]
    %v2624 = vld [vmem:[#allocation16 + $0x160] sm:$0xff]
    %v2625 = vld [vmem:[#allocation16 + $0x168] sm:$0xff]
    %v2626 = vld [vmem:[#allocation16 + $0x170] sm:$0xff]
    %v2627 = vld [vmem:[#allocation16 + $0x178] sm:$0xff]
    %v2628 = vld [vmem:[#allocation16 + $0x180] sm:$0xff]
    %v2629 = vld [vmem:[#allocation16 + $0x188] sm:$0xff]
    %v2630 = vld [vmem:[#allocation16 + $0x190] sm:$0xff]
    %v2631 = vld [vmem:[#allocation16 + $0x198] sm:$0xff]
    %v2632 = vld [vmem:[#allocation16 + $0x1a0] sm:$0xff]
    %v2633 = vld [vmem:[#allocation16 + $0x1a8] sm:$0xff]
    %v2634 = vld [vmem:[#allocation16 + $0x1b0] sm:$0xff]
    %v2635 = vld [vmem:[#allocation16 + $0x1b8] sm:$0xff]
    %v2636 = vld [vmem:[#allocation16 + $0x1c0] sm:$0xff]
    %v2637 = vld [vmem:[#allocation16 + $0x1c8] sm:$0xff]
    %v2638 = vld [vmem:[#allocation16 + $0x1d0] sm:$0xff]
    %v2639 = vld [vmem:[#allocation16 + $0x1d8] sm:$0xff]
    %v2640 = vld [vmem:[#allocation16 + $0x1e0] sm:$0xff]
    %v2641 = vld [vmem:[#allocation16 + $0x1e8] sm:$0xff]
    %v2642 = vld [vmem:[#allocation16 + $0x1f0] sm:$0xff]
    %v2643 = vld [vmem:[#allocation16 + $0x1f8] sm:$0xff]
    %2644 = vmatprep.subr.mxu0 %v2581
    %2645 = vmatpush1.msra.mxu0 %v2580
    %2646 = vmatprep.subr.mxu0 %v2585
    %2647 = vmatpush1.msra.mxu0 %v2584
    %2648 = vmatprep.subr.mxu0 %v2589
    %2649 = vmatpush1.msra.mxu0 %v2588
    %2650 = vmatprep.subr.mxu0 %v2593
    %2651 = vmatpush1.msra.mxu0 %v2592
    %2652 = vmatprep.subr.mxu0 %v2597
    %2653 = vmatpush1.msra.mxu0 %v2596
    %2654 = vmatprep.subr.mxu0 %v2601
    %2655 = vmatpush1.msra.mxu0 %v2600
    %2656 = vmatprep.subr.mxu0 %v2605
    %2657 = vmatpush1.msra.mxu0 %v2604
    %2658 = vmatprep.subr.mxu0 %v2609
    %2659 = vmatpush1.msra.mxu0 %v2608
    %2660 = vmatprep.subr.mxu0 %v2613
    %2661 = vmatpush1.msra.mxu0 %v2612
    %2662 = vmatprep.subr.mxu0 %v2617
    %2663 = vmatpush1.msra.mxu0 %v2616
    %2664 = vmatprep.subr.mxu0 %v2621
    %2665 = vmatpush1.msra.mxu0 %v2620
    %2666 = vmatprep.subr.mxu0 %v2625
    %2667 = vmatpush1.msra.mxu0 %v2624
    %2668 = vmatprep.subr.mxu0 %v2629
    %2669 = vmatpush1.msra.mxu0 %v2628
    %2670 = vmatprep.subr.mxu0 %v2633
    %2671 = vmatpush1.msra.mxu0 %v2632
    %2672 = vmatprep.subr.mxu0 %v2637
    %2673 = vmatpush1.msra.mxu0 %v2636
    %2674 = vmatprep.subr.mxu0 %v2641
    %2675 = vmatpush1.msra.mxu0 %v2640
    %2676 = vmatprep.subr.mxu0 0.0
    %2677 = vmatpush1.msra.mxu0 0.0
    %2678 = vmatprep.subr.mxu0 0.0
    %2679 = vmatpush1.msra.mxu0 0.0
    %2680 = vmatprep.subr.mxu0 0.0
    %2681 = vmatpush1.msra.mxu0 0.0
    %2682 = vmatprep.subr.mxu0 0.0
    %2683 = vmatpush1.msra.mxu0 0.0
    %2684 = vmatprep.subr.mxu0 0.0
    %2685 = vmatpush1.msra.mxu0 0.0
    %2686 = vmatprep.subr.mxu0 0.0
    %2687 = vmatpush1.msra.mxu0 0.0
    %2688 = vmatprep.subr.mxu0 0.0
    %2689 = vmatpush1.msra.mxu0 0.0
    %2690 = vmatprep.subr.mxu0 0.0
    %2691 = vmatpush1.msra.mxu0 0.0
    %2692 = vmatprep.subr.mxu0 0.0
    %2693 = vmatpush1.msra.mxu0 0.0
    %2694 = vmatprep.subr.mxu0 0.0
    %2695 = vmatpush1.msra.mxu0 0.0
    %2696 = vmatprep.subr.mxu0 0.0
    %2697 = vmatpush1.msra.mxu0 0.0
    %2698 = vmatprep.subr.mxu0 0.0
    %2699 = vmatpush1.msra.mxu0 0.0
    %2700 = vmatprep.subr.mxu0 0.0
    %2701 = vmatpush1.msra.mxu0 0.0
    %2702 = vmatprep.subr.mxu0 0.0
    %2703 = vmatpush1.msra.mxu0 0.0
    %2704 = vmatprep.subr.mxu0 0.0
    %2705 = vmatpush1.msra.mxu0 0.0
    %2706 = vmatprep.subr.mxu0 0.0
    %2707 = vmatpush1.msra.mxu0 0.0
    %2708 = vmatprep.mubr.f32.mxu0 0.0
    %2709 = vmatmul.mubr.f32.gmra.mrb[0].mxu0 %v2353
    %v2710 = vpop.f32.mrb[0].mxu0
    %v2711 = vadd.f32 0.0, %v2710
    %v2712 = vpop.f32.mrb[0].mxu0
    %v2713 = vadd.f32 0.0, %v2712
    %2714 = vdwg.mxu0
    %2715 = vmatprep.subr.mxu0 %v2583
    %2716 = vmatpush1.msra.mxu0 %v2582
    %2717 = vmatprep.subr.mxu0 %v2587
    %2718 = vmatpush1.msra.mxu0 %v2586
    %2719 = vmatprep.subr.mxu0 %v2591
    %2720 = vmatpush1.msra.mxu0 %v2590
    %2721 = vmatprep.subr.mxu0 %v2595
    %2722 = vmatpush1.msra.mxu0 %v2594
    %2723 = vmatprep.subr.mxu0 %v2599
    %2724 = vmatpush1.msra.mxu0 %v2598
    %2725 = vmatprep.subr.mxu0 %v2603
    %2726 = vmatpush1.msra.mxu0 %v2602
    %2727 = vmatprep.subr.mxu0 %v2607
    %2728 = vmatpush1.msra.mxu0 %v2606
    %2729 = vmatprep.subr.mxu0 %v2611
    %2730 = vmatpush1.msra.mxu0 %v2610
    %2731 = vmatprep.subr.mxu0 %v2615
    %2732 = vmatpush1.msra.mxu0 %v2614
    %2733 = vmatprep.subr.mxu0 %v2619
    %2734 = vmatpush1.msra.mxu0 %v2618
    %2735 = vmatprep.subr.mxu0 %v2623
    %2736 = vmatpush1.msra.mxu0 %v2622
    %2737 = vmatprep.subr.mxu0 %v2627
    %2738 = vmatpush1.msra.mxu0 %v2626
    %2739 = vmatprep.subr.mxu0 %v2631
    %2740 = vmatpush1.msra.mxu0 %v2630
    %2741 = vmatprep.subr.mxu0 %v2635
    %2742 = vmatpush1.msra.mxu0 %v2634
    %2743 = vmatprep.subr.mxu0 %v2639
    %2744 = vmatpush1.msra.mxu0 %v2638
    %2745 = vmatprep.subr.mxu0 %v2643
    %2746 = vmatpush1.msra.mxu0 %v2642
    %2747 = vmatprep.subr.mxu0 0.0
    %2748 = vmatpush1.msra.mxu0 0.0
    %2749 = vmatprep.subr.mxu0 0.0
    %2750 = vmatpush1.msra.mxu0 0.0
    %2751 = vmatprep.subr.mxu0 0.0
    %2752 = vmatpush1.msra.mxu0 0.0
    %2753 = vmatprep.subr.mxu0 0.0
    %2754 = vmatpush1.msra.mxu0 0.0
    %2755 = vmatprep.subr.mxu0 0.0
    %2756 = vmatpush1.msra.mxu0 0.0
    %2757 = vmatprep.subr.mxu0 0.0
    %2758 = vmatpush1.msra.mxu0 0.0
    %2759 = vmatprep.subr.mxu0 0.0
    %2760 = vmatpush1.msra.mxu0 0.0
    %2761 = vmatprep.subr.mxu0 0.0
    %2762 = vmatpush1.msra.mxu0 0.0
    %2763 = vmatprep.subr.mxu0 0.0
    %2764 = vmatpush1.msra.mxu0 0.0
    %2765 = vmatprep.subr.mxu0 0.0
    %2766 = vmatpush1.msra.mxu0 0.0
    %2767 = vmatprep.subr.mxu0 0.0
    %2768 = vmatpush1.msra.mxu0 0.0
    %2769 = vmatprep.subr.mxu0 0.0
    %2770 = vmatpush1.msra.mxu0 0.0
    %2771 = vmatprep.subr.mxu0 0.0
    %2772 = vmatpush1.msra.mxu0 0.0
    %2773 = vmatprep.subr.mxu0 0.0
    %2774 = vmatpush1.msra.mxu0 0.0
    %2775 = vmatprep.subr.mxu0 0.0
    %2776 = vmatpush1.msra.mxu0 0.0
    %2777 = vmatprep.subr.mxu0 0.0
    %2778 = vmatpush1.msra.mxu0 0.0
    %2779 = vmatprep.mubr.f32.mxu0 0.0
    %2780 = vmatmul.mubr.f32.gmra.mrb[0].mxu0 %v2353
    %v2781 = vpop.f32.mrb[0].mxu0
    %v2782 = vadd.f32 0.0, %v2781
    %v2783 = vpop.f32.mrb[0].mxu0
    %v2784 = vadd.f32 0.0, %v2783
    %2785 = vdwg.mxu0
    %v2786 = vadd.f32 %v2576, %v2711
    %v2787 = vadd.f32 %v2577, %v2713
    %v2788 = vadd.f32 %v2578, %v2782
    %v2789 = vadd.f32 %v2579, %v2784
    %s2790 = scalar_lea.vmem [#allocation16], 512
    %v2791 = vld [vmem:[%s2790] sm:$0xff]
    %v2792 = vld [vmem:[%s2790 + $0x8] sm:$0xff]
    %v2793 = vld [vmem:[%s2790 + $0x10] sm:$0xff]
    %v2794 = vld [vmem:[%s2790 + $0x18] sm:$0xff]
    %v2795 = vld [vmem:[%s2790 + $0x20] sm:$0xff]
    %v2796 = vld [vmem:[%s2790 + $0x28] sm:$0xff]
    %v2797 = vld [vmem:[%s2790 + $0x30] sm:$0xff]
    %v2798 = vld [vmem:[%s2790 + $0x38] sm:$0xff]
    %v2799 = vld [vmem:[%s2790 + $0x40] sm:$0xff]
    %v2800 = vld [vmem:[%s2790 + $0x48] sm:$0xff]
    %v2801 = vld [vmem:[%s2790 + $0x50] sm:$0xff]
    %v2802 = vld [vmem:[%s2790 + $0x58] sm:$0xff]
    %v2803 = vld [vmem:[%s2790 + $0x60] sm:$0xff]
    %v2804 = vld [vmem:[%s2790 + $0x68] sm:$0xff]
    %v2805 = vld [vmem:[%s2790 + $0x70] sm:$0xff]
    %v2806 = vld [vmem:[%s2790 + $0x78] sm:$0xff]
    %v2807 = vld [vmem:[%s2790 + $0x80] sm:$0xff]
    %v2808 = vld [vmem:[%s2790 + $0x88] sm:$0xff]
    %v2809 = vld [vmem:[%s2790 + $0x90] sm:$0xff]
    %v2810 = vld [vmem:[%s2790 + $0x98] sm:$0xff]
    %v2811 = vld [vmem:[%s2790 + $0xa0] sm:$0xff]
    %v2812 = vld [vmem:[%s2790 + $0xa8] sm:$0xff]
    %v2813 = vld [vmem:[%s2790 + $0xb0] sm:$0xff]
    %v2814 = vld [vmem:[%s2790 + $0xb8] sm:$0xff]
    %v2815 = vld [vmem:[%s2790 + $0xc0] sm:$0xff]
    %v2816 = vld [vmem:[%s2790 + $0xc8] sm:$0xff]
    %v2817 = vld [vmem:[%s2790 + $0xd0] sm:$0xff]
    %v2818 = vld [vmem:[%s2790 + $0xd8] sm:$0xff]
    %v2819 = vld [vmem:[%s2790 + $0xe0] sm:$0xff]
    %v2820 = vld [vmem:[%s2790 + $0xe8] sm:$0xff]
    %v2821 = vld [vmem:[%s2790 + $0xf0] sm:$0xff]
    %v2822 = vld [vmem:[%s2790 + $0xf8] sm:$0xff]
    %v2823 = vld [vmem:[%s2790 + $0x100] sm:$0xff]
    %v2824 = vld [vmem:[%s2790 + $0x108] sm:$0xff]
    %v2825 = vld [vmem:[%s2790 + $0x110] sm:$0xff]
    %v2826 = vld [vmem:[%s2790 + $0x118] sm:$0xff]
    %v2827 = vld [vmem:[%s2790 + $0x120] sm:$0xff]
    %v2828 = vld [vmem:[%s2790 + $0x128] sm:$0xff]
    %v2829 = vld [vmem:[%s2790 + $0x130] sm:$0xff]
    %v2830 = vld [vmem:[%s2790 + $0x138] sm:$0xff]
    %v2831 = vld [vmem:[%s2790 + $0x140] sm:$0xff]
    %v2832 = vld [vmem:[%s2790 + $0x148] sm:$0xff]
    %v2833 = vld [vmem:[%s2790 + $0x150] sm:$0xff]
    %v2834 = vld [vmem:[%s2790 + $0x158] sm:$0xff]
    %v2835 = vld [vmem:[%s2790 + $0x160] sm:$0xff]
    %v2836 = vld [vmem:[%s2790 + $0x168] sm:$0xff]
    %v2837 = vld [vmem:[%s2790 + $0x170] sm:$0xff]
    %v2838 = vld [vmem:[%s2790 + $0x178] sm:$0xff]
    %v2839 = vld [vmem:[%s2790 + $0x180] sm:$0xff]
    %v2840 = vld [vmem:[%s2790 + $0x188] sm:$0xff]
    %v2841 = vld [vmem:[%s2790 + $0x190] sm:$0xff]
    %v2842 = vld [vmem:[%s2790 + $0x198] sm:$0xff]
    %v2843 = vld [vmem:[%s2790 + $0x1a0] sm:$0xff]
    %v2844 = vld [vmem:[%s2790 + $0x1a8] sm:$0xff]
    %v2845 = vld [vmem:[%s2790 + $0x1b0] sm:$0xff]
    %v2846 = vld [vmem:[%s2790 + $0x1b8] sm:$0xff]
    %v2847 = vld [vmem:[%s2790 + $0x1c0] sm:$0xff]
    %v2848 = vld [vmem:[%s2790 + $0x1c8] sm:$0xff]
    %v2849 = vld [vmem:[%s2790 + $0x1d0] sm:$0xff]
    %v2850 = vld [vmem:[%s2790 + $0x1d8] sm:$0xff]
    %v2851 = vld [vmem:[%s2790 + $0x1e0] sm:$0xff]
    %v2852 = vld [vmem:[%s2790 + $0x1e8] sm:$0xff]
    %v2853 = vld [vmem:[%s2790 + $0x1f0] sm:$0xff]
    %v2854 = vld [vmem:[%s2790 + $0x1f8] sm:$0xff]
    %2855 = vmatprep.subr.mxu0 %v2792
    %2856 = vmatpush1.msra.mxu0 %v2791
    %2857 = vmatprep.subr.mxu0 %v2796
    %2858 = vmatpush1.msra.mxu0 %v2795
    %2859 = vmatprep.subr.mxu0 %v2800
    %2860 = vmatpush1.msra.mxu0 %v2799
    %2861 = vmatprep.subr.mxu0 %v2804
    %2862 = vmatpush1.msra.mxu0 %v2803
    %2863 = vmatprep.subr.mxu0 %v2808
    %2864 = vmatpush1.msra.mxu0 %v2807
    %2865 = vmatprep.subr.mxu0 %v2812
    %2866 = vmatpush1.msra.mxu0 %v2811
    %2867 = vmatprep.subr.mxu0 %v2816
    %2868 = vmatpush1.msra.mxu0 %v2815
    %2869 = vmatprep.subr.mxu0 %v2820
    %2870 = vmatpush1.msra.mxu0 %v2819
    %2871 = vmatprep.subr.mxu0 %v2824
    %2872 = vmatpush1.msra.mxu0 %v2823
    %2873 = vmatprep.subr.mxu0 %v2828
    %2874 = vmatpush1.msra.mxu0 %v2827
    %2875 = vmatprep.subr.mxu0 %v2832
    %2876 = vmatpush1.msra.mxu0 %v2831
    %2877 = vmatprep.subr.mxu0 %v2836
    %2878 = vmatpush1.msra.mxu0 %v2835
    %2879 = vmatprep.subr.mxu0 %v2840
    %2880 = vmatpush1.msra.mxu0 %v2839
    %2881 = vmatprep.subr.mxu0 %v2844
    %2882 = vmatpush1.msra.mxu0 %v2843
    %2883 = vmatprep.subr.mxu0 %v2848
    %2884 = vmatpush1.msra.mxu0 %v2847
    %2885 = vmatprep.subr.mxu0 %v2852
    %2886 = vmatpush1.msra.mxu0 %v2851
    %2887 = vmatprep.subr.mxu0 0.0
    %2888 = vmatpush1.msra.mxu0 0.0
    %2889 = vmatprep.subr.mxu0 0.0
    %2890 = vmatpush1.msra.mxu0 0.0
    %2891 = vmatprep.subr.mxu0 0.0
    %2892 = vmatpush1.msra.mxu0 0.0
    %2893 = vmatprep.subr.mxu0 0.0
    %2894 = vmatpush1.msra.mxu0 0.0
    %2895 = vmatprep.subr.mxu0 0.0
    %2896 = vmatpush1.msra.mxu0 0.0
    %2897 = vmatprep.subr.mxu0 0.0
    %2898 = vmatpush1.msra.mxu0 0.0
    %2899 = vmatprep.subr.mxu0 0.0
    %2900 = vmatpush1.msra.mxu0 0.0
    %2901 = vmatprep.subr.mxu0 0.0
    %2902 = vmatpush1.msra.mxu0 0.0
    %2903 = vmatprep.subr.mxu0 0.0
    %2904 = vmatpush1.msra.mxu0 0.0
    %2905 = vmatprep.subr.mxu0 0.0
    %2906 = vmatpush1.msra.mxu0 0.0
    %2907 = vmatprep.subr.mxu0 0.0
    %2908 = vmatpush1.msra.mxu0 0.0
    %2909 = vmatprep.subr.mxu0 0.0
    %2910 = vmatpush1.msra.mxu0 0.0
    %2911 = vmatprep.subr.mxu0 0.0
    %2912 = vmatpush1.msra.mxu0 0.0
    %2913 = vmatprep.subr.mxu0 0.0
    %2914 = vmatpush1.msra.mxu0 0.0
    %2915 = vmatprep.subr.mxu0 0.0
    %2916 = vmatpush1.msra.mxu0 0.0
    %2917 = vmatprep.subr.mxu0 0.0
    %2918 = vmatpush1.msra.mxu0 0.0
    %2919 = vmatprep.mubr.f32.mxu0 0.0
    %2920 = vmatmul.mubr.f32.gmra.mrb[0].mxu0 %v2358
    %v2921 = vpop.f32.mrb[0].mxu0
    %v2922 = vadd.f32 0.0, %v2921
    %v2923 = vpop.f32.mrb[0].mxu0
    %v2924 = vadd.f32 0.0, %v2923
    %2925 = vdwg.mxu0
    %2926 = vmatprep.subr.mxu0 %v2794
    %2927 = vmatpush1.msra.mxu0 %v2793
    %2928 = vmatprep.subr.mxu0 %v2798
    %2929 = vmatpush1.msra.mxu0 %v2797
    %2930 = vmatprep.subr.mxu0 %v2802
    %2931 = vmatpush1.msra.mxu0 %v2801
    %2932 = vmatprep.subr.mxu0 %v2806
    %2933 = vmatpush1.msra.mxu0 %v2805
    %2934 = vmatprep.subr.mxu0 %v2810
    %2935 = vmatpush1.msra.mxu0 %v2809
    %2936 = vmatprep.subr.mxu0 %v2814
    %2937 = vmatpush1.msra.mxu0 %v2813
    %2938 = vmatprep.subr.mxu0 %v2818
    %2939 = vmatpush1.msra.mxu0 %v2817
    %2940 = vmatprep.subr.mxu0 %v2822
    %2941 = vmatpush1.msra.mxu0 %v2821
    %2942 = vmatprep.subr.mxu0 %v2826
    %2943 = vmatpush1.msra.mxu0 %v2825
    %2944 = vmatprep.subr.mxu0 %v2830
    %2945 = vmatpush1.msra.mxu0 %v2829
    %2946 = vmatprep.subr.mxu0 %v2834
    %2947 = vmatpush1.msra.mxu0 %v2833
    %2948 = vmatprep.subr.mxu0 %v2838
    %2949 = vmatpush1.msra.mxu0 %v2837
    %2950 = vmatprep.subr.mxu0 %v2842
    %2951 = vmatpush1.msra.mxu0 %v2841
    %2952 = vmatprep.subr.mxu0 %v2846
    %2953 = vmatpush1.msra.mxu0 %v2845
    %2954 = vmatprep.subr.mxu0 %v2850
    %2955 = vmatpush1.msra.mxu0 %v2849
    %2956 = vmatprep.subr.mxu0 %v2854
    %2957 = vmatpush1.msra.mxu0 %v2853
    %2958 = vmatprep.subr.mxu0 0.0
    %2959 = vmatpush1.msra.mxu0 0.0
    %2960 = vmatprep.subr.mxu0 0.0
    %2961 = vmatpush1.msra.mxu0 0.0
    %2962 = vmatprep.subr.mxu0 0.0
    %2963 = vmatpush1.msra.mxu0 0.0
    %2964 = vmatprep.subr.mxu0 0.0
    %2965 = vmatpush1.msra.mxu0 0.0
    %2966 = vmatprep.subr.mxu0 0.0
    %2967 = vmatpush1.msra.mxu0 0.0
    %2968 = vmatprep.subr.mxu0 0.0
    %2969 = vmatpush1.msra.mxu0 0.0
    %2970 = vmatprep.subr.mxu0 0.0
    %2971 = vmatpush1.msra.mxu0 0.0
    %2972 = vmatprep.subr.mxu0 0.0
    %2973 = vmatpush1.msra.mxu0 0.0
    %2974 = vmatprep.subr.mxu0 0.0
    %2975 = vmatpush1.msra.mxu0 0.0
    %2976 = vmatprep.subr.mxu0 0.0
    %2977 = vmatpush1.msra.mxu0 0.0
    %2978 = vmatprep.subr.mxu0 0.0
    %2979 = vmatpush1.msra.mxu0 0.0
    %2980 = vmatprep.subr.mxu0 0.0
    %2981 = vmatpush1.msra.mxu0 0.0
    %2982 = vmatprep.subr.mxu0 0.0
    %2983 = vmatpush1.msra.mxu0 0.0
    %2984 = vmatprep.subr.mxu0 0.0
    %2985 = vmatpush1.msra.mxu0 0.0
    %2986 = vmatprep.subr.mxu0 0.0
    %2987 = vmatpush1.msra.mxu0 0.0
    %2988 = vmatprep.subr.mxu0 0.0
    %2989 = vmatpush1.msra.mxu0 0.0
    %2990 = vmatprep.mubr.f32.mxu0 0.0
    %2991 = vmatmul.mubr.f32.gmra.mrb[0].mxu0 %v2358
    %v2992 = vpop.f32.mrb[0].mxu0
    %v2993 = vadd.f32 0.0, %v2992
    %v2994 = vpop.f32.mrb[0].mxu0
    %v2995 = vadd.f32 0.0, %v2994
    %2996 = vdwg.mxu0
    %v2997 = vadd.f32 %v2786, %v2922
    %v2998 = vadd.f32 %v2787, %v2924
    %v2999 = vadd.f32 %v2788, %v2993
    %v3000 = vadd.f32 %v2789, %v2995
    %s3001 = scalar_lea.vmem [#allocation16], 1024
    %v3002 = vld [vmem:[%s3001] sm:$0xff]
    %v3003 = vld [vmem:[%s3001 + $0x8] sm:$0xff]
    %v3004 = vld [vmem:[%s3001 + $0x10] sm:$0xff]
    %v3005 = vld [vmem:[%s3001 + $0x18] sm:$0xff]
    %v3006 = vld [vmem:[%s3001 + $0x20] sm:$0xff]
    %v3007 = vld [vmem:[%s3001 + $0x28] sm:$0xff]
    %v3008 = vld [vmem:[%s3001 + $0x30] sm:$0xff]
    %v3009 = vld [vmem:[%s3001 + $0x38] sm:$0xff]
    %v3010 = vld [vmem:[%s3001 + $0x40] sm:$0xff]
    %v3011 = vld [vmem:[%s3001 + $0x48] sm:$0xff]
    %v3012 = vld [vmem:[%s3001 + $0x50] sm:$0xff]
    %v3013 = vld [vmem:[%s3001 + $0x58] sm:$0xff]
    %v3014 = vld [vmem:[%s3001 + $0x60] sm:$0xff]
    %v3015 = vld [vmem:[%s3001 + $0x68] sm:$0xff]
    %v3016 = vld [vmem:[%s3001 + $0x70] sm:$0xff]
    %v3017 = vld [vmem:[%s3001 + $0x78] sm:$0xff]
    %v3018 = vld [vmem:[%s3001 + $0x80] sm:$0xff]
    %v3019 = vld [vmem:[%s3001 + $0x88] sm:$0xff]
    %v3020 = vld [vmem:[%s3001 + $0x90] sm:$0xff]
    %v3021 = vld [vmem:[%s3001 + $0x98] sm:$0xff]
    %v3022 = vld [vmem:[%s3001 + $0xa0] sm:$0xff]
    %v3023 = vld [vmem:[%s3001 + $0xa8] sm:$0xff]
    %v3024 = vld [vmem:[%s3001 + $0xb0] sm:$0xff]
    %v3025 = vld [vmem:[%s3001 + $0xb8] sm:$0xff]
    %v3026 = vld [vmem:[%s3001 + $0xc0] sm:$0xff]
    %v3027 = vld [vmem:[%s3001 + $0xc8] sm:$0xff]
    %v3028 = vld [vmem:[%s3001 + $0xd0] sm:$0xff]
    %v3029 = vld [vmem:[%s3001 + $0xd8] sm:$0xff]
    %v3030 = vld [vmem:[%s3001 + $0xe0] sm:$0xff]
    %v3031 = vld [vmem:[%s3001 + $0xe8] sm:$0xff]
    %v3032 = vld [vmem:[%s3001 + $0xf0] sm:$0xff]
    %v3033 = vld [vmem:[%s3001 + $0xf8] sm:$0xff]
    %v3034 = vld [vmem:[%s3001 + $0x100] sm:$0xff]
    %v3035 = vld [vmem:[%s3001 + $0x108] sm:$0xff]
    %v3036 = vld [vmem:[%s3001 + $0x110] sm:$0xff]
    %v3037 = vld [vmem:[%s3001 + $0x118] sm:$0xff]
    %v3038 = vld [vmem:[%s3001 + $0x120] sm:$0xff]
    %v3039 = vld [vmem:[%s3001 + $0x128] sm:$0xff]
    %v3040 = vld [vmem:[%s3001 + $0x130] sm:$0xff]
    %v3041 = vld [vmem:[%s3001 + $0x138] sm:$0xff]
    %v3042 = vld [vmem:[%s3001 + $0x140] sm:$0xff]
    %v3043 = vld [vmem:[%s3001 + $0x148] sm:$0xff]
    %v3044 = vld [vmem:[%s3001 + $0x150] sm:$0xff]
    %v3045 = vld [vmem:[%s3001 + $0x158] sm:$0xff]
    %v3046 = vld [vmem:[%s3001 + $0x160] sm:$0xff]
    %v3047 = vld [vmem:[%s3001 + $0x168] sm:$0xff]
    %v3048 = vld [vmem:[%s3001 + $0x170] sm:$0xff]
    %v3049 = vld [vmem:[%s3001 + $0x178] sm:$0xff]
    %v3050 = vld [vmem:[%s3001 + $0x180] sm:$0xff]
    %v3051 = vld [vmem:[%s3001 + $0x188] sm:$0xff]
    %v3052 = vld [vmem:[%s3001 + $0x190] sm:$0xff]
    %v3053 = vld [vmem:[%s3001 + $0x198] sm:$0xff]
    %v3054 = vld [vmem:[%s3001 + $0x1a0] sm:$0xff]
    %v3055 = vld [vmem:[%s3001 + $0x1a8] sm:$0xff]
    %v3056 = vld [vmem:[%s3001 + $0x1b0] sm:$0xff]
    %v3057 = vld [vmem:[%s3001 + $0x1b8] sm:$0xff]
    %v3058 = vld [vmem:[%s3001 + $0x1c0] sm:$0xff]
    %v3059 = vld [vmem:[%s3001 + $0x1c8] sm:$0xff]
    %v3060 = vld [vmem:[%s3001 + $0x1d0] sm:$0xff]
    %v3061 = vld [vmem:[%s3001 + $0x1d8] sm:$0xff]
    %v3062 = vld [vmem:[%s3001 + $0x1e0] sm:$0xff]
    %v3063 = vld [vmem:[%s3001 + $0x1e8] sm:$0xff]
    %v3064 = vld [vmem:[%s3001 + $0x1f0] sm:$0xff]
    %v3065 = vld [vmem:[%s3001 + $0x1f8] sm:$0xff]
    %3066 = vmatprep.subr.mxu0 %v3003
    %3067 = vmatpush1.msra.mxu0 %v3002
    %3068 = vmatprep.subr.mxu0 %v3007
    %3069 = vmatpush1.msra.mxu0 %v3006
    %3070 = vmatprep.subr.mxu0 %v3011
    %3071 = vmatpush1.msra.mxu0 %v3010
    %3072 = vmatprep.subr.mxu0 %v3015
    %3073 = vmatpush1.msra.mxu0 %v3014
    %3074 = vmatprep.subr.mxu0 %v3019
    %3075 = vmatpush1.msra.mxu0 %v3018
    %3076 = vmatprep.subr.mxu0 %v3023
    %3077 = vmatpush1.msra.mxu0 %v3022
    %3078 = vmatprep.subr.mxu0 %v3027
    %3079 = vmatpush1.msra.mxu0 %v3026
    %3080 = vmatprep.subr.mxu0 %v3031
    %3081 = vmatpush1.msra.mxu0 %v3030
    %3082 = vmatprep.subr.mxu0 %v3035
    %3083 = vmatpush1.msra.mxu0 %v3034
    %3084 = vmatprep.subr.mxu0 %v3039
    %3085 = vmatpush1.msra.mxu0 %v3038
    %3086 = vmatprep.subr.mxu0 %v3043
    %3087 = vmatpush1.msra.mxu0 %v3042
    %3088 = vmatprep.subr.mxu0 %v3047
    %3089 = vmatpush1.msra.mxu0 %v3046
    %3090 = vmatprep.subr.mxu0 %v3051
    %3091 = vmatpush1.msra.mxu0 %v3050
    %3092 = vmatprep.subr.mxu0 %v3055
    %3093 = vmatpush1.msra.mxu0 %v3054
    %3094 = vmatprep.subr.mxu0 %v3059
    %3095 = vmatpush1.msra.mxu0 %v3058
    %3096 = vmatprep.subr.mxu0 %v3063
    %3097 = vmatpush1.msra.mxu0 %v3062
    %3098 = vmatprep.subr.mxu0 0.0
    %3099 = vmatpush1.msra.mxu0 0.0
    %3100 = vmatprep.subr.mxu0 0.0
    %3101 = vmatpush1.msra.mxu0 0.0
    %3102 = vmatprep.subr.mxu0 0.0
    %3103 = vmatpush1.msra.mxu0 0.0
    %3104 = vmatprep.subr.mxu0 0.0
    %3105 = vmatpush1.msra.mxu0 0.0
    %3106 = vmatprep.subr.mxu0 0.0
    %3107 = vmatpush1.msra.mxu0 0.0
    %3108 = vmatprep.subr.mxu0 0.0
    %3109 = vmatpush1.msra.mxu0 0.0
    %3110 = vmatprep.subr.mxu0 0.0
    %3111 = vmatpush1.msra.mxu0 0.0
    %3112 = vmatprep.subr.mxu0 0.0
    %3113 = vmatpush1.msra.mxu0 0.0
    %3114 = vmatprep.subr.mxu0 0.0
    %3115 = vmatpush1.msra.mxu0 0.0
    %3116 = vmatprep.subr.mxu0 0.0
    %3117 = vmatpush1.msra.mxu0 0.0
    %3118 = vmatprep.subr.mxu0 0.0
    %3119 = vmatpush1.msra.mxu0 0.0
    %3120 = vmatprep.subr.mxu0 0.0
    %3121 = vmatpush1.msra.mxu0 0.0
    %3122 = vmatprep.subr.mxu0 0.0
    %3123 = vmatpush1.msra.mxu0 0.0
    %3124 = vmatprep.subr.mxu0 0.0
    %3125 = vmatpush1.msra.mxu0 0.0
    %3126 = vmatprep.subr.mxu0 0.0
    %3127 = vmatpush1.msra.mxu0 0.0
    %3128 = vmatprep.subr.mxu0 0.0
    %3129 = vmatpush1.msra.mxu0 0.0
    %3130 = vmatprep.mubr.f32.mxu0 0.0
    %3131 = vmatmul.mubr.f32.gmra.mrb[0].mxu0 %v2363
    %v3132 = vpop.f32.mrb[0].mxu0
    %v3133 = vadd.f32 0.0, %v3132
    %v3134 = vpop.f32.mrb[0].mxu0
    %v3135 = vadd.f32 0.0, %v3134
    %3136 = vdwg.mxu0
    %3137 = vmatprep.subr.mxu0 %v3005
    %3138 = vmatpush1.msra.mxu0 %v3004
    %3139 = vmatprep.subr.mxu0 %v3009
    %3140 = vmatpush1.msra.mxu0 %v3008
    %3141 = vmatprep.subr.mxu0 %v3013
    %3142 = vmatpush1.msra.mxu0 %v3012
    %3143 = vmatprep.subr.mxu0 %v3017
    %3144 = vmatpush1.msra.mxu0 %v3016
    %3145 = vmatprep.subr.mxu0 %v3021
    %3146 = vmatpush1.msra.mxu0 %v3020
    %3147 = vmatprep.subr.mxu0 %v3025
    %3148 = vmatpush1.msra.mxu0 %v3024
    %3149 = vmatprep.subr.mxu0 %v3029
    %3150 = vmatpush1.msra.mxu0 %v3028
    %3151 = vmatprep.subr.mxu0 %v3033
    %3152 = vmatpush1.msra.mxu0 %v3032
    %3153 = vmatprep.subr.mxu0 %v3037
    %3154 = vmatpush1.msra.mxu0 %v3036
    %3155 = vmatprep.subr.mxu0 %v3041
    %3156 = vmatpush1.msra.mxu0 %v3040
    %3157 = vmatprep.subr.mxu0 %v3045
    %3158 = vmatpush1.msra.mxu0 %v3044
    %3159 = vmatprep.subr.mxu0 %v3049
    %3160 = vmatpush1.msra.mxu0 %v3048
    %3161 = vmatprep.subr.mxu0 %v3053
    %3162 = vmatpush1.msra.mxu0 %v3052
    %3163 = vmatprep.subr.mxu0 %v3057
    %3164 = vmatpush1.msra.mxu0 %v3056
    %3165 = vmatprep.subr.mxu0 %v3061
    %3166 = vmatpush1.msra.mxu0 %v3060
    %3167 = vmatprep.subr.mxu0 %v3065
    %3168 = vmatpush1.msra.mxu0 %v3064
    %3169 = vmatprep.subr.mxu0 0.0
    %3170 = vmatpush1.msra.mxu0 0.0
    %3171 = vmatprep.subr.mxu0 0.0
    %3172 = vmatpush1.msra.mxu0 0.0
    %3173 = vmatprep.subr.mxu0 0.0
    %3174 = vmatpush1.msra.mxu0 0.0
    %3175 = vmatprep.subr.mxu0 0.0
    %3176 = vmatpush1.msra.mxu0 0.0
    %3177 = vmatprep.subr.mxu0 0.0
    %3178 = vmatpush1.msra.mxu0 0.0
    %3179 = vmatprep.subr.mxu0 0.0
    %3180 = vmatpush1.msra.mxu0 0.0
    %3181 = vmatprep.subr.mxu0 0.0
    %3182 = vmatpush1.msra.mxu0 0.0
    %3183 = vmatprep.subr.mxu0 0.0
    %3184 = vmatpush1.msra.mxu0 0.0
    %3185 = vmatprep.subr.mxu0 0.0
    %3186 = vmatpush1.msra.mxu0 0.0
    %3187 = vmatprep.subr.mxu0 0.0
    %3188 = vmatpush1.msra.mxu0 0.0
    %3189 = vmatprep.subr.mxu0 0.0
    %3190 = vmatpush1.msra.mxu0 0.0
    %3191 = vmatprep.subr.mxu0 0.0
    %3192 = vmatpush1.msra.mxu0 0.0
    %3193 = vmatprep.subr.mxu0 0.0
    %3194 = vmatpush1.msra.mxu0 0.0
    %3195 = vmatprep.subr.mxu0 0.0
    %3196 = vmatpush1.msra.mxu0 0.0
    %3197 = vmatprep.subr.mxu0 0.0
    %3198 = vmatpush1.msra.mxu0 0.0
    %3199 = vmatprep.subr.mxu0 0.0
    %3200 = vmatpush1.msra.mxu0 0.0
    %3201 = vmatprep.mubr.f32.mxu0 0.0
    %3202 = vmatmul.mubr.f32.gmra.mrb[0].mxu0 %v2363
    %v3203 = vpop.f32.mrb[0].mxu0
    %v3204 = vadd.f32 0.0, %v3203
    %v3205 = vpop.f32.mrb[0].mxu0
    %v3206 = vadd.f32 0.0, %v3205
    %3207 = vdwg.mxu0
    %v3208 = vadd.f32 %v2997, %v3133
    %v3209 = vadd.f32 %v2998, %v3135
    %v3210 = vadd.f32 %v2999, %v3204
    %v3211 = vadd.f32 %v3000, %v3206
    %s3212 = scalar_lea.vmem [#allocation16], 1536
    %v3213 = vld [vmem:[%s3212] sm:$0xff]
    %v3214 = vld [vmem:[%s3212 + $0x8] sm:$0xff]
    %v3215 = vld [vmem:[%s3212 + $0x10] sm:$0xff]
    %v3216 = vld [vmem:[%s3212 + $0x18] sm:$0xff]
    %v3217 = vld [vmem:[%s3212 + $0x20] sm:$0xff]
    %v3218 = vld [vmem:[%s3212 + $0x28] sm:$0xff]
    %v3219 = vld [vmem:[%s3212 + $0x30] sm:$0xff]
    %v3220 = vld [vmem:[%s3212 + $0x38] sm:$0xff]
    %v3221 = vld [vmem:[%s3212 + $0x40] sm:$0xff]
    %v3222 = vld [vmem:[%s3212 + $0x48] sm:$0xff]
    %v3223 = vld [vmem:[%s3212 + $0x50] sm:$0xff]
    %v3224 = vld [vmem:[%s3212 + $0x58] sm:$0xff]
    %v3225 = vld [vmem:[%s3212 + $0x60] sm:$0xff]
    %v3226 = vld [vmem:[%s3212 + $0x68] sm:$0xff]
    %v3227 = vld [vmem:[%s3212 + $0x70] sm:$0xff]
    %v3228 = vld [vmem:[%s3212 + $0x78] sm:$0xff]
    %v3229 = vld [vmem:[%s3212 + $0x80] sm:$0xff]
    %v3230 = vld [vmem:[%s3212 + $0x88] sm:$0xff]
    %v3231 = vld [vmem:[%s3212 + $0x90] sm:$0xff]
    %v3232 = vld [vmem:[%s3212 + $0x98] sm:$0xff]
    %v3233 = vld [vmem:[%s3212 + $0xa0] sm:$0xff]
    %v3234 = vld [vmem:[%s3212 + $0xa8] sm:$0xff]
    %v3235 = vld [vmem:[%s3212 + $0xb0] sm:$0xff]
    %v3236 = vld [vmem:[%s3212 + $0xb8] sm:$0xff]
    %v3237 = vld [vmem:[%s3212 + $0xc0] sm:$0xff]
    %v3238 = vld [vmem:[%s3212 + $0xc8] sm:$0xff]
    %v3239 = vld [vmem:[%s3212 + $0xd0] sm:$0xff]
    %v3240 = vld [vmem:[%s3212 + $0xd8] sm:$0xff]
    %v3241 = vld [vmem:[%s3212 + $0xe0] sm:$0xff]
    %v3242 = vld [vmem:[%s3212 + $0xe8] sm:$0xff]
    %v3243 = vld [vmem:[%s3212 + $0xf0] sm:$0xff]
    %v3244 = vld [vmem:[%s3212 + $0xf8] sm:$0xff]
    %v3245 = vld [vmem:[%s3212 + $0x100] sm:$0xff]
    %v3246 = vld [vmem:[%s3212 + $0x108] sm:$0xff]
    %v3247 = vld [vmem:[%s3212 + $0x110] sm:$0xff]
    %v3248 = vld [vmem:[%s3212 + $0x118] sm:$0xff]
    %v3249 = vld [vmem:[%s3212 + $0x120] sm:$0xff]
    %v3250 = vld [vmem:[%s3212 + $0x128] sm:$0xff]
    %v3251 = vld [vmem:[%s3212 + $0x130] sm:$0xff]
    %v3252 = vld [vmem:[%s3212 + $0x138] sm:$0xff]
    %v3253 = vld [vmem:[%s3212 + $0x140] sm:$0xff]
    %v3254 = vld [vmem:[%s3212 + $0x148] sm:$0xff]
    %v3255 = vld [vmem:[%s3212 + $0x150] sm:$0xff]
    %v3256 = vld [vmem:[%s3212 + $0x158] sm:$0xff]
    %v3257 = vld [vmem:[%s3212 + $0x160] sm:$0xff]
    %v3258 = vld [vmem:[%s3212 + $0x168] sm:$0xff]
    %v3259 = vld [vmem:[%s3212 + $0x170] sm:$0xff]
    %v3260 = vld [vmem:[%s3212 + $0x178] sm:$0xff]
    %v3261 = vld [vmem:[%s3212 + $0x180] sm:$0xff]
    %v3262 = vld [vmem:[%s3212 + $0x188] sm:$0xff]
    %v3263 = vld [vmem:[%s3212 + $0x190] sm:$0xff]
    %v3264 = vld [vmem:[%s3212 + $0x198] sm:$0xff]
    %v3265 = vld [vmem:[%s3212 + $0x1a0] sm:$0xff]
    %v3266 = vld [vmem:[%s3212 + $0x1a8] sm:$0xff]
    %v3267 = vld [vmem:[%s3212 + $0x1b0] sm:$0xff]
    %v3268 = vld [vmem:[%s3212 + $0x1b8] sm:$0xff]
    %v3269 = vld [vmem:[%s3212 + $0x1c0] sm:$0xff]
    %v3270 = vld [vmem:[%s3212 + $0x1c8] sm:$0xff]
    %v3271 = vld [vmem:[%s3212 + $0x1d0] sm:$0xff]
    %v3272 = vld [vmem:[%s3212 + $0x1d8] sm:$0xff]
    %v3273 = vld [vmem:[%s3212 + $0x1e0] sm:$0xff]
    %v3274 = vld [vmem:[%s3212 + $0x1e8] sm:$0xff]
    %v3275 = vld [vmem:[%s3212 + $0x1f0] sm:$0xff]
    %v3276 = vld [vmem:[%s3212 + $0x1f8] sm:$0xff]
    %3277 = vmatprep.subr.mxu0 %v3214
    %3278 = vmatpush1.msra.mxu0 %v3213
    %3279 = vmatprep.subr.mxu0 %v3218
    %3280 = vmatpush1.msra.mxu0 %v3217
    %3281 = vmatprep.subr.mxu0 %v3222
    %3282 = vmatpush1.msra.mxu0 %v3221
    %3283 = vmatprep.subr.mxu0 %v3226
    %3284 = vmatpush1.msra.mxu0 %v3225
    %3285 = vmatprep.subr.mxu0 %v3230
    %3286 = vmatpush1.msra.mxu0 %v3229
    %3287 = vmatprep.subr.mxu0 %v3234
    %3288 = vmatpush1.msra.mxu0 %v3233
    %3289 = vmatprep.subr.mxu0 %v3238
    %3290 = vmatpush1.msra.mxu0 %v3237
    %3291 = vmatprep.subr.mxu0 %v3242
    %3292 = vmatpush1.msra.mxu0 %v3241
    %3293 = vmatprep.subr.mxu0 %v3246
    %3294 = vmatpush1.msra.mxu0 %v3245
    %3295 = vmatprep.subr.mxu0 %v3250
    %3296 = vmatpush1.msra.mxu0 %v3249
    %3297 = vmatprep.subr.mxu0 %v3254
    %3298 = vmatpush1.msra.mxu0 %v3253
    %3299 = vmatprep.subr.mxu0 %v3258
    %3300 = vmatpush1.msra.mxu0 %v3257
    %3301 = vmatprep.subr.mxu0 %v3262
    %3302 = vmatpush1.msra.mxu0 %v3261
    %3303 = vmatprep.subr.mxu0 %v3266
    %3304 = vmatpush1.msra.mxu0 %v3265
    %3305 = vmatprep.subr.mxu0 %v3270
    %3306 = vmatpush1.msra.mxu0 %v3269
    %3307 = vmatprep.subr.mxu0 %v3274
    %3308 = vmatpush1.msra.mxu0 %v3273
    %3309 = vmatprep.subr.mxu0 0.0
    %3310 = vmatpush1.msra.mxu0 0.0
    %3311 = vmatprep.subr.mxu0 0.0
    %3312 = vmatpush1.msra.mxu0 0.0
    %3313 = vmatprep.subr.mxu0 0.0
    %3314 = vmatpush1.msra.mxu0 0.0
    %3315 = vmatprep.subr.mxu0 0.0
    %3316 = vmatpush1.msra.mxu0 0.0
    %3317 = vmatprep.subr.mxu0 0.0
    %3318 = vmatpush1.msra.mxu0 0.0
    %3319 = vmatprep.subr.mxu0 0.0
    %3320 = vmatpush1.msra.mxu0 0.0
    %3321 = vmatprep.subr.mxu0 0.0
    %3322 = vmatpush1.msra.mxu0 0.0
    %3323 = vmatprep.subr.mxu0 0.0
    %3324 = vmatpush1.msra.mxu0 0.0
    %3325 = vmatprep.subr.mxu0 0.0
    %3326 = vmatpush1.msra.mxu0 0.0
    %3327 = vmatprep.subr.mxu0 0.0
    %3328 = vmatpush1.msra.mxu0 0.0
    %3329 = vmatprep.subr.mxu0 0.0
    %3330 = vmatpush1.msra.mxu0 0.0
    %3331 = vmatprep.subr.mxu0 0.0
    %3332 = vmatpush1.msra.mxu0 0.0
    %3333 = vmatprep.subr.mxu0 0.0
    %3334 = vmatpush1.msra.mxu0 0.0
    %3335 = vmatprep.subr.mxu0 0.0
    %3336 = vmatpush1.msra.mxu0 0.0
    %3337 = vmatprep.subr.mxu0 0.0
    %3338 = vmatpush1.msra.mxu0 0.0
    %3339 = vmatprep.subr.mxu0 0.0
    %3340 = vmatpush1.msra.mxu0 0.0
    %3341 = vmatprep.mubr.f32.mxu0 0.0
    %3342 = vmatmul.mubr.f32.gmra.mrb[0].mxu0 %v2368
    %v3343 = vpop.f32.mrb[0].mxu0
    %v3344 = vadd.f32 0.0, %v3343
    %v3345 = vpop.f32.mrb[0].mxu0
    %v3346 = vadd.f32 0.0, %v3345
    %3347 = vdwg.mxu0
    %3348 = vmatprep.subr.mxu0 %v3216
    %3349 = vmatpush1.msra.mxu0 %v3215
    %3350 = vmatprep.subr.mxu0 %v3220
    %3351 = vmatpush1.msra.mxu0 %v3219
    %3352 = vmatprep.subr.mxu0 %v3224
    %3353 = vmatpush1.msra.mxu0 %v3223
    %3354 = vmatprep.subr.mxu0 %v3228
    %3355 = vmatpush1.msra.mxu0 %v3227
    %3356 = vmatprep.subr.mxu0 %v3232
    %3357 = vmatpush1.msra.mxu0 %v3231
    %3358 = vmatprep.subr.mxu0 %v3236
    %3359 = vmatpush1.msra.mxu0 %v3235
    %3360 = vmatprep.subr.mxu0 %v3240
    %3361 = vmatpush1.msra.mxu0 %v3239
    %3362 = vmatprep.subr.mxu0 %v3244
    %3363 = vmatpush1.msra.mxu0 %v3243
    %3364 = vmatprep.subr.mxu0 %v3248
    %3365 = vmatpush1.msra.mxu0 %v3247
    %3366 = vmatprep.subr.mxu0 %v3252
    %3367 = vmatpush1.msra.mxu0 %v3251
    %3368 = vmatprep.subr.mxu0 %v3256
    %3369 = vmatpush1.msra.mxu0 %v3255
    %3370 = vmatprep.subr.mxu0 %v3260
    %3371 = vmatpush1.msra.mxu0 %v3259
    %3372 = vmatprep.subr.mxu0 %v3264
    %3373 = vmatpush1.msra.mxu0 %v3263
    %3374 = vmatprep.subr.mxu0 %v3268
    %3375 = vmatpush1.msra.mxu0 %v3267
    %3376 = vmatprep.subr.mxu0 %v3272
    %3377 = vmatpush1.msra.mxu0 %v3271
    %3378 = vmatprep.subr.mxu0 %v3276
    %3379 = vmatpush1.msra.mxu0 %v3275
    %3380 = vmatprep.subr.mxu0 0.0
    %3381 = vmatpush1.msra.mxu0 0.0
    %3382 = vmatprep.subr.mxu0 0.0
    %3383 = vmatpush1.msra.mxu0 0.0
    %3384 = vmatprep.subr.mxu0 0.0
    %3385 = vmatpush1.msra.mxu0 0.0
    %3386 = vmatprep.subr.mxu0 0.0
    %3387 = vmatpush1.msra.mxu0 0.0
    %3388 = vmatprep.subr.mxu0 0.0
    %3389 = vmatpush1.msra.mxu0 0.0
    %3390 = vmatprep.subr.mxu0 0.0
    %3391 = vmatpush1.msra.mxu0 0.0
    %3392 = vmatprep.subr.mxu0 0.0
    %3393 = vmatpush1.msra.mxu0 0.0
    %3394 = vmatprep.subr.mxu0 0.0
    %3395 = vmatpush1.msra.mxu0 0.0
    %3396 = vmatprep.subr.mxu0 0.0
    %3397 = vmatpush1.msra.mxu0 0.0
    %3398 = vmatprep.subr.mxu0 0.0
    %3399 = vmatpush1.msra.mxu0 0.0
    %3400 = vmatprep.subr.mxu0 0.0
    %3401 = vmatpush1.msra.mxu0 0.0
    %3402 = vmatprep.subr.mxu0 0.0
    %3403 = vmatpush1.msra.mxu0 0.0
    %3404 = vmatprep.subr.mxu0 0.0
    %3405 = vmatpush1.msra.mxu0 0.0
    %3406 = vmatprep.subr.mxu0 0.0
    %3407 = vmatpush1.msra.mxu0 0.0
    %3408 = vmatprep.subr.mxu0 0.0
    %3409 = vmatpush1.msra.mxu0 0.0
    %3410 = vmatprep.subr.mxu0 0.0
    %3411 = vmatpush1.msra.mxu0 0.0
    %3412 = vmatprep.mubr.f32.mxu0 0.0
    %3413 = vmatmul.mubr.f32.gmra.mrb[0].mxu0 %v2368
    %v3414 = vpop.f32.mrb[0].mxu0
    %v3415 = vadd.f32 0.0, %v3414
    %v3416 = vpop.f32.mrb[0].mxu0
    %v3417 = vadd.f32 0.0, %v3416
    %3418 = vdwg.mxu0
    %v3419 = vadd.f32 %v3208, %v3344
    %v3420 = vadd.f32 %v3209, %v3346
    %v3421 = vadd.f32 %v3210, %v3415
    %v3422 = vadd.f32 %v3211, %v3417
    %s3423 = scalar_lea.vmem [#allocation16], 2048
    %v3424 = vld [vmem:[%s3423] sm:$0xff]
    %v3425 = vld [vmem:[%s3423 + $0x8] sm:$0xff]
    %v3426 = vld [vmem:[%s3423 + $0x10] sm:$0xff]
    %v3427 = vld [vmem:[%s3423 + $0x18] sm:$0xff]
    %v3428 = vld [vmem:[%s3423 + $0x20] sm:$0xff]
    %v3429 = vld [vmem:[%s3423 + $0x28] sm:$0xff]
    %v3430 = vld [vmem:[%s3423 + $0x30] sm:$0xff]
    %v3431 = vld [vmem:[%s3423 + $0x38] sm:$0xff]
    %v3432 = vld [vmem:[%s3423 + $0x40] sm:$0xff]
    %v3433 = vld [vmem:[%s3423 + $0x48] sm:$0xff]
    %v3434 = vld [vmem:[%s3423 + $0x50] sm:$0xff]
    %v3435 = vld [vmem:[%s3423 + $0x58] sm:$0xff]
    %v3436 = vld [vmem:[%s3423 + $0x60] sm:$0xff]
    %v3437 = vld [vmem:[%s3423 + $0x68] sm:$0xff]
    %v3438 = vld [vmem:[%s3423 + $0x70] sm:$0xff]
    %v3439 = vld [vmem:[%s3423 + $0x78] sm:$0xff]
    %v3440 = vld [vmem:[%s3423 + $0x80] sm:$0xff]
    %v3441 = vld [vmem:[%s3423 + $0x88] sm:$0xff]
    %v3442 = vld [vmem:[%s3423 + $0x90] sm:$0xff]
    %v3443 = vld [vmem:[%s3423 + $0x98] sm:$0xff]
    %v3444 = vld [vmem:[%s3423 + $0xa0] sm:$0xff]
    %v3445 = vld [vmem:[%s3423 + $0xa8] sm:$0xff]
    %v3446 = vld [vmem:[%s3423 + $0xb0] sm:$0xff]
    %v3447 = vld [vmem:[%s3423 + $0xb8] sm:$0xff]
    %v3448 = vld [vmem:[%s3423 + $0xc0] sm:$0xff]
    %v3449 = vld [vmem:[%s3423 + $0xc8] sm:$0xff]
    %v3450 = vld [vmem:[%s3423 + $0xd0] sm:$0xff]
    %v3451 = vld [vmem:[%s3423 + $0xd8] sm:$0xff]
    %v3452 = vld [vmem:[%s3423 + $0xe0] sm:$0xff]
    %v3453 = vld [vmem:[%s3423 + $0xe8] sm:$0xff]
    %v3454 = vld [vmem:[%s3423 + $0xf0] sm:$0xff]
    %v3455 = vld [vmem:[%s3423 + $0xf8] sm:$0xff]
    %v3456 = vld [vmem:[%s3423 + $0x100] sm:$0xff]
    %v3457 = vld [vmem:[%s3423 + $0x108] sm:$0xff]
    %v3458 = vld [vmem:[%s3423 + $0x110] sm:$0xff]
    %v3459 = vld [vmem:[%s3423 + $0x118] sm:$0xff]
    %v3460 = vld [vmem:[%s3423 + $0x120] sm:$0xff]
    %v3461 = vld [vmem:[%s3423 + $0x128] sm:$0xff]
    %v3462 = vld [vmem:[%s3423 + $0x130] sm:$0xff]
    %v3463 = vld [vmem:[%s3423 + $0x138] sm:$0xff]
    %v3464 = vld [vmem:[%s3423 + $0x140] sm:$0xff]
    %v3465 = vld [vmem:[%s3423 + $0x148] sm:$0xff]
    %v3466 = vld [vmem:[%s3423 + $0x150] sm:$0xff]
    %v3467 = vld [vmem:[%s3423 + $0x158] sm:$0xff]
    %v3468 = vld [vmem:[%s3423 + $0x160] sm:$0xff]
    %v3469 = vld [vmem:[%s3423 + $0x168] sm:$0xff]
    %v3470 = vld [vmem:[%s3423 + $0x170] sm:$0xff]
    %v3471 = vld [vmem:[%s3423 + $0x178] sm:$0xff]
    %v3472 = vld [vmem:[%s3423 + $0x180] sm:$0xff]
    %v3473 = vld [vmem:[%s3423 + $0x188] sm:$0xff]
    %v3474 = vld [vmem:[%s3423 + $0x190] sm:$0xff]
    %v3475 = vld [vmem:[%s3423 + $0x198] sm:$0xff]
    %v3476 = vld [vmem:[%s3423 + $0x1a0] sm:$0xff]
    %v3477 = vld [vmem:[%s3423 + $0x1a8] sm:$0xff]
    %v3478 = vld [vmem:[%s3423 + $0x1b0] sm:$0xff]
    %v3479 = vld [vmem:[%s3423 + $0x1b8] sm:$0xff]
    %v3480 = vld [vmem:[%s3423 + $0x1c0] sm:$0xff]
    %v3481 = vld [vmem:[%s3423 + $0x1c8] sm:$0xff]
    %v3482 = vld [vmem:[%s3423 + $0x1d0] sm:$0xff]
    %v3483 = vld [vmem:[%s3423 + $0x1d8] sm:$0xff]
    %v3484 = vld [vmem:[%s3423 + $0x1e0] sm:$0xff]
    %v3485 = vld [vmem:[%s3423 + $0x1e8] sm:$0xff]
    %v3486 = vld [vmem:[%s3423 + $0x1f0] sm:$0xff]
    %v3487 = vld [vmem:[%s3423 + $0x1f8] sm:$0xff]
    %3488 = vmatprep.subr.mxu0 %v3425
    %3489 = vmatpush1.msra.mxu0 %v3424
    %3490 = vmatprep.subr.mxu0 %v3429
    %3491 = vmatpush1.msra.mxu0 %v3428
    %3492 = vmatprep.subr.mxu0 %v3433
    %3493 = vmatpush1.msra.mxu0 %v3432
    %3494 = vmatprep.subr.mxu0 %v3437
    %3495 = vmatpush1.msra.mxu0 %v3436
    %3496 = vmatprep.subr.mxu0 %v3441
    %3497 = vmatpush1.msra.mxu0 %v3440
    %3498 = vmatprep.subr.mxu0 %v3445
    %3499 = vmatpush1.msra.mxu0 %v3444
    %3500 = vmatprep.subr.mxu0 %v3449
    %3501 = vmatpush1.msra.mxu0 %v3448
    %3502 = vmatprep.subr.mxu0 %v3453
    %3503 = vmatpush1.msra.mxu0 %v3452
    %3504 = vmatprep.subr.mxu0 %v3457
    %3505 = vmatpush1.msra.mxu0 %v3456
    %3506 = vmatprep.subr.mxu0 %v3461
    %3507 = vmatpush1.msra.mxu0 %v3460
    %3508 = vmatprep.subr.mxu0 %v3465
    %3509 = vmatpush1.msra.mxu0 %v3464
    %3510 = vmatprep.subr.mxu0 %v3469
    %3511 = vmatpush1.msra.mxu0 %v3468
    %3512 = vmatprep.subr.mxu0 %v3473
    %3513 = vmatpush1.msra.mxu0 %v3472
    %3514 = vmatprep.subr.mxu0 %v3477
    %3515 = vmatpush1.msra.mxu0 %v3476
    %3516 = vmatprep.subr.mxu0 %v3481
    %3517 = vmatpush1.msra.mxu0 %v3480
    %3518 = vmatprep.subr.mxu0 %v3485
    %3519 = vmatpush1.msra.mxu0 %v3484
    %3520 = vmatprep.subr.mxu0 0.0
    %3521 = vmatpush1.msra.mxu0 0.0
    %3522 = vmatprep.subr.mxu0 0.0
    %3523 = vmatpush1.msra.mxu0 0.0
    %3524 = vmatprep.subr.mxu0 0.0
    %3525 = vmatpush1.msra.mxu0 0.0
    %3526 = vmatprep.subr.mxu0 0.0
    %3527 = vmatpush1.msra.mxu0 0.0
    %3528 = vmatprep.subr.mxu0 0.0
    %3529 = vmatpush1.msra.mxu0 0.0
    %3530 = vmatprep.subr.mxu0 0.0
    %3531 = vmatpush1.msra.mxu0 0.0
    %3532 = vmatprep.subr.mxu0 0.0
    %3533 = vmatpush1.msra.mxu0 0.0
    %3534 = vmatprep.subr.mxu0 0.0
    %3535 = vmatpush1.msra.mxu0 0.0
    %3536 = vmatprep.subr.mxu0 0.0
    %3537 = vmatpush1.msra.mxu0 0.0
    %3538 = vmatprep.subr.mxu0 0.0
    %3539 = vmatpush1.msra.mxu0 0.0
    %3540 = vmatprep.subr.mxu0 0.0
    %3541 = vmatpush1.msra.mxu0 0.0
    %3542 = vmatprep.subr.mxu0 0.0
    %3543 = vmatpush1.msra.mxu0 0.0
    %3544 = vmatprep.subr.mxu0 0.0
    %3545 = vmatpush1.msra.mxu0 0.0
    %3546 = vmatprep.subr.mxu0 0.0
    %3547 = vmatpush1.msra.mxu0 0.0
    %3548 = vmatprep.subr.mxu0 0.0
    %3549 = vmatpush1.msra.mxu0 0.0
    %3550 = vmatprep.subr.mxu0 0.0
    %3551 = vmatpush1.msra.mxu0 0.0
    %3552 = vmatprep.mubr.f32.mxu0 0.0
    %3553 = vmatmul.mubr.f32.gmra.mrb[0].mxu0 %v2373
    %v3554 = vpop.f32.mrb[0].mxu0
    %v3555 = vadd.f32 0.0, %v3554
    %v3556 = vpop.f32.mrb[0].mxu0
    %v3557 = vadd.f32 0.0, %v3556
    %3558 = vdwg.mxu0
    %3559 = vmatprep.subr.mxu0 %v3427
    %3560 = vmatpush1.msra.mxu0 %v3426
    %3561 = vmatprep.subr.mxu0 %v3431
    %3562 = vmatpush1.msra.mxu0 %v3430
    %3563 = vmatprep.subr.mxu0 %v3435
    %3564 = vmatpush1.msra.mxu0 %v3434
    %3565 = vmatprep.subr.mxu0 %v3439
    %3566 = vmatpush1.msra.mxu0 %v3438
    %3567 = vmatprep.subr.mxu0 %v3443
    %3568 = vmatpush1.msra.mxu0 %v3442
    %3569 = vmatprep.subr.mxu0 %v3447
    %3570 = vmatpush1.msra.mxu0 %v3446
    %3571 = vmatprep.subr.mxu0 %v3451
    %3572 = vmatpush1.msra.mxu0 %v3450
    %3573 = vmatprep.subr.mxu0 %v3455
    %3574 = vmatpush1.msra.mxu0 %v3454
    %3575 = vmatprep.subr.mxu0 %v3459
    %3576 = vmatpush1.msra.mxu0 %v3458
    %3577 = vmatprep.subr.mxu0 %v3463
    %3578 = vmatpush1.msra.mxu0 %v3462
    %3579 = vmatprep.subr.mxu0 %v3467
    %3580 = vmatpush1.msra.mxu0 %v3466
    %3581 = vmatprep.subr.mxu0 %v3471
    %3582 = vmatpush1.msra.mxu0 %v3470
    %3583 = vmatprep.subr.mxu0 %v3475
    %3584 = vmatpush1.msra.mxu0 %v3474
    %3585 = vmatprep.subr.mxu0 %v3479
    %3586 = vmatpush1.msra.mxu0 %v3478
    %3587 = vmatprep.subr.mxu0 %v3483
    %3588 = vmatpush1.msra.mxu0 %v3482
    %3589 = vmatprep.subr.mxu0 %v3487
    %3590 = vmatpush1.msra.mxu0 %v3486
    %3591 = vmatprep.subr.mxu0 0.0
    %3592 = vmatpush1.msra.mxu0 0.0
    %3593 = vmatprep.subr.mxu0 0.0
    %3594 = vmatpush1.msra.mxu0 0.0
    %3595 = vmatprep.subr.mxu0 0.0
    %3596 = vmatpush1.msra.mxu0 0.0
    %3597 = vmatprep.subr.mxu0 0.0
    %3598 = vmatpush1.msra.mxu0 0.0
    %3599 = vmatprep.subr.mxu0 0.0
    %3600 = vmatpush1.msra.mxu0 0.0
    %3601 = vmatprep.subr.mxu0 0.0
    %3602 = vmatpush1.msra.mxu0 0.0
    %3603 = vmatprep.subr.mxu0 0.0
    %3604 = vmatpush1.msra.mxu0 0.0
    %3605 = vmatprep.subr.mxu0 0.0
    %3606 = vmatpush1.msra.mxu0 0.0
    %3607 = vmatprep.subr.mxu0 0.0
    %3608 = vmatpush1.msra.mxu0 0.0
    %3609 = vmatprep.subr.mxu0 0.0
    %3610 = vmatpush1.msra.mxu0 0.0
    %3611 = vmatprep.subr.mxu0 0.0
    %3612 = vmatpush1.msra.mxu0 0.0
    %3613 = vmatprep.subr.mxu0 0.0
    %3614 = vmatpush1.msra.mxu0 0.0
    %3615 = vmatprep.subr.mxu0 0.0
    %3616 = vmatpush1.msra.mxu0 0.0
    %3617 = vmatprep.subr.mxu0 0.0
    %3618 = vmatpush1.msra.mxu0 0.0
    %3619 = vmatprep.subr.mxu0 0.0
    %3620 = vmatpush1.msra.mxu0 0.0
    %3621 = vmatprep.subr.mxu0 0.0
    %3622 = vmatpush1.msra.mxu0 0.0
    %3623 = vmatprep.mubr.f32.mxu0 0.0
    %3624 = vmatmul.mubr.f32.gmra.mrb[0].mxu0 %v2373
    %v3625 = vpop.f32.mrb[0].mxu0
    %v3626 = vadd.f32 0.0, %v3625
    %v3627 = vpop.f32.mrb[0].mxu0
    %v3628 = vadd.f32 0.0, %v3627
    %3629 = vdwg.mxu0
    %v3630 = vadd.f32 %v3419, %v3555
    %v3631 = vadd.f32 %v3420, %v3557
    %v3632 = vadd.f32 %v3421, %v3626
    %v3633 = vadd.f32 %v3422, %v3628
    %s3634 = scalar_lea.vmem [#allocation16], 2560
    %v3635 = vld [vmem:[%s3634] sm:$0xff]
    %v3636 = vld [vmem:[%s3634 + $0x8] sm:$0xff]
    %v3637 = vld [vmem:[%s3634 + $0x10] sm:$0xff]
    %v3638 = vld [vmem:[%s3634 + $0x18] sm:$0xff]
    %v3639 = vld [vmem:[%s3634 + $0x20] sm:$0xff]
    %v3640 = vld [vmem:[%s3634 + $0x28] sm:$0xff]
    %v3641 = vld [vmem:[%s3634 + $0x30] sm:$0xff]
    %v3642 = vld [vmem:[%s3634 + $0x38] sm:$0xff]
    %v3643 = vld [vmem:[%s3634 + $0x40] sm:$0xff]
    %v3644 = vld [vmem:[%s3634 + $0x48] sm:$0xff]
    %v3645 = vld [vmem:[%s3634 + $0x50] sm:$0xff]
    %v3646 = vld [vmem:[%s3634 + $0x58] sm:$0xff]
    %v3647 = vld [vmem:[%s3634 + $0x60] sm:$0xff]
    %v3648 = vld [vmem:[%s3634 + $0x68] sm:$0xff]
    %v3649 = vld [vmem:[%s3634 + $0x70] sm:$0xff]
    %v3650 = vld [vmem:[%s3634 + $0x78] sm:$0xff]
    %v3651 = vld [vmem:[%s3634 + $0x80] sm:$0xff]
    %v3652 = vld [vmem:[%s3634 + $0x88] sm:$0xff]
    %v3653 = vld [vmem:[%s3634 + $0x90] sm:$0xff]
    %v3654 = vld [vmem:[%s3634 + $0x98] sm:$0xff]
    %v3655 = vld [vmem:[%s3634 + $0xa0] sm:$0xff]
    %v3656 = vld [vmem:[%s3634 + $0xa8] sm:$0xff]
    %v3657 = vld [vmem:[%s3634 + $0xb0] sm:$0xff]
    %v3658 = vld [vmem:[%s3634 + $0xb8] sm:$0xff]
    %v3659 = vld [vmem:[%s3634 + $0xc0] sm:$0xff]
    %v3660 = vld [vmem:[%s3634 + $0xc8] sm:$0xff]
    %v3661 = vld [vmem:[%s3634 + $0xd0] sm:$0xff]
    %v3662 = vld [vmem:[%s3634 + $0xd8] sm:$0xff]
    %v3663 = vld [vmem:[%s3634 + $0xe0] sm:$0xff]
    %v3664 = vld [vmem:[%s3634 + $0xe8] sm:$0xff]
    %v3665 = vld [vmem:[%s3634 + $0xf0] sm:$0xff]
    %v3666 = vld [vmem:[%s3634 + $0xf8] sm:$0xff]
    %v3667 = vld [vmem:[%s3634 + $0x100] sm:$0xff]
    %v3668 = vld [vmem:[%s3634 + $0x108] sm:$0xff]
    %v3669 = vld [vmem:[%s3634 + $0x110] sm:$0xff]
    %v3670 = vld [vmem:[%s3634 + $0x118] sm:$0xff]
    %v3671 = vld [vmem:[%s3634 + $0x120] sm:$0xff]
    %v3672 = vld [vmem:[%s3634 + $0x128] sm:$0xff]
    %v3673 = vld [vmem:[%s3634 + $0x130] sm:$0xff]
    %v3674 = vld [vmem:[%s3634 + $0x138] sm:$0xff]
    %v3675 = vld [vmem:[%s3634 + $0x140] sm:$0xff]
    %v3676 = vld [vmem:[%s3634 + $0x148] sm:$0xff]
    %v3677 = vld [vmem:[%s3634 + $0x150] sm:$0xff]
    %v3678 = vld [vmem:[%s3634 + $0x158] sm:$0xff]
    %v3679 = vld [vmem:[%s3634 + $0x160] sm:$0xff]
    %v3680 = vld [vmem:[%s3634 + $0x168] sm:$0xff]
    %v3681 = vld [vmem:[%s3634 + $0x170] sm:$0xff]
    %v3682 = vld [vmem:[%s3634 + $0x178] sm:$0xff]
    %v3683 = vld [vmem:[%s3634 + $0x180] sm:$0xff]
    %v3684 = vld [vmem:[%s3634 + $0x188] sm:$0xff]
    %v3685 = vld [vmem:[%s3634 + $0x190] sm:$0xff]
    %v3686 = vld [vmem:[%s3634 + $0x198] sm:$0xff]
    %v3687 = vld [vmem:[%s3634 + $0x1a0] sm:$0xff]
    %v3688 = vld [vmem:[%s3634 + $0x1a8] sm:$0xff]
    %v3689 = vld [vmem:[%s3634 + $0x1b0] sm:$0xff]
    %v3690 = vld [vmem:[%s3634 + $0x1b8] sm:$0xff]
    %v3691 = vld [vmem:[%s3634 + $0x1c0] sm:$0xff]
    %v3692 = vld [vmem:[%s3634 + $0x1c8] sm:$0xff]
    %v3693 = vld [vmem:[%s3634 + $0x1d0] sm:$0xff]
    %v3694 = vld [vmem:[%s3634 + $0x1d8] sm:$0xff]
    %v3695 = vld [vmem:[%s3634 + $0x1e0] sm:$0xff]
    %v3696 = vld [vmem:[%s3634 + $0x1e8] sm:$0xff]
    %v3697 = vld [vmem:[%s3634 + $0x1f0] sm:$0xff]
    %v3698 = vld [vmem:[%s3634 + $0x1f8] sm:$0xff]
    %3699 = vmatprep.subr.mxu0 %v3636
    %3700 = vmatpush1.msra.mxu0 %v3635
    %3701 = vmatprep.subr.mxu0 %v3640
    %3702 = vmatpush1.msra.mxu0 %v3639
    %3703 = vmatprep.subr.mxu0 %v3644
    %3704 = vmatpush1.msra.mxu0 %v3643
    %3705 = vmatprep.subr.mxu0 %v3648
    %3706 = vmatpush1.msra.mxu0 %v3647
    %3707 = vmatprep.subr.mxu0 %v3652
    %3708 = vmatpush1.msra.mxu0 %v3651
    %3709 = vmatprep.subr.mxu0 %v3656
    %3710 = vmatpush1.msra.mxu0 %v3655
    %3711 = vmatprep.subr.mxu0 %v3660
    %3712 = vmatpush1.msra.mxu0 %v3659
    %3713 = vmatprep.subr.mxu0 %v3664
    %3714 = vmatpush1.msra.mxu0 %v3663
    %3715 = vmatprep.subr.mxu0 %v3668
    %3716 = vmatpush1.msra.mxu0 %v3667
    %3717 = vmatprep.subr.mxu0 %v3672
    %3718 = vmatpush1.msra.mxu0 %v3671
    %3719 = vmatprep.subr.mxu0 %v3676
    %3720 = vmatpush1.msra.mxu0 %v3675
    %3721 = vmatprep.subr.mxu0 %v3680
    %3722 = vmatpush1.msra.mxu0 %v3679
    %3723 = vmatprep.subr.mxu0 %v3684
    %3724 = vmatpush1.msra.mxu0 %v3683
    %3725 = vmatprep.subr.mxu0 %v3688
    %3726 = vmatpush1.msra.mxu0 %v3687
    %3727 = vmatprep.subr.mxu0 %v3692
    %3728 = vmatpush1.msra.mxu0 %v3691
    %3729 = vmatprep.subr.mxu0 %v3696
    %3730 = vmatpush1.msra.mxu0 %v3695
    %3731 = vmatprep.subr.mxu0 0.0
    %3732 = vmatpush1.msra.mxu0 0.0
    %3733 = vmatprep.subr.mxu0 0.0
    %3734 = vmatpush1.msra.mxu0 0.0
    %3735 = vmatprep.subr.mxu0 0.0
    %3736 = vmatpush1.msra.mxu0 0.0
    %3737 = vmatprep.subr.mxu0 0.0
    %3738 = vmatpush1.msra.mxu0 0.0
    %3739 = vmatprep.subr.mxu0 0.0
    %3740 = vmatpush1.msra.mxu0 0.0
    %3741 = vmatprep.subr.mxu0 0.0
    %3742 = vmatpush1.msra.mxu0 0.0
    %3743 = vmatprep.subr.mxu0 0.0
    %3744 = vmatpush1.msra.mxu0 0.0
    %3745 = vmatprep.subr.mxu0 0.0
    %3746 = vmatpush1.msra.mxu0 0.0
    %3747 = vmatprep.subr.mxu0 0.0
    %3748 = vmatpush1.msra.mxu0 0.0
    %3749 = vmatprep.subr.mxu0 0.0
    %3750 = vmatpush1.msra.mxu0 0.0
    %3751 = vmatprep.subr.mxu0 0.0
    %3752 = vmatpush1.msra.mxu0 0.0
    %3753 = vmatprep.subr.mxu0 0.0
    %3754 = vmatpush1.msra.mxu0 0.0
    %3755 = vmatprep.subr.mxu0 0.0
    %3756 = vmatpush1.msra.mxu0 0.0
    %3757 = vmatprep.subr.mxu0 0.0
    %3758 = vmatpush1.msra.mxu0 0.0
    %3759 = vmatprep.subr.mxu0 0.0
    %3760 = vmatpush1.msra.mxu0 0.0
    %3761 = vmatprep.subr.mxu0 0.0
    %3762 = vmatpush1.msra.mxu0 0.0
    %3763 = vmatprep.mubr.f32.mxu0 0.0
    %3764 = vmatmul.mubr.f32.gmra.mrb[0].mxu0 %v2378
    %v3765 = vpop.f32.mrb[0].mxu0
    %v3766 = vadd.f32 0.0, %v3765
    %v3767 = vpop.f32.mrb[0].mxu0
    %v3768 = vadd.f32 0.0, %v3767
    %3769 = vdwg.mxu0
    %3770 = vmatprep.subr.mxu0 %v3638
    %3771 = vmatpush1.msra.mxu0 %v3637
    %3772 = vmatprep.subr.mxu0 %v3642
    %3773 = vmatpush1.msra.mxu0 %v3641
    %3774 = vmatprep.subr.mxu0 %v3646
    %3775 = vmatpush1.msra.mxu0 %v3645
    %3776 = vmatprep.subr.mxu0 %v3650
    %3777 = vmatpush1.msra.mxu0 %v3649
    %3778 = vmatprep.subr.mxu0 %v3654
    %3779 = vmatpush1.msra.mxu0 %v3653
    %3780 = vmatprep.subr.mxu0 %v3658
    %3781 = vmatpush1.msra.mxu0 %v3657
    %3782 = vmatprep.subr.mxu0 %v3662
    %3783 = vmatpush1.msra.mxu0 %v3661
    %3784 = vmatprep.subr.mxu0 %v3666
    %3785 = vmatpush1.msra.mxu0 %v3665
    %3786 = vmatprep.subr.mxu0 %v3670
    %3787 = vmatpush1.msra.mxu0 %v3669
    %3788 = vmatprep.subr.mxu0 %v3674
    %3789 = vmatpush1.msra.mxu0 %v3673
    %3790 = vmatprep.subr.mxu0 %v3678
    %3791 = vmatpush1.msra.mxu0 %v3677
    %3792 = vmatprep.subr.mxu0 %v3682
    %3793 = vmatpush1.msra.mxu0 %v3681
    %3794 = vmatprep.subr.mxu0 %v3686
    %3795 = vmatpush1.msra.mxu0 %v3685
    %3796 = vmatprep.subr.mxu0 %v3690
    %3797 = vmatpush1.msra.mxu0 %v3689
    %3798 = vmatprep.subr.mxu0 %v3694
    %3799 = vmatpush1.msra.mxu0 %v3693
    %3800 = vmatprep.subr.mxu0 %v3698
    %3801 = vmatpush1.msra.mxu0 %v3697
    %3802 = vmatprep.subr.mxu0 0.0
    %3803 = vmatpush1.msra.mxu0 0.0
    %3804 = vmatprep.subr.mxu0 0.0
    %3805 = vmatpush1.msra.mxu0 0.0
    %3806 = vmatprep.subr.mxu0 0.0
    %3807 = vmatpush1.msra.mxu0 0.0
    %3808 = vmatprep.subr.mxu0 0.0
    %3809 = vmatpush1.msra.mxu0 0.0
    %3810 = vmatprep.subr.mxu0 0.0
    %3811 = vmatpush1.msra.mxu0 0.0
    %3812 = vmatprep.subr.mxu0 0.0
    %3813 = vmatpush1.msra.mxu0 0.0
    %3814 = vmatprep.subr.mxu0 0.0
    %3815 = vmatpush1.msra.mxu0 0.0
    %3816 = vmatprep.subr.mxu0 0.0
    %3817 = vmatpush1.msra.mxu0 0.0
    %3818 = vmatprep.subr.mxu0 0.0
    %3819 = vmatpush1.msra.mxu0 0.0
    %3820 = vmatprep.subr.mxu0 0.0
    %3821 = vmatpush1.msra.mxu0 0.0
    %3822 = vmatprep.subr.mxu0 0.0
    %3823 = vmatpush1.msra.mxu0 0.0
    %3824 = vmatprep.subr.mxu0 0.0
    %3825 = vmatpush1.msra.mxu0 0.0
    %3826 = vmatprep.subr.mxu0 0.0
    %3827 = vmatpush1.msra.mxu0 0.0
    %3828 = vmatprep.subr.mxu0 0.0
    %3829 = vmatpush1.msra.mxu0 0.0
    %3830 = vmatprep.subr.mxu0 0.0
    %3831 = vmatpush1.msra.mxu0 0.0
    %3832 = vmatprep.subr.mxu0 0.0
    %3833 = vmatpush1.msra.mxu0 0.0
    %3834 = vmatprep.mubr.f32.mxu0 0.0
    %3835 = vmatmul.mubr.f32.gmra.mrb[0].mxu0 %v2378
    %v3836 = vpop.f32.mrb[0].mxu0
    %v3837 = vadd.f32 0.0, %v3836
    %v3838 = vpop.f32.mrb[0].mxu0
    %v3839 = vadd.f32 0.0, %v3838
    %3840 = vdwg.mxu0
    %v3841 = vadd.f32 %v3630, %v3766
    %v3842 = vadd.f32 %v3631, %v3768
    %v3843 = vadd.f32 %v3632, %v3837
    %v3844 = vadd.f32 %v3633, %v3839
    %s3845 = scalar_lea.vmem [#allocation16], 3072
    %v3846 = vld [vmem:[%s3845] sm:$0xff]
    %v3847 = vld [vmem:[%s3845 + $0x8] sm:$0xff]
    %v3848 = vld [vmem:[%s3845 + $0x10] sm:$0xff]
    %v3849 = vld [vmem:[%s3845 + $0x18] sm:$0xff]
    %v3850 = vld [vmem:[%s3845 + $0x20] sm:$0xff]
    %v3851 = vld [vmem:[%s3845 + $0x28] sm:$0xff]
    %v3852 = vld [vmem:[%s3845 + $0x30] sm:$0xff]
    %v3853 = vld [vmem:[%s3845 + $0x38] sm:$0xff]
    %v3854 = vld [vmem:[%s3845 + $0x40] sm:$0xff]
    %v3855 = vld [vmem:[%s3845 + $0x48] sm:$0xff]
    %v3856 = vld [vmem:[%s3845 + $0x50] sm:$0xff]
    %v3857 = vld [vmem:[%s3845 + $0x58] sm:$0xff]
    %v3858 = vld [vmem:[%s3845 + $0x60] sm:$0xff]
    %v3859 = vld [vmem:[%s3845 + $0x68] sm:$0xff]
    %v3860 = vld [vmem:[%s3845 + $0x70] sm:$0xff]
    %v3861 = vld [vmem:[%s3845 + $0x78] sm:$0xff]
    %v3862 = vld [vmem:[%s3845 + $0x80] sm:$0xff]
    %v3863 = vld [vmem:[%s3845 + $0x88] sm:$0xff]
    %v3864 = vld [vmem:[%s3845 + $0x90] sm:$0xff]
    %v3865 = vld [vmem:[%s3845 + $0x98] sm:$0xff]
    %v3866 = vld [vmem:[%s3845 + $0xa0] sm:$0xff]
    %v3867 = vld [vmem:[%s3845 + $0xa8] sm:$0xff]
    %v3868 = vld [vmem:[%s3845 + $0xb0] sm:$0xff]
    %v3869 = vld [vmem:[%s3845 + $0xb8] sm:$0xff]
    %v3870 = vld [vmem:[%s3845 + $0xc0] sm:$0xff]
    %v3871 = vld [vmem:[%s3845 + $0xc8] sm:$0xff]
    %v3872 = vld [vmem:[%s3845 + $0xd0] sm:$0xff]
    %v3873 = vld [vmem:[%s3845 + $0xd8] sm:$0xff]
    %v3874 = vld [vmem:[%s3845 + $0xe0] sm:$0xff]
    %v3875 = vld [vmem:[%s3845 + $0xe8] sm:$0xff]
    %v3876 = vld [vmem:[%s3845 + $0xf0] sm:$0xff]
    %v3877 = vld [vmem:[%s3845 + $0xf8] sm:$0xff]
    %v3878 = vld [vmem:[%s3845 + $0x100] sm:$0xff]
    %v3879 = vld [vmem:[%s3845 + $0x108] sm:$0xff]
    %v3880 = vld [vmem:[%s3845 + $0x110] sm:$0xff]
    %v3881 = vld [vmem:[%s3845 + $0x118] sm:$0xff]
    %v3882 = vld [vmem:[%s3845 + $0x120] sm:$0xff]
    %v3883 = vld [vmem:[%s3845 + $0x128] sm:$0xff]
    %v3884 = vld [vmem:[%s3845 + $0x130] sm:$0xff]
    %v3885 = vld [vmem:[%s3845 + $0x138] sm:$0xff]
    %v3886 = vld [vmem:[%s3845 + $0x140] sm:$0xff]
    %v3887 = vld [vmem:[%s3845 + $0x148] sm:$0xff]
    %v3888 = vld [vmem:[%s3845 + $0x150] sm:$0xff]
    %v3889 = vld [vmem:[%s3845 + $0x158] sm:$0xff]
    %v3890 = vld [vmem:[%s3845 + $0x160] sm:$0xff]
    %v3891 = vld [vmem:[%s3845 + $0x168] sm:$0xff]
    %v3892 = vld [vmem:[%s3845 + $0x170] sm:$0xff]
    %v3893 = vld [vmem:[%s3845 + $0x178] sm:$0xff]
    %v3894 = vld [vmem:[%s3845 + $0x180] sm:$0xff]
    %v3895 = vld [vmem:[%s3845 + $0x188] sm:$0xff]
    %v3896 = vld [vmem:[%s3845 + $0x190] sm:$0xff]
    %v3897 = vld [vmem:[%s3845 + $0x198] sm:$0xff]
    %v3898 = vld [vmem:[%s3845 + $0x1a0] sm:$0xff]
    %v3899 = vld [vmem:[%s3845 + $0x1a8] sm:$0xff]
    %v3900 = vld [vmem:[%s3845 + $0x1b0] sm:$0xff]
    %v3901 = vld [vmem:[%s3845 + $0x1b8] sm:$0xff]
    %v3902 = vld [vmem:[%s3845 + $0x1c0] sm:$0xff]
    %v3903 = vld [vmem:[%s3845 + $0x1c8] sm:$0xff]
    %v3904 = vld [vmem:[%s3845 + $0x1d0] sm:$0xff]
    %v3905 = vld [vmem:[%s3845 + $0x1d8] sm:$0xff]
    %v3906 = vld [vmem:[%s3845 + $0x1e0] sm:$0xff]
    %v3907 = vld [vmem:[%s3845 + $0x1e8] sm:$0xff]
    %v3908 = vld [vmem:[%s3845 + $0x1f0] sm:$0xff]
    %v3909 = vld [vmem:[%s3845 + $0x1f8] sm:$0xff]
    %3910 = vmatprep.subr.mxu0 %v3847
    %3911 = vmatpush1.msra.mxu0 %v3846
    %3912 = vmatprep.subr.mxu0 %v3851
    %3913 = vmatpush1.msra.mxu0 %v3850
    %3914 = vmatprep.subr.mxu0 %v3855
    %3915 = vmatpush1.msra.mxu0 %v3854
    %3916 = vmatprep.subr.mxu0 %v3859
    %3917 = vmatpush1.msra.mxu0 %v3858
    %3918 = vmatprep.subr.mxu0 %v3863
    %3919 = vmatpush1.msra.mxu0 %v3862
    %3920 = vmatprep.subr.mxu0 %v3867
    %3921 = vmatpush1.msra.mxu0 %v3866
    %3922 = vmatprep.subr.mxu0 %v3871
    %3923 = vmatpush1.msra.mxu0 %v3870
    %3924 = vmatprep.subr.mxu0 %v3875
    %3925 = vmatpush1.msra.mxu0 %v3874
    %3926 = vmatprep.subr.mxu0 %v3879
    %3927 = vmatpush1.msra.mxu0 %v3878
    %3928 = vmatprep.subr.mxu0 %v3883
    %3929 = vmatpush1.msra.mxu0 %v3882
    %3930 = vmatprep.subr.mxu0 %v3887
    %3931 = vmatpush1.msra.mxu0 %v3886
    %3932 = vmatprep.subr.mxu0 %v3891
    %3933 = vmatpush1.msra.mxu0 %v3890
    %3934 = vmatprep.subr.mxu0 %v3895
    %3935 = vmatpush1.msra.mxu0 %v3894
    %3936 = vmatprep.subr.mxu0 %v3899
    %3937 = vmatpush1.msra.mxu0 %v3898
    %3938 = vmatprep.subr.mxu0 %v3903
    %3939 = vmatpush1.msra.mxu0 %v3902
    %3940 = vmatprep.subr.mxu0 %v3907
    %3941 = vmatpush1.msra.mxu0 %v3906
    %3942 = vmatprep.subr.mxu0 0.0
    %3943 = vmatpush1.msra.mxu0 0.0
    %3944 = vmatprep.subr.mxu0 0.0
    %3945 = vmatpush1.msra.mxu0 0.0
    %3946 = vmatprep.subr.mxu0 0.0
    %3947 = vmatpush1.msra.mxu0 0.0
    %3948 = vmatprep.subr.mxu0 0.0
    %3949 = vmatpush1.msra.mxu0 0.0
    %3950 = vmatprep.subr.mxu0 0.0
    %3951 = vmatpush1.msra.mxu0 0.0
    %3952 = vmatprep.subr.mxu0 0.0
    %3953 = vmatpush1.msra.mxu0 0.0
    %3954 = vmatprep.subr.mxu0 0.0
    %3955 = vmatpush1.msra.mxu0 0.0
    %3956 = vmatprep.subr.mxu0 0.0
    %3957 = vmatpush1.msra.mxu0 0.0
    %3958 = vmatprep.subr.mxu0 0.0
    %3959 = vmatpush1.msra.mxu0 0.0
    %3960 = vmatprep.subr.mxu0 0.0
    %3961 = vmatpush1.msra.mxu0 0.0
    %3962 = vmatprep.subr.mxu0 0.0
    %3963 = vmatpush1.msra.mxu0 0.0
    %3964 = vmatprep.subr.mxu0 0.0
    %3965 = vmatpush1.msra.mxu0 0.0
    %3966 = vmatprep.subr.mxu0 0.0
    %3967 = vmatpush1.msra.mxu0 0.0
    %3968 = vmatprep.subr.mxu0 0.0
    %3969 = vmatpush1.msra.mxu0 0.0
    %3970 = vmatprep.subr.mxu0 0.0
    %3971 = vmatpush1.msra.mxu0 0.0
    %3972 = vmatprep.subr.mxu0 0.0
    %3973 = vmatpush1.msra.mxu0 0.0
    %3974 = vmatprep.mubr.f32.mxu0 0.0
    %3975 = vmatmul.mubr.f32.gmra.mrb[0].mxu0 %v2383
    %v3976 = vpop.f32.mrb[0].mxu0
    %v3977 = vadd.f32 0.0, %v3976
    %v3978 = vpop.f32.mrb[0].mxu0
    %v3979 = vadd.f32 0.0, %v3978
    %3980 = vdwg.mxu0
    %3981 = vmatprep.subr.mxu0 %v3849
    %3982 = vmatpush1.msra.mxu0 %v3848
    %3983 = vmatprep.subr.mxu0 %v3853
    %3984 = vmatpush1.msra.mxu0 %v3852
    %3985 = vmatprep.subr.mxu0 %v3857
    %3986 = vmatpush1.msra.mxu0 %v3856
    %3987 = vmatprep.subr.mxu0 %v3861
    %3988 = vmatpush1.msra.mxu0 %v3860
    %3989 = vmatprep.subr.mxu0 %v3865
    %3990 = vmatpush1.msra.mxu0 %v3864
    %3991 = vmatprep.subr.mxu0 %v3869
    %3992 = vmatpush1.msra.mxu0 %v3868
    %3993 = vmatprep.subr.mxu0 %v3873
    %3994 = vmatpush1.msra.mxu0 %v3872
    %3995 = vmatprep.subr.mxu0 %v3877
    %3996 = vmatpush1.msra.mxu0 %v3876
    %3997 = vmatprep.subr.mxu0 %v3881
    %3998 = vmatpush1.msra.mxu0 %v3880
    %3999 = vmatprep.subr.mxu0 %v3885
    %4000 = vmatpush1.msra.mxu0 %v3884
    %4001 = vmatprep.subr.mxu0 %v3889
    %4002 = vmatpush1.msra.mxu0 %v3888
    %4003 = vmatprep.subr.mxu0 %v3893
    %4004 = vmatpush1.msra.mxu0 %v3892
    %4005 = vmatprep.subr.mxu0 %v3897
    %4006 = vmatpush1.msra.mxu0 %v3896
    %4007 = vmatprep.subr.mxu0 %v3901
    %4008 = vmatpush1.msra.mxu0 %v3900
    %4009 = vmatprep.subr.mxu0 %v3905
    %4010 = vmatpush1.msra.mxu0 %v3904
    %4011 = vmatprep.subr.mxu0 %v3909
    %4012 = vmatpush1.msra.mxu0 %v3908
    %4013 = vmatprep.subr.mxu0 0.0
    %4014 = vmatpush1.msra.mxu0 0.0
    %4015 = vmatprep.subr.mxu0 0.0
    %4016 = vmatpush1.msra.mxu0 0.0
    %4017 = vmatprep.subr.mxu0 0.0
    %4018 = vmatpush1.msra.mxu0 0.0
    %4019 = vmatprep.subr.mxu0 0.0
    %4020 = vmatpush1.msra.mxu0 0.0
    %4021 = vmatprep.subr.mxu0 0.0
    %4022 = vmatpush1.msra.mxu0 0.0
    %4023 = vmatprep.subr.mxu0 0.0
    %4024 = vmatpush1.msra.mxu0 0.0
    %4025 = vmatprep.subr.mxu0 0.0
    %4026 = vmatpush1.msra.mxu0 0.0
    %4027 = vmatprep.subr.mxu0 0.0
    %4028 = vmatpush1.msra.mxu0 0.0
    %4029 = vmatprep.subr.mxu0 0.0
    %4030 = vmatpush1.msra.mxu0 0.0
    %4031 = vmatprep.subr.mxu0 0.0
    %4032 = vmatpush1.msra.mxu0 0.0
    %4033 = vmatprep.subr.mxu0 0.0
    %4034 = vmatpush1.msra.mxu0 0.0
    %4035 = vmatprep.subr.mxu0 0.0
    %4036 = vmatpush1.msra.mxu0 0.0
    %4037 = vmatprep.subr.mxu0 0.0
    %4038 = vmatpush1.msra.mxu0 0.0
    %4039 = vmatprep.subr.mxu0 0.0
    %4040 = vmatpush1.msra.mxu0 0.0
    %4041 = vmatprep.subr.mxu0 0.0
    %4042 = vmatpush1.msra.mxu0 0.0
    %4043 = vmatprep.subr.mxu0 0.0
    %4044 = vmatpush1.msra.mxu0 0.0
    %4045 = vmatprep.mubr.f32.mxu0 0.0
    %4046 = vmatmul.mubr.f32.gmra.mrb[0].mxu0 %v2383
    %v4047 = vpop.f32.mrb[0].mxu0
    %v4048 = vadd.f32 0.0, %v4047
    %v4049 = vpop.f32.mrb[0].mxu0
    %v4050 = vadd.f32 0.0, %v4049
    %4051 = vdwg.mxu0
    %v4052 = vadd.f32 %v3841, %v3977
    %v4053 = vadd.f32 %v3842, %v3979
    %v4054 = vadd.f32 %v3843, %v4048
    %v4055 = vadd.f32 %v3844, %v4050
    %4056 = vst [vmem:[%s22] sm:$0xff] %v4052
    %4057 = vst [vmem:[%s22 + $0x8] sm:$0xff] %v4053
    %4058 = vst [vmem:[%s23] sm:$0xff] %v4054
    %4059 = vst [vmem:[%s23 + $0x8] sm:$0xff] %v4055
    %v4060 = vld [vmem:[%s2] sm:$0xff]
    %v4061 = vld [vmem:[%s2 + $0x8] sm:$0xff]
    %v4062 = vmul.f32 %v4054, 0.5
    %v4063 = vmul.f32 %v4055, 0.5
    %v4064 = vmul.f32 %v4062, 1.442695
    %v4065 = vpow.pop %v4064
    %v4066 = vmul.f32 %v4063, 1.442695
    %v4067 = vpow.pop %v4066
    %v4068 = vmul.f32 %v4060, %v4065
    %v4069 = vmul.f32 %v4061, %v4067
    %v4070 = vadd.f32 %v4052, %v4068
    %v4071 = vadd.f32 %v4053, %v4069
    %v4072 = vld [vmem:[#allocation22] sm:$0xff]
    %v4073 = vld [vmem:[%s14] sm:$0xff]
    %v4074 = vld [vmem:[%s14 + $0x8] sm:$0xff]
    %v4075 = vld [vmem:[%s14 + $0x10] sm:$0xff]
    %v4076 = vld [vmem:[%s14 + $0x18] sm:$0xff]
    %v4077 = vld [vmem:[%s14 + $0x20] sm:$0xff]
    %v4078 = vld [vmem:[%s14 + $0x28] sm:$0xff]
    %v4079 = vld [vmem:[%s14 + $0x30] sm:$0xff]
    %v4080 = vld [vmem:[%s14 + $0x38] sm:$0xff]
    %v4081 = vld [vmem:[%s14 + $0x40] sm:$0xff]
    %v4082 = vld [vmem:[%s14 + $0x48] sm:$0xff]
    %v4083 = vld [vmem:[%s14 + $0x50] sm:$0xff]
    %v4084 = vld [vmem:[%s14 + $0x58] sm:$0xff]
    %v4085 = vld [vmem:[%s14 + $0x60] sm:$0xff]
    %v4086 = vld [vmem:[%s14 + $0x68] sm:$0xff]
    %v4087 = vld [vmem:[%s14 + $0x70] sm:$0xff]
    %v4088 = vld [vmem:[%s14 + $0x78] sm:$0xff]
    %v4089 = vld [vmem:[%s14 + $0x80] sm:$0xff]
    %v4090 = vld [vmem:[%s14 + $0x88] sm:$0xff]
    %v4091 = vld [vmem:[%s14 + $0x90] sm:$0xff]
    %v4092 = vld [vmem:[%s14 + $0x98] sm:$0xff]
    %v4093 = vld [vmem:[%s14 + $0xa0] sm:$0xff]
    %v4094 = vld [vmem:[%s14 + $0xa8] sm:$0xff]
    %v4095 = vld [vmem:[%s14 + $0xb0] sm:$0xff]
    %v4096 = vld [vmem:[%s14 + $0xb8] sm:$0xff]
    %v4097 = vld [vmem:[%s14 + $0xc0] sm:$0xff]
    %v4098 = vld [vmem:[%s14 + $0xc8] sm:$0xff]
    %v4099 = vld [vmem:[%s14 + $0xd0] sm:$0xff]
    %v4100 = vld [vmem:[%s14 + $0xd8] sm:$0xff]
    %v4101 = vld [vmem:[%s14 + $0xe0] sm:$0xff]
    %v4102 = vld [vmem:[%s14 + $0xe8] sm:$0xff]
    %v4103 = vld [vmem:[%s14 + $0xf0] sm:$0xff]
    %v4104 = vld [vmem:[%s14 + $0xf8] sm:$0xff]
    %v4105 = vld [vmem:[%s14 + $0x100] sm:$0xff]
    %v4106 = vld [vmem:[%s14 + $0x108] sm:$0xff]
    %v4107 = vld [vmem:[%s14 + $0x110] sm:$0xff]
    %v4108 = vld [vmem:[%s14 + $0x118] sm:$0xff]
    %v4109 = vld [vmem:[%s14 + $0x120] sm:$0xff]
    %v4110 = vld [vmem:[%s14 + $0x128] sm:$0xff]
    %v4111 = vld [vmem:[%s14 + $0x130] sm:$0xff]
    %v4112 = vld [vmem:[%s14 + $0x138] sm:$0xff]
    %v4113 = vld [vmem:[%s14 + $0x140] sm:$0xff]
    %v4114 = vld [vmem:[%s14 + $0x148] sm:$0xff]
    %v4115 = vld [vmem:[%s14 + $0x150] sm:$0xff]
    %v4116 = vld [vmem:[%s14 + $0x158] sm:$0xff]
    %v4117 = vld [vmem:[%s14 + $0x160] sm:$0xff]
    %v4118 = vld [vmem:[%s14 + $0x168] sm:$0xff]
    %v4119 = vld [vmem:[%s14 + $0x170] sm:$0xff]
    %v4120 = vld [vmem:[%s14 + $0x178] sm:$0xff]
    %v4121 = vld [vmem:[%s14 + $0x180] sm:$0xff]
    %v4122 = vld [vmem:[%s14 + $0x188] sm:$0xff]
    %v4123 = vld [vmem:[%s14 + $0x190] sm:$0xff]
    %v4124 = vld [vmem:[%s14 + $0x198] sm:$0xff]
    %v4125 = vld [vmem:[%s14 + $0x1a0] sm:$0xff]
    %v4126 = vld [vmem:[%s14 + $0x1a8] sm:$0xff]
    %v4127 = vld [vmem:[%s14 + $0x1b0] sm:$0xff]
    %v4128 = vld [vmem:[%s14 + $0x1b8] sm:$0xff]
    %v4129 = vld [vmem:[%s14 + $0x1c0] sm:$0xff]
    %v4130 = vld [vmem:[%s14 + $0x1c8] sm:$0xff]
    %v4131 = vld [vmem:[%s14 + $0x1d0] sm:$0xff]
    %v4132 = vld [vmem:[%s14 + $0x1d8] sm:$0xff]
    %v4133 = vld [vmem:[%s14 + $0x1e0] sm:$0xff]
    %v4134 = vld [vmem:[%s14 + $0x1e8] sm:$0xff]
    %v4135 = vld [vmem:[%s14 + $0x1f0] sm:$0xff]
    %v4136 = vld [vmem:[%s14 + $0x1f8] sm:$0xff]
    %v4137 = vld [vmem:[%s14 + $0x200] sm:$0xff]
    %v4138 = vld [vmem:[%s14 + $0x208] sm:$0xff]
    %v4139 = vld [vmem:[%s14 + $0x210] sm:$0xff]
    %v4140 = vld [vmem:[%s14 + $0x218] sm:$0xff]
    %v4141 = vld [vmem:[%s14 + $0x220] sm:$0xff]
    %v4142 = vld [vmem:[%s14 + $0x228] sm:$0xff]
    %v4143 = vld [vmem:[%s14 + $0x230] sm:$0xff]
    %v4144 = vld [vmem:[%s14 + $0x238] sm:$0xff]
    %v4145 = vld [vmem:[%s14 + $0x240] sm:$0xff]
    %v4146 = vld [vmem:[%s14 + $0x248] sm:$0xff]
    %v4147 = vld [vmem:[%s14 + $0x250] sm:$0xff]
    %v4148 = vld [vmem:[%s14 + $0x258] sm:$0xff]
    %v4149 = vld [vmem:[%s14 + $0x260] sm:$0xff]
    %v4150 = vld [vmem:[%s14 + $0x268] sm:$0xff]
    %v4151 = vld [vmem:[%s14 + $0x270] sm:$0xff]
    %v4152 = vld [vmem:[%s14 + $0x278] sm:$0xff]
    %v4153 = vld [vmem:[%s14 + $0x280] sm:$0xff]
    %v4154 = vld [vmem:[%s14 + $0x288] sm:$0xff]
    %v4155 = vld [vmem:[%s14 + $0x290] sm:$0xff]
    %v4156 = vld [vmem:[%s14 + $0x298] sm:$0xff]
    %v4157 = vld [vmem:[%s14 + $0x2a0] sm:$0xff]
    %v4158 = vld [vmem:[%s14 + $0x2a8] sm:$0xff]
    %v4159 = vld [vmem:[%s14 + $0x2b0] sm:$0xff]
    %v4160 = vld [vmem:[%s14 + $0x2b8] sm:$0xff]
    %v4161 = vld [vmem:[%s14 + $0x2c0] sm:$0xff]
    %v4162 = vld [vmem:[%s14 + $0x2c8] sm:$0xff]
    %v4163 = vld [vmem:[%s14 + $0x2d0] sm:$0xff]
    %v4164 = vld [vmem:[%s14 + $0x2d8] sm:$0xff]
    %v4165 = vld [vmem:[%s14 + $0x2e0] sm:$0xff]
    %v4166 = vld [vmem:[%s14 + $0x2e8] sm:$0xff]
    %v4167 = vld [vmem:[%s14 + $0x2f0] sm:$0xff]
    %v4168 = vld [vmem:[%s14 + $0x2f8] sm:$0xff]
    %v4169 = vld [vmem:[%s14 + $0x300] sm:$0xff]
    %v4170 = vld [vmem:[%s14 + $0x308] sm:$0xff]
    %v4171 = vld [vmem:[%s14 + $0x310] sm:$0xff]
    %v4172 = vld [vmem:[%s14 + $0x318] sm:$0xff]
    %v4173 = vld [vmem:[%s14 + $0x320] sm:$0xff]
    %v4174 = vld [vmem:[%s14 + $0x328] sm:$0xff]
    %v4175 = vld [vmem:[%s14 + $0x330] sm:$0xff]
    %v4176 = vld [vmem:[%s14 + $0x338] sm:$0xff]
    %v4177 = vld [vmem:[%s14 + $0x340] sm:$0xff]
    %v4178 = vld [vmem:[%s14 + $0x348] sm:$0xff]
    %v4179 = vld [vmem:[%s14 + $0x350] sm:$0xff]
    %v4180 = vld [vmem:[%s14 + $0x358] sm:$0xff]
    %v4181 = vld [vmem:[%s14 + $0x360] sm:$0xff]
    %v4182 = vld [vmem:[%s14 + $0x368] sm:$0xff]
    %v4183 = vld [vmem:[%s14 + $0x370] sm:$0xff]
    %v4184 = vld [vmem:[%s14 + $0x378] sm:$0xff]
    %v4185 = vld [vmem:[%s14 + $0x380] sm:$0xff]
    %v4186 = vld [vmem:[%s14 + $0x388] sm:$0xff]
    %v4187 = vld [vmem:[%s14 + $0x390] sm:$0xff]
    %v4188 = vld [vmem:[%s14 + $0x398] sm:$0xff]
    %v4189 = vld [vmem:[%s14 + $0x3a0] sm:$0xff]
    %v4190 = vld [vmem:[%s14 + $0x3a8] sm:$0xff]
    %v4191 = vld [vmem:[%s14 + $0x3b0] sm:$0xff]
    %v4192 = vld [vmem:[%s14 + $0x3b8] sm:$0xff]
    %v4193 = vld [vmem:[%s14 + $0x3c0] sm:$0xff]
    %v4194 = vld [vmem:[%s14 + $0x3c8] sm:$0xff]
    %v4195 = vld [vmem:[%s14 + $0x3d0] sm:$0xff]
    %v4196 = vld [vmem:[%s14 + $0x3d8] sm:$0xff]
    %v4197 = vld [vmem:[%s14 + $0x3e0] sm:$0xff]
    %v4198 = vld [vmem:[%s14 + $0x3e8] sm:$0xff]
    %v4199 = vld [vmem:[%s14 + $0x3f0] sm:$0xff]
    %v4200 = vld [vmem:[%s14 + $0x3f8] sm:$0xff]
    %v4201 = vld [vmem:[%s14 + $0x400] sm:$0xff]
    %v4202 = vld [vmem:[%s14 + $0x408] sm:$0xff]
    %v4203 = vld [vmem:[%s14 + $0x410] sm:$0xff]
    %v4204 = vld [vmem:[%s14 + $0x418] sm:$0xff]
    %v4205 = vld [vmem:[%s14 + $0x420] sm:$0xff]
    %v4206 = vld [vmem:[%s14 + $0x428] sm:$0xff]
    %v4207 = vld [vmem:[%s14 + $0x430] sm:$0xff]
    %v4208 = vld [vmem:[%s14 + $0x438] sm:$0xff]
    %v4209 = vld [vmem:[%s14 + $0x440] sm:$0xff]
    %v4210 = vld [vmem:[%s14 + $0x448] sm:$0xff]
    %v4211 = vld [vmem:[%s14 + $0x450] sm:$0xff]
    %v4212 = vld [vmem:[%s14 + $0x458] sm:$0xff]
    %v4213 = vld [vmem:[%s14 + $0x460] sm:$0xff]
    %v4214 = vld [vmem:[%s14 + $0x468] sm:$0xff]
    %v4215 = vld [vmem:[%s14 + $0x470] sm:$0xff]
    %v4216 = vld [vmem:[%s14 + $0x478] sm:$0xff]
    %v4217 = vld [vmem:[%s14 + $0x480] sm:$0xff]
    %v4218 = vld [vmem:[%s14 + $0x488] sm:$0xff]
    %v4219 = vld [vmem:[%s14 + $0x490] sm:$0xff]
    %v4220 = vld [vmem:[%s14 + $0x498] sm:$0xff]
    %v4221 = vld [vmem:[%s14 + $0x4a0] sm:$0xff]
    %v4222 = vld [vmem:[%s14 + $0x4a8] sm:$0xff]
    %v4223 = vld [vmem:[%s14 + $0x4b0] sm:$0xff]
    %v4224 = vld [vmem:[%s14 + $0x4b8] sm:$0xff]
    %v4225 = vld [vmem:[%s14 + $0x4c0] sm:$0xff]
    %v4226 = vld [vmem:[%s14 + $0x4c8] sm:$0xff]
    %v4227 = vld [vmem:[%s14 + $0x4d0] sm:$0xff]
    %v4228 = vld [vmem:[%s14 + $0x4d8] sm:$0xff]
    %v4229 = vld [vmem:[%s14 + $0x4e0] sm:$0xff]
    %v4230 = vld [vmem:[%s14 + $0x4e8] sm:$0xff]
    %v4231 = vld [vmem:[%s14 + $0x4f0] sm:$0xff]
    %v4232 = vld [vmem:[%s14 + $0x4f8] sm:$0xff]
    %v4233 = vld [vmem:[%s14 + $0x500] sm:$0xff]
    %v4234 = vld [vmem:[%s14 + $0x508] sm:$0xff]
    %v4235 = vld [vmem:[%s14 + $0x510] sm:$0xff]
    %v4236 = vld [vmem:[%s14 + $0x518] sm:$0xff]
    %v4237 = vld [vmem:[%s14 + $0x520] sm:$0xff]
    %v4238 = vld [vmem:[%s14 + $0x528] sm:$0xff]
    %v4239 = vld [vmem:[%s14 + $0x530] sm:$0xff]
    %v4240 = vld [vmem:[%s14 + $0x538] sm:$0xff]
    %v4241 = vld [vmem:[%s14 + $0x540] sm:$0xff]
    %v4242 = vld [vmem:[%s14 + $0x548] sm:$0xff]
    %v4243 = vld [vmem:[%s14 + $0x550] sm:$0xff]
    %v4244 = vld [vmem:[%s14 + $0x558] sm:$0xff]
    %v4245 = vld [vmem:[%s14 + $0x560] sm:$0xff]
    %v4246 = vld [vmem:[%s14 + $0x568] sm:$0xff]
    %v4247 = vld [vmem:[%s14 + $0x570] sm:$0xff]
    %v4248 = vld [vmem:[%s14 + $0x578] sm:$0xff]
    %v4249 = vld [vmem:[%s14 + $0x580] sm:$0xff]
    %v4250 = vld [vmem:[%s14 + $0x588] sm:$0xff]
    %v4251 = vld [vmem:[%s14 + $0x590] sm:$0xff]
    %v4252 = vld [vmem:[%s14 + $0x598] sm:$0xff]
    %v4253 = vld [vmem:[%s14 + $0x5a0] sm:$0xff]
    %v4254 = vld [vmem:[%s14 + $0x5a8] sm:$0xff]
    %v4255 = vld [vmem:[%s14 + $0x5b0] sm:$0xff]
    %v4256 = vld [vmem:[%s14 + $0x5b8] sm:$0xff]
    %v4257 = vld [vmem:[%s14 + $0x5c0] sm:$0xff]
    %v4258 = vld [vmem:[%s14 + $0x5c8] sm:$0xff]
    %v4259 = vld [vmem:[%s14 + $0x5d0] sm:$0xff]
    %v4260 = vld [vmem:[%s14 + $0x5d8] sm:$0xff]
    %v4261 = vld [vmem:[%s14 + $0x5e0] sm:$0xff]
    %v4262 = vld [vmem:[%s14 + $0x5e8] sm:$0xff]
    %v4263 = vld [vmem:[%s14 + $0x5f0] sm:$0xff]
    %v4264 = vld [vmem:[%s14 + $0x5f8] sm:$0xff]
    %v4265 = vld [vmem:[%s14 + $0x600] sm:$0xff]
    %v4266 = vld [vmem:[%s14 + $0x608] sm:$0xff]
    %v4267 = vld [vmem:[%s14 + $0x610] sm:$0xff]
    %v4268 = vld [vmem:[%s14 + $0x618] sm:$0xff]
    %v4269 = vld [vmem:[%s14 + $0x620] sm:$0xff]
    %v4270 = vld [vmem:[%s14 + $0x628] sm:$0xff]
    %v4271 = vld [vmem:[%s14 + $0x630] sm:$0xff]
    %v4272 = vld [vmem:[%s14 + $0x638] sm:$0xff]
    %v4273 = vld [vmem:[%s14 + $0x640] sm:$0xff]
    %v4274 = vld [vmem:[%s14 + $0x648] sm:$0xff]
    %v4275 = vld [vmem:[%s14 + $0x650] sm:$0xff]
    %v4276 = vld [vmem:[%s14 + $0x658] sm:$0xff]
    %v4277 = vld [vmem:[%s14 + $0x660] sm:$0xff]
    %v4278 = vld [vmem:[%s14 + $0x668] sm:$0xff]
    %v4279 = vld [vmem:[%s14 + $0x670] sm:$0xff]
    %v4280 = vld [vmem:[%s14 + $0x678] sm:$0xff]
    %v4281 = vld [vmem:[%s14 + $0x680] sm:$0xff]
    %v4282 = vld [vmem:[%s14 + $0x688] sm:$0xff]
    %v4283 = vld [vmem:[%s14 + $0x690] sm:$0xff]
    %v4284 = vld [vmem:[%s14 + $0x698] sm:$0xff]
    %v4285 = vld [vmem:[%s14 + $0x6a0] sm:$0xff]
    %v4286 = vld [vmem:[%s14 + $0x6a8] sm:$0xff]
    %v4287 = vld [vmem:[%s14 + $0x6b0] sm:$0xff]
    %v4288 = vld [vmem:[%s14 + $0x6b8] sm:$0xff]
    %v4289 = vld [vmem:[%s14 + $0x6c0] sm:$0xff]
    %v4290 = vld [vmem:[%s14 + $0x6c8] sm:$0xff]
    %v4291 = vld [vmem:[%s14 + $0x6d0] sm:$0xff]
    %v4292 = vld [vmem:[%s14 + $0x6d8] sm:$0xff]
    %v4293 = vld [vmem:[%s14 + $0x6e0] sm:$0xff]
    %v4294 = vld [vmem:[%s14 + $0x6e8] sm:$0xff]
    %v4295 = vld [vmem:[%s14 + $0x6f0] sm:$0xff]
    %v4296 = vld [vmem:[%s14 + $0x6f8] sm:$0xff]
    %4297 = vmatprep.subr.mxu0 %v4074
    %4298 = vmatpush1.msra.mxu0 %v4073
    %4299 = vmatprep.subr.mxu0 %v4081
    %4300 = vmatpush1.msra.mxu0 %v4080
    %4301 = vmatprep.subr.mxu0 %v4088
    %4302 = vmatpush1.msra.mxu0 %v4087
    %4303 = vmatprep.subr.mxu0 %v4095
    %4304 = vmatpush1.msra.mxu0 %v4094
    %4305 = vmatprep.subr.mxu0 %v4102
    %4306 = vmatpush1.msra.mxu0 %v4101
    %4307 = vmatprep.subr.mxu0 %v4109
    %4308 = vmatpush1.msra.mxu0 %v4108
    %4309 = vmatprep.subr.mxu0 %v4116
    %4310 = vmatpush1.msra.mxu0 %v4115
    %4311 = vmatprep.subr.mxu0 %v4123
    %4312 = vmatpush1.msra.mxu0 %v4122
    %4313 = vmatprep.subr.mxu0 %v4130
    %4314 = vmatpush1.msra.mxu0 %v4129
    %4315 = vmatprep.subr.mxu0 %v4137
    %4316 = vmatpush1.msra.mxu0 %v4136
    %4317 = vmatprep.subr.mxu0 %v4144
    %4318 = vmatpush1.msra.mxu0 %v4143
    %4319 = vmatprep.subr.mxu0 %v4151
    %4320 = vmatpush1.msra.mxu0 %v4150
    %4321 = vmatprep.subr.mxu0 %v4158
    %4322 = vmatpush1.msra.mxu0 %v4157
    %4323 = vmatprep.subr.mxu0 %v4165
    %4324 = vmatpush1.msra.mxu0 %v4164
    %4325 = vmatprep.subr.mxu0 %v4172
    %4326 = vmatpush1.msra.mxu0 %v4171
    %4327 = vmatprep.subr.mxu0 %v4179
    %4328 = vmatpush1.msra.mxu0 %v4178
    %4329 = vmatprep.subr.mxu0 %v4186
    %4330 = vmatpush1.msra.mxu0 %v4185
    %4331 = vmatprep.subr.mxu0 %v4193
    %4332 = vmatpush1.msra.mxu0 %v4192
    %4333 = vmatprep.subr.mxu0 %v4200
    %4334 = vmatpush1.msra.mxu0 %v4199
    %4335 = vmatprep.subr.mxu0 %v4207
    %4336 = vmatpush1.msra.mxu0 %v4206
    %4337 = vmatprep.subr.mxu0 %v4214
    %4338 = vmatpush1.msra.mxu0 %v4213
    %4339 = vmatprep.subr.mxu0 %v4221
    %4340 = vmatpush1.msra.mxu0 %v4220
    %4341 = vmatprep.subr.mxu0 %v4228
    %4342 = vmatpush1.msra.mxu0 %v4227
    %4343 = vmatprep.subr.mxu0 %v4235
    %4344 = vmatpush1.msra.mxu0 %v4234
    %4345 = vmatprep.subr.mxu0 %v4242
    %4346 = vmatpush1.msra.mxu0 %v4241
    %4347 = vmatprep.subr.mxu0 %v4249
    %4348 = vmatpush1.msra.mxu0 %v4248
    %4349 = vmatprep.subr.mxu0 %v4256
    %4350 = vmatpush1.msra.mxu0 %v4255
    %4351 = vmatprep.subr.mxu0 %v4263
    %4352 = vmatpush1.msra.mxu0 %v4262
    %4353 = vmatprep.subr.mxu0 %v4270
    %4354 = vmatpush1.msra.mxu0 %v4269
    %4355 = vmatprep.subr.mxu0 %v4277
    %4356 = vmatpush1.msra.mxu0 %v4276
    %4357 = vmatprep.subr.mxu0 %v4284
    %4358 = vmatpush1.msra.mxu0 %v4283
    %4359 = vmatprep.subr.mxu0 %v4291
    %4360 = vmatpush1.msra.mxu0 %v4290
    %4361 = vmatprep.mubr.f32.mxu0 %v4071
    %4362 = vmatmul.mubr.f32.gmra.mrb[0].mxu0 %v4070
    %v4363 = vpop.f32.mrb[0].mxu0
    %v4364 = vadd.f32 0.0, %v4363
    %v4365 = vpop.f32.mrb[0].mxu0
    %v4366 = vadd.f32 0.0, %v4365
    %4367 = vdwg.mxu0
    %4368 = vmatprep.subr.mxu0 %v4076
    %4369 = vmatpush1.msra.mxu0 %v4075
    %4370 = vmatprep.subr.mxu0 %v4083
    %4371 = vmatpush1.msra.mxu0 %v4082
    %4372 = vmatprep.subr.mxu0 %v4090
    %4373 = vmatpush1.msra.mxu0 %v4089
    %4374 = vmatprep.subr.mxu0 %v4097
    %4375 = vmatpush1.msra.mxu0 %v4096
    %4376 = vmatprep.subr.mxu0 %v4104
    %4377 = vmatpush1.msra.mxu0 %v4103
    %4378 = vmatprep.subr.mxu0 %v4111
    %4379 = vmatpush1.msra.mxu0 %v4110
    %4380 = vmatprep.subr.mxu0 %v4118
    %4381 = vmatpush1.msra.mxu0 %v4117
    %4382 = vmatprep.subr.mxu0 %v4125
    %4383 = vmatpush1.msra.mxu0 %v4124
    %4384 = vmatprep.subr.mxu0 %v4132
    %4385 = vmatpush1.msra.mxu0 %v4131
    %4386 = vmatprep.subr.mxu0 %v4139
    %4387 = vmatpush1.msra.mxu0 %v4138
    %4388 = vmatprep.subr.mxu0 %v4146
    %4389 = vmatpush1.msra.mxu0 %v4145
    %4390 = vmatprep.subr.mxu0 %v4153
    %4391 = vmatpush1.msra.mxu0 %v4152
    %4392 = vmatprep.subr.mxu0 %v4160
    %4393 = vmatpush1.msra.mxu0 %v4159
    %4394 = vmatprep.subr.mxu0 %v4167
    %4395 = vmatpush1.msra.mxu0 %v4166
    %4396 = vmatprep.subr.mxu0 %v4174
    %4397 = vmatpush1.msra.mxu0 %v4173
    %4398 = vmatprep.subr.mxu0 %v4181
    %4399 = vmatpush1.msra.mxu0 %v4180
    %4400 = vmatprep.subr.mxu0 %v4188
    %4401 = vmatpush1.msra.mxu0 %v4187
    %4402 = vmatprep.subr.mxu0 %v4195
    %4403 = vmatpush1.msra.mxu0 %v4194
    %4404 = vmatprep.subr.mxu0 %v4202
    %4405 = vmatpush1.msra.mxu0 %v4201
    %4406 = vmatprep.subr.mxu0 %v4209
    %4407 = vmatpush1.msra.mxu0 %v4208
    %4408 = vmatprep.subr.mxu0 %v4216
    %4409 = vmatpush1.msra.mxu0 %v4215
    %4410 = vmatprep.subr.mxu0 %v4223
    %4411 = vmatpush1.msra.mxu0 %v4222
    %4412 = vmatprep.subr.mxu0 %v4230
    %4413 = vmatpush1.msra.mxu0 %v4229
    %4414 = vmatprep.subr.mxu0 %v4237
    %4415 = vmatpush1.msra.mxu0 %v4236
    %4416 = vmatprep.subr.mxu0 %v4244
    %4417 = vmatpush1.msra.mxu0 %v4243
    %4418 = vmatprep.subr.mxu0 %v4251
    %4419 = vmatpush1.msra.mxu0 %v4250
    %4420 = vmatprep.subr.mxu0 %v4258
    %4421 = vmatpush1.msra.mxu0 %v4257
    %4422 = vmatprep.subr.mxu0 %v4265
    %4423 = vmatpush1.msra.mxu0 %v4264
    %4424 = vmatprep.subr.mxu0 %v4272
    %4425 = vmatpush1.msra.mxu0 %v4271
    %4426 = vmatprep.subr.mxu0 %v4279
    %4427 = vmatpush1.msra.mxu0 %v4278
    %4428 = vmatprep.subr.mxu0 %v4286
    %4429 = vmatpush1.msra.mxu0 %v4285
    %4430 = vmatprep.subr.mxu0 %v4293
    %4431 = vmatpush1.msra.mxu0 %v4292
    %4432 = vmatprep.mubr.f32.mxu0 %v4071
    %4433 = vmatmul.mubr.f32.gmra.mrb[0].mxu0 %v4070
    %v4434 = vpop.f32.mrb[0].mxu0
    %v4435 = vadd.f32 0.0, %v4434
    %v4436 = vpop.f32.mrb[0].mxu0
    %v4437 = vadd.f32 0.0, %v4436
    %4438 = vdwg.mxu0
    %4439 = vmatprep.subr.mxu0 %v4078
    %4440 = vmatpush1.msra.mxu0 %v4077
    %4441 = vmatprep.subr.mxu0 %v4085
    %4442 = vmatpush1.msra.mxu0 %v4084
    %4443 = vmatprep.subr.mxu0 %v4092
    %4444 = vmatpush1.msra.mxu0 %v4091
    %4445 = vmatprep.subr.mxu0 %v4099
    %4446 = vmatpush1.msra.mxu0 %v4098
    %4447 = vmatprep.subr.mxu0 %v4106
    %4448 = vmatpush1.msra.mxu0 %v4105
    %4449 = vmatprep.subr.mxu0 %v4113
    %4450 = vmatpush1.msra.mxu0 %v4112
    %4451 = vmatprep.subr.mxu0 %v4120
    %4452 = vmatpush1.msra.mxu0 %v4119
    %4453 = vmatprep.subr.mxu0 %v4127
    %4454 = vmatpush1.msra.mxu0 %v4126
    %4455 = vmatprep.subr.mxu0 %v4134
    %4456 = vmatpush1.msra.mxu0 %v4133
    %4457 = vmatprep.subr.mxu0 %v4141
    %4458 = vmatpush1.msra.mxu0 %v4140
    %4459 = vmatprep.subr.mxu0 %v4148
    %4460 = vmatpush1.msra.mxu0 %v4147
    %4461 = vmatprep.subr.mxu0 %v4155
    %4462 = vmatpush1.msra.mxu0 %v4154
    %4463 = vmatprep.subr.mxu0 %v4162
    %4464 = vmatpush1.msra.mxu0 %v4161
    %4465 = vmatprep.subr.mxu0 %v4169
    %4466 = vmatpush1.msra.mxu0 %v4168
    %4467 = vmatprep.subr.mxu0 %v4176
    %4468 = vmatpush1.msra.mxu0 %v4175
    %4469 = vmatprep.subr.mxu0 %v4183
    %4470 = vmatpush1.msra.mxu0 %v4182
    %4471 = vmatprep.subr.mxu0 %v4190
    %4472 = vmatpush1.msra.mxu0 %v4189
    %4473 = vmatprep.subr.mxu0 %v4197
    %4474 = vmatpush1.msra.mxu0 %v4196
    %4475 = vmatprep.subr.mxu0 %v4204
    %4476 = vmatpush1.msra.mxu0 %v4203
    %4477 = vmatprep.subr.mxu0 %v4211
    %4478 = vmatpush1.msra.mxu0 %v4210
    %4479 = vmatprep.subr.mxu0 %v4218
    %4480 = vmatpush1.msra.mxu0 %v4217
    %4481 = vmatprep.subr.mxu0 %v4225
    %4482 = vmatpush1.msra.mxu0 %v4224
    %4483 = vmatprep.subr.mxu0 %v4232
    %4484 = vmatpush1.msra.mxu0 %v4231
    %4485 = vmatprep.subr.mxu0 %v4239
    %4486 = vmatpush1.msra.mxu0 %v4238
    %4487 = vmatprep.subr.mxu0 %v4246
    %4488 = vmatpush1.msra.mxu0 %v4245
    %4489 = vmatprep.subr.mxu0 %v4253
    %4490 = vmatpush1.msra.mxu0 %v4252
    %4491 = vmatprep.subr.mxu0 %v4260
    %4492 = vmatpush1.msra.mxu0 %v4259
    %4493 = vmatprep.subr.mxu0 %v4267
    %4494 = vmatpush1.msra.mxu0 %v4266
    %4495 = vmatprep.subr.mxu0 %v4274
    %4496 = vmatpush1.msra.mxu0 %v4273
    %4497 = vmatprep.subr.mxu0 %v4281
    %4498 = vmatpush1.msra.mxu0 %v4280
    %4499 = vmatprep.subr.mxu0 %v4288
    %4500 = vmatpush1.msra.mxu0 %v4287
    %4501 = vmatprep.subr.mxu0 %v4295
    %4502 = vmatpush1.msra.mxu0 %v4294
    %4503 = vmatprep.mubr.f32.mxu0 %v4071
    %4504 = vmatmul.mubr.f32.gmra.mrb[0].mxu0 %v4070
    %v4505 = vpop.f32.mrb[0].mxu0
    %v4506 = vadd.f32 0.0, %v4505
    %v4507 = vpop.f32.mrb[0].mxu0
    %v4508 = vadd.f32 0.0, %v4507
    %4509 = vdwg.mxu0
    %4510 = vmatprep.subr.mxu0 0.0
    %4511 = vmatpush1.msra.mxu0 %v4079
    %4512 = vmatprep.subr.mxu0 0.0
    %4513 = vmatpush1.msra.mxu0 %v4086
    %4514 = vmatprep.subr.mxu0 0.0
    %4515 = vmatpush1.msra.mxu0 %v4093
    %4516 = vmatprep.subr.mxu0 0.0
    %4517 = vmatpush1.msra.mxu0 %v4100
    %4518 = vmatprep.subr.mxu0 0.0
    %4519 = vmatpush1.msra.mxu0 %v4107
    %4520 = vmatprep.subr.mxu0 0.0
    %4521 = vmatpush1.msra.mxu0 %v4114
    %4522 = vmatprep.subr.mxu0 0.0
    %4523 = vmatpush1.msra.mxu0 %v4121
    %4524 = vmatprep.subr.mxu0 0.0
    %4525 = vmatpush1.msra.mxu0 %v4128
    %4526 = vmatprep.subr.mxu0 0.0
    %4527 = vmatpush1.msra.mxu0 %v4135
    %4528 = vmatprep.subr.mxu0 0.0
    %4529 = vmatpush1.msra.mxu0 %v4142
    %4530 = vmatprep.subr.mxu0 0.0
    %4531 = vmatpush1.msra.mxu0 %v4149
    %4532 = vmatprep.subr.mxu0 0.0
    %4533 = vmatpush1.msra.mxu0 %v4156
    %4534 = vmatprep.subr.mxu0 0.0
    %4535 = vmatpush1.msra.mxu0 %v4163
    %4536 = vmatprep.subr.mxu0 0.0
    %4537 = vmatpush1.msra.mxu0 %v4170
    %4538 = vmatprep.subr.mxu0 0.0
    %4539 = vmatpush1.msra.mxu0 %v4177
    %4540 = vmatprep.subr.mxu0 0.0
    %4541 = vmatpush1.msra.mxu0 %v4184
    %4542 = vmatprep.subr.mxu0 0.0
    %4543 = vmatpush1.msra.mxu0 %v4191
    %4544 = vmatprep.subr.mxu0 0.0
    %4545 = vmatpush1.msra.mxu0 %v4198
    %4546 = vmatprep.subr.mxu0 0.0
    %4547 = vmatpush1.msra.mxu0 %v4205
    %4548 = vmatprep.subr.mxu0 0.0
    %4549 = vmatpush1.msra.mxu0 %v4212
    %4550 = vmatprep.subr.mxu0 0.0
    %4551 = vmatpush1.msra.mxu0 %v4219
    %4552 = vmatprep.subr.mxu0 0.0
    %4553 = vmatpush1.msra.mxu0 %v4226
    %4554 = vmatprep.subr.mxu0 0.0
    %4555 = vmatpush1.msra.mxu0 %v4233
    %4556 = vmatprep.subr.mxu0 0.0
    %4557 = vmatpush1.msra.mxu0 %v4240
    %4558 = vmatprep.subr.mxu0 0.0
    %4559 = vmatpush1.msra.mxu0 %v4247
    %4560 = vmatprep.subr.mxu0 0.0
    %4561 = vmatpush1.msra.mxu0 %v4254
    %4562 = vmatprep.subr.mxu0 0.0
    %4563 = vmatpush1.msra.mxu0 %v4261
    %4564 = vmatprep.subr.mxu0 0.0
    %4565 = vmatpush1.msra.mxu0 %v4268
    %4566 = vmatprep.subr.mxu0 0.0
    %4567 = vmatpush1.msra.mxu0 %v4275
    %4568 = vmatprep.subr.mxu0 0.0
    %4569 = vmatpush1.msra.mxu0 %v4282
    %4570 = vmatprep.subr.mxu0 0.0
    %4571 = vmatpush1.msra.mxu0 %v4289
    %4572 = vmatprep.subr.mxu0 0.0
    %4573 = vmatpush1.msra.mxu0 %v4296
    %4574 = vmatprep.mubr.f32.mxu0 %v4071
    %4575 = vmatmul.mubr.f32.gmra.mrb[0].mxu0 %v4070
    %v4576 = vpop.f32.mrb[0].mxu0
    %v4577 = vadd.f32 0.0, %v4576
    %v4578 = vpop.f32.mrb[0].mxu0
    %4579 = vdwg.mxu0
    %v4581 = vlaneseq
    %v4582 = vshrl.u32 %v4581, 7
    %v4583 = vsub.s32 0, %v4582
    %v4584 = vrot.slane %v4072, %v4583
    %v4585 = vlaneseq
    %v4586 = vshrl.u32 %v4585, 7
    %v4587 = vsub.s32 1, %v4586
    %v4588 = vrot.slane %v4072, %v4587
    %v4589 = vlaneseq
    %v4590 = vshrl.u32 %v4589, 7
    %v4591 = vsub.s32 2, %v4590
    %v4592 = vrot.slane %v4072, %v4591
    %v4593 = vlaneseq
    %v4594 = vshrl.u32 %v4593, 7
    %v4595 = vsub.s32 3, %v4594
    %v4596 = vrot.slane %v4072, %v4595
    %v4597 = vlaneseq
    %v4598 = vshrl.u32 %v4597, 7
    %v4599 = vsub.s32 4, %v4598
    %v4600 = vrot.slane %v4072, %v4599
    %v4601 = vlaneseq
    %v4602 = vshrl.u32 %v4601, 7
    %v4603 = vsub.s32 5, %v4602
    %v4604 = vrot.slane %v4072, %v4603
    %v4605 = vlaneseq
    %v4606 = vshrl.u32 %v4605, 7
    %v4607 = vsub.s32 6, %v4606
    %v4608 = vrot.slane %v4072, %v4607
    %v4616 = vadd.f32 %v4584, %v4364
    %v4617 = vadd.f32 %v4588, %v4366
    %v4618 = vadd.f32 %v4592, %v4435
    %v4619 = vadd.f32 %v4596, %v4437
    %v4620 = vadd.f32 %v4600, %v4506
    %v4621 = vadd.f32 %v4604, %v4508
    %v4622 = vadd.f32 %v4608, %v4577
    %v4623 = vld [vmem:[%s1] sm:$0xff]
    %v4624 = vld [vmem:[#allocation20] sm:$0xff]
    %v4625 = vld [vmem:[#allocation20 + $0x8] sm:$0xff]
    %v4626 = vld [vmem:[#allocation20 + $0x10] sm:$0xff]
    %v4627 = vld [vmem:[#allocation20 + $0x18] sm:$0xff]
    %v4628 = vld [vmem:[#allocation20 + $0x20] sm:$0xff]
    %v4629 = vld [vmem:[#allocation20 + $0x28] sm:$0xff]
    %v4630 = vld [vmem:[#allocation20 + $0x30] sm:$0xff]
    %v4631 = vld [vmem:[#allocation20 + $0x38] sm:$0x3]
    %v4632 = vld [vmem:[#allocation20 + $0x40] sm:$0x3]
    %v4633 = vld [vmem:[#allocation20 + $0x48] sm:$0x3]
    %v4634 = vld [vmem:[#allocation20 + $0x50] sm:$0x3]
    %v4635 = vld [vmem:[#allocation20 + $0x58] sm:$0x3]
    %v4636 = vld [vmem:[#allocation20 + $0x60] sm:$0x3]
    %v4637 = vld [vmem:[#allocation20 + $0x68] sm:$0x3]
    %v4639 = vsel %vm2396, %v4623, 0
    %v4642 = vsel %vm2400, %v4631, 0
    %v4645 = vsel %vm2400, %v4632, 0
    %v4648 = vsel %vm2400, %v4633, 0
    %v4651 = vsel %vm2400, %v4634, 0
    %v4654 = vsel %vm2400, %v4635, 0
    %v4657 = vsel %vm2400, %v4636, 0
    %v4660 = vsel %vm2400, %v4637, 0
    %4662 = vmatprep.subr.mxu0 %v4625
    %4663 = vmatpush1.msra.mxu0 %v4624
    %4664 = vmatprep.subr.mxu0 %v4645
    %4665 = vmatpush1.msra.mxu0 %v4642
    %4666 = vmatprep.subr.mxu0 0.0
    %4667 = vmatpush1.msra.mxu0 0.0
    %4668 = vmatprep.subr.mxu0 0.0
    %4669 = vmatpush1.msra.mxu0 0.0
    %4670 = vmatprep.subr.mxu0 0.0
    %4671 = vmatpush1.msra.mxu0 0.0
    %4672 = vmatprep.subr.mxu0 0.0
    %4673 = vmatpush1.msra.mxu0 0.0
    %4674 = vmatprep.subr.mxu0 0.0
    %4675 = vmatpush1.msra.mxu0 0.0
    %4676 = vmatprep.subr.mxu0 0.0
    %4677 = vmatpush1.msra.mxu0 0.0
    %4678 = vmatprep.subr.mxu0 0.0
    %4679 = vmatpush1.msra.mxu0 0.0
    %4680 = vmatprep.subr.mxu0 0.0
    %4681 = vmatpush1.msra.mxu0 0.0
    %4682 = vmatprep.subr.mxu0 0.0
    %4683 = vmatpush1.msra.mxu0 0.0
    %4684 = vmatprep.subr.mxu0 0.0
    %4685 = vmatpush1.msra.mxu0 0.0
    %4686 = vmatprep.subr.mxu0 0.0
    %4687 = vmatpush1.msra.mxu0 0.0
    %4688 = vmatprep.subr.mxu0 0.0
    %4689 = vmatpush1.msra.mxu0 0.0
    %4690 = vmatprep.subr.mxu0 0.0
    %4691 = vmatpush1.msra.mxu0 0.0
    %4692 = vmatprep.subr.mxu0 0.0
    %4693 = vmatpush1.msra.mxu0 0.0
    %4694 = vmatprep.subr.mxu0 0.0
    %4695 = vmatpush1.msra.mxu0 0.0
    %4696 = vmatprep.subr.mxu0 0.0
    %4697 = vmatpush1.msra.mxu0 0.0
    %4698 = vmatprep.subr.mxu0 0.0
    %4699 = vmatpush1.msra.mxu0 0.0
    %4700 = vmatprep.subr.mxu0 0.0
    %4701 = vmatpush1.msra.mxu0 0.0
    %4702 = vmatprep.subr.mxu0 0.0
    %4703 = vmatpush1.msra.mxu0 0.0
    %4704 = vmatprep.subr.mxu0 0.0
    %4705 = vmatpush1.msra.mxu0 0.0
    %4706 = vmatprep.subr.mxu0 0.0
    %4707 = vmatpush1.msra.mxu0 0.0
    %4708 = vmatprep.subr.mxu0 0.0
    %4709 = vmatpush1.msra.mxu0 0.0
    %4710 = vmatprep.subr.mxu0 0.0
    %4711 = vmatpush1.msra.mxu0 0.0
    %4712 = vmatprep.subr.mxu0 0.0
    %4713 = vmatpush1.msra.mxu0 0.0
    %4714 = vmatprep.subr.mxu0 0.0
    %4715 = vmatpush1.msra.mxu0 0.0
    %4716 = vmatprep.subr.mxu0 0.0
    %4717 = vmatpush1.msra.mxu0 0.0
    %4718 = vmatprep.subr.mxu0 0.0
    %4719 = vmatpush1.msra.mxu0 0.0
    %4720 = vmatprep.subr.mxu0 0.0
    %4721 = vmatpush1.msra.mxu0 0.0
    %4722 = vmatprep.subr.mxu0 0.0
    %4723 = vmatpush1.msra.mxu0 0.0
    %4724 = vmatprep.subr.mxu0 0.0
    %4725 = vmatpush1.msra.mxu0 0.0
    %4726 = vmatprep.mubr.f32.mxu0 0.0
    %4727 = vmatmul.mubr.f32.gmra.mrb[0].mxu0 %v4639
    %v4728 = vpop.f32.mrb[0].mxu0
    %v4729 = vadd.f32 0.0, %v4728
    %v4730 = vpop.f32.mrb[0].mxu0
    %v4731 = vadd.f32 0.0, %v4730
    %4732 = vdwg.mxu0
    %4733 = vmatprep.subr.mxu0 %v4627
    %4734 = vmatpush1.msra.mxu0 %v4626
    %4735 = vmatprep.subr.mxu0 %v4651
    %4736 = vmatpush1.msra.mxu0 %v4648
    %4737 = vmatprep.subr.mxu0 0.0
    %4738 = vmatpush1.msra.mxu0 0.0
    %4739 = vmatprep.subr.mxu0 0.0
    %4740 = vmatpush1.msra.mxu0 0.0
    %4741 = vmatprep.subr.mxu0 0.0
    %4742 = vmatpush1.msra.mxu0 0.0
    %4743 = vmatprep.subr.mxu0 0.0
    %4744 = vmatpush1.msra.mxu0 0.0
    %4745 = vmatprep.subr.mxu0 0.0
    %4746 = vmatpush1.msra.mxu0 0.0
    %4747 = vmatprep.subr.mxu0 0.0
    %4748 = vmatpush1.msra.mxu0 0.0
    %4749 = vmatprep.subr.mxu0 0.0
    %4750 = vmatpush1.msra.mxu0 0.0
    %4751 = vmatprep.subr.mxu0 0.0
    %4752 = vmatpush1.msra.mxu0 0.0
    %4753 = vmatprep.subr.mxu0 0.0
    %4754 = vmatpush1.msra.mxu0 0.0
    %4755 = vmatprep.subr.mxu0 0.0
    %4756 = vmatpush1.msra.mxu0 0.0
    %4757 = vmatprep.subr.mxu0 0.0
    %4758 = vmatpush1.msra.mxu0 0.0
    %4759 = vmatprep.subr.mxu0 0.0
    %4760 = vmatpush1.msra.mxu0 0.0
    %4761 = vmatprep.subr.mxu0 0.0
    %4762 = vmatpush1.msra.mxu0 0.0
    %4763 = vmatprep.subr.mxu0 0.0
    %4764 = vmatpush1.msra.mxu0 0.0
    %4765 = vmatprep.subr.mxu0 0.0
    %4766 = vmatpush1.msra.mxu0 0.0
    %4767 = vmatprep.subr.mxu0 0.0
    %4768 = vmatpush1.msra.mxu0 0.0
    %4769 = vmatprep.subr.mxu0 0.0
    %4770 = vmatpush1.msra.mxu0 0.0
    %4771 = vmatprep.subr.mxu0 0.0
    %4772 = vmatpush1.msra.mxu0 0.0
    %4773 = vmatprep.subr.mxu0 0.0
    %4774 = vmatpush1.msra.mxu0 0.0
    %4775 = vmatprep.subr.mxu0 0.0
    %4776 = vmatpush1.msra.mxu0 0.0
    %4777 = vmatprep.subr.mxu0 0.0
    %4778 = vmatpush1.msra.mxu0 0.0
    %4779 = vmatprep.subr.mxu0 0.0
    %4780 = vmatpush1.msra.mxu0 0.0
    %4781 = vmatprep.subr.mxu0 0.0
    %4782 = vmatpush1.msra.mxu0 0.0
    %4783 = vmatprep.subr.mxu0 0.0
    %4784 = vmatpush1.msra.mxu0 0.0
    %4785 = vmatprep.subr.mxu0 0.0
    %4786 = vmatpush1.msra.mxu0 0.0
    %4787 = vmatprep.subr.mxu0 0.0
    %4788 = vmatpush1.msra.mxu0 0.0
    %4789 = vmatprep.subr.mxu0 0.0
    %4790 = vmatpush1.msra.mxu0 0.0
    %4791 = vmatprep.subr.mxu0 0.0
    %4792 = vmatpush1.msra.mxu0 0.0
    %4793 = vmatprep.subr.mxu0 0.0
    %4794 = vmatpush1.msra.mxu0 0.0
    %4795 = vmatprep.subr.mxu0 0.0
    %4796 = vmatpush1.msra.mxu0 0.0
    %4797 = vmatprep.mubr.f32.mxu0 0.0
    %4798 = vmatmul.mubr.f32.gmra.mrb[0].mxu0 %v4639
    %v4799 = vpop.f32.mrb[0].mxu0
    %v4800 = vadd.f32 0.0, %v4799
    %v4801 = vpop.f32.mrb[0].mxu0
    %v4802 = vadd.f32 0.0, %v4801
    %4803 = vdwg.mxu0
    %4804 = vmatprep.subr.mxu0 %v4629
    %4805 = vmatpush1.msra.mxu0 %v4628
    %4806 = vmatprep.subr.mxu0 %v4657
    %4807 = vmatpush1.msra.mxu0 %v4654
    %4808 = vmatprep.subr.mxu0 0.0
    %4809 = vmatpush1.msra.mxu0 0.0
    %4810 = vmatprep.subr.mxu0 0.0
    %4811 = vmatpush1.msra.mxu0 0.0
    %4812 = vmatprep.subr.mxu0 0.0
    %4813 = vmatpush1.msra.mxu0 0.0
    %4814 = vmatprep.subr.mxu0 0.0
    %4815 = vmatpush1.msra.mxu0 0.0
    %4816 = vmatprep.subr.mxu0 0.0
    %4817 = vmatpush1.msra.mxu0 0.0
    %4818 = vmatprep.subr.mxu0 0.0
    %4819 = vmatpush1.msra.mxu0 0.0
    %4820 = vmatprep.subr.mxu0 0.0
    %4821 = vmatpush1.msra.mxu0 0.0
    %4822 = vmatprep.subr.mxu0 0.0
    %4823 = vmatpush1.msra.mxu0 0.0
    %4824 = vmatprep.subr.mxu0 0.0
    %4825 = vmatpush1.msra.mxu0 0.0
    %4826 = vmatprep.subr.mxu0 0.0
    %4827 = vmatpush1.msra.mxu0 0.0
    %4828 = vmatprep.subr.mxu0 0.0
    %4829 = vmatpush1.msra.mxu0 0.0
    %4830 = vmatprep.subr.mxu0 0.0
    %4831 = vmatpush1.msra.mxu0 0.0
    %4832 = vmatprep.subr.mxu0 0.0
    %4833 = vmatpush1.msra.mxu0 0.0
    %4834 = vmatprep.subr.mxu0 0.0
    %4835 = vmatpush1.msra.mxu0 0.0
    %4836 = vmatprep.subr.mxu0 0.0
    %4837 = vmatpush1.msra.mxu0 0.0
    %4838 = vmatprep.subr.mxu0 0.0
    %4839 = vmatpush1.msra.mxu0 0.0
    %4840 = vmatprep.subr.mxu0 0.0
    %4841 = vmatpush1.msra.mxu0 0.0
    %4842 = vmatprep.subr.mxu0 0.0
    %4843 = vmatpush1.msra.mxu0 0.0
    %4844 = vmatprep.subr.mxu0 0.0
    %4845 = vmatpush1.msra.mxu0 0.0
    %4846 = vmatprep.subr.mxu0 0.0
    %4847 = vmatpush1.msra.mxu0 0.0
    %4848 = vmatprep.subr.mxu0 0.0
    %4849 = vmatpush1.msra.mxu0 0.0
    %4850 = vmatprep.subr.mxu0 0.0
    %4851 = vmatpush1.msra.mxu0 0.0
    %4852 = vmatprep.subr.mxu0 0.0
    %4853 = vmatpush1.msra.mxu0 0.0
    %4854 = vmatprep.subr.mxu0 0.0
    %4855 = vmatpush1.msra.mxu0 0.0
    %4856 = vmatprep.subr.mxu0 0.0
    %4857 = vmatpush1.msra.mxu0 0.0
    %4858 = vmatprep.subr.mxu0 0.0
    %4859 = vmatpush1.msra.mxu0 0.0
    %4860 = vmatprep.subr.mxu0 0.0
    %4861 = vmatpush1.msra.mxu0 0.0
    %4862 = vmatprep.subr.mxu0 0.0
    %4863 = vmatpush1.msra.mxu0 0.0
    %4864 = vmatprep.subr.mxu0 0.0
    %4865 = vmatpush1.msra.mxu0 0.0
    %4866 = vmatprep.subr.mxu0 0.0
    %4867 = vmatpush1.msra.mxu0 0.0
    %4868 = vmatprep.mubr.f32.mxu0 0.0
    %4869 = vmatmul.mubr.f32.gmra.mrb[0].mxu0 %v4639
    %v4870 = vpop.f32.mrb[0].mxu0
    %v4871 = vadd.f32 0.0, %v4870
    %v4872 = vpop.f32.mrb[0].mxu0
    %v4873 = vadd.f32 0.0, %v4872
    %4874 = vdwg.mxu0
    %4875 = vmatprep.subr.mxu0 0.0
    %4876 = vmatpush1.msra.mxu0 %v4630
    %4877 = vmatprep.subr.mxu0 0.0
    %4878 = vmatpush1.msra.mxu0 %v4660
    %4879 = vmatprep.subr.mxu0 0.0
    %4880 = vmatpush1.msra.mxu0 0.0
    %4881 = vmatprep.subr.mxu0 0.0
    %4882 = vmatpush1.msra.mxu0 0.0
    %4883 = vmatprep.subr.mxu0 0.0
    %4884 = vmatpush1.msra.mxu0 0.0
    %4885 = vmatprep.subr.mxu0 0.0
    %4886 = vmatpush1.msra.mxu0 0.0
    %4887 = vmatprep.subr.mxu0 0.0
    %4888 = vmatpush1.msra.mxu0 0.0
    %4889 = vmatprep.subr.mxu0 0.0
    %4890 = vmatpush1.msra.mxu0 0.0
    %4891 = vmatprep.subr.mxu0 0.0
    %4892 = vmatpush1.msra.mxu0 0.0
    %4893 = vmatprep.subr.mxu0 0.0
    %4894 = vmatpush1.msra.mxu0 0.0
    %4895 = vmatprep.subr.mxu0 0.0
    %4896 = vmatpush1.msra.mxu0 0.0
    %4897 = vmatprep.subr.mxu0 0.0
    %4898 = vmatpush1.msra.mxu0 0.0
    %4899 = vmatprep.subr.mxu0 0.0
    %4900 = vmatpush1.msra.mxu0 0.0
    %4901 = vmatprep.subr.mxu0 0.0
    %4902 = vmatpush1.msra.mxu0 0.0
    %4903 = vmatprep.subr.mxu0 0.0
    %4904 = vmatpush1.msra.mxu0 0.0
    %4905 = vmatprep.subr.mxu0 0.0
    %4906 = vmatpush1.msra.mxu0 0.0
    %4907 = vmatprep.subr.mxu0 0.0
    %4908 = vmatpush1.msra.mxu0 0.0
    %4909 = vmatprep.subr.mxu0 0.0
    %4910 = vmatpush1.msra.mxu0 0.0
    %4911 = vmatprep.subr.mxu0 0.0
    %4912 = vmatpush1.msra.mxu0 0.0
    %4913 = vmatprep.subr.mxu0 0.0
    %4914 = vmatpush1.msra.mxu0 0.0
    %4915 = vmatprep.subr.mxu0 0.0
    %4916 = vmatpush1.msra.mxu0 0.0
    %4917 = vmatprep.subr.mxu0 0.0
    %4918 = vmatpush1.msra.mxu0 0.0
    %4919 = vmatprep.subr.mxu0 0.0
    %4920 = vmatpush1.msra.mxu0 0.0
    %4921 = vmatprep.subr.mxu0 0.0
    %4922 = vmatpush1.msra.mxu0 0.0
    %4923 = vmatprep.subr.mxu0 0.0
    %4924 = vmatpush1.msra.mxu0 0.0
    %4925 = vmatprep.subr.mxu0 0.0
    %4926 = vmatpush1.msra.mxu0 0.0
    %4927 = vmatprep.subr.mxu0 0.0
    %4928 = vmatpush1.msra.mxu0 0.0
    %4929 = vmatprep.subr.mxu0 0.0
    %4930 = vmatpush1.msra.mxu0 0.0
    %4931 = vmatprep.subr.mxu0 0.0
    %4932 = vmatpush1.msra.mxu0 0.0
    %4933 = vmatprep.subr.mxu0 0.0
    %4934 = vmatpush1.msra.mxu0 0.0
    %4935 = vmatprep.subr.mxu0 0.0
    %4936 = vmatpush1.msra.mxu0 0.0
    %4937 = vmatprep.subr.mxu0 0.0
    %4938 = vmatpush1.msra.mxu0 0.0
    %4939 = vmatprep.mubr.f32.mxu0 0.0
    %4940 = vmatmul.mubr.f32.gmra.mrb[0].mxu0 %v4639
    %v4941 = vpop.f32.mrb[0].mxu0
    %v4942 = vadd.f32 0.0, %v4941
    %v4943 = vpop.f32.mrb[0].mxu0
    %4944 = vdwg.mxu0
    %v4945 = vadd.f32 %v4616, %v4729
    %v4946 = vadd.f32 %v4617, %v4731
    %v4947 = vadd.f32 %v4618, %v4800
    %v4948 = vadd.f32 %v4619, %v4802
    %v4949 = vadd.f32 %v4620, %v4871
    %v4950 = vadd.f32 %v4621, %v4873
    %v4951 = vadd.f32 %v4622, %v4942
    %4952 = vst [vmem:[#allocation2] sm:$0xff] %v4945
    %4953 = vst [vmem:[#allocation2 + $0x8] sm:$0xff] %v4946
    %4954 = vst [vmem:[#allocation2 + $0x10] sm:$0xff] %v4947
    %4955 = vst [vmem:[#allocation2 + $0x18] sm:$0xff] %v4948
    %4956 = vst [vmem:[#allocation2 + $0x20] sm:$0xff] %v4949
    %4957 = vst [vmem:[#allocation2 + $0x28] sm:$0xff] %v4950
    %4958 = vst [vmem:[#allocation2 + $0x30] sm:$0xff] %v4951
    %v4959 = vld [vmem:[#allocation2] sm:$0xff]
    %v4960 = vld [vmem:[#allocation2 + $0x8] sm:$0xff]
    %v4961 = vld [vmem:[#allocation2 + $0x10] sm:$0xff]
    %v4962 = vld [vmem:[#allocation2 + $0x18] sm:$0xff]
    %v4963 = vld [vmem:[#allocation2 + $0x20] sm:$0xff]
    %v4964 = vld [vmem:[#allocation2 + $0x28] sm:$0xff]
    %v4965 = vld [vmem:[#allocation2 + $0x30] sm:$0xff]
    %v4966 = vld [vmem:[#allocation23] sm:$0xff]
    %v4967 = vld [vmem:[#allocation23 + $0x8] sm:$0xff]
    %v4968 = vld [vmem:[#allocation23 + $0x10] sm:$0xff]
    %v4969 = vld [vmem:[#allocation23 + $0x18] sm:$0xff]
    %v4970 = vld [vmem:[#allocation23 + $0x20] sm:$0xff]
    %v4971 = vld [vmem:[#allocation23 + $0x28] sm:$0xff]
    %v4972 = vld [vmem:[#allocation23 + $0x30] sm:$0xff]
    %v4973 = vld [vmem:[#allocation23 + $0x38] sm:$0xff]
    %v4974 = vld [vmem:[#allocation23 + $0x40] sm:$0xff]
    %v4975 = vld [vmem:[#allocation23 + $0x48] sm:$0xff]
    %v4976 = vld [vmem:[#allocation23 + $0x50] sm:$0xff]
    %v4977 = vld [vmem:[#allocation23 + $0x58] sm:$0xff]
    %v4978 = vld [vmem:[#allocation23 + $0x60] sm:$0xff]
    %v4979 = vld [vmem:[#allocation23 + $0x68] sm:$0xff]
    %v4980 = vld [vmem:[#allocation23 + $0x70] sm:$0xff]
    %v4981 = vld [vmem:[#allocation23 + $0x78] sm:$0xff]
    %v4982 = vld [vmem:[#allocation23 + $0x80] sm:$0xff]
    %v4983 = vld [vmem:[#allocation23 + $0x88] sm:$0xff]
    %v4984 = vld [vmem:[#allocation23 + $0x90] sm:$0xff]
    %v4985 = vld [vmem:[#allocation23 + $0x98] sm:$0xff]
    %v4986 = vld [vmem:[#allocation23 + $0xa0] sm:$0xff]
    %v4987 = vld [vmem:[#allocation23 + $0xa8] sm:$0xff]
    %v4988 = vld [vmem:[#allocation23 + $0xb0] sm:$0xff]
    %v4989 = vld [vmem:[#allocation23 + $0xb8] sm:$0xff]
    %v4990 = vld [vmem:[#allocation23 + $0xc0] sm:$0xff]
    %v4991 = vld [vmem:[#allocation23 + $0xc8] sm:$0xff]
    %v4992 = vld [vmem:[#allocation23 + $0xd0] sm:$0xff]
    %v4993 = vld [vmem:[#allocation23 + $0xd8] sm:$0xff]
    %v4994 = vld [vmem:[#allocation23 + $0xe0] sm:$0xff]
    %v4995 = vld [vmem:[#allocation23 + $0xe8] sm:$0xff]
    %v4996 = vld [vmem:[#allocation23 + $0xf0] sm:$0xff]
    %v4997 = vld [vmem:[#allocation23 + $0xf8] sm:$0xff]
    %v4998 = vld [vmem:[#allocation25] sm:$0x3]
    %v5000 = vlaneseq
    %v5001 = vshrl.u32 %v5000, 7
    %v5002 = vsub.s32 0, %v5001
    %v5003 = vrot.slane %v4998, %v5002
    %v5004 = vlaneseq
    %v5005 = vshrl.u32 %v5004, 7
    %v5006 = vsub.s32 1, %v5005
    %v5007 = vrot.slane %v4998, %v5006
    %5010 = vmatprep.subr.mxu0 %v4967
    %5011 = vmatpush1.msra.mxu0 %v4966
    %5012 = vmatprep.subr.mxu0 %v4969
    %5013 = vmatpush1.msra.mxu0 %v4968
    %5014 = vmatprep.subr.mxu0 %v4971
    %5015 = vmatpush1.msra.mxu0 %v4970
    %5016 = vmatprep.subr.mxu0 %v4973
    %5017 = vmatpush1.msra.mxu0 %v4972
    %5018 = vmatprep.subr.mxu0 %v4975
    %5019 = vmatpush1.msra.mxu0 %v4974
    %5020 = vmatprep.subr.mxu0 %v4977
    %5021 = vmatpush1.msra.mxu0 %v4976
    %5022 = vmatprep.subr.mxu0 %v4979
    %5023 = vmatpush1.msra.mxu0 %v4978
    %5024 = vmatprep.subr.mxu0 %v4981
    %5025 = vmatpush1.msra.mxu0 %v4980
    %5026 = vmatprep.subr.mxu0 %v4983
    %5027 = vmatpush1.msra.mxu0 %v4982
    %5028 = vmatprep.subr.mxu0 %v4985
    %5029 = vmatpush1.msra.mxu0 %v4984
    %5030 = vmatprep.subr.mxu0 %v4987
    %5031 = vmatpush1.msra.mxu0 %v4986
    %5032 = vmatprep.subr.mxu0 %v4989
    %5033 = vmatpush1.msra.mxu0 %v4988
    %5034 = vmatprep.subr.mxu0 %v4991
    %5035 = vmatpush1.msra.mxu0 %v4990
    %5036 = vmatprep.subr.mxu0 %v4993
    %5037 = vmatpush1.msra.mxu0 %v4992
    %5038 = vmatprep.subr.mxu0 %v4995
    %5039 = vmatpush1.msra.mxu0 %v4994
    %5040 = vmatprep.subr.mxu0 %v4997
    %5041 = vmatpush1.msra.mxu0 %v4996
    %5042 = vmatprep.subr.mxu0 0.0
    %5043 = vmatpush1.msra.mxu0 0.0
    %5044 = vmatprep.subr.mxu0 0.0
    %5045 = vmatpush1.msra.mxu0 0.0
    %5046 = vmatprep.subr.mxu0 0.0
    %5047 = vmatpush1.msra.mxu0 0.0
    %5048 = vmatprep.subr.mxu0 0.0
    %5049 = vmatpush1.msra.mxu0 0.0
    %5050 = vmatprep.subr.mxu0 0.0
    %5051 = vmatpush1.msra.mxu0 0.0
    %5052 = vmatprep.subr.mxu0 0.0
    %5053 = vmatpush1.msra.mxu0 0.0
    %5054 = vmatprep.subr.mxu0 0.0
    %5055 = vmatpush1.msra.mxu0 0.0
    %5056 = vmatprep.subr.mxu0 0.0
    %5057 = vmatpush1.msra.mxu0 0.0
    %5058 = vmatprep.subr.mxu0 0.0
    %5059 = vmatpush1.msra.mxu0 0.0
    %5060 = vmatprep.subr.mxu0 0.0
    %5061 = vmatpush1.msra.mxu0 0.0
    %5062 = vmatprep.subr.mxu0 0.0
    %5063 = vmatpush1.msra.mxu0 0.0
    %5064 = vmatprep.subr.mxu0 0.0
    %5065 = vmatpush1.msra.mxu0 0.0
    %5066 = vmatprep.subr.mxu0 0.0
    %5067 = vmatpush1.msra.mxu0 0.0
    %5068 = vmatprep.subr.mxu0 0.0
    %5069 = vmatpush1.msra.mxu0 0.0
    %5070 = vmatprep.subr.mxu0 0.0
    %5071 = vmatpush1.msra.mxu0 0.0
    %5072 = vmatprep.subr.mxu0 0.0
    %5073 = vmatpush1.msra.mxu0 0.0
    %5074 = vmatprep.mubr.f32.mxu0 0.0
    %5075 = vmatmul.mubr.f32.gmra.mrb[0].mxu0 %v4959
    %v5076 = vpop.f32.mrb[0].mxu0
    %v5077 = vadd.f32 %v5003, %v5076
    %v5078 = vpop.f32.mrb[0].mxu0
    %v5079 = vadd.f32 %v5007, %v5078
    %5080 = vmatprep.mubr.f32.mxu0 0.0
    %5081 = vmatmul.mubr.f32.gmra.mrb[0].mxu0 %v4960
    %v5082 = vpop.f32.mrb[0].mxu0
    %v5083 = vadd.f32 %v5003, %v5082
    %v5084 = vpop.f32.mrb[0].mxu0
    %v5085 = vadd.f32 %v5007, %v5084
    %5086 = vmatprep.mubr.f32.mxu0 0.0
    %5087 = vmatmul.mubr.f32.gmra.mrb[0].mxu0 %v4961
    %v5088 = vpop.f32.mrb[0].mxu0
    %v5089 = vadd.f32 %v5003, %v5088
    %v5090 = vpop.f32.mrb[0].mxu0
    %v5091 = vadd.f32 %v5007, %v5090
    %5092 = vmatprep.mubr.f32.mxu0 0.0
    %5093 = vmatmul.mubr.f32.gmra.mrb[0].mxu0 %v4962
    %v5094 = vpop.f32.mrb[0].mxu0
    %v5095 = vadd.f32 %v5003, %v5094
    %v5096 = vpop.f32.mrb[0].mxu0
    %v5097 = vadd.f32 %v5007, %v5096
    %5098 = vmatprep.mubr.f32.mxu0 0.0
    %5099 = vmatmul.mubr.f32.gmra.mrb[0].mxu0 %v4963
    %v5100 = vpop.f32.mrb[0].mxu0
    %v5101 = vadd.f32 %v5003, %v5100
    %v5102 = vpop.f32.mrb[0].mxu0
    %v5103 = vadd.f32 %v5007, %v5102
    %5104 = vmatprep.mubr.f32.mxu0 0.0
    %5105 = vmatmul.mubr.f32.gmra.mrb[0].mxu0 %v4964
    %v5106 = vpop.f32.mrb[0].mxu0
    %v5107 = vadd.f32 %v5003, %v5106
    %v5108 = vpop.f32.mrb[0].mxu0
    %v5109 = vadd.f32 %v5007, %v5108
    %5110 = vmatprep.mubr.f32.mxu0 0.0
    %5111 = vmatmul.mubr.f32.gmra.mrb[0].mxu0 %v4965
    %v5112 = vpop.f32.mrb[0].mxu0
    %v5113 = vadd.f32 %v5003, %v5112
    %v5114 = vpop.f32.mrb[0].mxu0
    %v5115 = vadd.f32 %v5007, %v5114
    %5116 = vdwg.mxu0
    %v5117 = vmax.f32 %v5077, 0.0
    %v5118 = vmax.f32 %v5079, 0.0
    %v5119 = vmax.f32 %v5083, 0.0
    %v5120 = vmax.f32 %v5085, 0.0
    %v5121 = vmax.f32 %v5089, 0.0
    %v5122 = vmax.f32 %v5091, 0.0
    %v5123 = vmax.f32 %v5095, 0.0
    %v5124 = vmax.f32 %v5097, 0.0
    %v5125 = vmax.f32 %v5101, 0.0
    %v5126 = vmax.f32 %v5103, 0.0
    %v5127 = vmax.f32 %v5107, 0.0
    %v5128 = vmax.f32 %v5109, 0.0
    %v5129 = vmax.f32 %v5113, 0.0
    %v5130 = vmax.f32 %v5115, 0.0
    %v5131 = vld [vmem:[#allocation26] sm:$0xff]
    %v5132 = vld [vmem:[#allocation26 + $0x8] sm:$0xff]
    %v5133 = vld [vmem:[#allocation26 + $0x10] sm:$0xff]
    %v5134 = vld [vmem:[#allocation26 + $0x18] sm:$0xff]
    %v5135 = vld [vmem:[#allocation26 + $0x20] sm:$0xff]
    %v5136 = vld [vmem:[#allocation26 + $0x28] sm:$0xff]
    %v5137 = vld [vmem:[#allocation26 + $0x30] sm:$0xff]
    %v5138 = vld [vmem:[#allocation26 + $0x38] sm:$0xff]
    %v5139 = vld [vmem:[#allocation26 + $0x40] sm:$0xff]
    %v5140 = vld [vmem:[#allocation26 + $0x48] sm:$0xff]
    %v5141 = vld [vmem:[#allocation26 + $0x50] sm:$0xff]
    %v5142 = vld [vmem:[#allocation26 + $0x58] sm:$0xff]
    %v5143 = vld [vmem:[#allocation26 + $0x60] sm:$0xff]
    %v5144 = vld [vmem:[#allocation26 + $0x68] sm:$0xff]
    %v5145 = vld [vmem:[#allocation26 + $0x70] sm:$0xff]
    %v5146 = vld [vmem:[#allocation26 + $0x78] sm:$0xff]
    %v5147 = vld [vmem:[#allocation26 + $0x80] sm:$0xff]
    %v5148 = vld [vmem:[#allocation26 + $0x88] sm:$0xff]
    %v5149 = vld [vmem:[#allocation26 + $0x90] sm:$0xff]
    %v5150 = vld [vmem:[#allocation26 + $0x98] sm:$0xff]
    %v5151 = vld [vmem:[#allocation26 + $0xa0] sm:$0xff]
    %v5152 = vld [vmem:[#allocation26 + $0xa8] sm:$0xff]
    %v5153 = vld [vmem:[#allocation26 + $0xb0] sm:$0xff]
    %v5154 = vld [vmem:[#allocation26 + $0xb8] sm:$0xff]
    %v5155 = vld [vmem:[#allocation26 + $0xc0] sm:$0xff]
    %v5156 = vld [vmem:[#allocation26 + $0xc8] sm:$0xff]
    %v5157 = vld [vmem:[#allocation26 + $0xd0] sm:$0xff]
    %v5158 = vld [vmem:[#allocation26 + $0xd8] sm:$0xff]
    %v5159 = vld [vmem:[#allocation26 + $0xe0] sm:$0xff]
    %v5160 = vld [vmem:[#allocation26 + $0xe8] sm:$0xff]
    %v5161 = vld [vmem:[#allocation26 + $0xf0] sm:$0xff]
    %v5162 = vld [vmem:[#allocation26 + $0xf8] sm:$0xff]
    %v5163 = vld [vmem:[#allocation28] sm:$0x1]
    %v5165 = vlaneseq
    %v5166 = vshrl.u32 %v5165, 7
    %v5167 = vsub.s32 0, %v5166
    %v5168 = vrot.slane %v5163, %v5167
    %5170 = vmatprep.subr.mxu0 0.0
    %5171 = vmatpush1.msra.mxu0 %v5131
    %5172 = vmatprep.subr.mxu0 0.0
    %5173 = vmatpush1.msra.mxu0 %v5132
    %5174 = vmatprep.subr.mxu0 0.0
    %5175 = vmatpush1.msra.mxu0 %v5133
    %5176 = vmatprep.subr.mxu0 0.0
    %5177 = vmatpush1.msra.mxu0 %v5134
    %5178 = vmatprep.subr.mxu0 0.0
    %5179 = vmatpush1.msra.mxu0 %v5135
    %5180 = vmatprep.subr.mxu0 0.0
    %5181 = vmatpush1.msra.mxu0 %v5136
    %5182 = vmatprep.subr.mxu0 0.0
    %5183 = vmatpush1.msra.mxu0 %v5137
    %5184 = vmatprep.subr.mxu0 0.0
    %5185 = vmatpush1.msra.mxu0 %v5138
    %5186 = vmatprep.subr.mxu0 0.0
    %5187 = vmatpush1.msra.mxu0 %v5139
    %5188 = vmatprep.subr.mxu0 0.0
    %5189 = vmatpush1.msra.mxu0 %v5140
    %5190 = vmatprep.subr.mxu0 0.0
    %5191 = vmatpush1.msra.mxu0 %v5141
    %5192 = vmatprep.subr.mxu0 0.0
    %5193 = vmatpush1.msra.mxu0 %v5142
    %5194 = vmatprep.subr.mxu0 0.0
    %5195 = vmatpush1.msra.mxu0 %v5143
    %5196 = vmatprep.subr.mxu0 0.0
    %5197 = vmatpush1.msra.mxu0 %v5144
    %5198 = vmatprep.subr.mxu0 0.0
    %5199 = vmatpush1.msra.mxu0 %v5145
    %5200 = vmatprep.subr.mxu0 0.0
    %5201 = vmatpush1.msra.mxu0 %v5146
    %5202 = vmatprep.subr.mxu0 0.0
    %5203 = vmatpush1.msra.mxu0 %v5147
    %5204 = vmatprep.subr.mxu0 0.0
    %5205 = vmatpush1.msra.mxu0 %v5148
    %5206 = vmatprep.subr.mxu0 0.0
    %5207 = vmatpush1.msra.mxu0 %v5149
    %5208 = vmatprep.subr.mxu0 0.0
    %5209 = vmatpush1.msra.mxu0 %v5150
    %5210 = vmatprep.subr.mxu0 0.0
    %5211 = vmatpush1.msra.mxu0 %v5151
    %5212 = vmatprep.subr.mxu0 0.0
    %5213 = vmatpush1.msra.mxu0 %v5152
    %5214 = vmatprep.subr.mxu0 0.0
    %5215 = vmatpush1.msra.mxu0 %v5153
    %5216 = vmatprep.subr.mxu0 0.0
    %5217 = vmatpush1.msra.mxu0 %v5154
    %5218 = vmatprep.subr.mxu0 0.0
    %5219 = vmatpush1.msra.mxu0 %v5155
    %5220 = vmatprep.subr.mxu0 0.0
    %5221 = vmatpush1.msra.mxu0 %v5156
    %5222 = vmatprep.subr.mxu0 0.0
    %5223 = vmatpush1.msra.mxu0 %v5157
    %5224 = vmatprep.subr.mxu0 0.0
    %5225 = vmatpush1.msra.mxu0 %v5158
    %5226 = vmatprep.subr.mxu0 0.0
    %5227 = vmatpush1.msra.mxu0 %v5159
    %5228 = vmatprep.subr.mxu0 0.0
    %5229 = vmatpush1.msra.mxu0 %v5160
    %5230 = vmatprep.subr.mxu0 0.0
    %5231 = vmatpush1.msra.mxu0 %v5161
    %5232 = vmatprep.subr.mxu0 0.0
    %5233 = vmatpush1.msra.mxu0 %v5162
    %5234 = vmatprep.mubr.f32.mxu0 %v5118
    %5235 = vmatmul.mubr.f32.gmra.mrb[0].mxu0 %v5117
    %v5236 = vpop.f32.mrb[0].mxu0
    %v5237 = vadd.f32 %v5168, %v5236
    %v5238 = vpop.f32.mrb[0].mxu0
    %5239 = vmatprep.mubr.f32.mxu0 %v5120
    %5240 = vmatmul.mubr.f32.gmra.mrb[0].mxu0 %v5119
    %v5241 = vpop.f32.mrb[0].mxu0
    %v5242 = vadd.f32 %v5168, %v5241
    %v5243 = vpop.f32.mrb[0].mxu0
    %5244 = vmatprep.mubr.f32.mxu0 %v5122
    %5245 = vmatmul.mubr.f32.gmra.mrb[0].mxu0 %v5121
    %v5246 = vpop.f32.mrb[0].mxu0
    %v5247 = vadd.f32 %v5168, %v5246
    %v5248 = vpop.f32.mrb[0].mxu0
    %5249 = vmatprep.mubr.f32.mxu0 %v5124
    %5250 = vmatmul.mubr.f32.gmra.mrb[0].mxu0 %v5123
    %v5251 = vpop.f32.mrb[0].mxu0
    %v5252 = vadd.f32 %v5168, %v5251
    %v5253 = vpop.f32.mrb[0].mxu0
    %5254 = vmatprep.mubr.f32.mxu0 %v5126
    %5255 = vmatmul.mubr.f32.gmra.mrb[0].mxu0 %v5125
    %v5256 = vpop.f32.mrb[0].mxu0
    %v5257 = vadd.f32 %v5168, %v5256
    %v5258 = vpop.f32.mrb[0].mxu0
    %5259 = vmatprep.mubr.f32.mxu0 %v5128
    %5260 = vmatmul.mubr.f32.gmra.mrb[0].mxu0 %v5127
    %v5261 = vpop.f32.mrb[0].mxu0
    %v5262 = vadd.f32 %v5168, %v5261
    %v5263 = vpop.f32.mrb[0].mxu0
    %5264 = vmatprep.mubr.f32.mxu0 %v5130
    %5265 = vmatmul.mubr.f32.gmra.mrb[0].mxu0 %v5129
    %v5266 = vpop.f32.mrb[0].mxu0
    %v5267 = vadd.f32 %v5168, %v5266
    %v5268 = vpop.f32.mrb[0].mxu0
    %5269 = vdwg.mxu0
    %v5270 = vmul.f32 %v5237, 0.5
    %v5271 = vmul.f32 %v5242, 0.5
    %v5272 = vmul.f32 %v5247, 0.5
    %v5273 = vmul.f32 %v5252, 0.5
    %v5274 = vmul.f32 %v5257, 0.5
    %v5275 = vmul.f32 %v5262, 0.5
    %v5276 = vmul.f32 %v5267, 0.5
    %v5277 = vtanh.pop %v5270
    %v5278 = vtanh.pop %v5271
    %v5279 = vtanh.pop %v5272
    %v5280 = vtanh.pop %v5273
    %v5281 = vtanh.pop %v5274
    %v5282 = vtanh.pop %v5275
    %v5283 = vtanh.pop %v5276
    %v5284 = vadd.f32 %v5277, 1.0
    %v5285 = vadd.f32 %v5278, 1.0
    %v5286 = vadd.f32 %v5279, 1.0
    %v5287 = vadd.f32 %v5280, 1.0
    %v5288 = vadd.f32 %v5281, 1.0
    %v5289 = vadd.f32 %v5282, 1.0
    %v5290 = vadd.f32 %v5283, 1.0
    %v5291 = vmul.f32 %v5284, 0.5
    %v5292 = vmul.f32 %v5285, 0.5
    %v5293 = vmul.f32 %v5286, 0.5
    %v5294 = vmul.f32 %v5287, 0.5
    %v5295 = vmul.f32 %v5288, 0.5
    %v5296 = vmul.f32 %v5289, 0.5
    %v5297 = vmul.f32 %v5290, 0.5
    %5298 = vst [vmem:[%s21] sm:$0xff] %v5291
    %5299 = vst [vmem:[%s21 + $0x8] sm:$0xff] %v5292
    %5300 = vst [vmem:[%s21 + $0x10] sm:$0xff] %v5293
    %5301 = vst [vmem:[%s21 + $0x18] sm:$0xff] %v5294
    %5302 = vst [vmem:[%s21 + $0x20] sm:$0xff] %v5295
    %5303 = vst [vmem:[%s21 + $0x28] sm:$0xff] %v5296
    %5304 = vst [vmem:[%s21 + $0x30] sm:$0xff] %v5297
    // Predicated region
    $region154: #{beta_cvae_forward.1} parent=1 // pred_check
      _
    $region155: #{beta_cvae_forward.1} parent=1 // pred_check_branch
      %5306 = sbr.rel (0) target = $region157
    $region156: #{beta_cvae_forward.1} parent=1 // pred_region
      _
    $region157: #{beta_cvae_forward.1} parent=1 // pred_fallthru
      _
    // Predicated region
    $region158: #{beta_cvae_forward.1} parent=1 // pred_check
      _
    $region159: #{beta_cvae_forward.1} parent=1 // pred_check_branch
      %5308 = sbr.rel (0) target = $region161
    $region160: #{beta_cvae_forward.1} parent=1 // pred_region
      _
    $region161: #{beta_cvae_forward.1} parent=1 // pred_fallthru
      _
    // Predicated region
    $region162: #{beta_cvae_forward.1} parent=1 // pred_check
      _
    $region163: #{beta_cvae_forward.1} parent=1 // pred_check_branch
      %5310 = sbr.rel (0) target = $region165
    $region164: #{beta_cvae_forward.1} parent=1 // pred_region
      _
    $region165: #{beta_cvae_forward.1} parent=1 // pred_fallthru
      _
    // Predicated region
    $region166: #{beta_cvae_forward.1} parent=1 // pred_check
      _
    $region167: #{beta_cvae_forward.1} parent=1 // pred_check_branch
      %5312 = sbr.rel (0) target = $region169
    $region168: #{beta_cvae_forward.1} parent=1 // pred_region
      _
    $region169: #{beta_cvae_forward.1} parent=1 // pred_fallthru
      _
    // Predicated region
    $region170: #{beta_cvae_forward.1} parent=1 // pred_check
      _
    $region171: #{beta_cvae_forward.1} parent=1 // pred_check_branch
      %5314 = sbr.rel (0) target = $region173
    $region172: #{beta_cvae_forward.1} parent=1 // pred_region
      _
    $region173: #{beta_cvae_forward.1} parent=1 // pred_fallthru
      _
    // Predicated region
    $region174: #{beta_cvae_forward.1} parent=1 // pred_check
      _
    $region175: #{beta_cvae_forward.1} parent=1 // pred_check_branch
      %5316 = sbr.rel (0) target = $region177
    $region176: #{beta_cvae_forward.1} parent=1 // pred_region
      _
    $region177: #{beta_cvae_forward.1} parent=1 // pred_fallthru
      _
    %5317 = vsyncpa [#allocation4], 1
    %5318 = vsyncpa [#allocation6], 1
    %5319 = vsyncpa [#allocation9], 1
    %5320 = vsyncpa [#allocation12], 1
    %5321 = vsyncpa [#allocation15], 1
    %5322 = vsyncpa [#allocation18], 1
    %5323 = vsyncpa [#allocation21], 1
    %5324 = vsyncpa [#allocation24], 1
    %5325 = vsyncpa [#allocation27], 1

</llo_original>
